<compile_context>
chip_gen: v5e
topology: v5e:2x2
jax: 0.10.0
libtpu: 0.0.40
codegen_flags: <defaults>
</compile_context>

<pallas_src>
import jax
import jax.numpy as jnp
import numpy as np
from jax import lax
from jax.experimental import pallas as pl
from jax.experimental.pallas import tpu as pltpu

d_model = 512
d_ff = 2048
LN_EPS = 1e-5


def _cdiv(a, b):
    return -(-a // b)


def _round_up(a, b):
    return _cdiv(a, b) * b


def ffn_ln_kernel(x_ref, w1_ref, b1_ref, w2_ref, b2_ref, g_ref, beta_ref, o_ref):
    # x_ref: (bm, d_model) token tile; weights/biases fully VMEM-resident.
    x_in = x_ref[...]
    mm_dtype = w1_ref.dtype

    # MXU operand: cast only when the tile is not already the matmul dtype.
    x_mm = x_in if x_in.dtype == mm_dtype else x_in.astype(mm_dtype)
    # Residual / LayerNorm path stays f32.
    x_f32 = x_in if x_in.dtype == jnp.float32 else x_in.astype(jnp.float32)

    # conv1 (k=1): bf16 operands on the MXU, f32 accumulation; bias+ReLU in f32.
    h = jnp.dot(x_mm, w1_ref[...], preferred_element_type=jnp.float32)
    h = jnp.maximum(h + b1_ref[...], 0.0)

    # conv2 (k=1) + bias + residual (residual full f32).
    y = jnp.dot(h.astype(mm_dtype), w2_ref[...], preferred_element_type=jnp.float32)
    y = y + b2_ref[...] + x_f32

    # LayerNorm over last dim (biased variance, eps=1e-5), affine, all f32.
    mean = jnp.mean(y, axis=-1, keepdims=True)
    cent = y - mean
    var = jnp.mean(cent * cent, axis=-1, keepdims=True)
    yn = cent * lax.rsqrt(var + LN_EPS)
    o_ref[...] = (yn * g_ref[...] + beta_ref[...]).astype(o_ref.dtype)


def _const_spec(shape):
    """BlockSpec for an operand that is identical for every grid step."""
    idx = lambda *_: (0,) * len(shape)
    try:
        # Constant-index blocks are fetched exactly once; one buffer is enough
        # (reclaims ~4 MiB the default double-buffering would waste on W1+W2).
        return pl.BlockSpec(shape, idx, pipeline_mode=pl.Buffered(1))
    except (TypeError, AttributeError):
        # Older JAX without pipeline_mode/Buffered: default (double) buffering.
        return pl.BlockSpec(shape, idx)


def poswise_ffn(x, w1, b1, w2, b2, gamma, beta, *,
                block_m=512, matmul_dtype=jnp.bfloat16,
                vmem_limit_bytes=56 << 20):
    """x: (B, S, d_model). Returns (B, S, d_model) in x.dtype.

    block_m: target token-tile rows (512 suits v5e/v6e/v7x; live VMEM ~20 MiB).
    Ragged N is split near-evenly across tiles instead of padding a full tile.
    """
    B, S, D = x.shape
    assert D == d_model
    N = B * S

    # ---- tile sizing -------------------------------------------------------
    num_tiles = max(1, _cdiv(N, block_m))
    # v7x megacore: an even grid length (>=2) keeps both TensorCores busy; on
    # single-TC v5e/v6e the extra step only costs ~0.35 us.
    if num_tiles % 2 == 1 and N >= 16:
        num_tiles += 1
    bm = max(8, _round_up(_cdiv(N, num_tiles), 8))  # near-even split, x8 rows
    n_pad = num_tiles * bm

    x2 = x.reshape(N, D)
    if n_pad != N:
        x2 = jnp.pad(x2, ((0, n_pad - N), (0, 0)))

    # Pre-cast weights to the matmul dtype (halves weight HBM traffic + VMEM).
    w1c = w1.astype(matmul_dtype)
    w2c = w2.astype(matmul_dtype)
    b1_2 = b1.reshape(1, d_ff).astype(jnp.float32)
    b2_2 = b2.reshape(1, d_model).astype(jnp.float32)
    g_2 = gamma.reshape(1, d_model).astype(jnp.float32)
    beta_2 = beta.reshape(1, d_model).astype(jnp.float32)

    out = pl.pallas_call(
        ffn_ln_kernel,
        out_shape=jax.ShapeDtypeStruct((n_pad, D), x.dtype),
        grid_spec=pltpu.PrefetchScalarGridSpec(
            num_scalar_prefetch=0,
            grid=(num_tiles,),
            in_specs=[
                pl.BlockSpec((bm, d_model), lambda i: (i, 0)),   # x tile
                _const_spec((d_model, d_ff)),                    # W1 (bf16)
                _const_spec((1, d_ff)),                          # b1
                _const_spec((d_ff, d_model)),                    # W2 (bf16)
                _const_spec((1, d_model)),                       # b2
                _const_spec((1, d_model)),                       # ln gamma
                _const_spec((1, d_model)),                       # ln beta
            ],
            out_specs=pl.BlockSpec((bm, d_model), lambda i: (i, 0)),
        ),
        compiler_params=pltpu.CompilerParams(
            dimension_semantics=("parallel",),
            vmem_limit_bytes=vmem_limit_bytes,
        ),
    )(x2, w1c, b1_2, w2c, b2_2, g_2, beta_2)

    return out[:N].reshape(B, S, D)


def reference_f32(x, w1, b1, w2, b2, gamma, beta):
    """Pure-f32 reference matching the PyTorch module semantics."""
    h = jnp.maximum(jnp.einsum("bsd,df->bsf", x, w1) + b1, 0.0)
    y = jnp.einsum("bsf,fd->bsd", h, w2) + b2 + x
    mean = jnp.mean(y, axis=-1, keepdims=True)
    var = jnp.mean((y - mean) ** 2, axis=-1, keepdims=True)
    return (y - mean) * lax.rsqrt(var + LN_EPS) * gamma + beta


def reference_matched(x, w1, b1, w2, b2, gamma, beta, matmul_dtype=jnp.bfloat16):
    """Reference using the same bf16-operand / f32-accumulate matmul recipe."""
    w1c = w1.astype(matmul_dtype)
    w2c = w2.astype(matmul_dtype)
    h = jnp.einsum("bsd,df->bsf", x.astype(matmul_dtype), w1c,
                   preferred_element_type=jnp.float32) + b1
    h = jnp.maximum(h, 0.0)
    y = jnp.einsum("bsf,fd->bsd", h.astype(matmul_dtype), w2c,
                   preferred_element_type=jnp.float32) + b2 + x
    mean = jnp.mean(y, axis=-1, keepdims=True)
    var = jnp.mean((y - mean) ** 2, axis=-1, keepdims=True)
    return (y - mean) * lax.rsqrt(var + LN_EPS) * gamma + beta


if __name__ == "__main__":
    key = jax.random.PRNGKey(0)
    k_x, k_w1, k_b1, k_w2, k_b2 = jax.random.split(key, 5)

    B, S = 2, 8
    x = jax.random.normal(k_x, (B, S, d_model), dtype=jnp.float32)

    # Deterministic synthetic parameters (shapes match nn.Conv1d(k=1) / LayerNorm).
    w1 = jax.random.normal(k_w1, (d_model, d_ff), dtype=jnp.float32) * (1.0 / np.sqrt(d_model))
    b1 = jax.random.normal(k_b1, (d_ff,), dtype=jnp.float32) * 0.02
    w2 = jax.random.normal(k_w2, (d_ff, d_model), dtype=jnp.float32) * (1.0 / np.sqrt(d_ff))
    b2 = jax.random.normal(k_b2, (d_model,), dtype=jnp.float32) * 0.02
    gamma = jnp.ones((d_model,), dtype=jnp.float32)
    beta = jnp.zeros((d_model,), dtype=jnp.float32)

    out = poswise_ffn(x, w1, b1, w2, b2, gamma, beta)
    out = jax.block_until_ready(out)

    # Tight check vs. a reference using the same bf16-matmul / f32-accum recipe.
    ref_m = jax.block_until_ready(reference_matched(x, w1, b1, w2, b2, gamma, beta))
    np.testing.assert_allclose(np.asarray(out), np.asarray(ref_m), atol=1e-3, rtol=1e-3)

    # Looser check vs. the full-f32 module semantics (bf16 matmul operands only
    # perturb the post-LayerNorm result at the ~1e-2 level).
    ref_f = jax.block_until_ready(reference_f32(x, w1, b1, w2, b2, gamma, beta))
    np.testing.assert_allclose(np.asarray(out), np.asarray(ref_f), atol=5e-2, rtol=5e-2)

    print("KERNEL_OK")
</pallas_src>

<mosaic_0001>
module attributes {stable_mosaic.version = 11 : i64} {
  func.func @ffn_ln_kernel(%arg0: i32, %arg1: memref<8x512xf32, #tpu.memory_space<vmem>>, %arg2: memref<512x2048xbf16, #tpu.memory_space<vmem>>, %arg3: memref<1x2048xf32, #tpu.memory_space<vmem>>, %arg4: memref<2048x512xbf16, #tpu.memory_space<vmem>>, %arg5: memref<1x512xf32, #tpu.memory_space<vmem>>, %arg6: memref<1x512xf32, #tpu.memory_space<vmem>>, %arg7: memref<1x512xf32, #tpu.memory_space<vmem>>, %arg8: memref<8x512xf32, #tpu.memory_space<vmem>>) attributes {dimension_semantics = [#tpu.dimension_semantics<parallel>], iteration_bounds = array<i64: 2>, scalar_prefetch = 0 : i64, scratch_operands = 0 : i64, tpu.core_type = #tpu.core_type<tc>, window_params = [{transform_indices = @transform_0, window_bounds = array<i64: 8, 512>}, {pipeline_mode = #tpu.pipeline_mode<synchronous>, transform_indices = @transform_1, window_bounds = array<i64: 512, 2048>}, {pipeline_mode = #tpu.pipeline_mode<synchronous>, transform_indices = @transform_2, window_bounds = array<i64: 1, 2048>}, {pipeline_mode = #tpu.pipeline_mode<synchronous>, transform_indices = @transform_3, window_bounds = array<i64: 2048, 512>}, {pipeline_mode = #tpu.pipeline_mode<synchronous>, transform_indices = @transform_4, window_bounds = array<i64: 1, 512>}, {pipeline_mode = #tpu.pipeline_mode<synchronous>, transform_indices = @transform_5, window_bounds = array<i64: 1, 512>}, {pipeline_mode = #tpu.pipeline_mode<synchronous>, transform_indices = @transform_6, window_bounds = array<i64: 1, 512>}, {transform_indices = @transform_7, window_bounds = array<i64: 8, 512>}]} {
    %c0 = arith.constant 0 : index
    %c0_0 = arith.constant 0 : index
    %0 = vector.load %arg1[%c0, %c0_0] : memref<8x512xf32, #tpu.memory_space<vmem>>, vector<8x512xf32>
    %1 = arith.truncf %0 : vector<8x512xf32> to vector<8x512xbf16>
    %c0_1 = arith.constant 0 : index
    %c0_2 = arith.constant 0 : index
    %2 = vector.load %arg2[%c0_1, %c0_2] : memref<512x2048xbf16, #tpu.memory_space<vmem>>, vector<512x2048xbf16>
    %cst = arith.constant dense<0.000000e+00> : vector<8x2048xf32>
    %3 = tpu.matmul %1, %2, %cst {dimension_numbers = #tpu.dot_dimension_numbers<[1], [0], [0], [1], [0, 0, 1, 1], [], []>} : vector<8x512xbf16>, vector<512x2048xbf16>, vector<8x2048xf32> -> vector<8x2048xf32>
    %c0_3 = arith.constant 0 : index
    %c0_4 = arith.constant 0 : index
    %4 = vector.load %arg3[%c0_3, %c0_4] : memref<1x2048xf32, #tpu.memory_space<vmem>>, vector<1x2048xf32>
    %5 = vector.broadcast %4 : vector<1x2048xf32> to vector<8x2048xf32>
    %6 = arith.addf %3, %5 : vector<8x2048xf32>
    %cst_5 = arith.constant 0.000000e+00 : f32
    %7 = vector.broadcast %cst_5 : f32 to vector<8x2048xf32>
    %8 = arith.maximumf %6, %7 : vector<8x2048xf32>
    %9 = arith.truncf %8 : vector<8x2048xf32> to vector<8x2048xbf16>
    %c0_6 = arith.constant 0 : index
    %c0_7 = arith.constant 0 : index
    %10 = vector.load %arg4[%c0_6, %c0_7] : memref<2048x512xbf16, #tpu.memory_space<vmem>>, vector<2048x512xbf16>
    %cst_8 = arith.constant dense<0.000000e+00> : vector<8x512xf32>
    %11 = tpu.matmul %9, %10, %cst_8 {dimension_numbers = #tpu.dot_dimension_numbers<[1], [0], [0], [1], [0, 0, 1, 1], [], []>} : vector<8x2048xbf16>, vector<2048x512xbf16>, vector<8x512xf32> -> vector<8x512xf32>
    %c0_9 = arith.constant 0 : index
    %c0_10 = arith.constant 0 : index
    %12 = vector.load %arg5[%c0_9, %c0_10] : memref<1x512xf32, #tpu.memory_space<vmem>>, vector<1x512xf32>
    %13 = vector.broadcast %12 : vector<1x512xf32> to vector<8x512xf32>
    %14 = arith.addf %11, %13 : vector<8x512xf32>
    %15 = arith.addf %14, %0 : vector<8x512xf32>
    %cst_11 = arith.constant dense<0.000000e+00> : vector<8xf32>
    %16 = vector.multi_reduction <add>, %15, %cst_11 [1] : vector<8x512xf32> to vector<8xf32>
    %17 = vector.shape_cast %16 : vector<8xf32> to vector<8x1xf32>
    %cst_12 = arith.constant 5.120000e+02 : f32
    %18 = vector.broadcast %cst_12 : f32 to vector<8x1xf32>
    %19 = arith.divf %17, %18 : vector<8x1xf32>
    %20 = vector.broadcast %19 : vector<8x1xf32> to vector<8x512xf32>
    %21 = arith.subf %15, %20 : vector<8x512xf32>
    %22 = arith.mulf %21, %21 : vector<8x512xf32>
    %cst_13 = arith.constant dense<0.000000e+00> : vector<8xf32>
    %23 = vector.multi_reduction <add>, %22, %cst_13 [1] : vector<8x512xf32> to vector<8xf32>
    %24 = vector.shape_cast %23 : vector<8xf32> to vector<8x1xf32>
    %cst_14 = arith.constant 5.120000e+02 : f32
    %25 = vector.broadcast %cst_14 : f32 to vector<8x1xf32>
    %26 = arith.divf %24, %25 : vector<8x1xf32>
    %cst_15 = arith.constant 9.99999974E-6 : f32
    %27 = vector.broadcast %cst_15 : f32 to vector<8x1xf32>
    %28 = arith.addf %26, %27 : vector<8x1xf32>
    %29 = math.rsqrt %28 : vector<8x1xf32>
    %30 = vector.broadcast %29 : vector<8x1xf32> to vector<8x512xf32>
    %31 = arith.mulf %21, %30 : vector<8x512xf32>
    %c0_16 = arith.constant 0 : index
    %c0_17 = arith.constant 0 : index
    %32 = vector.load %arg6[%c0_16, %c0_17] : memref<1x512xf32, #tpu.memory_space<vmem>>, vector<1x512xf32>
    %33 = vector.broadcast %32 : vector<1x512xf32> to vector<8x512xf32>
    %34 = arith.mulf %31, %33 : vector<8x512xf32>
    %c0_18 = arith.constant 0 : index
    %c0_19 = arith.constant 0 : index
    %35 = vector.load %arg7[%c0_18, %c0_19] : memref<1x512xf32, #tpu.memory_space<vmem>>, vector<1x512xf32>
    %36 = vector.broadcast %35 : vector<1x512xf32> to vector<8x512xf32>
    %37 = arith.addf %34, %36 : vector<8x512xf32>
    %c0_20 = arith.constant 0 : index
    %c0_21 = arith.constant 0 : index
    %38 = vector.load %arg8[%c0_20, %c0_21] : memref<8x512xf32, #tpu.memory_space<vmem>>, vector<8x512xf32>
    tpu.vector_store %arg8[%c0_20, %c0_21], %37 {strides = array<i32>} : memref<8x512xf32, #tpu.memory_space<vmem>>, vector<8x512xf32>,
    return
  }
  func.func @transform_0(%arg0: i32) -> (i32, i32) {
    %c0_i32 = arith.constant 0 : i32
    %c0_i32_0 = arith.constant 0 : i32
    return %arg0, %c0_i32 : i32, i32
  }
  func.func @transform_1(%arg0: i32) -> (i32, i32) {
    %c0_i32 = arith.constant 0 : i32
    %c0_i32_0 = arith.constant 0 : i32
    %c0_i32_1 = arith.constant 0 : i32
    return %c0_i32, %c0_i32_0 : i32, i32
  }
  func.func @transform_2(%arg0: i32) -> (i32, i32) {
    %c0_i32 = arith.constant 0 : i32
    %c0_i32_0 = arith.constant 0 : i32
    %c0_i32_1 = arith.constant 0 : i32
    return %c0_i32, %c0_i32_0 : i32, i32
  }
  func.func @transform_3(%arg0: i32) -> (i32, i32) {
    %c0_i32 = arith.constant 0 : i32
    %c0_i32_0 = arith.constant 0 : i32
    %c0_i32_1 = arith.constant 0 : i32
    return %c0_i32, %c0_i32_0 : i32, i32
  }
  func.func @transform_4(%arg0: i32) -> (i32, i32) {
    %c0_i32 = arith.constant 0 : i32
    %c0_i32_0 = arith.constant 0 : i32
    %c0_i32_1 = arith.constant 0 : i32
    return %c0_i32, %c0_i32_0 : i32, i32
  }
  func.func @transform_5(%arg0: i32) -> (i32, i32) {
    %c0_i32 = arith.constant 0 : i32
    %c0_i32_0 = arith.constant 0 : i32
    %c0_i32_1 = arith.constant 0 : i32
    return %c0_i32, %c0_i32_0 : i32, i32
  }
  func.func @transform_6(%arg0: i32) -> (i32, i32) {
    %c0_i32 = arith.constant 0 : i32
    %c0_i32_0 = arith.constant 0 : i32
    %c0_i32_1 = arith.constant 0 : i32
    return %c0_i32, %c0_i32_0 : i32, i32
  }
  func.func @transform_7(%arg0: i32) -> (i32, i32) {
    %c0_i32 = arith.constant 0 : i32
    %c0_i32_0 = arith.constant 0 : i32
    return %arg0, %c0_i32 : i32, i32
  }
}

</mosaic_0001>

<llo_original>
// kernel: tpu_custom_call.1
$region0: #{tpu_custom_call.1}
  #allocation0 [shape = 'u32[]', space=smem, size = 0x4, offset = 0x4, fixed_abs, tag = 'smem constant byte address 0x4 - core index']
  #allocation1 [shape = 'u32[72,128]{1,0:T(1,128)}', space=vmem, size = 0x9000, scoped, tag = 'internal scratch']
  %s0 = inlined_call_operand.hbm [shape: f32[16,512], index: 0, kind: input, shape index: {}]
  %s1 = inlined_call_operand.hbm [shape: bf16[512,2048], index: 1, kind: input, shape index: {}]
  %s2 = inlined_call_operand.hbm [shape: f32[1,2048], index: 2, kind: input, shape index: {}]
  %s3 = inlined_call_operand.hbm [shape: bf16[2048,512], index: 3, kind: input, shape index: {}]
  %s4 = inlined_call_operand.hbm [shape: f32[1,512], index: 4, kind: input, shape index: {}]
  %s5 = inlined_call_operand.hbm [shape: f32[1,512], index: 5, kind: input, shape index: {}]
  %s6 = inlined_call_operand.hbm [shape: f32[1,512], index: 6, kind: input, shape index: {}]
  %s7 = inlined_call_operand.hbm [shape: f32[16,512], index: 7, kind: output, shape index: {}]
  %s8 = sld [smem:[#allocation0]]
  $region89: #{tpu_custom_call.1} parent=0
    _
  %s10 = ssub.s32 1, %s8
  %s11 = scalar_select 0, %s10, %s8
  $region1: #{tpu_custom_call.1} parent=0
    #allocation2 [shape = 'u8[32768]{0}', space=vmem, size = 0x8000, scoped, tag = 'input window, operand 0']
    #allocation3 [shape = 's32[2]{0}', space=sflag, size = 0x8, scoped, tag = 'scoped memory for tpu_custom_call.1']
    #allocation4 [shape = 's32[2]{0}', space=sflag, size = 0x8, scoped, tag = 'scoped memory for tpu_custom_call.1']
    #allocation5 [shape = 'u8[2097152]{0}', space=vmem, size = 0x200000, scoped, tag = 'input window, operand 1, single buffered']
    #allocation6 [shape = 's32[1]{0}', space=sflag, size = 0x4, scoped, tag = 'scoped memory for tpu_custom_call.1']
    #allocation7 [shape = 'u8[8192]{0}', space=vmem, size = 0x2000, scoped, tag = 'input window, operand 2, single buffered']
    #allocation8 [shape = 'u8[2097152]{0}', space=vmem, size = 0x200000, scoped, tag = 'input window, operand 3, single buffered']
    #allocation9 [shape = 's32[1]{0}', space=sflag, size = 0x4, scoped, tag = 'scoped memory for tpu_custom_call.1']
    #allocation10 [shape = 'u8[2048]{0}', space=vmem, size = 0x800, scoped, tag = 'input window, operand 4, single buffered']
    #allocation11 [shape = 'u8[2048]{0}', space=vmem, size = 0x800, scoped, tag = 'input window, operand 5, single buffered']
    #allocation12 [shape = 's32[1]{0}', space=sflag, size = 0x4, scoped, tag = 'scoped memory for tpu_custom_call.1']
    #allocation13 [shape = 'u8[2048]{0}', space=vmem, size = 0x800, scoped, tag = 'input window, operand 6, single buffered']
    #allocation14 [shape = 'u8[32768]{0}', space=vmem, size = 0x8000, scoped, tag = 'output window, operand 0']
    %12 = vsyncpa [#allocation3], 0
    %s13 = scalar_lea.sflag [#allocation3], 1
    %14 = vsyncpa %s13, 0
    %15 = vsyncpa [#allocation6], 0
    %16 = vsyncpa [#allocation9], 0
    %17 = vsyncpa [#allocation12], 0
    %18 = vsyncpa [#allocation4], 0
    %s19 = scalar_lea.sflag [#allocation4], 1
    %20 = vsyncpa %s19, 0
    loop: start=0, step=1, limit=4
    $region2: #{tpu_custom_call.1} parent=1 // loop_pre_header
      _
    $region3: #{tpu_custom_call.1} parent=1 // loop_header
      %s22 = sphi 0, %s26
      %p23 = scmp.ge.s32.totalorder %s22, 4
      %s32 = sphi 0, %s34
      %s35 = sphi 0, %s32
      %s36 = sphi 0, %s35
      %s52 = sphi 0, %s36
      %s56 = sphi 0, %s56
      %s58 = sphi 0, %s56
      %s59 = sphi 0, %s58
      %s73 = sphi 0, %s59
      %s77 = sphi 0, %s77
      %s79 = sphi 0, %s77
      %s80 = sphi 0, %s79
      %s94 = sphi 0, %s80
      %s98 = sphi 0, %s98
      %s100 = sphi 0, %s98
      %s101 = sphi 0, %s100
      %s115 = sphi 0, %s101
      %s119 = sphi 0, %s119
      %s121 = sphi 0, %s119
      %s122 = sphi 0, %s121
      %s136 = sphi 0, %s122
      %s140 = sphi 0, %s140
      %s142 = sphi 0, %s140
      %s143 = sphi 0, %s142
      %s157 = sphi 0, %s143
      %s161 = sphi 0, %s161
      %s163 = sphi 0, %s161
      %s164 = sphi 0, %s163
      %s178 = sphi 0, %s164
      %s184 = sphi 0, %s186
      %s187 = sphi 0, %s184
      %s188 = sphi 0, %s187
      %s204 = sphi 0, %s188
    $region4: #{tpu_custom_call.1} parent=1 // loop_header_branch
      %25 = sbr.rel (%p23) target = $region8
    $region5: #{tpu_custom_call.1} parent=1 // loop_body
      %s27 = ssub.s32 %s22, 1
      %s28 = ssub.s32 %s22, 2
      %s29 = sadd.s32 %s22, 1
      %s30 = ssub.s32 %s22, %s29
      %p31 = scmp.eq.s32.totalorder %s30, 0
      %s33 = sadd.s32 %s32, 1
      %s34 = scalar_select %p31, %s32, %s33
      %p37 = pneg %p31
      %p38 = scmp.eq.s32.totalorder %s22, 1
      %p39 = por %p37, %p38
      %p40 = scmp.ne.s32.totalorder %s32, %s35
      %p41 = scmp.eq.s32.totalorder %s22, 0
      %p42 = por %p40, %p41
      %p43 = scmp.ne.s32.totalorder %s32, %s35
      %p44 = scmp.eq.s32.totalorder %s27, 1
      %p45 = por %p43, %p44
      %p46 = scmp.ne.s32.totalorder %s35, %s36
      %p47 = scmp.eq.s32.totalorder %s27, 0
      %p48 = por %p46, %p47
      %p49 = scmp.ne.s32.totalorder %s35, %s36
      %p50 = scmp.eq.s32.totalorder %s28, 1
      %p51 = por %p49, %p50
      %p53 = scmp.ne.s32.totalorder %s36, %s52
      %p54 = scmp.eq.s32.totalorder %s28, 0
      %p55 = por %p53, %p54
      %s57 = sadd.s32 %s56, 1
      %p60 = scmp.eq.s32.totalorder %s22, 1
      %p61 = scmp.ne.s32.totalorder %s56, %s58
      %p62 = scmp.eq.s32.totalorder %s22, 0
      %p63 = por %p61, %p62
      %p64 = scmp.ne.s32.totalorder %s56, %s58
      %p65 = scmp.eq.s32.totalorder %s27, 1
      %p66 = por %p64, %p65
      %p67 = scmp.ne.s32.totalorder %s58, %s59
      %p68 = scmp.eq.s32.totalorder %s27, 0
      %p69 = por %p67, %p68
      %p70 = scmp.ne.s32.totalorder %s58, %s59
      %p71 = scmp.eq.s32.totalorder %s28, 1
      %p72 = por %p70, %p71
      %p74 = scmp.ne.s32.totalorder %s59, %s73
      %p75 = scmp.eq.s32.totalorder %s28, 0
      %p76 = por %p74, %p75
      %s78 = sadd.s32 %s77, 1
      %p81 = scmp.eq.s32.totalorder %s22, 1
      %p82 = scmp.ne.s32.totalorder %s77, %s79
      %p83 = scmp.eq.s32.totalorder %s22, 0
      %p84 = por %p82, %p83
      %p85 = scmp.ne.s32.totalorder %s77, %s79
      %p86 = scmp.eq.s32.totalorder %s27, 1
      %p87 = por %p85, %p86
      %p88 = scmp.ne.s32.totalorder %s79, %s80
      %p89 = scmp.eq.s32.totalorder %s27, 0
      %p90 = por %p88, %p89
      %p91 = scmp.ne.s32.totalorder %s79, %s80
      %p92 = scmp.eq.s32.totalorder %s28, 1
      %p93 = por %p91, %p92
      %p95 = scmp.ne.s32.totalorder %s80, %s94
      %p96 = scmp.eq.s32.totalorder %s28, 0
      %p97 = por %p95, %p96
      %s99 = sadd.s32 %s98, 1
      %p102 = scmp.eq.s32.totalorder %s22, 1
      %p103 = scmp.ne.s32.totalorder %s98, %s100
      %p104 = scmp.eq.s32.totalorder %s22, 0
      %p105 = por %p103, %p104
      %p106 = scmp.ne.s32.totalorder %s98, %s100
      %p107 = scmp.eq.s32.totalorder %s27, 1
      %p108 = por %p106, %p107
      %p109 = scmp.ne.s32.totalorder %s100, %s101
      %p110 = scmp.eq.s32.totalorder %s27, 0
      %p111 = por %p109, %p110
      %p112 = scmp.ne.s32.totalorder %s100, %s101
      %p113 = scmp.eq.s32.totalorder %s28, 1
      %p114 = por %p112, %p113
      %p116 = scmp.ne.s32.totalorder %s101, %s115
      %p117 = scmp.eq.s32.totalorder %s28, 0
      %p118 = por %p116, %p117
      %s120 = sadd.s32 %s119, 1
      %p123 = scmp.eq.s32.totalorder %s22, 1
      %p124 = scmp.ne.s32.totalorder %s119, %s121
      %p125 = scmp.eq.s32.totalorder %s22, 0
      %p126 = por %p124, %p125
      %p127 = scmp.ne.s32.totalorder %s119, %s121
      %p128 = scmp.eq.s32.totalorder %s27, 1
      %p129 = por %p127, %p128
      %p130 = scmp.ne.s32.totalorder %s121, %s122
      %p131 = scmp.eq.s32.totalorder %s27, 0
      %p132 = por %p130, %p131
      %p133 = scmp.ne.s32.totalorder %s121, %s122
      %p134 = scmp.eq.s32.totalorder %s28, 1
      %p135 = por %p133, %p134
      %p137 = scmp.ne.s32.totalorder %s122, %s136
      %p138 = scmp.eq.s32.totalorder %s28, 0
      %p139 = por %p137, %p138
      %s141 = sadd.s32 %s140, 1
      %p144 = scmp.eq.s32.totalorder %s22, 1
      %p145 = scmp.ne.s32.totalorder %s140, %s142
      %p146 = scmp.eq.s32.totalorder %s22, 0
      %p147 = por %p145, %p146
      %p148 = scmp.ne.s32.totalorder %s140, %s142
      %p149 = scmp.eq.s32.totalorder %s27, 1
      %p150 = por %p148, %p149
      %p151 = scmp.ne.s32.totalorder %s142, %s143
      %p152 = scmp.eq.s32.totalorder %s27, 0
      %p153 = por %p151, %p152
      %p154 = scmp.ne.s32.totalorder %s142, %s143
      %p155 = scmp.eq.s32.totalorder %s28, 1
      %p156 = por %p154, %p155
      %p158 = scmp.ne.s32.totalorder %s143, %s157
      %p159 = scmp.eq.s32.totalorder %s28, 0
      %p160 = por %p158, %p159
      %s162 = sadd.s32 %s161, 1
      %p165 = scmp.eq.s32.totalorder %s22, 1
      %p166 = scmp.ne.s32.totalorder %s161, %s163
      %p167 = scmp.eq.s32.totalorder %s22, 0
      %p168 = por %p166, %p167
      %p169 = scmp.ne.s32.totalorder %s161, %s163
      %p170 = scmp.eq.s32.totalorder %s27, 1
      %p171 = por %p169, %p170
      %p172 = scmp.ne.s32.totalorder %s163, %s164
      %p173 = scmp.eq.s32.totalorder %s27, 0
      %p174 = por %p172, %p173
      %p175 = scmp.ne.s32.totalorder %s163, %s164
      %p176 = scmp.eq.s32.totalorder %s28, 1
      %p177 = por %p175, %p176
      %p179 = scmp.ne.s32.totalorder %s164, %s178
      %p180 = scmp.eq.s32.totalorder %s28, 0
      %p181 = por %p179, %p180
      %s182 = ssub.s32 %s22, %s29
      %p183 = scmp.eq.s32.totalorder %s182, 0
      %s185 = sadd.s32 %s184, 1
      %s186 = scalar_select %p183, %s184, %s185
      %p189 = pneg %p183
      %p190 = scmp.eq.s32.totalorder %s22, 1
      %p191 = por %p189, %p190
      %p192 = scmp.ne.s32.totalorder %s184, %s187
      %p193 = scmp.eq.s32.totalorder %s22, 0
      %p194 = por %p192, %p193
      %p195 = scmp.ne.s32.totalorder %s184, %s187
      %p196 = scmp.eq.s32.totalorder %s27, 1
      %p197 = por %p195, %p196
      %p198 = scmp.ne.s32.totalorder %s187, %s188
      %p199 = scmp.eq.s32.totalorder %s27, 0
      %p200 = por %p198, %p199
      %p201 = scmp.ne.s32.totalorder %s187, %s188
      %p202 = scmp.eq.s32.totalorder %s28, 1
      %p203 = por %p201, %p202
      %p205 = scmp.ne.s32.totalorder %s188, %s204
      %p206 = scmp.eq.s32.totalorder %s28, 0
      %p207 = por %p205, %p206
      %p208 = scmp.le.s32.totalorder 1, %s22
      %p209 = scmp.lt.s32.totalorder %s22, 3
      %p210 = pnand %p208, %p209
      %p211 = pneg %p210
      // Predicated region
      $region9: #{tpu_custom_call.1} parent=5 // pred_check
        _
      $region10: #{tpu_custom_call.1} parent=5 // pred_check_branch
        %213 = sbr.rel (%p210) target = $region12
      $region11: #{tpu_custom_call.1} parent=5 // pred_region
        %s214 = ssub.s32 %s22, 1
        // Predicated region
        $region13: #{tpu_custom_call.1} parent=11 // pred_check
          %p215 = pneg %p69
        $region14: #{tpu_custom_call.1} parent=11 // pred_check_branch
          %217 = sbr.rel (%p215) target = $region16
        $region15: #{tpu_custom_call.1} parent=11 // pred_region
          %219 = vsyncadd [#allocation6], 0
          %s220 = sshll.u32 %s1, 4
          %s221 = int_to_ptr.hbm [resolvable:$true] %s220
          %s222 = sshll.u32 [#allocation5], 4
          %s223 = int_to_ptr.vmem [resolvable:$true] %s222
          %228 = dma.hbm_to_vmem [thread:$0]  %s221, 65536, %s223, [#allocation6], 1024, 1024, 64
        $region16: #{tpu_custom_call.1} parent=11 // pred_fallthru
          _
        // Predicated region
        $region17: #{tpu_custom_call.1} parent=11 // pred_check
          %p229 = pneg %p90
        $region18: #{tpu_custom_call.1} parent=11 // pred_check_branch
          %231 = sbr.rel (%p229) target = $region20
        $region19: #{tpu_custom_call.1} parent=11 // pred_region
          %233 = vsyncadd [#allocation6], 0
          %s235 = sshll.u32 %s2, 4
          %s236 = int_to_ptr.hbm [resolvable:$true] %s235
          %s237 = sshll.u32 [#allocation7], 4
          %s238 = int_to_ptr.vmem [resolvable:$true] %s237
          %240 = dma.hbm_to_vmem [thread:$0]  %s236, 256, %s238, [#allocation6]
        $region20: #{tpu_custom_call.1} parent=11 // pred_fallthru
          _
        // Predicated region
        $region21: #{tpu_custom_call.1} parent=11 // pred_check
          %p241 = pneg %p111
        $region22: #{tpu_custom_call.1} parent=11 // pred_check_branch
          %243 = sbr.rel (%p241) target = $region24
        $region23: #{tpu_custom_call.1} parent=11 // pred_region
          %245 = vsyncadd [#allocation9], 0
          %s246 = sshll.u32 %s3, 4
          %s247 = int_to_ptr.hbm [resolvable:$true] %s246
          %s248 = sshll.u32 [#allocation8], 4
          %s249 = int_to_ptr.vmem [resolvable:$true] %s248
          %254 = dma.hbm_to_vmem [thread:$0]  %s247, 65536, %s249, [#allocation9], 256, 256, 16
        $region24: #{tpu_custom_call.1} parent=11 // pred_fallthru
          _
        // Predicated region
        $region25: #{tpu_custom_call.1} parent=11 // pred_check
          %p255 = pneg %p132
        $region26: #{tpu_custom_call.1} parent=11 // pred_check_branch
          %257 = sbr.rel (%p255) target = $region28
        $region27: #{tpu_custom_call.1} parent=11 // pred_region
          %259 = vsyncadd [#allocation9], 0
          %s261 = sshll.u32 %s4, 4
          %s262 = int_to_ptr.hbm [resolvable:$true] %s261
          %s263 = sshll.u32 [#allocation10], 4
          %s264 = int_to_ptr.vmem [resolvable:$true] %s263
          %266 = dma.hbm_to_vmem [thread:$0]  %s262, 64, %s264, [#allocation9]
        $region28: #{tpu_custom_call.1} parent=11 // pred_fallthru
          _
        // Predicated region
        $region29: #{tpu_custom_call.1} parent=11 // pred_check
          %p267 = pneg %p153
        $region30: #{tpu_custom_call.1} parent=11 // pred_check_branch
          %269 = sbr.rel (%p267) target = $region32
        $region31: #{tpu_custom_call.1} parent=11 // pred_region
          %271 = vsyncadd [#allocation12], 0
          %s273 = sshll.u32 %s5, 4
          %s274 = int_to_ptr.hbm [resolvable:$true] %s273
          %s275 = sshll.u32 [#allocation11], 4
          %s276 = int_to_ptr.vmem [resolvable:$true] %s275
          %278 = dma.hbm_to_vmem [thread:$0]  %s274, 64, %s276, [#allocation12]
        $region32: #{tpu_custom_call.1} parent=11 // pred_fallthru
          _
        // Predicated region
        $region33: #{tpu_custom_call.1} parent=11 // pred_check
          %p279 = pneg %p174
        $region34: #{tpu_custom_call.1} parent=11 // pred_check_branch
          %281 = sbr.rel (%p279) target = $region36
        $region35: #{tpu_custom_call.1} parent=11 // pred_region
          %283 = vsyncadd [#allocation12], 0
          %s285 = sshll.u32 %s6, 4
          %s286 = int_to_ptr.hbm [resolvable:$true] %s285
          %s287 = sshll.u32 [#allocation13], 4
          %s288 = int_to_ptr.vmem [resolvable:$true] %s287
          %290 = dma.hbm_to_vmem [thread:$0]  %s286, 64, %s288, [#allocation12]
        $region36: #{tpu_custom_call.1} parent=11 // pred_fallthru
          _
      $region12: #{tpu_custom_call.1} parent=5 // pred_fallthru
        _
      %p291 = scmp.lt.s32.totalorder %s22, 2
      // Predicated region
      $region37: #{tpu_custom_call.1} parent=5 // pred_check
        %p292 = pneg %p291
      $region38: #{tpu_custom_call.1} parent=5 // pred_check_branch
        %294 = sbr.rel (%p292) target = $region40
      $region39: #{tpu_custom_call.1} parent=5 // pred_region
        // Predicated region
        $region41: #{tpu_custom_call.1} parent=39 // pred_check
          %p295 = pneg %p42
        $region42: #{tpu_custom_call.1} parent=39 // pred_check_branch
          %297 = sbr.rel (%p295) target = $region44
        $region43: #{tpu_custom_call.1} parent=39 // pred_region
          %s298 = sand.u32 %s32, 1
          %s299 = scalar_lea.sflag [#allocation3], %s298
          %s300 = sand.u32 %s32, 1
          %s301 = smul.addr %s300, 32
          %s302 = scalar_lea.vmem [#allocation2], %s301
          %304 = vsyncadd %s299, 0
          %s305 = smul.addr %s22, 4
          %s306 = smul.addr %s305, 8
          %s307 = scalar_lea.hbm %s0, %s306
          %s309 = sshll.u32 %s307, 4
          %s310 = int_to_ptr.hbm [resolvable:$true] %s309
          %s311 = sshll.u32 %s302, 4
          %s312 = int_to_ptr.vmem [resolvable:$true] %s311
          %314 = dma.hbm_to_vmem [thread:$0]  %s310, 512, %s312, %s299
        $region44: #{tpu_custom_call.1} parent=39 // pred_fallthru
          _
      $region40: #{tpu_custom_call.1} parent=5 // pred_fallthru
        _
      %p315 = scmp.le.s32.totalorder 1, %s22
      %p316 = scmp.lt.s32.totalorder %s22, 3
      %p317 = pnand %p315, %p316
      %p318 = pneg %p317
      // Predicated region
      $region45: #{tpu_custom_call.1} parent=5 // pred_check
        _
      $region46: #{tpu_custom_call.1} parent=5 // pred_check_branch
        %320 = sbr.rel (%p317) target = $region48
      $region47: #{tpu_custom_call.1} parent=5 // pred_region
        %s321 = ssub.s32 %s22, 1
        %s322 = sand.u32 %s35, 1
        %s323 = scalar_lea.sflag [#allocation3], %s322
        %s324 = sand.u32 %s35, 1
        %s325 = smul.addr %s324, 32
        %s326 = scalar_lea.vmem [#allocation2], %s325
        // Predicated region
        $region49: #{tpu_custom_call.1} parent=47 // pred_check
          %p327 = pneg %p48
        $region50: #{tpu_custom_call.1} parent=47 // pred_check_branch
          %329 = sbr.rel (%p327) target = $region52
        $region51: #{tpu_custom_call.1} parent=47 // pred_region
          %331 = dma.done %s323, 512
        $region52: #{tpu_custom_call.1} parent=47 // pred_fallthru
          _
        // Predicated region
        $region53: #{tpu_custom_call.1} parent=47 // pred_check
          %p332 = pneg %p69
        $region54: #{tpu_custom_call.1} parent=47 // pred_check_branch
          %334 = sbr.rel (%p332) target = $region56
        $region55: #{tpu_custom_call.1} parent=47 // pred_region
          %336 = dma.done [#allocation6], 65536
        $region56: #{tpu_custom_call.1} parent=47 // pred_fallthru
          _
        // Predicated region
        $region57: #{tpu_custom_call.1} parent=47 // pred_check
          %p337 = pneg %p90
        $region58: #{tpu_custom_call.1} parent=47 // pred_check_branch
          %339 = sbr.rel (%p337) target = $region60
        $region59: #{tpu_custom_call.1} parent=47 // pred_region
          %341 = dma.done [#allocation6], 256
        $region60: #{tpu_custom_call.1} parent=47 // pred_fallthru
          _
        // Predicated region
        $region61: #{tpu_custom_call.1} parent=47 // pred_check
          %p342 = pneg %p111
        $region62: #{tpu_custom_call.1} parent=47 // pred_check_branch
          %344 = sbr.rel (%p342) target = $region64
        $region63: #{tpu_custom_call.1} parent=47 // pred_region
          %346 = dma.done [#allocation9], 65536
        $region64: #{tpu_custom_call.1} parent=47 // pred_fallthru
          _
        // Predicated region
        $region65: #{tpu_custom_call.1} parent=47 // pred_check
          %p347 = pneg %p132
        $region66: #{tpu_custom_call.1} parent=47 // pred_check_branch
          %349 = sbr.rel (%p347) target = $region68
        $region67: #{tpu_custom_call.1} parent=47 // pred_region
          %351 = dma.done [#allocation9], 64
        $region68: #{tpu_custom_call.1} parent=47 // pred_fallthru
          _
        // Predicated region
        $region69: #{tpu_custom_call.1} parent=47 // pred_check
          %p352 = pneg %p153
        $region70: #{tpu_custom_call.1} parent=47 // pred_check_branch
          %354 = sbr.rel (%p352) target = $region72
        $region71: #{tpu_custom_call.1} parent=47 // pred_region
          %356 = dma.done [#allocation12], 64
        $region72: #{tpu_custom_call.1} parent=47 // pred_fallthru
          _
        // Predicated region
        $region73: #{tpu_custom_call.1} parent=47 // pred_check
          %p357 = pneg %p174
        $region74: #{tpu_custom_call.1} parent=47 // pred_check_branch
          %359 = sbr.rel (%p357) target = $region76
        $region75: #{tpu_custom_call.1} parent=47 // pred_region
          %361 = dma.done [#allocation12], 64
        $region76: #{tpu_custom_call.1} parent=47 // pred_fallthru
          _
        %s362 = sand.u32 %s35, 1
        %s363 = scalar_lea.sflag [#allocation3], %s362
        %s364 = sand.u32 %s35, 1
        %s365 = smul.addr %s364, 32
        %s366 = scalar_lea.vmem [#allocation2], %s365
        %p367 = pneg %p48
        %p368 = pneg %p45
        %p369 = pneg %p69
        %p370 = pneg %p66
        %p371 = pneg %p90
        %p372 = pneg %p87
        %p373 = pneg %p111
        %p374 = pneg %p108
        %p375 = pneg %p132
        %p376 = pneg %p129
        %p377 = pneg %p153
        %p378 = pneg %p150
        %p379 = pneg %p174
        %p380 = pneg %p171
        %p381 = pneg %p200
        %p382 = pneg %p197
        %s383 = sand.u32 %s187, 1
        %s384 = scalar_lea.sflag [#allocation4], %s383
        %s385 = sand.u32 %s187, 1
        %s386 = smul.addr %s385, 32
        %s387 = scalar_lea.vmem [#allocation14], %s386
        %v388 = vld [vmem:[%s326] sm:$0xff]
        %v389 = vld [vmem:[%s326 + $0x8] sm:$0xff]
        %v390 = vld [vmem:[%s326 + $0x10] sm:$0xff]
        %v391 = vld [vmem:[%s326 + $0x18] sm:$0xff]
        %v392 = vpack.c.bf16 %v388, %v388
        %v393 = vpack.c.bf16 %v389, %v389
        %v394 = vpack.c.bf16 %v390, %v390
        %v395 = vpack.c.bf16 %v391, %v391
        %v396 = vld [vmem:[#allocation5] sm:$0xff]
        %v397 = vld [vmem:[#allocation5 + $0x8] sm:$0xff]
        %v398 = vld [vmem:[#allocation5 + $0x10] sm:$0xff]
        %v399 = vld [vmem:[#allocation5 + $0x18] sm:$0xff]
        %v400 = vld [vmem:[#allocation5 + $0x20] sm:$0xff]
        %v401 = vld [vmem:[#allocation5 + $0x28] sm:$0xff]
        %v402 = vld [vmem:[#allocation5 + $0x30] sm:$0xff]
        %v403 = vld [vmem:[#allocation5 + $0x38] sm:$0xff]
        %v404 = vld [vmem:[#allocation5 + $0x40] sm:$0xff]
        %v405 = vld [vmem:[#allocation5 + $0x48] sm:$0xff]
        %v406 = vld [vmem:[#allocation5 + $0x50] sm:$0xff]
        %v407 = vld [vmem:[#allocation5 + $0x58] sm:$0xff]
        %v408 = vld [vmem:[#allocation5 + $0x60] sm:$0xff]
        %v409 = vld [vmem:[#allocation5 + $0x68] sm:$0xff]
        %v410 = vld [vmem:[#allocation5 + $0x70] sm:$0xff]
        %v411 = vld [vmem:[#allocation5 + $0x78] sm:$0xff]
        %v412 = vld [vmem:[#allocation5 + $0x80] sm:$0xff]
        %v413 = vld [vmem:[#allocation5 + $0x88] sm:$0xff]
        %v414 = vld [vmem:[#allocation5 + $0x90] sm:$0xff]
        %v415 = vld [vmem:[#allocation5 + $0x98] sm:$0xff]
        %v416 = vld [vmem:[#allocation5 + $0xa0] sm:$0xff]
        %v417 = vld [vmem:[#allocation5 + $0xa8] sm:$0xff]
        %v418 = vld [vmem:[#allocation5 + $0xb0] sm:$0xff]
        %v419 = vld [vmem:[#allocation5 + $0xb8] sm:$0xff]
        %v420 = vld [vmem:[#allocation5 + $0xc0] sm:$0xff]
        %v421 = vld [vmem:[#allocation5 + $0xc8] sm:$0xff]
        %v422 = vld [vmem:[#allocation5 + $0xd0] sm:$0xff]
        %v423 = vld [vmem:[#allocation5 + $0xd8] sm:$0xff]
        %v424 = vld [vmem:[#allocation5 + $0xe0] sm:$0xff]
        %v425 = vld [vmem:[#allocation5 + $0xe8] sm:$0xff]
        %v426 = vld [vmem:[#allocation5 + $0xf0] sm:$0xff]
        %v427 = vld [vmem:[#allocation5 + $0xf8] sm:$0xff]
        %v428 = vld [vmem:[#allocation5 + $0x100] sm:$0xff]
        %v429 = vld [vmem:[#allocation5 + $0x108] sm:$0xff]
        %v430 = vld [vmem:[#allocation5 + $0x110] sm:$0xff]
        %v431 = vld [vmem:[#allocation5 + $0x118] sm:$0xff]
        %v432 = vld [vmem:[#allocation5 + $0x120] sm:$0xff]
        %v433 = vld [vmem:[#allocation5 + $0x128] sm:$0xff]
        %v434 = vld [vmem:[#allocation5 + $0x130] sm:$0xff]
        %v435 = vld [vmem:[#allocation5 + $0x138] sm:$0xff]
        %v436 = vld [vmem:[#allocation5 + $0x140] sm:$0xff]
        %v437 = vld [vmem:[#allocation5 + $0x148] sm:$0xff]
        %v438 = vld [vmem:[#allocation5 + $0x150] sm:$0xff]
        %v439 = vld [vmem:[#allocation5 + $0x158] sm:$0xff]
        %v440 = vld [vmem:[#allocation5 + $0x160] sm:$0xff]
        %v441 = vld [vmem:[#allocation5 + $0x168] sm:$0xff]
        %v442 = vld [vmem:[#allocation5 + $0x170] sm:$0xff]
        %v443 = vld [vmem:[#allocation5 + $0x178] sm:$0xff]
        %v444 = vld [vmem:[#allocation5 + $0x180] sm:$0xff]
        %v445 = vld [vmem:[#allocation5 + $0x188] sm:$0xff]
        %v446 = vld [vmem:[#allocation5 + $0x190] sm:$0xff]
        %v447 = vld [vmem:[#allocation5 + $0x198] sm:$0xff]
        %v448 = vld [vmem:[#allocation5 + $0x1a0] sm:$0xff]
        %v449 = vld [vmem:[#allocation5 + $0x1a8] sm:$0xff]
        %v450 = vld [vmem:[#allocation5 + $0x1b0] sm:$0xff]
        %v451 = vld [vmem:[#allocation5 + $0x1b8] sm:$0xff]
        %v452 = vld [vmem:[#allocation5 + $0x1c0] sm:$0xff]
        %v453 = vld [vmem:[#allocation5 + $0x1c8] sm:$0xff]
        %v454 = vld [vmem:[#allocation5 + $0x1d0] sm:$0xff]
        %v455 = vld [vmem:[#allocation5 + $0x1d8] sm:$0xff]
        %v456 = vld [vmem:[#allocation5 + $0x1e0] sm:$0xff]
        %v457 = vld [vmem:[#allocation5 + $0x1e8] sm:$0xff]
        %v458 = vld [vmem:[#allocation5 + $0x1f0] sm:$0xff]
        %v459 = vld [vmem:[#allocation5 + $0x1f8] sm:$0xff]
        %v460 = vld [vmem:[#allocation5 + $0x200] sm:$0xff]
        %v461 = vld [vmem:[#allocation5 + $0x208] sm:$0xff]
        %v462 = vld [vmem:[#allocation5 + $0x210] sm:$0xff]
        %v463 = vld [vmem:[#allocation5 + $0x218] sm:$0xff]
        %v464 = vld [vmem:[#allocation5 + $0x220] sm:$0xff]
        %v465 = vld [vmem:[#allocation5 + $0x228] sm:$0xff]
        %v466 = vld [vmem:[#allocation5 + $0x230] sm:$0xff]
        %v467 = vld [vmem:[#allocation5 + $0x238] sm:$0xff]
        %v468 = vld [vmem:[#allocation5 + $0x240] sm:$0xff]
        %v469 = vld [vmem:[#allocation5 + $0x248] sm:$0xff]
        %v470 = vld [vmem:[#allocation5 + $0x250] sm:$0xff]
        %v471 = vld [vmem:[#allocation5 + $0x258] sm:$0xff]
        %v472 = vld [vmem:[#allocation5 + $0x260] sm:$0xff]
        %v473 = vld [vmem:[#allocation5 + $0x268] sm:$0xff]
        %v474 = vld [vmem:[#allocation5 + $0x270] sm:$0xff]
        %v475 = vld [vmem:[#allocation5 + $0x278] sm:$0xff]
        %v476 = vld [vmem:[#allocation5 + $0x280] sm:$0xff]
        %v477 = vld [vmem:[#allocation5 + $0x288] sm:$0xff]
        %v478 = vld [vmem:[#allocation5 + $0x290] sm:$0xff]
        %v479 = vld [vmem:[#allocation5 + $0x298] sm:$0xff]
        %v480 = vld [vmem:[#allocation5 + $0x2a0] sm:$0xff]
        %v481 = vld [vmem:[#allocation5 + $0x2a8] sm:$0xff]
        %v482 = vld [vmem:[#allocation5 + $0x2b0] sm:$0xff]
        %v483 = vld [vmem:[#allocation5 + $0x2b8] sm:$0xff]
        %v484 = vld [vmem:[#allocation5 + $0x2c0] sm:$0xff]
        %v485 = vld [vmem:[#allocation5 + $0x2c8] sm:$0xff]
        %v486 = vld [vmem:[#allocation5 + $0x2d0] sm:$0xff]
        %v487 = vld [vmem:[#allocation5 + $0x2d8] sm:$0xff]
        %v488 = vld [vmem:[#allocation5 + $0x2e0] sm:$0xff]
        %v489 = vld [vmem:[#allocation5 + $0x2e8] sm:$0xff]
        %v490 = vld [vmem:[#allocation5 + $0x2f0] sm:$0xff]
        %v491 = vld [vmem:[#allocation5 + $0x2f8] sm:$0xff]
        %v492 = vld [vmem:[#allocation5 + $0x300] sm:$0xff]
        %v493 = vld [vmem:[#allocation5 + $0x308] sm:$0xff]
        %v494 = vld [vmem:[#allocation5 + $0x310] sm:$0xff]
        %v495 = vld [vmem:[#allocation5 + $0x318] sm:$0xff]
        %v496 = vld [vmem:[#allocation5 + $0x320] sm:$0xff]
        %v497 = vld [vmem:[#allocation5 + $0x328] sm:$0xff]
        %v498 = vld [vmem:[#allocation5 + $0x330] sm:$0xff]
        %v499 = vld [vmem:[#allocation5 + $0x338] sm:$0xff]
        %v500 = vld [vmem:[#allocation5 + $0x340] sm:$0xff]
        %v501 = vld [vmem:[#allocation5 + $0x348] sm:$0xff]
        %v502 = vld [vmem:[#allocation5 + $0x350] sm:$0xff]
        %v503 = vld [vmem:[#allocation5 + $0x358] sm:$0xff]
        %v504 = vld [vmem:[#allocation5 + $0x360] sm:$0xff]
        %v505 = vld [vmem:[#allocation5 + $0x368] sm:$0xff]
        %v506 = vld [vmem:[#allocation5 + $0x370] sm:$0xff]
        %v507 = vld [vmem:[#allocation5 + $0x378] sm:$0xff]
        %v508 = vld [vmem:[#allocation5 + $0x380] sm:$0xff]
        %v509 = vld [vmem:[#allocation5 + $0x388] sm:$0xff]
        %v510 = vld [vmem:[#allocation5 + $0x390] sm:$0xff]
        %v511 = vld [vmem:[#allocation5 + $0x398] sm:$0xff]
        %v512 = vld [vmem:[#allocation5 + $0x3a0] sm:$0xff]
        %v513 = vld [vmem:[#allocation5 + $0x3a8] sm:$0xff]
        %v514 = vld [vmem:[#allocation5 + $0x3b0] sm:$0xff]
        %v515 = vld [vmem:[#allocation5 + $0x3b8] sm:$0xff]
        %v516 = vld [vmem:[#allocation5 + $0x3c0] sm:$0xff]
        %v517 = vld [vmem:[#allocation5 + $0x3c8] sm:$0xff]
        %v518 = vld [vmem:[#allocation5 + $0x3d0] sm:$0xff]
        %v519 = vld [vmem:[#allocation5 + $0x3d8] sm:$0xff]
        %v520 = vld [vmem:[#allocation5 + $0x3e0] sm:$0xff]
        %v521 = vld [vmem:[#allocation5 + $0x3e8] sm:$0xff]
        %v522 = vld [vmem:[#allocation5 + $0x3f0] sm:$0xff]
        %v523 = vld [vmem:[#allocation5 + $0x3f8] sm:$0xff]
        %v524 = vld [vmem:[#allocation5 + $0x400] sm:$0xff]
        %v525 = vld [vmem:[#allocation5 + $0x408] sm:$0xff]
        %v526 = vld [vmem:[#allocation5 + $0x410] sm:$0xff]
        %v527 = vld [vmem:[#allocation5 + $0x418] sm:$0xff]
        %v528 = vld [vmem:[#allocation5 + $0x420] sm:$0xff]
        %v529 = vld [vmem:[#allocation5 + $0x428] sm:$0xff]
        %v530 = vld [vmem:[#allocation5 + $0x430] sm:$0xff]
        %v531 = vld [vmem:[#allocation5 + $0x438] sm:$0xff]
        %v532 = vld [vmem:[#allocation5 + $0x440] sm:$0xff]
        %v533 = vld [vmem:[#allocation5 + $0x448] sm:$0xff]
        %v534 = vld [vmem:[#allocation5 + $0x450] sm:$0xff]
        %v535 = vld [vmem:[#allocation5 + $0x458] sm:$0xff]
        %v536 = vld [vmem:[#allocation5 + $0x460] sm:$0xff]
        %v537 = vld [vmem:[#allocation5 + $0x468] sm:$0xff]
        %v538 = vld [vmem:[#allocation5 + $0x470] sm:$0xff]
        %v539 = vld [vmem:[#allocation5 + $0x478] sm:$0xff]
        %v540 = vld [vmem:[#allocation5 + $0x480] sm:$0xff]
        %v541 = vld [vmem:[#allocation5 + $0x488] sm:$0xff]
        %v542 = vld [vmem:[#allocation5 + $0x490] sm:$0xff]
        %v543 = vld [vmem:[#allocation5 + $0x498] sm:$0xff]
        %v544 = vld [vmem:[#allocation5 + $0x4a0] sm:$0xff]
        %v545 = vld [vmem:[#allocation5 + $0x4a8] sm:$0xff]
        %v546 = vld [vmem:[#allocation5 + $0x4b0] sm:$0xff]
        %v547 = vld [vmem:[#allocation5 + $0x4b8] sm:$0xff]
        %v548 = vld [vmem:[#allocation5 + $0x4c0] sm:$0xff]
        %v549 = vld [vmem:[#allocation5 + $0x4c8] sm:$0xff]
        %v550 = vld [vmem:[#allocation5 + $0x4d0] sm:$0xff]
        %v551 = vld [vmem:[#allocation5 + $0x4d8] sm:$0xff]
        %v552 = vld [vmem:[#allocation5 + $0x4e0] sm:$0xff]
        %v553 = vld [vmem:[#allocation5 + $0x4e8] sm:$0xff]
        %v554 = vld [vmem:[#allocation5 + $0x4f0] sm:$0xff]
        %v555 = vld [vmem:[#allocation5 + $0x4f8] sm:$0xff]
        %v556 = vld [vmem:[#allocation5 + $0x500] sm:$0xff]
        %v557 = vld [vmem:[#allocation5 + $0x508] sm:$0xff]
        %v558 = vld [vmem:[#allocation5 + $0x510] sm:$0xff]
        %v559 = vld [vmem:[#allocation5 + $0x518] sm:$0xff]
        %v560 = vld [vmem:[#allocation5 + $0x520] sm:$0xff]
        %v561 = vld [vmem:[#allocation5 + $0x528] sm:$0xff]
        %v562 = vld [vmem:[#allocation5 + $0x530] sm:$0xff]
        %v563 = vld [vmem:[#allocation5 + $0x538] sm:$0xff]
        %v564 = vld [vmem:[#allocation5 + $0x540] sm:$0xff]
        %v565 = vld [vmem:[#allocation5 + $0x548] sm:$0xff]
        %v566 = vld [vmem:[#allocation5 + $0x550] sm:$0xff]
        %v567 = vld [vmem:[#allocation5 + $0x558] sm:$0xff]
        %v568 = vld [vmem:[#allocation5 + $0x560] sm:$0xff]
        %v569 = vld [vmem:[#allocation5 + $0x568] sm:$0xff]
        %v570 = vld [vmem:[#allocation5 + $0x570] sm:$0xff]
        %v571 = vld [vmem:[#allocation5 + $0x578] sm:$0xff]
        %v572 = vld [vmem:[#allocation5 + $0x580] sm:$0xff]
        %v573 = vld [vmem:[#allocation5 + $0x588] sm:$0xff]
        %v574 = vld [vmem:[#allocation5 + $0x590] sm:$0xff]
        %v575 = vld [vmem:[#allocation5 + $0x598] sm:$0xff]
        %v576 = vld [vmem:[#allocation5 + $0x5a0] sm:$0xff]
        %v577 = vld [vmem:[#allocation5 + $0x5a8] sm:$0xff]
        %v578 = vld [vmem:[#allocation5 + $0x5b0] sm:$0xff]
        %v579 = vld [vmem:[#allocation5 + $0x5b8] sm:$0xff]
        %v580 = vld [vmem:[#allocation5 + $0x5c0] sm:$0xff]
        %v581 = vld [vmem:[#allocation5 + $0x5c8] sm:$0xff]
        %v582 = vld [vmem:[#allocation5 + $0x5d0] sm:$0xff]
        %v583 = vld [vmem:[#allocation5 + $0x5d8] sm:$0xff]
        %v584 = vld [vmem:[#allocation5 + $0x5e0] sm:$0xff]
        %v585 = vld [vmem:[#allocation5 + $0x5e8] sm:$0xff]
        %v586 = vld [vmem:[#allocation5 + $0x5f0] sm:$0xff]
        %v587 = vld [vmem:[#allocation5 + $0x5f8] sm:$0xff]
        %v588 = vld [vmem:[#allocation5 + $0x600] sm:$0xff]
        %v589 = vld [vmem:[#allocation5 + $0x608] sm:$0xff]
        %v590 = vld [vmem:[#allocation5 + $0x610] sm:$0xff]
        %v591 = vld [vmem:[#allocation5 + $0x618] sm:$0xff]
        %v592 = vld [vmem:[#allocation5 + $0x620] sm:$0xff]
        %v593 = vld [vmem:[#allocation5 + $0x628] sm:$0xff]
        %v594 = vld [vmem:[#allocation5 + $0x630] sm:$0xff]
        %v595 = vld [vmem:[#allocation5 + $0x638] sm:$0xff]
        %v596 = vld [vmem:[#allocation5 + $0x640] sm:$0xff]
        %v597 = vld [vmem:[#allocation5 + $0x648] sm:$0xff]
        %v598 = vld [vmem:[#allocation5 + $0x650] sm:$0xff]
        %v599 = vld [vmem:[#allocation5 + $0x658] sm:$0xff]
        %v600 = vld [vmem:[#allocation5 + $0x660] sm:$0xff]
        %v601 = vld [vmem:[#allocation5 + $0x668] sm:$0xff]
        %v602 = vld [vmem:[#allocation5 + $0x670] sm:$0xff]
        %v603 = vld [vmem:[#allocation5 + $0x678] sm:$0xff]
        %v604 = vld [vmem:[#allocation5 + $0x680] sm:$0xff]
        %v605 = vld [vmem:[#allocation5 + $0x688] sm:$0xff]
        %v606 = vld [vmem:[#allocation5 + $0x690] sm:$0xff]
        %v607 = vld [vmem:[#allocation5 + $0x698] sm:$0xff]
        %v608 = vld [vmem:[#allocation5 + $0x6a0] sm:$0xff]
        %v609 = vld [vmem:[#allocation5 + $0x6a8] sm:$0xff]
        %v610 = vld [vmem:[#allocation5 + $0x6b0] sm:$0xff]
        %v611 = vld [vmem:[#allocation5 + $0x6b8] sm:$0xff]
        %v612 = vld [vmem:[#allocation5 + $0x6c0] sm:$0xff]
        %v613 = vld [vmem:[#allocation5 + $0x6c8] sm:$0xff]
        %v614 = vld [vmem:[#allocation5 + $0x6d0] sm:$0xff]
        %v615 = vld [vmem:[#allocation5 + $0x6d8] sm:$0xff]
        %v616 = vld [vmem:[#allocation5 + $0x6e0] sm:$0xff]
        %v617 = vld [vmem:[#allocation5 + $0x6e8] sm:$0xff]
        %v618 = vld [vmem:[#allocation5 + $0x6f0] sm:$0xff]
        %v619 = vld [vmem:[#allocation5 + $0x6f8] sm:$0xff]
        %v620 = vld [vmem:[#allocation5 + $0x700] sm:$0xff]
        %v621 = vld [vmem:[#allocation5 + $0x708] sm:$0xff]
        %v622 = vld [vmem:[#allocation5 + $0x710] sm:$0xff]
        %v623 = vld [vmem:[#allocation5 + $0x718] sm:$0xff]
        %v624 = vld [vmem:[#allocation5 + $0x720] sm:$0xff]
        %v625 = vld [vmem:[#allocation5 + $0x728] sm:$0xff]
        %v626 = vld [vmem:[#allocation5 + $0x730] sm:$0xff]
        %v627 = vld [vmem:[#allocation5 + $0x738] sm:$0xff]
        %v628 = vld [vmem:[#allocation5 + $0x740] sm:$0xff]
        %v629 = vld [vmem:[#allocation5 + $0x748] sm:$0xff]
        %v630 = vld [vmem:[#allocation5 + $0x750] sm:$0xff]
        %v631 = vld [vmem:[#allocation5 + $0x758] sm:$0xff]
        %v632 = vld [vmem:[#allocation5 + $0x760] sm:$0xff]
        %v633 = vld [vmem:[#allocation5 + $0x768] sm:$0xff]
        %v634 = vld [vmem:[#allocation5 + $0x770] sm:$0xff]
        %v635 = vld [vmem:[#allocation5 + $0x778] sm:$0xff]
        %v636 = vld [vmem:[#allocation5 + $0x780] sm:$0xff]
        %v637 = vld [vmem:[#allocation5 + $0x788] sm:$0xff]
        %v638 = vld [vmem:[#allocation5 + $0x790] sm:$0xff]
        %v639 = vld [vmem:[#allocation5 + $0x798] sm:$0xff]
        %v640 = vld [vmem:[#allocation5 + $0x7a0] sm:$0xff]
        %v641 = vld [vmem:[#allocation5 + $0x7a8] sm:$0xff]
        %v642 = vld [vmem:[#allocation5 + $0x7b0] sm:$0xff]
        %v643 = vld [vmem:[#allocation5 + $0x7b8] sm:$0xff]
        %v644 = vld [vmem:[#allocation5 + $0x7c0] sm:$0xff]
        %v645 = vld [vmem:[#allocation5 + $0x7c8] sm:$0xff]
        %v646 = vld [vmem:[#allocation5 + $0x7d0] sm:$0xff]
        %v647 = vld [vmem:[#allocation5 + $0x7d8] sm:$0xff]
        %v648 = vld [vmem:[#allocation5 + $0x7e0] sm:$0xff]
        %v649 = vld [vmem:[#allocation5 + $0x7e8] sm:$0xff]
        %v650 = vld [vmem:[#allocation5 + $0x7f0] sm:$0xff]
        %v651 = vld [vmem:[#allocation5 + $0x7f8] sm:$0xff]
        %v652 = vld [vmem:[#allocation5 + $0x800] sm:$0xff]
        %v653 = vld [vmem:[#allocation5 + $0x808] sm:$0xff]
        %v654 = vld [vmem:[#allocation5 + $0x810] sm:$0xff]
        %v655 = vld [vmem:[#allocation5 + $0x818] sm:$0xff]
        %v656 = vld [vmem:[#allocation5 + $0x820] sm:$0xff]
        %v657 = vld [vmem:[#allocation5 + $0x828] sm:$0xff]
        %v658 = vld [vmem:[#allocation5 + $0x830] sm:$0xff]
        %v659 = vld [vmem:[#allocation5 + $0x838] sm:$0xff]
        %v660 = vld [vmem:[#allocation5 + $0x840] sm:$0xff]
        %v661 = vld [vmem:[#allocation5 + $0x848] sm:$0xff]
        %v662 = vld [vmem:[#allocation5 + $0x850] sm:$0xff]
        %v663 = vld [vmem:[#allocation5 + $0x858] sm:$0xff]
        %v664 = vld [vmem:[#allocation5 + $0x860] sm:$0xff]
        %v665 = vld [vmem:[#allocation5 + $0x868] sm:$0xff]
        %v666 = vld [vmem:[#allocation5 + $0x870] sm:$0xff]
        %v667 = vld [vmem:[#allocation5 + $0x878] sm:$0xff]
        %v668 = vld [vmem:[#allocation5 + $0x880] sm:$0xff]
        %v669 = vld [vmem:[#allocation5 + $0x888] sm:$0xff]
        %v670 = vld [vmem:[#allocation5 + $0x890] sm:$0xff]
        %v671 = vld [vmem:[#allocation5 + $0x898] sm:$0xff]
        %v672 = vld [vmem:[#allocation5 + $0x8a0] sm:$0xff]
        %v673 = vld [vmem:[#allocation5 + $0x8a8] sm:$0xff]
        %v674 = vld [vmem:[#allocation5 + $0x8b0] sm:$0xff]
        %v675 = vld [vmem:[#allocation5 + $0x8b8] sm:$0xff]
        %v676 = vld [vmem:[#allocation5 + $0x8c0] sm:$0xff]
        %v677 = vld [vmem:[#allocation5 + $0x8c8] sm:$0xff]
        %v678 = vld [vmem:[#allocation5 + $0x8d0] sm:$0xff]
        %v679 = vld [vmem:[#allocation5 + $0x8d8] sm:$0xff]
        %v680 = vld [vmem:[#allocation5 + $0x8e0] sm:$0xff]
        %v681 = vld [vmem:[#allocation5 + $0x8e8] sm:$0xff]
        %v682 = vld [vmem:[#allocation5 + $0x8f0] sm:$0xff]
        %v683 = vld [vmem:[#allocation5 + $0x8f8] sm:$0xff]
        %v684 = vld [vmem:[#allocation5 + $0x900] sm:$0xff]
        %v685 = vld [vmem:[#allocation5 + $0x908] sm:$0xff]
        %v686 = vld [vmem:[#allocation5 + $0x910] sm:$0xff]
        %v687 = vld [vmem:[#allocation5 + $0x918] sm:$0xff]
        %v688 = vld [vmem:[#allocation5 + $0x920] sm:$0xff]
        %v689 = vld [vmem:[#allocation5 + $0x928] sm:$0xff]
        %v690 = vld [vmem:[#allocation5 + $0x930] sm:$0xff]
        %v691 = vld [vmem:[#allocation5 + $0x938] sm:$0xff]
        %v692 = vld [vmem:[#allocation5 + $0x940] sm:$0xff]
        %v693 = vld [vmem:[#allocation5 + $0x948] sm:$0xff]
        %v694 = vld [vmem:[#allocation5 + $0x950] sm:$0xff]
        %v695 = vld [vmem:[#allocation5 + $0x958] sm:$0xff]
        %v696 = vld [vmem:[#allocation5 + $0x960] sm:$0xff]
        %v697 = vld [vmem:[#allocation5 + $0x968] sm:$0xff]
        %v698 = vld [vmem:[#allocation5 + $0x970] sm:$0xff]
        %v699 = vld [vmem:[#allocation5 + $0x978] sm:$0xff]
        %v700 = vld [vmem:[#allocation5 + $0x980] sm:$0xff]
        %v701 = vld [vmem:[#allocation5 + $0x988] sm:$0xff]
        %v702 = vld [vmem:[#allocation5 + $0x990] sm:$0xff]
        %v703 = vld [vmem:[#allocation5 + $0x998] sm:$0xff]
        %v704 = vld [vmem:[#allocation5 + $0x9a0] sm:$0xff]
        %v705 = vld [vmem:[#allocation5 + $0x9a8] sm:$0xff]
        %v706 = vld [vmem:[#allocation5 + $0x9b0] sm:$0xff]
        %v707 = vld [vmem:[#allocation5 + $0x9b8] sm:$0xff]
        %v708 = vld [vmem:[#allocation5 + $0x9c0] sm:$0xff]
        %v709 = vld [vmem:[#allocation5 + $0x9c8] sm:$0xff]
        %v710 = vld [vmem:[#allocation5 + $0x9d0] sm:$0xff]
        %v711 = vld [vmem:[#allocation5 + $0x9d8] sm:$0xff]
        %v712 = vld [vmem:[#allocation5 + $0x9e0] sm:$0xff]
        %v713 = vld [vmem:[#allocation5 + $0x9e8] sm:$0xff]
        %v714 = vld [vmem:[#allocation5 + $0x9f0] sm:$0xff]
        %v715 = vld [vmem:[#allocation5 + $0x9f8] sm:$0xff]
        %v716 = vld [vmem:[#allocation5 + $0xa00] sm:$0xff]
        %v717 = vld [vmem:[#allocation5 + $0xa08] sm:$0xff]
        %v718 = vld [vmem:[#allocation5 + $0xa10] sm:$0xff]
        %v719 = vld [vmem:[#allocation5 + $0xa18] sm:$0xff]
        %v720 = vld [vmem:[#allocation5 + $0xa20] sm:$0xff]
        %v721 = vld [vmem:[#allocation5 + $0xa28] sm:$0xff]
        %v722 = vld [vmem:[#allocation5 + $0xa30] sm:$0xff]
        %v723 = vld [vmem:[#allocation5 + $0xa38] sm:$0xff]
        %v724 = vld [vmem:[#allocation5 + $0xa40] sm:$0xff]
        %v725 = vld [vmem:[#allocation5 + $0xa48] sm:$0xff]
        %v726 = vld [vmem:[#allocation5 + $0xa50] sm:$0xff]
        %v727 = vld [vmem:[#allocation5 + $0xa58] sm:$0xff]
        %v728 = vld [vmem:[#allocation5 + $0xa60] sm:$0xff]
        %v729 = vld [vmem:[#allocation5 + $0xa68] sm:$0xff]
        %v730 = vld [vmem:[#allocation5 + $0xa70] sm:$0xff]
        %v731 = vld [vmem:[#allocation5 + $0xa78] sm:$0xff]
        %v732 = vld [vmem:[#allocation5 + $0xa80] sm:$0xff]
        %v733 = vld [vmem:[#allocation5 + $0xa88] sm:$0xff]
        %v734 = vld [vmem:[#allocation5 + $0xa90] sm:$0xff]
        %v735 = vld [vmem:[#allocation5 + $0xa98] sm:$0xff]
        %v736 = vld [vmem:[#allocation5 + $0xaa0] sm:$0xff]
        %v737 = vld [vmem:[#allocation5 + $0xaa8] sm:$0xff]
        %v738 = vld [vmem:[#allocation5 + $0xab0] sm:$0xff]
        %v739 = vld [vmem:[#allocation5 + $0xab8] sm:$0xff]
        %v740 = vld [vmem:[#allocation5 + $0xac0] sm:$0xff]
        %v741 = vld [vmem:[#allocation5 + $0xac8] sm:$0xff]
        %v742 = vld [vmem:[#allocation5 + $0xad0] sm:$0xff]
        %v743 = vld [vmem:[#allocation5 + $0xad8] sm:$0xff]
        %v744 = vld [vmem:[#allocation5 + $0xae0] sm:$0xff]
        %v745 = vld [vmem:[#allocation5 + $0xae8] sm:$0xff]
        %v746 = vld [vmem:[#allocation5 + $0xaf0] sm:$0xff]
        %v747 = vld [vmem:[#allocation5 + $0xaf8] sm:$0xff]
        %v748 = vld [vmem:[#allocation5 + $0xb00] sm:$0xff]
        %v749 = vld [vmem:[#allocation5 + $0xb08] sm:$0xff]
        %v750 = vld [vmem:[#allocation5 + $0xb10] sm:$0xff]
        %v751 = vld [vmem:[#allocation5 + $0xb18] sm:$0xff]
        %v752 = vld [vmem:[#allocation5 + $0xb20] sm:$0xff]
        %v753 = vld [vmem:[#allocation5 + $0xb28] sm:$0xff]
        %v754 = vld [vmem:[#allocation5 + $0xb30] sm:$0xff]
        %v755 = vld [vmem:[#allocation5 + $0xb38] sm:$0xff]
        %v756 = vld [vmem:[#allocation5 + $0xb40] sm:$0xff]
        %v757 = vld [vmem:[#allocation5 + $0xb48] sm:$0xff]
        %v758 = vld [vmem:[#allocation5 + $0xb50] sm:$0xff]
        %v759 = vld [vmem:[#allocation5 + $0xb58] sm:$0xff]
        %v760 = vld [vmem:[#allocation5 + $0xb60] sm:$0xff]
        %v761 = vld [vmem:[#allocation5 + $0xb68] sm:$0xff]
        %v762 = vld [vmem:[#allocation5 + $0xb70] sm:$0xff]
        %v763 = vld [vmem:[#allocation5 + $0xb78] sm:$0xff]
        %v764 = vld [vmem:[#allocation5 + $0xb80] sm:$0xff]
        %v765 = vld [vmem:[#allocation5 + $0xb88] sm:$0xff]
        %v766 = vld [vmem:[#allocation5 + $0xb90] sm:$0xff]
        %v767 = vld [vmem:[#allocation5 + $0xb98] sm:$0xff]
        %v768 = vld [vmem:[#allocation5 + $0xba0] sm:$0xff]
        %v769 = vld [vmem:[#allocation5 + $0xba8] sm:$0xff]
        %v770 = vld [vmem:[#allocation5 + $0xbb0] sm:$0xff]
        %v771 = vld [vmem:[#allocation5 + $0xbb8] sm:$0xff]
        %v772 = vld [vmem:[#allocation5 + $0xbc0] sm:$0xff]
        %v773 = vld [vmem:[#allocation5 + $0xbc8] sm:$0xff]
        %v774 = vld [vmem:[#allocation5 + $0xbd0] sm:$0xff]
        %v775 = vld [vmem:[#allocation5 + $0xbd8] sm:$0xff]
        %v776 = vld [vmem:[#allocation5 + $0xbe0] sm:$0xff]
        %v777 = vld [vmem:[#allocation5 + $0xbe8] sm:$0xff]
        %v778 = vld [vmem:[#allocation5 + $0xbf0] sm:$0xff]
        %v779 = vld [vmem:[#allocation5 + $0xbf8] sm:$0xff]
        %v780 = vld [vmem:[#allocation5 + $0xc00] sm:$0xff]
        %v781 = vld [vmem:[#allocation5 + $0xc08] sm:$0xff]
        %v782 = vld [vmem:[#allocation5 + $0xc10] sm:$0xff]
        %v783 = vld [vmem:[#allocation5 + $0xc18] sm:$0xff]
        %v784 = vld [vmem:[#allocation5 + $0xc20] sm:$0xff]
        %v785 = vld [vmem:[#allocation5 + $0xc28] sm:$0xff]
        %v786 = vld [vmem:[#allocation5 + $0xc30] sm:$0xff]
        %v787 = vld [vmem:[#allocation5 + $0xc38] sm:$0xff]
        %v788 = vld [vmem:[#allocation5 + $0xc40] sm:$0xff]
        %v789 = vld [vmem:[#allocation5 + $0xc48] sm:$0xff]
        %v790 = vld [vmem:[#allocation5 + $0xc50] sm:$0xff]
        %v791 = vld [vmem:[#allocation5 + $0xc58] sm:$0xff]
        %v792 = vld [vmem:[#allocation5 + $0xc60] sm:$0xff]
        %v793 = vld [vmem:[#allocation5 + $0xc68] sm:$0xff]
        %v794 = vld [vmem:[#allocation5 + $0xc70] sm:$0xff]
        %v795 = vld [vmem:[#allocation5 + $0xc78] sm:$0xff]
        %v796 = vld [vmem:[#allocation5 + $0xc80] sm:$0xff]
        %v797 = vld [vmem:[#allocation5 + $0xc88] sm:$0xff]
        %v798 = vld [vmem:[#allocation5 + $0xc90] sm:$0xff]
        %v799 = vld [vmem:[#allocation5 + $0xc98] sm:$0xff]
        %v800 = vld [vmem:[#allocation5 + $0xca0] sm:$0xff]
        %v801 = vld [vmem:[#allocation5 + $0xca8] sm:$0xff]
        %v802 = vld [vmem:[#allocation5 + $0xcb0] sm:$0xff]
        %v803 = vld [vmem:[#allocation5 + $0xcb8] sm:$0xff]
        %v804 = vld [vmem:[#allocation5 + $0xcc0] sm:$0xff]
        %v805 = vld [vmem:[#allocation5 + $0xcc8] sm:$0xff]
        %v806 = vld [vmem:[#allocation5 + $0xcd0] sm:$0xff]
        %v807 = vld [vmem:[#allocation5 + $0xcd8] sm:$0xff]
        %v808 = vld [vmem:[#allocation5 + $0xce0] sm:$0xff]
        %v809 = vld [vmem:[#allocation5 + $0xce8] sm:$0xff]
        %v810 = vld [vmem:[#allocation5 + $0xcf0] sm:$0xff]
        %v811 = vld [vmem:[#allocation5 + $0xcf8] sm:$0xff]
        %v812 = vld [vmem:[#allocation5 + $0xd00] sm:$0xff]
        %v813 = vld [vmem:[#allocation5 + $0xd08] sm:$0xff]
        %v814 = vld [vmem:[#allocation5 + $0xd10] sm:$0xff]
        %v815 = vld [vmem:[#allocation5 + $0xd18] sm:$0xff]
        %v816 = vld [vmem:[#allocation5 + $0xd20] sm:$0xff]
        %v817 = vld [vmem:[#allocation5 + $0xd28] sm:$0xff]
        %v818 = vld [vmem:[#allocation5 + $0xd30] sm:$0xff]
        %v819 = vld [vmem:[#allocation5 + $0xd38] sm:$0xff]
        %v820 = vld [vmem:[#allocation5 + $0xd40] sm:$0xff]
        %v821 = vld [vmem:[#allocation5 + $0xd48] sm:$0xff]
        %v822 = vld [vmem:[#allocation5 + $0xd50] sm:$0xff]
        %v823 = vld [vmem:[#allocation5 + $0xd58] sm:$0xff]
        %v824 = vld [vmem:[#allocation5 + $0xd60] sm:$0xff]
        %v825 = vld [vmem:[#allocation5 + $0xd68] sm:$0xff]
        %v826 = vld [vmem:[#allocation5 + $0xd70] sm:$0xff]
        %v827 = vld [vmem:[#allocation5 + $0xd78] sm:$0xff]
        %v828 = vld [vmem:[#allocation5 + $0xd80] sm:$0xff]
        %v829 = vld [vmem:[#allocation5 + $0xd88] sm:$0xff]
        %v830 = vld [vmem:[#allocation5 + $0xd90] sm:$0xff]
        %v831 = vld [vmem:[#allocation5 + $0xd98] sm:$0xff]
        %v832 = vld [vmem:[#allocation5 + $0xda0] sm:$0xff]
        %v833 = vld [vmem:[#allocation5 + $0xda8] sm:$0xff]
        %v834 = vld [vmem:[#allocation5 + $0xdb0] sm:$0xff]
        %v835 = vld [vmem:[#allocation5 + $0xdb8] sm:$0xff]
        %v836 = vld [vmem:[#allocation5 + $0xdc0] sm:$0xff]
        %v837 = vld [vmem:[#allocation5 + $0xdc8] sm:$0xff]
        %v838 = vld [vmem:[#allocation5 + $0xdd0] sm:$0xff]
        %v839 = vld [vmem:[#allocation5 + $0xdd8] sm:$0xff]
        %v840 = vld [vmem:[#allocation5 + $0xde0] sm:$0xff]
        %v841 = vld [vmem:[#allocation5 + $0xde8] sm:$0xff]
        %v842 = vld [vmem:[#allocation5 + $0xdf0] sm:$0xff]
        %v843 = vld [vmem:[#allocation5 + $0xdf8] sm:$0xff]
        %v844 = vld [vmem:[#allocation5 + $0xe00] sm:$0xff]
        %v845 = vld [vmem:[#allocation5 + $0xe08] sm:$0xff]
        %v846 = vld [vmem:[#allocation5 + $0xe10] sm:$0xff]
        %v847 = vld [vmem:[#allocation5 + $0xe18] sm:$0xff]
        %v848 = vld [vmem:[#allocation5 + $0xe20] sm:$0xff]
        %v849 = vld [vmem:[#allocation5 + $0xe28] sm:$0xff]
        %v850 = vld [vmem:[#allocation5 + $0xe30] sm:$0xff]
        %v851 = vld [vmem:[#allocation5 + $0xe38] sm:$0xff]
        %v852 = vld [vmem:[#allocation5 + $0xe40] sm:$0xff]
        %v853 = vld [vmem:[#allocation5 + $0xe48] sm:$0xff]
        %v854 = vld [vmem:[#allocation5 + $0xe50] sm:$0xff]
        %v855 = vld [vmem:[#allocation5 + $0xe58] sm:$0xff]
        %v856 = vld [vmem:[#allocation5 + $0xe60] sm:$0xff]
        %v857 = vld [vmem:[#allocation5 + $0xe68] sm:$0xff]
        %v858 = vld [vmem:[#allocation5 + $0xe70] sm:$0xff]
        %v859 = vld [vmem:[#allocation5 + $0xe78] sm:$0xff]
        %v860 = vld [vmem:[#allocation5 + $0xe80] sm:$0xff]
        %v861 = vld [vmem:[#allocation5 + $0xe88] sm:$0xff]
        %v862 = vld [vmem:[#allocation5 + $0xe90] sm:$0xff]
        %v863 = vld [vmem:[#allocation5 + $0xe98] sm:$0xff]
        %v864 = vld [vmem:[#allocation5 + $0xea0] sm:$0xff]
        %v865 = vld [vmem:[#allocation5 + $0xea8] sm:$0xff]
        %v866 = vld [vmem:[#allocation5 + $0xeb0] sm:$0xff]
        %v867 = vld [vmem:[#allocation5 + $0xeb8] sm:$0xff]
        %v868 = vld [vmem:[#allocation5 + $0xec0] sm:$0xff]
        %v869 = vld [vmem:[#allocation5 + $0xec8] sm:$0xff]
        %v870 = vld [vmem:[#allocation5 + $0xed0] sm:$0xff]
        %v871 = vld [vmem:[#allocation5 + $0xed8] sm:$0xff]
        %v872 = vld [vmem:[#allocation5 + $0xee0] sm:$0xff]
        %v873 = vld [vmem:[#allocation5 + $0xee8] sm:$0xff]
        %v874 = vld [vmem:[#allocation5 + $0xef0] sm:$0xff]
        %v875 = vld [vmem:[#allocation5 + $0xef8] sm:$0xff]
        %v876 = vld [vmem:[#allocation5 + $0xf00] sm:$0xff]
        %v877 = vld [vmem:[#allocation5 + $0xf08] sm:$0xff]
        %v878 = vld [vmem:[#allocation5 + $0xf10] sm:$0xff]
        %v879 = vld [vmem:[#allocation5 + $0xf18] sm:$0xff]
        %v880 = vld [vmem:[#allocation5 + $0xf20] sm:$0xff]
        %v881 = vld [vmem:[#allocation5 + $0xf28] sm:$0xff]
        %v882 = vld [vmem:[#allocation5 + $0xf30] sm:$0xff]
        %v883 = vld [vmem:[#allocation5 + $0xf38] sm:$0xff]
        %v884 = vld [vmem:[#allocation5 + $0xf40] sm:$0xff]
        %v885 = vld [vmem:[#allocation5 + $0xf48] sm:$0xff]
        %v886 = vld [vmem:[#allocation5 + $0xf50] sm:$0xff]
        %v887 = vld [vmem:[#allocation5 + $0xf58] sm:$0xff]
        %v888 = vld [vmem:[#allocation5 + $0xf60] sm:$0xff]
        %v889 = vld [vmem:[#allocation5 + $0xf68] sm:$0xff]
        %v890 = vld [vmem:[#allocation5 + $0xf70] sm:$0xff]
        %v891 = vld [vmem:[#allocation5 + $0xf78] sm:$0xff]
        %v892 = vld [vmem:[#allocation5 + $0xf80] sm:$0xff]
        %v893 = vld [vmem:[#allocation5 + $0xf88] sm:$0xff]
        %v894 = vld [vmem:[#allocation5 + $0xf90] sm:$0xff]
        %v895 = vld [vmem:[#allocation5 + $0xf98] sm:$0xff]
        %v896 = vld [vmem:[#allocation5 + $0xfa0] sm:$0xff]
        %v897 = vld [vmem:[#allocation5 + $0xfa8] sm:$0xff]
        %v898 = vld [vmem:[#allocation5 + $0xfb0] sm:$0xff]
        %v899 = vld [vmem:[#allocation5 + $0xfb8] sm:$0xff]
        %v900 = vld [vmem:[#allocation5 + $0xfc0] sm:$0xff]
        %v901 = vld [vmem:[#allocation5 + $0xfc8] sm:$0xff]
        %v902 = vld [vmem:[#allocation5 + $0xfd0] sm:$0xff]
        %v903 = vld [vmem:[#allocation5 + $0xfd8] sm:$0xff]
        %v904 = vld [vmem:[#allocation5 + $0xfe0] sm:$0xff]
        %v905 = vld [vmem:[#allocation5 + $0xfe8] sm:$0xff]
        %v906 = vld [vmem:[#allocation5 + $0xff0] sm:$0xff]
        %v907 = vld [vmem:[#allocation5 + $0xff8] sm:$0xff]
        %v908 = vld [vmem:[#allocation7] sm:$0xff]
        %v909 = vld [vmem:[#allocation7 + $0x8] sm:$0xff]
        %v912 = vperm.slane %v908, 0
        %v913 = vperm.slane %v908, 1
        %v914 = vperm.slane %v908, 2
        %v915 = vperm.slane %v908, 3
        %v916 = vperm.slane %v908, 4
        %v917 = vperm.slane %v908, 5
        %v918 = vperm.slane %v908, 6
        %v919 = vperm.slane %v908, 7
        %v920 = vperm.slane %v909, 0
        %v921 = vperm.slane %v909, 1
        %v922 = vperm.slane %v909, 2
        %v923 = vperm.slane %v909, 3
        %v924 = vperm.slane %v909, 4
        %v925 = vperm.slane %v909, 5
        %v926 = vperm.slane %v909, 6
        %v927 = vperm.slane %v909, 7
        %v1456 = vunpack.c.l.b16 %v396
        %v1457 = vunpack.c.h.b16 %v396
        %v1458 = vunpack.c.l.b16 %v397
        %v1459 = vunpack.c.h.b16 %v397
        %v1460 = vunpack.c.l.b16 %v398
        %v1461 = vunpack.c.h.b16 %v398
        %v1462 = vunpack.c.l.b16 %v399
        %v1463 = vunpack.c.h.b16 %v399
        %v1464 = vunpack.c.l.b16 %v400
        %v1465 = vunpack.c.h.b16 %v400
        %v1466 = vunpack.c.l.b16 %v401
        %v1467 = vunpack.c.h.b16 %v401
        %v1468 = vunpack.c.l.b16 %v402
        %v1469 = vunpack.c.h.b16 %v402
        %v1470 = vunpack.c.l.b16 %v403
        %v1471 = vunpack.c.h.b16 %v403
        %v1472 = vunpack.c.l.b16 %v404
        %v1473 = vunpack.c.h.b16 %v404
        %v1474 = vunpack.c.l.b16 %v405
        %v1475 = vunpack.c.h.b16 %v405
        %v1476 = vunpack.c.l.b16 %v406
        %v1477 = vunpack.c.h.b16 %v406
        %v1478 = vunpack.c.l.b16 %v407
        %v1479 = vunpack.c.h.b16 %v407
        %v1480 = vunpack.c.l.b16 %v408
        %v1481 = vunpack.c.h.b16 %v408
        %v1482 = vunpack.c.l.b16 %v409
        %v1483 = vunpack.c.h.b16 %v409
        %v1484 = vunpack.c.l.b16 %v410
        %v1485 = vunpack.c.h.b16 %v410
        %v1486 = vunpack.c.l.b16 %v411
        %v1487 = vunpack.c.h.b16 %v411
        %v1488 = vunpack.c.l.b16 %v412
        %v1489 = vunpack.c.h.b16 %v412
        %v1490 = vunpack.c.l.b16 %v413
        %v1491 = vunpack.c.h.b16 %v413
        %v1492 = vunpack.c.l.b16 %v414
        %v1493 = vunpack.c.h.b16 %v414
        %v1494 = vunpack.c.l.b16 %v415
        %v1495 = vunpack.c.h.b16 %v415
        %v1496 = vunpack.c.l.b16 %v416
        %v1497 = vunpack.c.h.b16 %v416
        %v1498 = vunpack.c.l.b16 %v417
        %v1499 = vunpack.c.h.b16 %v417
        %v1500 = vunpack.c.l.b16 %v418
        %v1501 = vunpack.c.h.b16 %v418
        %v1502 = vunpack.c.l.b16 %v419
        %v1503 = vunpack.c.h.b16 %v419
        %v1504 = vunpack.c.l.b16 %v420
        %v1505 = vunpack.c.h.b16 %v420
        %v1506 = vunpack.c.l.b16 %v421
        %v1507 = vunpack.c.h.b16 %v421
        %v1508 = vunpack.c.l.b16 %v422
        %v1509 = vunpack.c.h.b16 %v422
        %v1510 = vunpack.c.l.b16 %v423
        %v1511 = vunpack.c.h.b16 %v423
        %v1512 = vunpack.c.l.b16 %v424
        %v1513 = vunpack.c.h.b16 %v424
        %v1514 = vunpack.c.l.b16 %v425
        %v1515 = vunpack.c.h.b16 %v425
        %v1516 = vunpack.c.l.b16 %v426
        %v1517 = vunpack.c.h.b16 %v426
        %v1518 = vunpack.c.l.b16 %v427
        %v1519 = vunpack.c.h.b16 %v427
        %v1520 = vunpack.c.l.b16 %v428
        %v1521 = vunpack.c.h.b16 %v428
        %v1522 = vunpack.c.l.b16 %v429
        %v1523 = vunpack.c.h.b16 %v429
        %v1524 = vunpack.c.l.b16 %v430
        %v1525 = vunpack.c.h.b16 %v430
        %v1526 = vunpack.c.l.b16 %v431
        %v1527 = vunpack.c.h.b16 %v431
        %v1528 = vunpack.c.l.b16 %v432
        %v1529 = vunpack.c.h.b16 %v432
        %v1530 = vunpack.c.l.b16 %v433
        %v1531 = vunpack.c.h.b16 %v433
        %v1532 = vunpack.c.l.b16 %v434
        %v1533 = vunpack.c.h.b16 %v434
        %v1534 = vunpack.c.l.b16 %v435
        %v1535 = vunpack.c.h.b16 %v435
        %v1536 = vunpack.c.l.b16 %v436
        %v1537 = vunpack.c.h.b16 %v436
        %v1538 = vunpack.c.l.b16 %v437
        %v1539 = vunpack.c.h.b16 %v437
        %v1540 = vunpack.c.l.b16 %v438
        %v1541 = vunpack.c.h.b16 %v438
        %v1542 = vunpack.c.l.b16 %v439
        %v1543 = vunpack.c.h.b16 %v439
        %v1544 = vunpack.c.l.b16 %v440
        %v1545 = vunpack.c.h.b16 %v440
        %v1546 = vunpack.c.l.b16 %v441
        %v1547 = vunpack.c.h.b16 %v441
        %v1548 = vunpack.c.l.b16 %v442
        %v1549 = vunpack.c.h.b16 %v442
        %v1550 = vunpack.c.l.b16 %v443
        %v1551 = vunpack.c.h.b16 %v443
        %v1552 = vunpack.c.l.b16 %v444
        %v1553 = vunpack.c.h.b16 %v444
        %v1554 = vunpack.c.l.b16 %v445
        %v1555 = vunpack.c.h.b16 %v445
        %v1556 = vunpack.c.l.b16 %v446
        %v1557 = vunpack.c.h.b16 %v446
        %v1558 = vunpack.c.l.b16 %v447
        %v1559 = vunpack.c.h.b16 %v447
        %v1560 = vunpack.c.l.b16 %v448
        %v1561 = vunpack.c.h.b16 %v448
        %v1562 = vunpack.c.l.b16 %v449
        %v1563 = vunpack.c.h.b16 %v449
        %v1564 = vunpack.c.l.b16 %v450
        %v1565 = vunpack.c.h.b16 %v450
        %v1566 = vunpack.c.l.b16 %v451
        %v1567 = vunpack.c.h.b16 %v451
        %v1568 = vunpack.c.l.b16 %v452
        %v1569 = vunpack.c.h.b16 %v452
        %v1570 = vunpack.c.l.b16 %v453
        %v1571 = vunpack.c.h.b16 %v453
        %v1572 = vunpack.c.l.b16 %v454
        %v1573 = vunpack.c.h.b16 %v454
        %v1574 = vunpack.c.l.b16 %v455
        %v1575 = vunpack.c.h.b16 %v455
        %v1576 = vunpack.c.l.b16 %v456
        %v1577 = vunpack.c.h.b16 %v456
        %v1578 = vunpack.c.l.b16 %v457
        %v1579 = vunpack.c.h.b16 %v457
        %v1580 = vunpack.c.l.b16 %v458
        %v1581 = vunpack.c.h.b16 %v458
        %v1582 = vunpack.c.l.b16 %v459
        %v1583 = vunpack.c.h.b16 %v459
        %v1584 = vunpack.c.l.b16 %v460
        %v1585 = vunpack.c.h.b16 %v460
        %v1586 = vunpack.c.l.b16 %v461
        %v1587 = vunpack.c.h.b16 %v461
        %v1588 = vunpack.c.l.b16 %v462
        %v1589 = vunpack.c.h.b16 %v462
        %v1590 = vunpack.c.l.b16 %v463
        %v1591 = vunpack.c.h.b16 %v463
        %v1592 = vunpack.c.l.b16 %v464
        %v1593 = vunpack.c.h.b16 %v464
        %v1594 = vunpack.c.l.b16 %v465
        %v1595 = vunpack.c.h.b16 %v465
        %v1596 = vunpack.c.l.b16 %v466
        %v1597 = vunpack.c.h.b16 %v466
        %v1598 = vunpack.c.l.b16 %v467
        %v1599 = vunpack.c.h.b16 %v467
        %v1600 = vunpack.c.l.b16 %v468
        %v1601 = vunpack.c.h.b16 %v468
        %v1602 = vunpack.c.l.b16 %v469
        %v1603 = vunpack.c.h.b16 %v469
        %v1604 = vunpack.c.l.b16 %v470
        %v1605 = vunpack.c.h.b16 %v470
        %v1606 = vunpack.c.l.b16 %v471
        %v1607 = vunpack.c.h.b16 %v471
        %v1608 = vunpack.c.l.b16 %v472
        %v1609 = vunpack.c.h.b16 %v472
        %v1610 = vunpack.c.l.b16 %v473
        %v1611 = vunpack.c.h.b16 %v473
        %v1612 = vunpack.c.l.b16 %v474
        %v1613 = vunpack.c.h.b16 %v474
        %v1614 = vunpack.c.l.b16 %v475
        %v1615 = vunpack.c.h.b16 %v475
        %v1616 = vunpack.c.l.b16 %v476
        %v1617 = vunpack.c.h.b16 %v476
        %v1618 = vunpack.c.l.b16 %v477
        %v1619 = vunpack.c.h.b16 %v477
        %v1620 = vunpack.c.l.b16 %v478
        %v1621 = vunpack.c.h.b16 %v478
        %v1622 = vunpack.c.l.b16 %v479
        %v1623 = vunpack.c.h.b16 %v479
        %v1624 = vunpack.c.l.b16 %v480
        %v1625 = vunpack.c.h.b16 %v480
        %v1626 = vunpack.c.l.b16 %v481
        %v1627 = vunpack.c.h.b16 %v481
        %v1628 = vunpack.c.l.b16 %v482
        %v1629 = vunpack.c.h.b16 %v482
        %v1630 = vunpack.c.l.b16 %v483
        %v1631 = vunpack.c.h.b16 %v483
        %v1632 = vunpack.c.l.b16 %v484
        %v1633 = vunpack.c.h.b16 %v484
        %v1634 = vunpack.c.l.b16 %v485
        %v1635 = vunpack.c.h.b16 %v485
        %v1636 = vunpack.c.l.b16 %v486
        %v1637 = vunpack.c.h.b16 %v486
        %v1638 = vunpack.c.l.b16 %v487
        %v1639 = vunpack.c.h.b16 %v487
        %v1640 = vunpack.c.l.b16 %v488
        %v1641 = vunpack.c.h.b16 %v488
        %v1642 = vunpack.c.l.b16 %v489
        %v1643 = vunpack.c.h.b16 %v489
        %v1644 = vunpack.c.l.b16 %v490
        %v1645 = vunpack.c.h.b16 %v490
        %v1646 = vunpack.c.l.b16 %v491
        %v1647 = vunpack.c.h.b16 %v491
        %v1648 = vunpack.c.l.b16 %v492
        %v1649 = vunpack.c.h.b16 %v492
        %v1650 = vunpack.c.l.b16 %v493
        %v1651 = vunpack.c.h.b16 %v493
        %v1652 = vunpack.c.l.b16 %v494
        %v1653 = vunpack.c.h.b16 %v494
        %v1654 = vunpack.c.l.b16 %v495
        %v1655 = vunpack.c.h.b16 %v495
        %v1656 = vunpack.c.l.b16 %v496
        %v1657 = vunpack.c.h.b16 %v496
        %v1658 = vunpack.c.l.b16 %v497
        %v1659 = vunpack.c.h.b16 %v497
        %v1660 = vunpack.c.l.b16 %v498
        %v1661 = vunpack.c.h.b16 %v498
        %v1662 = vunpack.c.l.b16 %v499
        %v1663 = vunpack.c.h.b16 %v499
        %v1664 = vunpack.c.l.b16 %v500
        %v1665 = vunpack.c.h.b16 %v500
        %v1666 = vunpack.c.l.b16 %v501
        %v1667 = vunpack.c.h.b16 %v501
        %v1668 = vunpack.c.l.b16 %v502
        %v1669 = vunpack.c.h.b16 %v502
        %v1670 = vunpack.c.l.b16 %v503
        %v1671 = vunpack.c.h.b16 %v503
        %v1672 = vunpack.c.l.b16 %v504
        %v1673 = vunpack.c.h.b16 %v504
        %v1674 = vunpack.c.l.b16 %v505
        %v1675 = vunpack.c.h.b16 %v505
        %v1676 = vunpack.c.l.b16 %v506
        %v1677 = vunpack.c.h.b16 %v506
        %v1678 = vunpack.c.l.b16 %v507
        %v1679 = vunpack.c.h.b16 %v507
        %v1680 = vunpack.c.l.b16 %v508
        %v1681 = vunpack.c.h.b16 %v508
        %v1682 = vunpack.c.l.b16 %v509
        %v1683 = vunpack.c.h.b16 %v509
        %v1684 = vunpack.c.l.b16 %v510
        %v1685 = vunpack.c.h.b16 %v510
        %v1686 = vunpack.c.l.b16 %v511
        %v1687 = vunpack.c.h.b16 %v511
        %v1688 = vunpack.c.l.b16 %v512
        %v1689 = vunpack.c.h.b16 %v512
        %v1690 = vunpack.c.l.b16 %v513
        %v1691 = vunpack.c.h.b16 %v513
        %v1692 = vunpack.c.l.b16 %v514
        %v1693 = vunpack.c.h.b16 %v514
        %v1694 = vunpack.c.l.b16 %v515
        %v1695 = vunpack.c.h.b16 %v515
        %v1696 = vunpack.c.l.b16 %v516
        %v1697 = vunpack.c.h.b16 %v516
        %v1698 = vunpack.c.l.b16 %v517
        %v1699 = vunpack.c.h.b16 %v517
        %v1700 = vunpack.c.l.b16 %v518
        %v1701 = vunpack.c.h.b16 %v518
        %v1702 = vunpack.c.l.b16 %v519
        %v1703 = vunpack.c.h.b16 %v519
        %v1704 = vunpack.c.l.b16 %v520
        %v1705 = vunpack.c.h.b16 %v520
        %v1706 = vunpack.c.l.b16 %v521
        %v1707 = vunpack.c.h.b16 %v521
        %v1708 = vunpack.c.l.b16 %v522
        %v1709 = vunpack.c.h.b16 %v522
        %v1710 = vunpack.c.l.b16 %v523
        %v1711 = vunpack.c.h.b16 %v523
        %v1712 = vunpack.c.l.b16 %v524
        %v1713 = vunpack.c.h.b16 %v524
        %v1714 = vunpack.c.l.b16 %v525
        %v1715 = vunpack.c.h.b16 %v525
        %v1716 = vunpack.c.l.b16 %v526
        %v1717 = vunpack.c.h.b16 %v526
        %v1718 = vunpack.c.l.b16 %v527
        %v1719 = vunpack.c.h.b16 %v527
        %v1720 = vunpack.c.l.b16 %v528
        %v1721 = vunpack.c.h.b16 %v528
        %v1722 = vunpack.c.l.b16 %v529
        %v1723 = vunpack.c.h.b16 %v529
        %v1724 = vunpack.c.l.b16 %v530
        %v1725 = vunpack.c.h.b16 %v530
        %v1726 = vunpack.c.l.b16 %v531
        %v1727 = vunpack.c.h.b16 %v531
        %v1728 = vunpack.c.l.b16 %v532
        %v1729 = vunpack.c.h.b16 %v532
        %v1730 = vunpack.c.l.b16 %v533
        %v1731 = vunpack.c.h.b16 %v533
        %v1732 = vunpack.c.l.b16 %v534
        %v1733 = vunpack.c.h.b16 %v534
        %v1734 = vunpack.c.l.b16 %v535
        %v1735 = vunpack.c.h.b16 %v535
        %v1736 = vunpack.c.l.b16 %v536
        %v1737 = vunpack.c.h.b16 %v536
        %v1738 = vunpack.c.l.b16 %v537
        %v1739 = vunpack.c.h.b16 %v537
        %v1740 = vunpack.c.l.b16 %v538
        %v1741 = vunpack.c.h.b16 %v538
        %v1742 = vunpack.c.l.b16 %v539
        %v1743 = vunpack.c.h.b16 %v539
        %v1744 = vunpack.c.l.b16 %v540
        %v1745 = vunpack.c.h.b16 %v540
        %v1746 = vunpack.c.l.b16 %v541
        %v1747 = vunpack.c.h.b16 %v541
        %v1748 = vunpack.c.l.b16 %v542
        %v1749 = vunpack.c.h.b16 %v542
        %v1750 = vunpack.c.l.b16 %v543
        %v1751 = vunpack.c.h.b16 %v543
        %v1752 = vunpack.c.l.b16 %v544
        %v1753 = vunpack.c.h.b16 %v544
        %v1754 = vunpack.c.l.b16 %v545
        %v1755 = vunpack.c.h.b16 %v545
        %v1756 = vunpack.c.l.b16 %v546
        %v1757 = vunpack.c.h.b16 %v546
        %v1758 = vunpack.c.l.b16 %v547
        %v1759 = vunpack.c.h.b16 %v547
        %v1760 = vunpack.c.l.b16 %v548
        %v1761 = vunpack.c.h.b16 %v548
        %v1762 = vunpack.c.l.b16 %v549
        %v1763 = vunpack.c.h.b16 %v549
        %v1764 = vunpack.c.l.b16 %v550
        %v1765 = vunpack.c.h.b16 %v550
        %v1766 = vunpack.c.l.b16 %v551
        %v1767 = vunpack.c.h.b16 %v551
        %v1768 = vunpack.c.l.b16 %v552
        %v1769 = vunpack.c.h.b16 %v552
        %v1770 = vunpack.c.l.b16 %v553
        %v1771 = vunpack.c.h.b16 %v553
        %v1772 = vunpack.c.l.b16 %v554
        %v1773 = vunpack.c.h.b16 %v554
        %v1774 = vunpack.c.l.b16 %v555
        %v1775 = vunpack.c.h.b16 %v555
        %v1776 = vunpack.c.l.b16 %v556
        %v1777 = vunpack.c.h.b16 %v556
        %v1778 = vunpack.c.l.b16 %v557
        %v1779 = vunpack.c.h.b16 %v557
        %v1780 = vunpack.c.l.b16 %v558
        %v1781 = vunpack.c.h.b16 %v558
        %v1782 = vunpack.c.l.b16 %v559
        %v1783 = vunpack.c.h.b16 %v559
        %v1784 = vunpack.c.l.b16 %v560
        %v1785 = vunpack.c.h.b16 %v560
        %v1786 = vunpack.c.l.b16 %v561
        %v1787 = vunpack.c.h.b16 %v561
        %v1788 = vunpack.c.l.b16 %v562
        %v1789 = vunpack.c.h.b16 %v562
        %v1790 = vunpack.c.l.b16 %v563
        %v1791 = vunpack.c.h.b16 %v563
        %v1792 = vunpack.c.l.b16 %v564
        %v1793 = vunpack.c.h.b16 %v564
        %v1794 = vunpack.c.l.b16 %v565
        %v1795 = vunpack.c.h.b16 %v565
        %v1796 = vunpack.c.l.b16 %v566
        %v1797 = vunpack.c.h.b16 %v566
        %v1798 = vunpack.c.l.b16 %v567
        %v1799 = vunpack.c.h.b16 %v567
        %v1800 = vunpack.c.l.b16 %v568
        %v1801 = vunpack.c.h.b16 %v568
        %v1802 = vunpack.c.l.b16 %v569
        %v1803 = vunpack.c.h.b16 %v569
        %v1804 = vunpack.c.l.b16 %v570
        %v1805 = vunpack.c.h.b16 %v570
        %v1806 = vunpack.c.l.b16 %v571
        %v1807 = vunpack.c.h.b16 %v571
        %v1808 = vunpack.c.l.b16 %v572
        %v1809 = vunpack.c.h.b16 %v572
        %v1810 = vunpack.c.l.b16 %v573
        %v1811 = vunpack.c.h.b16 %v573
        %v1812 = vunpack.c.l.b16 %v574
        %v1813 = vunpack.c.h.b16 %v574
        %v1814 = vunpack.c.l.b16 %v575
        %v1815 = vunpack.c.h.b16 %v575
        %v1816 = vunpack.c.l.b16 %v576
        %v1817 = vunpack.c.h.b16 %v576
        %v1818 = vunpack.c.l.b16 %v577
        %v1819 = vunpack.c.h.b16 %v577
        %v1820 = vunpack.c.l.b16 %v578
        %v1821 = vunpack.c.h.b16 %v578
        %v1822 = vunpack.c.l.b16 %v579
        %v1823 = vunpack.c.h.b16 %v579
        %v1824 = vunpack.c.l.b16 %v580
        %v1825 = vunpack.c.h.b16 %v580
        %v1826 = vunpack.c.l.b16 %v581
        %v1827 = vunpack.c.h.b16 %v581
        %v1828 = vunpack.c.l.b16 %v582
        %v1829 = vunpack.c.h.b16 %v582
        %v1830 = vunpack.c.l.b16 %v583
        %v1831 = vunpack.c.h.b16 %v583
        %v1832 = vunpack.c.l.b16 %v584
        %v1833 = vunpack.c.h.b16 %v584
        %v1834 = vunpack.c.l.b16 %v585
        %v1835 = vunpack.c.h.b16 %v585
        %v1836 = vunpack.c.l.b16 %v586
        %v1837 = vunpack.c.h.b16 %v586
        %v1838 = vunpack.c.l.b16 %v587
        %v1839 = vunpack.c.h.b16 %v587
        %v1840 = vunpack.c.l.b16 %v588
        %v1841 = vunpack.c.h.b16 %v588
        %v1842 = vunpack.c.l.b16 %v589
        %v1843 = vunpack.c.h.b16 %v589
        %v1844 = vunpack.c.l.b16 %v590
        %v1845 = vunpack.c.h.b16 %v590
        %v1846 = vunpack.c.l.b16 %v591
        %v1847 = vunpack.c.h.b16 %v591
        %v1848 = vunpack.c.l.b16 %v592
        %v1849 = vunpack.c.h.b16 %v592
        %v1850 = vunpack.c.l.b16 %v593
        %v1851 = vunpack.c.h.b16 %v593
        %v1852 = vunpack.c.l.b16 %v594
        %v1853 = vunpack.c.h.b16 %v594
        %v1854 = vunpack.c.l.b16 %v595
        %v1855 = vunpack.c.h.b16 %v595
        %v1856 = vunpack.c.l.b16 %v596
        %v1857 = vunpack.c.h.b16 %v596
        %v1858 = vunpack.c.l.b16 %v597
        %v1859 = vunpack.c.h.b16 %v597
        %v1860 = vunpack.c.l.b16 %v598
        %v1861 = vunpack.c.h.b16 %v598
        %v1862 = vunpack.c.l.b16 %v599
        %v1863 = vunpack.c.h.b16 %v599
        %v1864 = vunpack.c.l.b16 %v600
        %v1865 = vunpack.c.h.b16 %v600
        %v1866 = vunpack.c.l.b16 %v601
        %v1867 = vunpack.c.h.b16 %v601
        %v1868 = vunpack.c.l.b16 %v602
        %v1869 = vunpack.c.h.b16 %v602
        %v1870 = vunpack.c.l.b16 %v603
        %v1871 = vunpack.c.h.b16 %v603
        %v1872 = vunpack.c.l.b16 %v604
        %v1873 = vunpack.c.h.b16 %v604
        %v1874 = vunpack.c.l.b16 %v605
        %v1875 = vunpack.c.h.b16 %v605
        %v1876 = vunpack.c.l.b16 %v606
        %v1877 = vunpack.c.h.b16 %v606
        %v1878 = vunpack.c.l.b16 %v607
        %v1879 = vunpack.c.h.b16 %v607
        %v1880 = vunpack.c.l.b16 %v608
        %v1881 = vunpack.c.h.b16 %v608
        %v1882 = vunpack.c.l.b16 %v609
        %v1883 = vunpack.c.h.b16 %v609
        %v1884 = vunpack.c.l.b16 %v610
        %v1885 = vunpack.c.h.b16 %v610
        %v1886 = vunpack.c.l.b16 %v611
        %v1887 = vunpack.c.h.b16 %v611
        %v1888 = vunpack.c.l.b16 %v612
        %v1889 = vunpack.c.h.b16 %v612
        %v1890 = vunpack.c.l.b16 %v613
        %v1891 = vunpack.c.h.b16 %v613
        %v1892 = vunpack.c.l.b16 %v614
        %v1893 = vunpack.c.h.b16 %v614
        %v1894 = vunpack.c.l.b16 %v615
        %v1895 = vunpack.c.h.b16 %v615
        %v1896 = vunpack.c.l.b16 %v616
        %v1897 = vunpack.c.h.b16 %v616
        %v1898 = vunpack.c.l.b16 %v617
        %v1899 = vunpack.c.h.b16 %v617
        %v1900 = vunpack.c.l.b16 %v618
        %v1901 = vunpack.c.h.b16 %v618
        %v1902 = vunpack.c.l.b16 %v619
        %v1903 = vunpack.c.h.b16 %v619
        %v1904 = vunpack.c.l.b16 %v620
        %v1905 = vunpack.c.h.b16 %v620
        %v1906 = vunpack.c.l.b16 %v621
        %v1907 = vunpack.c.h.b16 %v621
        %v1908 = vunpack.c.l.b16 %v622
        %v1909 = vunpack.c.h.b16 %v622
        %v1910 = vunpack.c.l.b16 %v623
        %v1911 = vunpack.c.h.b16 %v623
        %v1912 = vunpack.c.l.b16 %v624
        %v1913 = vunpack.c.h.b16 %v624
        %v1914 = vunpack.c.l.b16 %v625
        %v1915 = vunpack.c.h.b16 %v625
        %v1916 = vunpack.c.l.b16 %v626
        %v1917 = vunpack.c.h.b16 %v626
        %v1918 = vunpack.c.l.b16 %v627
        %v1919 = vunpack.c.h.b16 %v627
        %v1920 = vunpack.c.l.b16 %v628
        %v1921 = vunpack.c.h.b16 %v628
        %v1922 = vunpack.c.l.b16 %v629
        %v1923 = vunpack.c.h.b16 %v629
        %v1924 = vunpack.c.l.b16 %v630
        %v1925 = vunpack.c.h.b16 %v630
        %v1926 = vunpack.c.l.b16 %v631
        %v1927 = vunpack.c.h.b16 %v631
        %v1928 = vunpack.c.l.b16 %v632
        %v1929 = vunpack.c.h.b16 %v632
        %v1930 = vunpack.c.l.b16 %v633
        %v1931 = vunpack.c.h.b16 %v633
        %v1932 = vunpack.c.l.b16 %v634
        %v1933 = vunpack.c.h.b16 %v634
        %v1934 = vunpack.c.l.b16 %v635
        %v1935 = vunpack.c.h.b16 %v635
        %v1936 = vunpack.c.l.b16 %v636
        %v1937 = vunpack.c.h.b16 %v636
        %v1938 = vunpack.c.l.b16 %v637
        %v1939 = vunpack.c.h.b16 %v637
        %v1940 = vunpack.c.l.b16 %v638
        %v1941 = vunpack.c.h.b16 %v638
        %v1942 = vunpack.c.l.b16 %v639
        %v1943 = vunpack.c.h.b16 %v639
        %v1944 = vunpack.c.l.b16 %v640
        %v1945 = vunpack.c.h.b16 %v640
        %v1946 = vunpack.c.l.b16 %v641
        %v1947 = vunpack.c.h.b16 %v641
        %v1948 = vunpack.c.l.b16 %v642
        %v1949 = vunpack.c.h.b16 %v642
        %v1950 = vunpack.c.l.b16 %v643
        %v1951 = vunpack.c.h.b16 %v643
        %v1952 = vunpack.c.l.b16 %v644
        %v1953 = vunpack.c.h.b16 %v644
        %v1954 = vunpack.c.l.b16 %v645
        %v1955 = vunpack.c.h.b16 %v645
        %v1956 = vunpack.c.l.b16 %v646
        %v1957 = vunpack.c.h.b16 %v646
        %v1958 = vunpack.c.l.b16 %v647
        %v1959 = vunpack.c.h.b16 %v647
        %v1960 = vunpack.c.l.b16 %v648
        %v1961 = vunpack.c.h.b16 %v648
        %v1962 = vunpack.c.l.b16 %v649
        %v1963 = vunpack.c.h.b16 %v649
        %v1964 = vunpack.c.l.b16 %v650
        %v1965 = vunpack.c.h.b16 %v650
        %v1966 = vunpack.c.l.b16 %v651
        %v1967 = vunpack.c.h.b16 %v651
        %v1968 = vunpack.c.l.b16 %v652
        %v1969 = vunpack.c.h.b16 %v652
        %v1970 = vunpack.c.l.b16 %v653
        %v1971 = vunpack.c.h.b16 %v653
        %v1972 = vunpack.c.l.b16 %v654
        %v1973 = vunpack.c.h.b16 %v654
        %v1974 = vunpack.c.l.b16 %v655
        %v1975 = vunpack.c.h.b16 %v655
        %v1976 = vunpack.c.l.b16 %v656
        %v1977 = vunpack.c.h.b16 %v656
        %v1978 = vunpack.c.l.b16 %v657
        %v1979 = vunpack.c.h.b16 %v657
        %v1980 = vunpack.c.l.b16 %v658
        %v1981 = vunpack.c.h.b16 %v658
        %v1982 = vunpack.c.l.b16 %v659
        %v1983 = vunpack.c.h.b16 %v659
        %v1984 = vunpack.c.l.b16 %v660
        %v1985 = vunpack.c.h.b16 %v660
        %v1986 = vunpack.c.l.b16 %v661
        %v1987 = vunpack.c.h.b16 %v661
        %v1988 = vunpack.c.l.b16 %v662
        %v1989 = vunpack.c.h.b16 %v662
        %v1990 = vunpack.c.l.b16 %v663
        %v1991 = vunpack.c.h.b16 %v663
        %v1992 = vunpack.c.l.b16 %v664
        %v1993 = vunpack.c.h.b16 %v664
        %v1994 = vunpack.c.l.b16 %v665
        %v1995 = vunpack.c.h.b16 %v665
        %v1996 = vunpack.c.l.b16 %v666
        %v1997 = vunpack.c.h.b16 %v666
        %v1998 = vunpack.c.l.b16 %v667
        %v1999 = vunpack.c.h.b16 %v667
        %v2000 = vunpack.c.l.b16 %v668
        %v2001 = vunpack.c.h.b16 %v668
        %v2002 = vunpack.c.l.b16 %v669
        %v2003 = vunpack.c.h.b16 %v669
        %v2004 = vunpack.c.l.b16 %v670
        %v2005 = vunpack.c.h.b16 %v670
        %v2006 = vunpack.c.l.b16 %v671
        %v2007 = vunpack.c.h.b16 %v671
        %v2008 = vunpack.c.l.b16 %v672
        %v2009 = vunpack.c.h.b16 %v672
        %v2010 = vunpack.c.l.b16 %v673
        %v2011 = vunpack.c.h.b16 %v673
        %v2012 = vunpack.c.l.b16 %v674
        %v2013 = vunpack.c.h.b16 %v674
        %v2014 = vunpack.c.l.b16 %v675
        %v2015 = vunpack.c.h.b16 %v675
        %v2016 = vunpack.c.l.b16 %v676
        %v2017 = vunpack.c.h.b16 %v676
        %v2018 = vunpack.c.l.b16 %v677
        %v2019 = vunpack.c.h.b16 %v677
        %v2020 = vunpack.c.l.b16 %v678
        %v2021 = vunpack.c.h.b16 %v678
        %v2022 = vunpack.c.l.b16 %v679
        %v2023 = vunpack.c.h.b16 %v679
        %v2024 = vunpack.c.l.b16 %v680
        %v2025 = vunpack.c.h.b16 %v680
        %v2026 = vunpack.c.l.b16 %v681
        %v2027 = vunpack.c.h.b16 %v681
        %v2028 = vunpack.c.l.b16 %v682
        %v2029 = vunpack.c.h.b16 %v682
        %v2030 = vunpack.c.l.b16 %v683
        %v2031 = vunpack.c.h.b16 %v683
        %v2032 = vunpack.c.l.b16 %v684
        %v2033 = vunpack.c.h.b16 %v684
        %v2034 = vunpack.c.l.b16 %v685
        %v2035 = vunpack.c.h.b16 %v685
        %v2036 = vunpack.c.l.b16 %v686
        %v2037 = vunpack.c.h.b16 %v686
        %v2038 = vunpack.c.l.b16 %v687
        %v2039 = vunpack.c.h.b16 %v687
        %v2040 = vunpack.c.l.b16 %v688
        %v2041 = vunpack.c.h.b16 %v688
        %v2042 = vunpack.c.l.b16 %v689
        %v2043 = vunpack.c.h.b16 %v689
        %v2044 = vunpack.c.l.b16 %v690
        %v2045 = vunpack.c.h.b16 %v690
        %v2046 = vunpack.c.l.b16 %v691
        %v2047 = vunpack.c.h.b16 %v691
        %v2048 = vunpack.c.l.b16 %v692
        %v2049 = vunpack.c.h.b16 %v692
        %v2050 = vunpack.c.l.b16 %v693
        %v2051 = vunpack.c.h.b16 %v693
        %v2052 = vunpack.c.l.b16 %v694
        %v2053 = vunpack.c.h.b16 %v694
        %v2054 = vunpack.c.l.b16 %v695
        %v2055 = vunpack.c.h.b16 %v695
        %v2056 = vunpack.c.l.b16 %v696
        %v2057 = vunpack.c.h.b16 %v696
        %v2058 = vunpack.c.l.b16 %v697
        %v2059 = vunpack.c.h.b16 %v697
        %v2060 = vunpack.c.l.b16 %v698
        %v2061 = vunpack.c.h.b16 %v698
        %v2062 = vunpack.c.l.b16 %v699
        %v2063 = vunpack.c.h.b16 %v699
        %v2064 = vunpack.c.l.b16 %v700
        %v2065 = vunpack.c.h.b16 %v700
        %v2066 = vunpack.c.l.b16 %v701
        %v2067 = vunpack.c.h.b16 %v701
        %v2068 = vunpack.c.l.b16 %v702
        %v2069 = vunpack.c.h.b16 %v702
        %v2070 = vunpack.c.l.b16 %v703
        %v2071 = vunpack.c.h.b16 %v703
        %v2072 = vunpack.c.l.b16 %v704
        %v2073 = vunpack.c.h.b16 %v704
        %v2074 = vunpack.c.l.b16 %v705
        %v2075 = vunpack.c.h.b16 %v705
        %v2076 = vunpack.c.l.b16 %v706
        %v2077 = vunpack.c.h.b16 %v706
        %v2078 = vunpack.c.l.b16 %v707
        %v2079 = vunpack.c.h.b16 %v707
        %v2080 = vunpack.c.l.b16 %v708
        %v2081 = vunpack.c.h.b16 %v708
        %v2082 = vunpack.c.l.b16 %v709
        %v2083 = vunpack.c.h.b16 %v709
        %v2084 = vunpack.c.l.b16 %v710
        %v2085 = vunpack.c.h.b16 %v710
        %v2086 = vunpack.c.l.b16 %v711
        %v2087 = vunpack.c.h.b16 %v711
        %v2088 = vunpack.c.l.b16 %v712
        %v2089 = vunpack.c.h.b16 %v712
        %v2090 = vunpack.c.l.b16 %v713
        %v2091 = vunpack.c.h.b16 %v713
        %v2092 = vunpack.c.l.b16 %v714
        %v2093 = vunpack.c.h.b16 %v714
        %v2094 = vunpack.c.l.b16 %v715
        %v2095 = vunpack.c.h.b16 %v715
        %v2096 = vunpack.c.l.b16 %v716
        %v2097 = vunpack.c.h.b16 %v716
        %v2098 = vunpack.c.l.b16 %v717
        %v2099 = vunpack.c.h.b16 %v717
        %v2100 = vunpack.c.l.b16 %v718
        %v2101 = vunpack.c.h.b16 %v718
        %v2102 = vunpack.c.l.b16 %v719
        %v2103 = vunpack.c.h.b16 %v719
        %v2104 = vunpack.c.l.b16 %v720
        %v2105 = vunpack.c.h.b16 %v720
        %v2106 = vunpack.c.l.b16 %v721
        %v2107 = vunpack.c.h.b16 %v721
        %v2108 = vunpack.c.l.b16 %v722
        %v2109 = vunpack.c.h.b16 %v722
        %v2110 = vunpack.c.l.b16 %v723
        %v2111 = vunpack.c.h.b16 %v723
        %v2112 = vunpack.c.l.b16 %v724
        %v2113 = vunpack.c.h.b16 %v724
        %v2114 = vunpack.c.l.b16 %v725
        %v2115 = vunpack.c.h.b16 %v725
        %v2116 = vunpack.c.l.b16 %v726
        %v2117 = vunpack.c.h.b16 %v726
        %v2118 = vunpack.c.l.b16 %v727
        %v2119 = vunpack.c.h.b16 %v727
        %v2120 = vunpack.c.l.b16 %v728
        %v2121 = vunpack.c.h.b16 %v728
        %v2122 = vunpack.c.l.b16 %v729
        %v2123 = vunpack.c.h.b16 %v729
        %v2124 = vunpack.c.l.b16 %v730
        %v2125 = vunpack.c.h.b16 %v730
        %v2126 = vunpack.c.l.b16 %v731
        %v2127 = vunpack.c.h.b16 %v731
        %v2128 = vunpack.c.l.b16 %v732
        %v2129 = vunpack.c.h.b16 %v732
        %v2130 = vunpack.c.l.b16 %v733
        %v2131 = vunpack.c.h.b16 %v733
        %v2132 = vunpack.c.l.b16 %v734
        %v2133 = vunpack.c.h.b16 %v734
        %v2134 = vunpack.c.l.b16 %v735
        %v2135 = vunpack.c.h.b16 %v735
        %v2136 = vunpack.c.l.b16 %v736
        %v2137 = vunpack.c.h.b16 %v736
        %v2138 = vunpack.c.l.b16 %v737
        %v2139 = vunpack.c.h.b16 %v737
        %v2140 = vunpack.c.l.b16 %v738
        %v2141 = vunpack.c.h.b16 %v738
        %v2142 = vunpack.c.l.b16 %v739
        %v2143 = vunpack.c.h.b16 %v739
        %v2144 = vunpack.c.l.b16 %v740
        %v2145 = vunpack.c.h.b16 %v740
        %v2146 = vunpack.c.l.b16 %v741
        %v2147 = vunpack.c.h.b16 %v741
        %v2148 = vunpack.c.l.b16 %v742
        %v2149 = vunpack.c.h.b16 %v742
        %v2150 = vunpack.c.l.b16 %v743
        %v2151 = vunpack.c.h.b16 %v743
        %v2152 = vunpack.c.l.b16 %v744
        %v2153 = vunpack.c.h.b16 %v744
        %v2154 = vunpack.c.l.b16 %v745
        %v2155 = vunpack.c.h.b16 %v745
        %v2156 = vunpack.c.l.b16 %v746
        %v2157 = vunpack.c.h.b16 %v746
        %v2158 = vunpack.c.l.b16 %v747
        %v2159 = vunpack.c.h.b16 %v747
        %v2160 = vunpack.c.l.b16 %v748
        %v2161 = vunpack.c.h.b16 %v748
        %v2162 = vunpack.c.l.b16 %v749
        %v2163 = vunpack.c.h.b16 %v749
        %v2164 = vunpack.c.l.b16 %v750
        %v2165 = vunpack.c.h.b16 %v750
        %v2166 = vunpack.c.l.b16 %v751
        %v2167 = vunpack.c.h.b16 %v751
        %v2168 = vunpack.c.l.b16 %v752
        %v2169 = vunpack.c.h.b16 %v752
        %v2170 = vunpack.c.l.b16 %v753
        %v2171 = vunpack.c.h.b16 %v753
        %v2172 = vunpack.c.l.b16 %v754
        %v2173 = vunpack.c.h.b16 %v754
        %v2174 = vunpack.c.l.b16 %v755
        %v2175 = vunpack.c.h.b16 %v755
        %v2176 = vunpack.c.l.b16 %v756
        %v2177 = vunpack.c.h.b16 %v756
        %v2178 = vunpack.c.l.b16 %v757
        %v2179 = vunpack.c.h.b16 %v757
        %v2180 = vunpack.c.l.b16 %v758
        %v2181 = vunpack.c.h.b16 %v758
        %v2182 = vunpack.c.l.b16 %v759
        %v2183 = vunpack.c.h.b16 %v759
        %v2184 = vunpack.c.l.b16 %v760
        %v2185 = vunpack.c.h.b16 %v760
        %v2186 = vunpack.c.l.b16 %v761
        %v2187 = vunpack.c.h.b16 %v761
        %v2188 = vunpack.c.l.b16 %v762
        %v2189 = vunpack.c.h.b16 %v762
        %v2190 = vunpack.c.l.b16 %v763
        %v2191 = vunpack.c.h.b16 %v763
        %v2192 = vunpack.c.l.b16 %v764
        %v2193 = vunpack.c.h.b16 %v764
        %v2194 = vunpack.c.l.b16 %v765
        %v2195 = vunpack.c.h.b16 %v765
        %v2196 = vunpack.c.l.b16 %v766
        %v2197 = vunpack.c.h.b16 %v766
        %v2198 = vunpack.c.l.b16 %v767
        %v2199 = vunpack.c.h.b16 %v767
        %v2200 = vunpack.c.l.b16 %v768
        %v2201 = vunpack.c.h.b16 %v768
        %v2202 = vunpack.c.l.b16 %v769
        %v2203 = vunpack.c.h.b16 %v769
        %v2204 = vunpack.c.l.b16 %v770
        %v2205 = vunpack.c.h.b16 %v770
        %v2206 = vunpack.c.l.b16 %v771
        %v2207 = vunpack.c.h.b16 %v771
        %v2208 = vunpack.c.l.b16 %v772
        %v2209 = vunpack.c.h.b16 %v772
        %v2210 = vunpack.c.l.b16 %v773
        %v2211 = vunpack.c.h.b16 %v773
        %v2212 = vunpack.c.l.b16 %v774
        %v2213 = vunpack.c.h.b16 %v774
        %v2214 = vunpack.c.l.b16 %v775
        %v2215 = vunpack.c.h.b16 %v775
        %v2216 = vunpack.c.l.b16 %v776
        %v2217 = vunpack.c.h.b16 %v776
        %v2218 = vunpack.c.l.b16 %v777
        %v2219 = vunpack.c.h.b16 %v777
        %v2220 = vunpack.c.l.b16 %v778
        %v2221 = vunpack.c.h.b16 %v778
        %v2222 = vunpack.c.l.b16 %v779
        %v2223 = vunpack.c.h.b16 %v779
        %v2224 = vunpack.c.l.b16 %v780
        %v2225 = vunpack.c.h.b16 %v780
        %v2226 = vunpack.c.l.b16 %v781
        %v2227 = vunpack.c.h.b16 %v781
        %v2228 = vunpack.c.l.b16 %v782
        %v2229 = vunpack.c.h.b16 %v782
        %v2230 = vunpack.c.l.b16 %v783
        %v2231 = vunpack.c.h.b16 %v783
        %v2232 = vunpack.c.l.b16 %v784
        %v2233 = vunpack.c.h.b16 %v784
        %v2234 = vunpack.c.l.b16 %v785
        %v2235 = vunpack.c.h.b16 %v785
        %v2236 = vunpack.c.l.b16 %v786
        %v2237 = vunpack.c.h.b16 %v786
        %v2238 = vunpack.c.l.b16 %v787
        %v2239 = vunpack.c.h.b16 %v787
        %v2240 = vunpack.c.l.b16 %v788
        %v2241 = vunpack.c.h.b16 %v788
        %v2242 = vunpack.c.l.b16 %v789
        %v2243 = vunpack.c.h.b16 %v789
        %v2244 = vunpack.c.l.b16 %v790
        %v2245 = vunpack.c.h.b16 %v790
        %v2246 = vunpack.c.l.b16 %v791
        %v2247 = vunpack.c.h.b16 %v791
        %v2248 = vunpack.c.l.b16 %v792
        %v2249 = vunpack.c.h.b16 %v792
        %v2250 = vunpack.c.l.b16 %v793
        %v2251 = vunpack.c.h.b16 %v793
        %v2252 = vunpack.c.l.b16 %v794
        %v2253 = vunpack.c.h.b16 %v794
        %v2254 = vunpack.c.l.b16 %v795
        %v2255 = vunpack.c.h.b16 %v795
        %v2256 = vunpack.c.l.b16 %v796
        %v2257 = vunpack.c.h.b16 %v796
        %v2258 = vunpack.c.l.b16 %v797
        %v2259 = vunpack.c.h.b16 %v797
        %v2260 = vunpack.c.l.b16 %v798
        %v2261 = vunpack.c.h.b16 %v798
        %v2262 = vunpack.c.l.b16 %v799
        %v2263 = vunpack.c.h.b16 %v799
        %v2264 = vunpack.c.l.b16 %v800
        %v2265 = vunpack.c.h.b16 %v800
        %v2266 = vunpack.c.l.b16 %v801
        %v2267 = vunpack.c.h.b16 %v801
        %v2268 = vunpack.c.l.b16 %v802
        %v2269 = vunpack.c.h.b16 %v802
        %v2270 = vunpack.c.l.b16 %v803
        %v2271 = vunpack.c.h.b16 %v803
        %v2272 = vunpack.c.l.b16 %v804
        %v2273 = vunpack.c.h.b16 %v804
        %v2274 = vunpack.c.l.b16 %v805
        %v2275 = vunpack.c.h.b16 %v805
        %v2276 = vunpack.c.l.b16 %v806
        %v2277 = vunpack.c.h.b16 %v806
        %v2278 = vunpack.c.l.b16 %v807
        %v2279 = vunpack.c.h.b16 %v807
        %v2280 = vunpack.c.l.b16 %v808
        %v2281 = vunpack.c.h.b16 %v808
        %v2282 = vunpack.c.l.b16 %v809
        %v2283 = vunpack.c.h.b16 %v809
        %v2284 = vunpack.c.l.b16 %v810
        %v2285 = vunpack.c.h.b16 %v810
        %v2286 = vunpack.c.l.b16 %v811
        %v2287 = vunpack.c.h.b16 %v811
        %v2288 = vunpack.c.l.b16 %v812
        %v2289 = vunpack.c.h.b16 %v812
        %v2290 = vunpack.c.l.b16 %v813
        %v2291 = vunpack.c.h.b16 %v813
        %v2292 = vunpack.c.l.b16 %v814
        %v2293 = vunpack.c.h.b16 %v814
        %v2294 = vunpack.c.l.b16 %v815
        %v2295 = vunpack.c.h.b16 %v815
        %v2296 = vunpack.c.l.b16 %v816
        %v2297 = vunpack.c.h.b16 %v816
        %v2298 = vunpack.c.l.b16 %v817
        %v2299 = vunpack.c.h.b16 %v817
        %v2300 = vunpack.c.l.b16 %v818
        %v2301 = vunpack.c.h.b16 %v818
        %v2302 = vunpack.c.l.b16 %v819
        %v2303 = vunpack.c.h.b16 %v819
        %v2304 = vunpack.c.l.b16 %v820
        %v2305 = vunpack.c.h.b16 %v820
        %v2306 = vunpack.c.l.b16 %v821
        %v2307 = vunpack.c.h.b16 %v821
        %v2308 = vunpack.c.l.b16 %v822
        %v2309 = vunpack.c.h.b16 %v822
        %v2310 = vunpack.c.l.b16 %v823
        %v2311 = vunpack.c.h.b16 %v823
        %v2312 = vunpack.c.l.b16 %v824
        %v2313 = vunpack.c.h.b16 %v824
        %v2314 = vunpack.c.l.b16 %v825
        %v2315 = vunpack.c.h.b16 %v825
        %v2316 = vunpack.c.l.b16 %v826
        %v2317 = vunpack.c.h.b16 %v826
        %v2318 = vunpack.c.l.b16 %v827
        %v2319 = vunpack.c.h.b16 %v827
        %v2320 = vunpack.c.l.b16 %v828
        %v2321 = vunpack.c.h.b16 %v828
        %v2322 = vunpack.c.l.b16 %v829
        %v2323 = vunpack.c.h.b16 %v829
        %v2324 = vunpack.c.l.b16 %v830
        %v2325 = vunpack.c.h.b16 %v830
        %v2326 = vunpack.c.l.b16 %v831
        %v2327 = vunpack.c.h.b16 %v831
        %v2328 = vunpack.c.l.b16 %v832
        %v2329 = vunpack.c.h.b16 %v832
        %v2330 = vunpack.c.l.b16 %v833
        %v2331 = vunpack.c.h.b16 %v833
        %v2332 = vunpack.c.l.b16 %v834
        %v2333 = vunpack.c.h.b16 %v834
        %v2334 = vunpack.c.l.b16 %v835
        %v2335 = vunpack.c.h.b16 %v835
        %v2336 = vunpack.c.l.b16 %v836
        %v2337 = vunpack.c.h.b16 %v836
        %v2338 = vunpack.c.l.b16 %v837
        %v2339 = vunpack.c.h.b16 %v837
        %v2340 = vunpack.c.l.b16 %v838
        %v2341 = vunpack.c.h.b16 %v838
        %v2342 = vunpack.c.l.b16 %v839
        %v2343 = vunpack.c.h.b16 %v839
        %v2344 = vunpack.c.l.b16 %v840
        %v2345 = vunpack.c.h.b16 %v840
        %v2346 = vunpack.c.l.b16 %v841
        %v2347 = vunpack.c.h.b16 %v841
        %v2348 = vunpack.c.l.b16 %v842
        %v2349 = vunpack.c.h.b16 %v842
        %v2350 = vunpack.c.l.b16 %v843
        %v2351 = vunpack.c.h.b16 %v843
        %v2352 = vunpack.c.l.b16 %v844
        %v2353 = vunpack.c.h.b16 %v844
        %v2354 = vunpack.c.l.b16 %v845
        %v2355 = vunpack.c.h.b16 %v845
        %v2356 = vunpack.c.l.b16 %v846
        %v2357 = vunpack.c.h.b16 %v846
        %v2358 = vunpack.c.l.b16 %v847
        %v2359 = vunpack.c.h.b16 %v847
        %v2360 = vunpack.c.l.b16 %v848
        %v2361 = vunpack.c.h.b16 %v848
        %v2362 = vunpack.c.l.b16 %v849
        %v2363 = vunpack.c.h.b16 %v849
        %v2364 = vunpack.c.l.b16 %v850
        %v2365 = vunpack.c.h.b16 %v850
        %v2366 = vunpack.c.l.b16 %v851
        %v2367 = vunpack.c.h.b16 %v851
        %v2368 = vunpack.c.l.b16 %v852
        %v2369 = vunpack.c.h.b16 %v852
        %v2370 = vunpack.c.l.b16 %v853
        %v2371 = vunpack.c.h.b16 %v853
        %v2372 = vunpack.c.l.b16 %v854
        %v2373 = vunpack.c.h.b16 %v854
        %v2374 = vunpack.c.l.b16 %v855
        %v2375 = vunpack.c.h.b16 %v855
        %v2376 = vunpack.c.l.b16 %v856
        %v2377 = vunpack.c.h.b16 %v856
        %v2378 = vunpack.c.l.b16 %v857
        %v2379 = vunpack.c.h.b16 %v857
        %v2380 = vunpack.c.l.b16 %v858
        %v2381 = vunpack.c.h.b16 %v858
        %v2382 = vunpack.c.l.b16 %v859
        %v2383 = vunpack.c.h.b16 %v859
        %v2384 = vunpack.c.l.b16 %v860
        %v2385 = vunpack.c.h.b16 %v860
        %v2386 = vunpack.c.l.b16 %v861
        %v2387 = vunpack.c.h.b16 %v861
        %v2388 = vunpack.c.l.b16 %v862
        %v2389 = vunpack.c.h.b16 %v862
        %v2390 = vunpack.c.l.b16 %v863
        %v2391 = vunpack.c.h.b16 %v863
        %v2392 = vunpack.c.l.b16 %v864
        %v2393 = vunpack.c.h.b16 %v864
        %v2394 = vunpack.c.l.b16 %v865
        %v2395 = vunpack.c.h.b16 %v865
        %v2396 = vunpack.c.l.b16 %v866
        %v2397 = vunpack.c.h.b16 %v866
        %v2398 = vunpack.c.l.b16 %v867
        %v2399 = vunpack.c.h.b16 %v867
        %v2400 = vunpack.c.l.b16 %v868
        %v2401 = vunpack.c.h.b16 %v868
        %v2402 = vunpack.c.l.b16 %v869
        %v2403 = vunpack.c.h.b16 %v869
        %v2404 = vunpack.c.l.b16 %v870
        %v2405 = vunpack.c.h.b16 %v870
        %v2406 = vunpack.c.l.b16 %v871
        %v2407 = vunpack.c.h.b16 %v871
        %v2408 = vunpack.c.l.b16 %v872
        %v2409 = vunpack.c.h.b16 %v872
        %v2410 = vunpack.c.l.b16 %v873
        %v2411 = vunpack.c.h.b16 %v873
        %v2412 = vunpack.c.l.b16 %v874
        %v2413 = vunpack.c.h.b16 %v874
        %v2414 = vunpack.c.l.b16 %v875
        %v2415 = vunpack.c.h.b16 %v875
        %v2416 = vunpack.c.l.b16 %v876
        %v2417 = vunpack.c.h.b16 %v876
        %v2418 = vunpack.c.l.b16 %v877
        %v2419 = vunpack.c.h.b16 %v877
        %v2420 = vunpack.c.l.b16 %v878
        %v2421 = vunpack.c.h.b16 %v878
        %v2422 = vunpack.c.l.b16 %v879
        %v2423 = vunpack.c.h.b16 %v879
        %v2424 = vunpack.c.l.b16 %v880
        %v2425 = vunpack.c.h.b16 %v880
        %v2426 = vunpack.c.l.b16 %v881
        %v2427 = vunpack.c.h.b16 %v881
        %v2428 = vunpack.c.l.b16 %v882
        %v2429 = vunpack.c.h.b16 %v882
        %v2430 = vunpack.c.l.b16 %v883
        %v2431 = vunpack.c.h.b16 %v883
        %v2432 = vunpack.c.l.b16 %v884
        %v2433 = vunpack.c.h.b16 %v884
        %v2434 = vunpack.c.l.b16 %v885
        %v2435 = vunpack.c.h.b16 %v885
        %v2436 = vunpack.c.l.b16 %v886
        %v2437 = vunpack.c.h.b16 %v886
        %v2438 = vunpack.c.l.b16 %v887
        %v2439 = vunpack.c.h.b16 %v887
        %v2440 = vunpack.c.l.b16 %v888
        %v2441 = vunpack.c.h.b16 %v888
        %v2442 = vunpack.c.l.b16 %v889
        %v2443 = vunpack.c.h.b16 %v889
        %v2444 = vunpack.c.l.b16 %v890
        %v2445 = vunpack.c.h.b16 %v890
        %v2446 = vunpack.c.l.b16 %v891
        %v2447 = vunpack.c.h.b16 %v891
        %v2448 = vunpack.c.l.b16 %v892
        %v2449 = vunpack.c.h.b16 %v892
        %v2450 = vunpack.c.l.b16 %v893
        %v2451 = vunpack.c.h.b16 %v893
        %v2452 = vunpack.c.l.b16 %v894
        %v2453 = vunpack.c.h.b16 %v894
        %v2454 = vunpack.c.l.b16 %v895
        %v2455 = vunpack.c.h.b16 %v895
        %v2456 = vunpack.c.l.b16 %v896
        %v2457 = vunpack.c.h.b16 %v896
        %v2458 = vunpack.c.l.b16 %v897
        %v2459 = vunpack.c.h.b16 %v897
        %v2460 = vunpack.c.l.b16 %v898
        %v2461 = vunpack.c.h.b16 %v898
        %v2462 = vunpack.c.l.b16 %v899
        %v2463 = vunpack.c.h.b16 %v899
        %v2464 = vunpack.c.l.b16 %v900
        %v2465 = vunpack.c.h.b16 %v900
        %v2466 = vunpack.c.l.b16 %v901
        %v2467 = vunpack.c.h.b16 %v901
        %v2468 = vunpack.c.l.b16 %v902
        %v2469 = vunpack.c.h.b16 %v902
        %v2470 = vunpack.c.l.b16 %v903
        %v2471 = vunpack.c.h.b16 %v903
        %v2472 = vunpack.c.l.b16 %v904
        %v2473 = vunpack.c.h.b16 %v904
        %v2474 = vunpack.c.l.b16 %v905
        %v2475 = vunpack.c.h.b16 %v905
        %v2476 = vunpack.c.l.b16 %v906
        %v2477 = vunpack.c.h.b16 %v906
        %v2478 = vunpack.c.l.b16 %v907
        %v2479 = vunpack.c.h.b16 %v907
        %v2480 = vpack.c.b16 %v1472, %v1456
        %v2481 = vpack.c.b16 %v1473, %v1457
        %v2482 = vpack.c.b16 %v1474, %v1458
        %v2483 = vpack.c.b16 %v1475, %v1459
        %v2484 = vpack.c.b16 %v1476, %v1460
        %v2485 = vpack.c.b16 %v1477, %v1461
        %v2486 = vpack.c.b16 %v1478, %v1462
        %v2487 = vpack.c.b16 %v1479, %v1463
        %v2488 = vpack.c.b16 %v1480, %v1464
        %v2489 = vpack.c.b16 %v1481, %v1465
        %v2490 = vpack.c.b16 %v1482, %v1466
        %v2491 = vpack.c.b16 %v1483, %v1467
        %v2492 = vpack.c.b16 %v1484, %v1468
        %v2493 = vpack.c.b16 %v1485, %v1469
        %v2494 = vpack.c.b16 %v1486, %v1470
        %v2495 = vpack.c.b16 %v1487, %v1471
        %v2496 = vpack.c.b16 %v1504, %v1488
        %v2497 = vpack.c.b16 %v1505, %v1489
        %v2498 = vpack.c.b16 %v1506, %v1490
        %v2499 = vpack.c.b16 %v1507, %v1491
        %v2500 = vpack.c.b16 %v1508, %v1492
        %v2501 = vpack.c.b16 %v1509, %v1493
        %v2502 = vpack.c.b16 %v1510, %v1494
        %v2503 = vpack.c.b16 %v1511, %v1495
        %v2504 = vpack.c.b16 %v1512, %v1496
        %v2505 = vpack.c.b16 %v1513, %v1497
        %v2506 = vpack.c.b16 %v1514, %v1498
        %v2507 = vpack.c.b16 %v1515, %v1499
        %v2508 = vpack.c.b16 %v1516, %v1500
        %v2509 = vpack.c.b16 %v1517, %v1501
        %v2510 = vpack.c.b16 %v1518, %v1502
        %v2511 = vpack.c.b16 %v1519, %v1503
        %v2512 = vpack.c.b16 %v1536, %v1520
        %v2513 = vpack.c.b16 %v1537, %v1521
        %v2514 = vpack.c.b16 %v1538, %v1522
        %v2515 = vpack.c.b16 %v1539, %v1523
        %v2516 = vpack.c.b16 %v1540, %v1524
        %v2517 = vpack.c.b16 %v1541, %v1525
        %v2518 = vpack.c.b16 %v1542, %v1526
        %v2519 = vpack.c.b16 %v1543, %v1527
        %v2520 = vpack.c.b16 %v1544, %v1528
        %v2521 = vpack.c.b16 %v1545, %v1529
        %v2522 = vpack.c.b16 %v1546, %v1530
        %v2523 = vpack.c.b16 %v1547, %v1531
        %v2524 = vpack.c.b16 %v1548, %v1532
        %v2525 = vpack.c.b16 %v1549, %v1533
        %v2526 = vpack.c.b16 %v1550, %v1534
        %v2527 = vpack.c.b16 %v1551, %v1535
        %v2528 = vpack.c.b16 %v1568, %v1552
        %v2529 = vpack.c.b16 %v1569, %v1553
        %v2530 = vpack.c.b16 %v1570, %v1554
        %v2531 = vpack.c.b16 %v1571, %v1555
        %v2532 = vpack.c.b16 %v1572, %v1556
        %v2533 = vpack.c.b16 %v1573, %v1557
        %v2534 = vpack.c.b16 %v1574, %v1558
        %v2535 = vpack.c.b16 %v1575, %v1559
        %v2536 = vpack.c.b16 %v1576, %v1560
        %v2537 = vpack.c.b16 %v1577, %v1561
        %v2538 = vpack.c.b16 %v1578, %v1562
        %v2539 = vpack.c.b16 %v1579, %v1563
        %v2540 = vpack.c.b16 %v1580, %v1564
        %v2541 = vpack.c.b16 %v1581, %v1565
        %v2542 = vpack.c.b16 %v1582, %v1566
        %v2543 = vpack.c.b16 %v1583, %v1567
        %v2544 = vpack.c.b16 %v1600, %v1584
        %v2545 = vpack.c.b16 %v1601, %v1585
        %v2546 = vpack.c.b16 %v1602, %v1586
        %v2547 = vpack.c.b16 %v1603, %v1587
        %v2548 = vpack.c.b16 %v1604, %v1588
        %v2549 = vpack.c.b16 %v1605, %v1589
        %v2550 = vpack.c.b16 %v1606, %v1590
        %v2551 = vpack.c.b16 %v1607, %v1591
        %v2552 = vpack.c.b16 %v1608, %v1592
        %v2553 = vpack.c.b16 %v1609, %v1593
        %v2554 = vpack.c.b16 %v1610, %v1594
        %v2555 = vpack.c.b16 %v1611, %v1595
        %v2556 = vpack.c.b16 %v1612, %v1596
        %v2557 = vpack.c.b16 %v1613, %v1597
        %v2558 = vpack.c.b16 %v1614, %v1598
        %v2559 = vpack.c.b16 %v1615, %v1599
        %v2560 = vpack.c.b16 %v1632, %v1616
        %v2561 = vpack.c.b16 %v1633, %v1617
        %v2562 = vpack.c.b16 %v1634, %v1618
        %v2563 = vpack.c.b16 %v1635, %v1619
        %v2564 = vpack.c.b16 %v1636, %v1620
        %v2565 = vpack.c.b16 %v1637, %v1621
        %v2566 = vpack.c.b16 %v1638, %v1622
        %v2567 = vpack.c.b16 %v1639, %v1623
        %v2568 = vpack.c.b16 %v1640, %v1624
        %v2569 = vpack.c.b16 %v1641, %v1625
        %v2570 = vpack.c.b16 %v1642, %v1626
        %v2571 = vpack.c.b16 %v1643, %v1627
        %v2572 = vpack.c.b16 %v1644, %v1628
        %v2573 = vpack.c.b16 %v1645, %v1629
        %v2574 = vpack.c.b16 %v1646, %v1630
        %v2575 = vpack.c.b16 %v1647, %v1631
        %v2576 = vpack.c.b16 %v1664, %v1648
        %v2577 = vpack.c.b16 %v1665, %v1649
        %v2578 = vpack.c.b16 %v1666, %v1650
        %v2579 = vpack.c.b16 %v1667, %v1651
        %v2580 = vpack.c.b16 %v1668, %v1652
        %v2581 = vpack.c.b16 %v1669, %v1653
        %v2582 = vpack.c.b16 %v1670, %v1654
        %v2583 = vpack.c.b16 %v1671, %v1655
        %v2584 = vpack.c.b16 %v1672, %v1656
        %v2585 = vpack.c.b16 %v1673, %v1657
        %v2586 = vpack.c.b16 %v1674, %v1658
        %v2587 = vpack.c.b16 %v1675, %v1659
        %v2588 = vpack.c.b16 %v1676, %v1660
        %v2589 = vpack.c.b16 %v1677, %v1661
        %v2590 = vpack.c.b16 %v1678, %v1662
        %v2591 = vpack.c.b16 %v1679, %v1663
        %v2592 = vpack.c.b16 %v1696, %v1680
        %v2593 = vpack.c.b16 %v1697, %v1681
        %v2594 = vpack.c.b16 %v1698, %v1682
        %v2595 = vpack.c.b16 %v1699, %v1683
        %v2596 = vpack.c.b16 %v1700, %v1684
        %v2597 = vpack.c.b16 %v1701, %v1685
        %v2598 = vpack.c.b16 %v1702, %v1686
        %v2599 = vpack.c.b16 %v1703, %v1687
        %v2600 = vpack.c.b16 %v1704, %v1688
        %v2601 = vpack.c.b16 %v1705, %v1689
        %v2602 = vpack.c.b16 %v1706, %v1690
        %v2603 = vpack.c.b16 %v1707, %v1691
        %v2604 = vpack.c.b16 %v1708, %v1692
        %v2605 = vpack.c.b16 %v1709, %v1693
        %v2606 = vpack.c.b16 %v1710, %v1694
        %v2607 = vpack.c.b16 %v1711, %v1695
        %v2608 = vpack.c.b16 %v1728, %v1712
        %v2609 = vpack.c.b16 %v1729, %v1713
        %v2610 = vpack.c.b16 %v1730, %v1714
        %v2611 = vpack.c.b16 %v1731, %v1715
        %v2612 = vpack.c.b16 %v1732, %v1716
        %v2613 = vpack.c.b16 %v1733, %v1717
        %v2614 = vpack.c.b16 %v1734, %v1718
        %v2615 = vpack.c.b16 %v1735, %v1719
        %v2616 = vpack.c.b16 %v1736, %v1720
        %v2617 = vpack.c.b16 %v1737, %v1721
        %v2618 = vpack.c.b16 %v1738, %v1722
        %v2619 = vpack.c.b16 %v1739, %v1723
        %v2620 = vpack.c.b16 %v1740, %v1724
        %v2621 = vpack.c.b16 %v1741, %v1725
        %v2622 = vpack.c.b16 %v1742, %v1726
        %v2623 = vpack.c.b16 %v1743, %v1727
        %v2624 = vpack.c.b16 %v1760, %v1744
        %v2625 = vpack.c.b16 %v1761, %v1745
        %v2626 = vpack.c.b16 %v1762, %v1746
        %v2627 = vpack.c.b16 %v1763, %v1747
        %v2628 = vpack.c.b16 %v1764, %v1748
        %v2629 = vpack.c.b16 %v1765, %v1749
        %v2630 = vpack.c.b16 %v1766, %v1750
        %v2631 = vpack.c.b16 %v1767, %v1751
        %v2632 = vpack.c.b16 %v1768, %v1752
        %v2633 = vpack.c.b16 %v1769, %v1753
        %v2634 = vpack.c.b16 %v1770, %v1754
        %v2635 = vpack.c.b16 %v1771, %v1755
        %v2636 = vpack.c.b16 %v1772, %v1756
        %v2637 = vpack.c.b16 %v1773, %v1757
        %v2638 = vpack.c.b16 %v1774, %v1758
        %v2639 = vpack.c.b16 %v1775, %v1759
        %v2640 = vpack.c.b16 %v1792, %v1776
        %v2641 = vpack.c.b16 %v1793, %v1777
        %v2642 = vpack.c.b16 %v1794, %v1778
        %v2643 = vpack.c.b16 %v1795, %v1779
        %v2644 = vpack.c.b16 %v1796, %v1780
        %v2645 = vpack.c.b16 %v1797, %v1781
        %v2646 = vpack.c.b16 %v1798, %v1782
        %v2647 = vpack.c.b16 %v1799, %v1783
        %v2648 = vpack.c.b16 %v1800, %v1784
        %v2649 = vpack.c.b16 %v1801, %v1785
        %v2650 = vpack.c.b16 %v1802, %v1786
        %v2651 = vpack.c.b16 %v1803, %v1787
        %v2652 = vpack.c.b16 %v1804, %v1788
        %v2653 = vpack.c.b16 %v1805, %v1789
        %v2654 = vpack.c.b16 %v1806, %v1790
        %v2655 = vpack.c.b16 %v1807, %v1791
        %v2656 = vpack.c.b16 %v1824, %v1808
        %v2657 = vpack.c.b16 %v1825, %v1809
        %v2658 = vpack.c.b16 %v1826, %v1810
        %v2659 = vpack.c.b16 %v1827, %v1811
        %v2660 = vpack.c.b16 %v1828, %v1812
        %v2661 = vpack.c.b16 %v1829, %v1813
        %v2662 = vpack.c.b16 %v1830, %v1814
        %v2663 = vpack.c.b16 %v1831, %v1815
        %v2664 = vpack.c.b16 %v1832, %v1816
        %v2665 = vpack.c.b16 %v1833, %v1817
        %v2666 = vpack.c.b16 %v1834, %v1818
        %v2667 = vpack.c.b16 %v1835, %v1819
        %v2668 = vpack.c.b16 %v1836, %v1820
        %v2669 = vpack.c.b16 %v1837, %v1821
        %v2670 = vpack.c.b16 %v1838, %v1822
        %v2671 = vpack.c.b16 %v1839, %v1823
        %v2672 = vpack.c.b16 %v1856, %v1840
        %v2673 = vpack.c.b16 %v1857, %v1841
        %v2674 = vpack.c.b16 %v1858, %v1842
        %v2675 = vpack.c.b16 %v1859, %v1843
        %v2676 = vpack.c.b16 %v1860, %v1844
        %v2677 = vpack.c.b16 %v1861, %v1845
        %v2678 = vpack.c.b16 %v1862, %v1846
        %v2679 = vpack.c.b16 %v1863, %v1847
        %v2680 = vpack.c.b16 %v1864, %v1848
        %v2681 = vpack.c.b16 %v1865, %v1849
        %v2682 = vpack.c.b16 %v1866, %v1850
        %v2683 = vpack.c.b16 %v1867, %v1851
        %v2684 = vpack.c.b16 %v1868, %v1852
        %v2685 = vpack.c.b16 %v1869, %v1853
        %v2686 = vpack.c.b16 %v1870, %v1854
        %v2687 = vpack.c.b16 %v1871, %v1855
        %v2688 = vpack.c.b16 %v1888, %v1872
        %v2689 = vpack.c.b16 %v1889, %v1873
        %v2690 = vpack.c.b16 %v1890, %v1874
        %v2691 = vpack.c.b16 %v1891, %v1875
        %v2692 = vpack.c.b16 %v1892, %v1876
        %v2693 = vpack.c.b16 %v1893, %v1877
        %v2694 = vpack.c.b16 %v1894, %v1878
        %v2695 = vpack.c.b16 %v1895, %v1879
        %v2696 = vpack.c.b16 %v1896, %v1880
        %v2697 = vpack.c.b16 %v1897, %v1881
        %v2698 = vpack.c.b16 %v1898, %v1882
        %v2699 = vpack.c.b16 %v1899, %v1883
        %v2700 = vpack.c.b16 %v1900, %v1884
        %v2701 = vpack.c.b16 %v1901, %v1885
        %v2702 = vpack.c.b16 %v1902, %v1886
        %v2703 = vpack.c.b16 %v1903, %v1887
        %v2704 = vpack.c.b16 %v1920, %v1904
        %v2705 = vpack.c.b16 %v1921, %v1905
        %v2706 = vpack.c.b16 %v1922, %v1906
        %v2707 = vpack.c.b16 %v1923, %v1907
        %v2708 = vpack.c.b16 %v1924, %v1908
        %v2709 = vpack.c.b16 %v1925, %v1909
        %v2710 = vpack.c.b16 %v1926, %v1910
        %v2711 = vpack.c.b16 %v1927, %v1911
        %v2712 = vpack.c.b16 %v1928, %v1912
        %v2713 = vpack.c.b16 %v1929, %v1913
        %v2714 = vpack.c.b16 %v1930, %v1914
        %v2715 = vpack.c.b16 %v1931, %v1915
        %v2716 = vpack.c.b16 %v1932, %v1916
        %v2717 = vpack.c.b16 %v1933, %v1917
        %v2718 = vpack.c.b16 %v1934, %v1918
        %v2719 = vpack.c.b16 %v1935, %v1919
        %v2720 = vpack.c.b16 %v1952, %v1936
        %v2721 = vpack.c.b16 %v1953, %v1937
        %v2722 = vpack.c.b16 %v1954, %v1938
        %v2723 = vpack.c.b16 %v1955, %v1939
        %v2724 = vpack.c.b16 %v1956, %v1940
        %v2725 = vpack.c.b16 %v1957, %v1941
        %v2726 = vpack.c.b16 %v1958, %v1942
        %v2727 = vpack.c.b16 %v1959, %v1943
        %v2728 = vpack.c.b16 %v1960, %v1944
        %v2729 = vpack.c.b16 %v1961, %v1945
        %v2730 = vpack.c.b16 %v1962, %v1946
        %v2731 = vpack.c.b16 %v1963, %v1947
        %v2732 = vpack.c.b16 %v1964, %v1948
        %v2733 = vpack.c.b16 %v1965, %v1949
        %v2734 = vpack.c.b16 %v1966, %v1950
        %v2735 = vpack.c.b16 %v1967, %v1951
        %v2736 = vpack.c.b16 %v1984, %v1968
        %v2737 = vpack.c.b16 %v1985, %v1969
        %v2738 = vpack.c.b16 %v1986, %v1970
        %v2739 = vpack.c.b16 %v1987, %v1971
        %v2740 = vpack.c.b16 %v1988, %v1972
        %v2741 = vpack.c.b16 %v1989, %v1973
        %v2742 = vpack.c.b16 %v1990, %v1974
        %v2743 = vpack.c.b16 %v1991, %v1975
        %v2744 = vpack.c.b16 %v1992, %v1976
        %v2745 = vpack.c.b16 %v1993, %v1977
        %v2746 = vpack.c.b16 %v1994, %v1978
        %v2747 = vpack.c.b16 %v1995, %v1979
        %v2748 = vpack.c.b16 %v1996, %v1980
        %v2749 = vpack.c.b16 %v1997, %v1981
        %v2750 = vpack.c.b16 %v1998, %v1982
        %v2751 = vpack.c.b16 %v1999, %v1983
        %v2752 = vpack.c.b16 %v2016, %v2000
        %v2753 = vpack.c.b16 %v2017, %v2001
        %v2754 = vpack.c.b16 %v2018, %v2002
        %v2755 = vpack.c.b16 %v2019, %v2003
        %v2756 = vpack.c.b16 %v2020, %v2004
        %v2757 = vpack.c.b16 %v2021, %v2005
        %v2758 = vpack.c.b16 %v2022, %v2006
        %v2759 = vpack.c.b16 %v2023, %v2007
        %v2760 = vpack.c.b16 %v2024, %v2008
        %v2761 = vpack.c.b16 %v2025, %v2009
        %v2762 = vpack.c.b16 %v2026, %v2010
        %v2763 = vpack.c.b16 %v2027, %v2011
        %v2764 = vpack.c.b16 %v2028, %v2012
        %v2765 = vpack.c.b16 %v2029, %v2013
        %v2766 = vpack.c.b16 %v2030, %v2014
        %v2767 = vpack.c.b16 %v2031, %v2015
        %v2768 = vpack.c.b16 %v2048, %v2032
        %v2769 = vpack.c.b16 %v2049, %v2033
        %v2770 = vpack.c.b16 %v2050, %v2034
        %v2771 = vpack.c.b16 %v2051, %v2035
        %v2772 = vpack.c.b16 %v2052, %v2036
        %v2773 = vpack.c.b16 %v2053, %v2037
        %v2774 = vpack.c.b16 %v2054, %v2038
        %v2775 = vpack.c.b16 %v2055, %v2039
        %v2776 = vpack.c.b16 %v2056, %v2040
        %v2777 = vpack.c.b16 %v2057, %v2041
        %v2778 = vpack.c.b16 %v2058, %v2042
        %v2779 = vpack.c.b16 %v2059, %v2043
        %v2780 = vpack.c.b16 %v2060, %v2044
        %v2781 = vpack.c.b16 %v2061, %v2045
        %v2782 = vpack.c.b16 %v2062, %v2046
        %v2783 = vpack.c.b16 %v2063, %v2047
        %v2784 = vpack.c.b16 %v2080, %v2064
        %v2785 = vpack.c.b16 %v2081, %v2065
        %v2786 = vpack.c.b16 %v2082, %v2066
        %v2787 = vpack.c.b16 %v2083, %v2067
        %v2788 = vpack.c.b16 %v2084, %v2068
        %v2789 = vpack.c.b16 %v2085, %v2069
        %v2790 = vpack.c.b16 %v2086, %v2070
        %v2791 = vpack.c.b16 %v2087, %v2071
        %v2792 = vpack.c.b16 %v2088, %v2072
        %v2793 = vpack.c.b16 %v2089, %v2073
        %v2794 = vpack.c.b16 %v2090, %v2074
        %v2795 = vpack.c.b16 %v2091, %v2075
        %v2796 = vpack.c.b16 %v2092, %v2076
        %v2797 = vpack.c.b16 %v2093, %v2077
        %v2798 = vpack.c.b16 %v2094, %v2078
        %v2799 = vpack.c.b16 %v2095, %v2079
        %v2800 = vpack.c.b16 %v2112, %v2096
        %v2801 = vpack.c.b16 %v2113, %v2097
        %v2802 = vpack.c.b16 %v2114, %v2098
        %v2803 = vpack.c.b16 %v2115, %v2099
        %v2804 = vpack.c.b16 %v2116, %v2100
        %v2805 = vpack.c.b16 %v2117, %v2101
        %v2806 = vpack.c.b16 %v2118, %v2102
        %v2807 = vpack.c.b16 %v2119, %v2103
        %v2808 = vpack.c.b16 %v2120, %v2104
        %v2809 = vpack.c.b16 %v2121, %v2105
        %v2810 = vpack.c.b16 %v2122, %v2106
        %v2811 = vpack.c.b16 %v2123, %v2107
        %v2812 = vpack.c.b16 %v2124, %v2108
        %v2813 = vpack.c.b16 %v2125, %v2109
        %v2814 = vpack.c.b16 %v2126, %v2110
        %v2815 = vpack.c.b16 %v2127, %v2111
        %v2816 = vpack.c.b16 %v2144, %v2128
        %v2817 = vpack.c.b16 %v2145, %v2129
        %v2818 = vpack.c.b16 %v2146, %v2130
        %v2819 = vpack.c.b16 %v2147, %v2131
        %v2820 = vpack.c.b16 %v2148, %v2132
        %v2821 = vpack.c.b16 %v2149, %v2133
        %v2822 = vpack.c.b16 %v2150, %v2134
        %v2823 = vpack.c.b16 %v2151, %v2135
        %v2824 = vpack.c.b16 %v2152, %v2136
        %v2825 = vpack.c.b16 %v2153, %v2137
        %v2826 = vpack.c.b16 %v2154, %v2138
        %v2827 = vpack.c.b16 %v2155, %v2139
        %v2828 = vpack.c.b16 %v2156, %v2140
        %v2829 = vpack.c.b16 %v2157, %v2141
        %v2830 = vpack.c.b16 %v2158, %v2142
        %v2831 = vpack.c.b16 %v2159, %v2143
        %v2832 = vpack.c.b16 %v2176, %v2160
        %v2833 = vpack.c.b16 %v2177, %v2161
        %v2834 = vpack.c.b16 %v2178, %v2162
        %v2835 = vpack.c.b16 %v2179, %v2163
        %v2836 = vpack.c.b16 %v2180, %v2164
        %v2837 = vpack.c.b16 %v2181, %v2165
        %v2838 = vpack.c.b16 %v2182, %v2166
        %v2839 = vpack.c.b16 %v2183, %v2167
        %v2840 = vpack.c.b16 %v2184, %v2168
        %v2841 = vpack.c.b16 %v2185, %v2169
        %v2842 = vpack.c.b16 %v2186, %v2170
        %v2843 = vpack.c.b16 %v2187, %v2171
        %v2844 = vpack.c.b16 %v2188, %v2172
        %v2845 = vpack.c.b16 %v2189, %v2173
        %v2846 = vpack.c.b16 %v2190, %v2174
        %v2847 = vpack.c.b16 %v2191, %v2175
        %v2848 = vpack.c.b16 %v2208, %v2192
        %v2849 = vpack.c.b16 %v2209, %v2193
        %v2850 = vpack.c.b16 %v2210, %v2194
        %v2851 = vpack.c.b16 %v2211, %v2195
        %v2852 = vpack.c.b16 %v2212, %v2196
        %v2853 = vpack.c.b16 %v2213, %v2197
        %v2854 = vpack.c.b16 %v2214, %v2198
        %v2855 = vpack.c.b16 %v2215, %v2199
        %v2856 = vpack.c.b16 %v2216, %v2200
        %v2857 = vpack.c.b16 %v2217, %v2201
        %v2858 = vpack.c.b16 %v2218, %v2202
        %v2859 = vpack.c.b16 %v2219, %v2203
        %v2860 = vpack.c.b16 %v2220, %v2204
        %v2861 = vpack.c.b16 %v2221, %v2205
        %v2862 = vpack.c.b16 %v2222, %v2206
        %v2863 = vpack.c.b16 %v2223, %v2207
        %v2864 = vpack.c.b16 %v2240, %v2224
        %v2865 = vpack.c.b16 %v2241, %v2225
        %v2866 = vpack.c.b16 %v2242, %v2226
        %v2867 = vpack.c.b16 %v2243, %v2227
        %v2868 = vpack.c.b16 %v2244, %v2228
        %v2869 = vpack.c.b16 %v2245, %v2229
        %v2870 = vpack.c.b16 %v2246, %v2230
        %v2871 = vpack.c.b16 %v2247, %v2231
        %v2872 = vpack.c.b16 %v2248, %v2232
        %v2873 = vpack.c.b16 %v2249, %v2233
        %v2874 = vpack.c.b16 %v2250, %v2234
        %v2875 = vpack.c.b16 %v2251, %v2235
        %v2876 = vpack.c.b16 %v2252, %v2236
        %v2877 = vpack.c.b16 %v2253, %v2237
        %v2878 = vpack.c.b16 %v2254, %v2238
        %v2879 = vpack.c.b16 %v2255, %v2239
        %v2880 = vpack.c.b16 %v2272, %v2256
        %v2881 = vpack.c.b16 %v2273, %v2257
        %v2882 = vpack.c.b16 %v2274, %v2258
        %v2883 = vpack.c.b16 %v2275, %v2259
        %v2884 = vpack.c.b16 %v2276, %v2260
        %v2885 = vpack.c.b16 %v2277, %v2261
        %v2886 = vpack.c.b16 %v2278, %v2262
        %v2887 = vpack.c.b16 %v2279, %v2263
        %v2888 = vpack.c.b16 %v2280, %v2264
        %v2889 = vpack.c.b16 %v2281, %v2265
        %v2890 = vpack.c.b16 %v2282, %v2266
        %v2891 = vpack.c.b16 %v2283, %v2267
        %v2892 = vpack.c.b16 %v2284, %v2268
        %v2893 = vpack.c.b16 %v2285, %v2269
        %v2894 = vpack.c.b16 %v2286, %v2270
        %v2895 = vpack.c.b16 %v2287, %v2271
        %v2896 = vpack.c.b16 %v2304, %v2288
        %v2897 = vpack.c.b16 %v2305, %v2289
        %v2898 = vpack.c.b16 %v2306, %v2290
        %v2899 = vpack.c.b16 %v2307, %v2291
        %v2900 = vpack.c.b16 %v2308, %v2292
        %v2901 = vpack.c.b16 %v2309, %v2293
        %v2902 = vpack.c.b16 %v2310, %v2294
        %v2903 = vpack.c.b16 %v2311, %v2295
        %v2904 = vpack.c.b16 %v2312, %v2296
        %v2905 = vpack.c.b16 %v2313, %v2297
        %v2906 = vpack.c.b16 %v2314, %v2298
        %v2907 = vpack.c.b16 %v2315, %v2299
        %v2908 = vpack.c.b16 %v2316, %v2300
        %v2909 = vpack.c.b16 %v2317, %v2301
        %v2910 = vpack.c.b16 %v2318, %v2302
        %v2911 = vpack.c.b16 %v2319, %v2303
        %v2912 = vpack.c.b16 %v2336, %v2320
        %v2913 = vpack.c.b16 %v2337, %v2321
        %v2914 = vpack.c.b16 %v2338, %v2322
        %v2915 = vpack.c.b16 %v2339, %v2323
        %v2916 = vpack.c.b16 %v2340, %v2324
        %v2917 = vpack.c.b16 %v2341, %v2325
        %v2918 = vpack.c.b16 %v2342, %v2326
        %v2919 = vpack.c.b16 %v2343, %v2327
        %v2920 = vpack.c.b16 %v2344, %v2328
        %v2921 = vpack.c.b16 %v2345, %v2329
        %v2922 = vpack.c.b16 %v2346, %v2330
        %v2923 = vpack.c.b16 %v2347, %v2331
        %v2924 = vpack.c.b16 %v2348, %v2332
        %v2925 = vpack.c.b16 %v2349, %v2333
        %v2926 = vpack.c.b16 %v2350, %v2334
        %v2927 = vpack.c.b16 %v2351, %v2335
        %v2928 = vpack.c.b16 %v2368, %v2352
        %v2929 = vpack.c.b16 %v2369, %v2353
        %v2930 = vpack.c.b16 %v2370, %v2354
        %v2931 = vpack.c.b16 %v2371, %v2355
        %v2932 = vpack.c.b16 %v2372, %v2356
        %v2933 = vpack.c.b16 %v2373, %v2357
        %v2934 = vpack.c.b16 %v2374, %v2358
        %v2935 = vpack.c.b16 %v2375, %v2359
        %v2936 = vpack.c.b16 %v2376, %v2360
        %v2937 = vpack.c.b16 %v2377, %v2361
        %v2938 = vpack.c.b16 %v2378, %v2362
        %v2939 = vpack.c.b16 %v2379, %v2363
        %v2940 = vpack.c.b16 %v2380, %v2364
        %v2941 = vpack.c.b16 %v2381, %v2365
        %v2942 = vpack.c.b16 %v2382, %v2366
        %v2943 = vpack.c.b16 %v2383, %v2367
        %v2944 = vpack.c.b16 %v2400, %v2384
        %v2945 = vpack.c.b16 %v2401, %v2385
        %v2946 = vpack.c.b16 %v2402, %v2386
        %v2947 = vpack.c.b16 %v2403, %v2387
        %v2948 = vpack.c.b16 %v2404, %v2388
        %v2949 = vpack.c.b16 %v2405, %v2389
        %v2950 = vpack.c.b16 %v2406, %v2390
        %v2951 = vpack.c.b16 %v2407, %v2391
        %v2952 = vpack.c.b16 %v2408, %v2392
        %v2953 = vpack.c.b16 %v2409, %v2393
        %v2954 = vpack.c.b16 %v2410, %v2394
        %v2955 = vpack.c.b16 %v2411, %v2395
        %v2956 = vpack.c.b16 %v2412, %v2396
        %v2957 = vpack.c.b16 %v2413, %v2397
        %v2958 = vpack.c.b16 %v2414, %v2398
        %v2959 = vpack.c.b16 %v2415, %v2399
        %v2960 = vpack.c.b16 %v2432, %v2416
        %v2961 = vpack.c.b16 %v2433, %v2417
        %v2962 = vpack.c.b16 %v2434, %v2418
        %v2963 = vpack.c.b16 %v2435, %v2419
        %v2964 = vpack.c.b16 %v2436, %v2420
        %v2965 = vpack.c.b16 %v2437, %v2421
        %v2966 = vpack.c.b16 %v2438, %v2422
        %v2967 = vpack.c.b16 %v2439, %v2423
        %v2968 = vpack.c.b16 %v2440, %v2424
        %v2969 = vpack.c.b16 %v2441, %v2425
        %v2970 = vpack.c.b16 %v2442, %v2426
        %v2971 = vpack.c.b16 %v2443, %v2427
        %v2972 = vpack.c.b16 %v2444, %v2428
        %v2973 = vpack.c.b16 %v2445, %v2429
        %v2974 = vpack.c.b16 %v2446, %v2430
        %v2975 = vpack.c.b16 %v2447, %v2431
        %v2976 = vpack.c.b16 %v2464, %v2448
        %v2977 = vpack.c.b16 %v2465, %v2449
        %v2978 = vpack.c.b16 %v2466, %v2450
        %v2979 = vpack.c.b16 %v2467, %v2451
        %v2980 = vpack.c.b16 %v2468, %v2452
        %v2981 = vpack.c.b16 %v2469, %v2453
        %v2982 = vpack.c.b16 %v2470, %v2454
        %v2983 = vpack.c.b16 %v2471, %v2455
        %v2984 = vpack.c.b16 %v2472, %v2456
        %v2985 = vpack.c.b16 %v2473, %v2457
        %v2986 = vpack.c.b16 %v2474, %v2458
        %v2987 = vpack.c.b16 %v2475, %v2459
        %v2988 = vpack.c.b16 %v2476, %v2460
        %v2989 = vpack.c.b16 %v2477, %v2461
        %v2990 = vpack.c.b16 %v2478, %v2462
        %v2991 = vpack.c.b16 %v2479, %v2463
        %3504 = vmatpush.bf16.msra.mxu0 %v2592
        %3505 = vmatpush.bf16.msra.mxu0 %v2576
        %3506 = vmatpush.bf16.msra.mxu0 %v2560
        %3507 = vmatpush.bf16.msra.mxu0 %v2544
        %3508 = vmatpush.bf16.msra.mxu0 %v2528
        %3509 = vmatpush.bf16.msra.mxu0 %v2512
        %3510 = vmatpush.bf16.msra.mxu0 %v2496
        %3511 = vmatpush.bf16.msra.mxu0 %v2480
        %3512 = vmatmul.bf16.gmra.mxu0 %v392
        %v3513 = vpop.f32.mrf.mxu0
        %v3514 = vadd.f32 %v912, %v3513
        %v3515 = vpop.f32.mrf.mxu0
        %3516 = vdwg.mxu0
        %3517 = vmatpush.bf16.msra.mxu0 %v2720
        %3518 = vmatpush.bf16.msra.mxu0 %v2704
        %3519 = vmatpush.bf16.msra.mxu0 %v2688
        %3520 = vmatpush.bf16.msra.mxu0 %v2672
        %3521 = vmatpush.bf16.msra.mxu0 %v2656
        %3522 = vmatpush.bf16.msra.mxu0 %v2640
        %3523 = vmatpush.bf16.msra.mxu0 %v2624
        %3524 = vmatpush.bf16.msra.mxu0 %v2608
        %3525 = vmatmul.bf16.gmra.mxu0 %v393
        %v3526 = vpop.f32.mrf.mxu0
        %v3527 = vadd.f32 %v3514, %v3526
        %v3528 = vpop.f32.mrf.mxu0
        %3529 = vdwg.mxu0
        %3530 = vmatpush.bf16.msra.mxu0 %v2848
        %3531 = vmatpush.bf16.msra.mxu0 %v2832
        %3532 = vmatpush.bf16.msra.mxu0 %v2816
        %3533 = vmatpush.bf16.msra.mxu0 %v2800
        %3534 = vmatpush.bf16.msra.mxu0 %v2784
        %3535 = vmatpush.bf16.msra.mxu0 %v2768
        %3536 = vmatpush.bf16.msra.mxu0 %v2752
        %3537 = vmatpush.bf16.msra.mxu0 %v2736
        %3538 = vmatmul.bf16.gmra.mxu0 %v394
        %v3539 = vpop.f32.mrf.mxu0
        %v3540 = vadd.f32 %v3527, %v3539
        %v3541 = vpop.f32.mrf.mxu0
        %3542 = vdwg.mxu0
        %3543 = vmatpush.bf16.msra.mxu0 %v2976
        %3544 = vmatpush.bf16.msra.mxu0 %v2960
        %3545 = vmatpush.bf16.msra.mxu0 %v2944
        %3546 = vmatpush.bf16.msra.mxu0 %v2928
        %3547 = vmatpush.bf16.msra.mxu0 %v2912
        %3548 = vmatpush.bf16.msra.mxu0 %v2896
        %3549 = vmatpush.bf16.msra.mxu0 %v2880
        %3550 = vmatpush.bf16.msra.mxu0 %v2864
        %3551 = vmatmul.bf16.gmra.mxu0 %v395
        %v3552 = vpop.f32.mrf.mxu0
        %v3553 = vadd.f32 %v3540, %v3552
        %v3554 = vpop.f32.mrf.mxu0
        %3555 = vdwg.mxu0
        %3556 = vmatpush.bf16.msra.mxu0 %v2593
        %3557 = vmatpush.bf16.msra.mxu0 %v2577
        %3558 = vmatpush.bf16.msra.mxu0 %v2561
        %3559 = vmatpush.bf16.msra.mxu0 %v2545
        %3560 = vmatpush.bf16.msra.mxu0 %v2529
        %3561 = vmatpush.bf16.msra.mxu0 %v2513
        %3562 = vmatpush.bf16.msra.mxu0 %v2497
        %3563 = vmatpush.bf16.msra.mxu0 %v2481
        %3564 = vmatmul.bf16.gmra.mxu0 %v392
        %v3565 = vpop.f32.mrf.mxu0
        %v3566 = vadd.f32 %v913, %v3565
        %v3567 = vpop.f32.mrf.mxu0
        %3568 = vdwg.mxu0
        %3569 = vmatpush.bf16.msra.mxu0 %v2721
        %3570 = vmatpush.bf16.msra.mxu0 %v2705
        %3571 = vmatpush.bf16.msra.mxu0 %v2689
        %3572 = vmatpush.bf16.msra.mxu0 %v2673
        %3573 = vmatpush.bf16.msra.mxu0 %v2657
        %3574 = vmatpush.bf16.msra.mxu0 %v2641
        %3575 = vmatpush.bf16.msra.mxu0 %v2625
        %3576 = vmatpush.bf16.msra.mxu0 %v2609
        %3577 = vmatmul.bf16.gmra.mxu0 %v393
        %v3578 = vpop.f32.mrf.mxu0
        %v3579 = vadd.f32 %v3566, %v3578
        %v3580 = vpop.f32.mrf.mxu0
        %3581 = vdwg.mxu0
        %3582 = vmatpush.bf16.msra.mxu0 %v2849
        %3583 = vmatpush.bf16.msra.mxu0 %v2833
        %3584 = vmatpush.bf16.msra.mxu0 %v2817
        %3585 = vmatpush.bf16.msra.mxu0 %v2801
        %3586 = vmatpush.bf16.msra.mxu0 %v2785
        %3587 = vmatpush.bf16.msra.mxu0 %v2769
        %3588 = vmatpush.bf16.msra.mxu0 %v2753
        %3589 = vmatpush.bf16.msra.mxu0 %v2737
        %3590 = vmatmul.bf16.gmra.mxu0 %v394
        %v3591 = vpop.f32.mrf.mxu0
        %v3592 = vadd.f32 %v3579, %v3591
        %v3593 = vpop.f32.mrf.mxu0
        %3594 = vdwg.mxu0
        %3595 = vmatpush.bf16.msra.mxu0 %v2977
        %3596 = vmatpush.bf16.msra.mxu0 %v2961
        %3597 = vmatpush.bf16.msra.mxu0 %v2945
        %3598 = vmatpush.bf16.msra.mxu0 %v2929
        %3599 = vmatpush.bf16.msra.mxu0 %v2913
        %3600 = vmatpush.bf16.msra.mxu0 %v2897
        %3601 = vmatpush.bf16.msra.mxu0 %v2881
        %3602 = vmatpush.bf16.msra.mxu0 %v2865
        %3603 = vmatmul.bf16.gmra.mxu0 %v395
        %v3604 = vpop.f32.mrf.mxu0
        %v3605 = vadd.f32 %v3592, %v3604
        %v3606 = vpop.f32.mrf.mxu0
        %3607 = vdwg.mxu0
        %3608 = vmatpush.bf16.msra.mxu0 %v2594
        %3609 = vmatpush.bf16.msra.mxu0 %v2578
        %3610 = vmatpush.bf16.msra.mxu0 %v2562
        %3611 = vmatpush.bf16.msra.mxu0 %v2546
        %3612 = vmatpush.bf16.msra.mxu0 %v2530
        %3613 = vmatpush.bf16.msra.mxu0 %v2514
        %3614 = vmatpush.bf16.msra.mxu0 %v2498
        %3615 = vmatpush.bf16.msra.mxu0 %v2482
        %3616 = vmatmul.bf16.gmra.mxu0 %v392
        %v3617 = vpop.f32.mrf.mxu0
        %v3618 = vadd.f32 %v914, %v3617
        %v3619 = vpop.f32.mrf.mxu0
        %3620 = vdwg.mxu0
        %3621 = vmatpush.bf16.msra.mxu0 %v2722
        %3622 = vmatpush.bf16.msra.mxu0 %v2706
        %3623 = vmatpush.bf16.msra.mxu0 %v2690
        %3624 = vmatpush.bf16.msra.mxu0 %v2674
        %3625 = vmatpush.bf16.msra.mxu0 %v2658
        %3626 = vmatpush.bf16.msra.mxu0 %v2642
        %3627 = vmatpush.bf16.msra.mxu0 %v2626
        %3628 = vmatpush.bf16.msra.mxu0 %v2610
        %3629 = vmatmul.bf16.gmra.mxu0 %v393
        %v3630 = vpop.f32.mrf.mxu0
        %v3631 = vadd.f32 %v3618, %v3630
        %v3632 = vpop.f32.mrf.mxu0
        %3633 = vdwg.mxu0
        %3634 = vmatpush.bf16.msra.mxu0 %v2850
        %3635 = vmatpush.bf16.msra.mxu0 %v2834
        %3636 = vmatpush.bf16.msra.mxu0 %v2818
        %3637 = vmatpush.bf16.msra.mxu0 %v2802
        %3638 = vmatpush.bf16.msra.mxu0 %v2786
        %3639 = vmatpush.bf16.msra.mxu0 %v2770
        %3640 = vmatpush.bf16.msra.mxu0 %v2754
        %3641 = vmatpush.bf16.msra.mxu0 %v2738
        %3642 = vmatmul.bf16.gmra.mxu0 %v394
        %v3643 = vpop.f32.mrf.mxu0
        %v3644 = vadd.f32 %v3631, %v3643
        %v3645 = vpop.f32.mrf.mxu0
        %3646 = vdwg.mxu0
        %3647 = vmatpush.bf16.msra.mxu0 %v2978
        %3648 = vmatpush.bf16.msra.mxu0 %v2962
        %3649 = vmatpush.bf16.msra.mxu0 %v2946
        %3650 = vmatpush.bf16.msra.mxu0 %v2930
        %3651 = vmatpush.bf16.msra.mxu0 %v2914
        %3652 = vmatpush.bf16.msra.mxu0 %v2898
        %3653 = vmatpush.bf16.msra.mxu0 %v2882
        %3654 = vmatpush.bf16.msra.mxu0 %v2866
        %3655 = vmatmul.bf16.gmra.mxu0 %v395
        %v3656 = vpop.f32.mrf.mxu0
        %v3657 = vadd.f32 %v3644, %v3656
        %v3658 = vpop.f32.mrf.mxu0
        %3659 = vdwg.mxu0
        %3660 = vmatpush.bf16.msra.mxu0 %v2595
        %3661 = vmatpush.bf16.msra.mxu0 %v2579
        %3662 = vmatpush.bf16.msra.mxu0 %v2563
        %3663 = vmatpush.bf16.msra.mxu0 %v2547
        %3664 = vmatpush.bf16.msra.mxu0 %v2531
        %3665 = vmatpush.bf16.msra.mxu0 %v2515
        %3666 = vmatpush.bf16.msra.mxu0 %v2499
        %3667 = vmatpush.bf16.msra.mxu0 %v2483
        %3668 = vmatmul.bf16.gmra.mxu0 %v392
        %v3669 = vpop.f32.mrf.mxu0
        %v3670 = vadd.f32 %v915, %v3669
        %v3671 = vpop.f32.mrf.mxu0
        %3672 = vdwg.mxu0
        %3673 = vmatpush.bf16.msra.mxu0 %v2723
        %3674 = vmatpush.bf16.msra.mxu0 %v2707
        %3675 = vmatpush.bf16.msra.mxu0 %v2691
        %3676 = vmatpush.bf16.msra.mxu0 %v2675
        %3677 = vmatpush.bf16.msra.mxu0 %v2659
        %3678 = vmatpush.bf16.msra.mxu0 %v2643
        %3679 = vmatpush.bf16.msra.mxu0 %v2627
        %3680 = vmatpush.bf16.msra.mxu0 %v2611
        %3681 = vmatmul.bf16.gmra.mxu0 %v393
        %v3682 = vpop.f32.mrf.mxu0
        %v3683 = vadd.f32 %v3670, %v3682
        %v3684 = vpop.f32.mrf.mxu0
        %3685 = vdwg.mxu0
        %3686 = vmatpush.bf16.msra.mxu0 %v2851
        %3687 = vmatpush.bf16.msra.mxu0 %v2835
        %3688 = vmatpush.bf16.msra.mxu0 %v2819
        %3689 = vmatpush.bf16.msra.mxu0 %v2803
        %3690 = vmatpush.bf16.msra.mxu0 %v2787
        %3691 = vmatpush.bf16.msra.mxu0 %v2771
        %3692 = vmatpush.bf16.msra.mxu0 %v2755
        %3693 = vmatpush.bf16.msra.mxu0 %v2739
        %3694 = vmatmul.bf16.gmra.mxu0 %v394
        %v3695 = vpop.f32.mrf.mxu0
        %v3696 = vadd.f32 %v3683, %v3695
        %v3697 = vpop.f32.mrf.mxu0
        %3698 = vdwg.mxu0
        %3699 = vmatpush.bf16.msra.mxu0 %v2979
        %3700 = vmatpush.bf16.msra.mxu0 %v2963
        %3701 = vmatpush.bf16.msra.mxu0 %v2947
        %3702 = vmatpush.bf16.msra.mxu0 %v2931
        %3703 = vmatpush.bf16.msra.mxu0 %v2915
        %3704 = vmatpush.bf16.msra.mxu0 %v2899
        %3705 = vmatpush.bf16.msra.mxu0 %v2883
        %3706 = vmatpush.bf16.msra.mxu0 %v2867
        %3707 = vmatmul.bf16.gmra.mxu0 %v395
        %v3708 = vpop.f32.mrf.mxu0
        %v3709 = vadd.f32 %v3696, %v3708
        %v3710 = vpop.f32.mrf.mxu0
        %3711 = vdwg.mxu0
        %3712 = vmatpush.bf16.msra.mxu0 %v2596
        %3713 = vmatpush.bf16.msra.mxu0 %v2580
        %3714 = vmatpush.bf16.msra.mxu0 %v2564
        %3715 = vmatpush.bf16.msra.mxu0 %v2548
        %3716 = vmatpush.bf16.msra.mxu0 %v2532
        %3717 = vmatpush.bf16.msra.mxu0 %v2516
        %3718 = vmatpush.bf16.msra.mxu0 %v2500
        %3719 = vmatpush.bf16.msra.mxu0 %v2484
        %3720 = vmatmul.bf16.gmra.mxu0 %v392
        %v3721 = vpop.f32.mrf.mxu0
        %v3722 = vadd.f32 %v916, %v3721
        %v3723 = vpop.f32.mrf.mxu0
        %3724 = vdwg.mxu0
        %3725 = vmatpush.bf16.msra.mxu0 %v2724
        %3726 = vmatpush.bf16.msra.mxu0 %v2708
        %3727 = vmatpush.bf16.msra.mxu0 %v2692
        %3728 = vmatpush.bf16.msra.mxu0 %v2676
        %3729 = vmatpush.bf16.msra.mxu0 %v2660
        %3730 = vmatpush.bf16.msra.mxu0 %v2644
        %3731 = vmatpush.bf16.msra.mxu0 %v2628
        %3732 = vmatpush.bf16.msra.mxu0 %v2612
        %3733 = vmatmul.bf16.gmra.mxu0 %v393
        %v3734 = vpop.f32.mrf.mxu0
        %v3735 = vadd.f32 %v3722, %v3734
        %v3736 = vpop.f32.mrf.mxu0
        %3737 = vdwg.mxu0
        %3738 = vmatpush.bf16.msra.mxu0 %v2852
        %3739 = vmatpush.bf16.msra.mxu0 %v2836
        %3740 = vmatpush.bf16.msra.mxu0 %v2820
        %3741 = vmatpush.bf16.msra.mxu0 %v2804
        %3742 = vmatpush.bf16.msra.mxu0 %v2788
        %3743 = vmatpush.bf16.msra.mxu0 %v2772
        %3744 = vmatpush.bf16.msra.mxu0 %v2756
        %3745 = vmatpush.bf16.msra.mxu0 %v2740
        %3746 = vmatmul.bf16.gmra.mxu0 %v394
        %v3747 = vpop.f32.mrf.mxu0
        %v3748 = vadd.f32 %v3735, %v3747
        %v3749 = vpop.f32.mrf.mxu0
        %3750 = vdwg.mxu0
        %3751 = vmatpush.bf16.msra.mxu0 %v2980
        %3752 = vmatpush.bf16.msra.mxu0 %v2964
        %3753 = vmatpush.bf16.msra.mxu0 %v2948
        %3754 = vmatpush.bf16.msra.mxu0 %v2932
        %3755 = vmatpush.bf16.msra.mxu0 %v2916
        %3756 = vmatpush.bf16.msra.mxu0 %v2900
        %3757 = vmatpush.bf16.msra.mxu0 %v2884
        %3758 = vmatpush.bf16.msra.mxu0 %v2868
        %3759 = vmatmul.bf16.gmra.mxu0 %v395
        %v3760 = vpop.f32.mrf.mxu0
        %v3761 = vadd.f32 %v3748, %v3760
        %v3762 = vpop.f32.mrf.mxu0
        %3763 = vdwg.mxu0
        %3764 = vmatpush.bf16.msra.mxu0 %v2597
        %3765 = vmatpush.bf16.msra.mxu0 %v2581
        %3766 = vmatpush.bf16.msra.mxu0 %v2565
        %3767 = vmatpush.bf16.msra.mxu0 %v2549
        %3768 = vmatpush.bf16.msra.mxu0 %v2533
        %3769 = vmatpush.bf16.msra.mxu0 %v2517
        %3770 = vmatpush.bf16.msra.mxu0 %v2501
        %3771 = vmatpush.bf16.msra.mxu0 %v2485
        %3772 = vmatmul.bf16.gmra.mxu0 %v392
        %v3773 = vpop.f32.mrf.mxu0
        %v3774 = vadd.f32 %v917, %v3773
        %v3775 = vpop.f32.mrf.mxu0
        %3776 = vdwg.mxu0
        %3777 = vmatpush.bf16.msra.mxu0 %v2725
        %3778 = vmatpush.bf16.msra.mxu0 %v2709
        %3779 = vmatpush.bf16.msra.mxu0 %v2693
        %3780 = vmatpush.bf16.msra.mxu0 %v2677
        %3781 = vmatpush.bf16.msra.mxu0 %v2661
        %3782 = vmatpush.bf16.msra.mxu0 %v2645
        %3783 = vmatpush.bf16.msra.mxu0 %v2629
        %3784 = vmatpush.bf16.msra.mxu0 %v2613
        %3785 = vmatmul.bf16.gmra.mxu0 %v393
        %v3786 = vpop.f32.mrf.mxu0
        %v3787 = vadd.f32 %v3774, %v3786
        %v3788 = vpop.f32.mrf.mxu0
        %3789 = vdwg.mxu0
        %3790 = vmatpush.bf16.msra.mxu0 %v2853
        %3791 = vmatpush.bf16.msra.mxu0 %v2837
        %3792 = vmatpush.bf16.msra.mxu0 %v2821
        %3793 = vmatpush.bf16.msra.mxu0 %v2805
        %3794 = vmatpush.bf16.msra.mxu0 %v2789
        %3795 = vmatpush.bf16.msra.mxu0 %v2773
        %3796 = vmatpush.bf16.msra.mxu0 %v2757
        %3797 = vmatpush.bf16.msra.mxu0 %v2741
        %3798 = vmatmul.bf16.gmra.mxu0 %v394
        %v3799 = vpop.f32.mrf.mxu0
        %v3800 = vadd.f32 %v3787, %v3799
        %v3801 = vpop.f32.mrf.mxu0
        %3802 = vdwg.mxu0
        %3803 = vmatpush.bf16.msra.mxu0 %v2981
        %3804 = vmatpush.bf16.msra.mxu0 %v2965
        %3805 = vmatpush.bf16.msra.mxu0 %v2949
        %3806 = vmatpush.bf16.msra.mxu0 %v2933
        %3807 = vmatpush.bf16.msra.mxu0 %v2917
        %3808 = vmatpush.bf16.msra.mxu0 %v2901
        %3809 = vmatpush.bf16.msra.mxu0 %v2885
        %3810 = vmatpush.bf16.msra.mxu0 %v2869
        %3811 = vmatmul.bf16.gmra.mxu0 %v395
        %v3812 = vpop.f32.mrf.mxu0
        %v3813 = vadd.f32 %v3800, %v3812
        %v3814 = vpop.f32.mrf.mxu0
        %3815 = vdwg.mxu0
        %3816 = vmatpush.bf16.msra.mxu0 %v2598
        %3817 = vmatpush.bf16.msra.mxu0 %v2582
        %3818 = vmatpush.bf16.msra.mxu0 %v2566
        %3819 = vmatpush.bf16.msra.mxu0 %v2550
        %3820 = vmatpush.bf16.msra.mxu0 %v2534
        %3821 = vmatpush.bf16.msra.mxu0 %v2518
        %3822 = vmatpush.bf16.msra.mxu0 %v2502
        %3823 = vmatpush.bf16.msra.mxu0 %v2486
        %3824 = vmatmul.bf16.gmra.mxu0 %v392
        %v3825 = vpop.f32.mrf.mxu0
        %v3826 = vadd.f32 %v918, %v3825
        %v3827 = vpop.f32.mrf.mxu0
        %3828 = vdwg.mxu0
        %3829 = vmatpush.bf16.msra.mxu0 %v2726
        %3830 = vmatpush.bf16.msra.mxu0 %v2710
        %3831 = vmatpush.bf16.msra.mxu0 %v2694
        %3832 = vmatpush.bf16.msra.mxu0 %v2678
        %3833 = vmatpush.bf16.msra.mxu0 %v2662
        %3834 = vmatpush.bf16.msra.mxu0 %v2646
        %3835 = vmatpush.bf16.msra.mxu0 %v2630
        %3836 = vmatpush.bf16.msra.mxu0 %v2614
        %3837 = vmatmul.bf16.gmra.mxu0 %v393
        %v3838 = vpop.f32.mrf.mxu0
        %v3839 = vadd.f32 %v3826, %v3838
        %v3840 = vpop.f32.mrf.mxu0
        %3841 = vdwg.mxu0
        %3842 = vmatpush.bf16.msra.mxu0 %v2854
        %3843 = vmatpush.bf16.msra.mxu0 %v2838
        %3844 = vmatpush.bf16.msra.mxu0 %v2822
        %3845 = vmatpush.bf16.msra.mxu0 %v2806
        %3846 = vmatpush.bf16.msra.mxu0 %v2790
        %3847 = vmatpush.bf16.msra.mxu0 %v2774
        %3848 = vmatpush.bf16.msra.mxu0 %v2758
        %3849 = vmatpush.bf16.msra.mxu0 %v2742
        %3850 = vmatmul.bf16.gmra.mxu0 %v394
        %v3851 = vpop.f32.mrf.mxu0
        %v3852 = vadd.f32 %v3839, %v3851
        %v3853 = vpop.f32.mrf.mxu0
        %3854 = vdwg.mxu0
        %3855 = vmatpush.bf16.msra.mxu0 %v2982
        %3856 = vmatpush.bf16.msra.mxu0 %v2966
        %3857 = vmatpush.bf16.msra.mxu0 %v2950
        %3858 = vmatpush.bf16.msra.mxu0 %v2934
        %3859 = vmatpush.bf16.msra.mxu0 %v2918
        %3860 = vmatpush.bf16.msra.mxu0 %v2902
        %3861 = vmatpush.bf16.msra.mxu0 %v2886
        %3862 = vmatpush.bf16.msra.mxu0 %v2870
        %3863 = vmatmul.bf16.gmra.mxu0 %v395
        %v3864 = vpop.f32.mrf.mxu0
        %v3865 = vadd.f32 %v3852, %v3864
        %v3866 = vpop.f32.mrf.mxu0
        %3867 = vdwg.mxu0
        %3868 = vmatpush.bf16.msra.mxu0 %v2599
        %3869 = vmatpush.bf16.msra.mxu0 %v2583
        %3870 = vmatpush.bf16.msra.mxu0 %v2567
        %3871 = vmatpush.bf16.msra.mxu0 %v2551
        %3872 = vmatpush.bf16.msra.mxu0 %v2535
        %3873 = vmatpush.bf16.msra.mxu0 %v2519
        %3874 = vmatpush.bf16.msra.mxu0 %v2503
        %3875 = vmatpush.bf16.msra.mxu0 %v2487
        %3876 = vmatmul.bf16.gmra.mxu0 %v392
        %v3877 = vpop.f32.mrf.mxu0
        %v3878 = vadd.f32 %v919, %v3877
        %v3879 = vpop.f32.mrf.mxu0
        %3880 = vdwg.mxu0
        %3881 = vmatpush.bf16.msra.mxu0 %v2727
        %3882 = vmatpush.bf16.msra.mxu0 %v2711
        %3883 = vmatpush.bf16.msra.mxu0 %v2695
        %3884 = vmatpush.bf16.msra.mxu0 %v2679
        %3885 = vmatpush.bf16.msra.mxu0 %v2663
        %3886 = vmatpush.bf16.msra.mxu0 %v2647
        %3887 = vmatpush.bf16.msra.mxu0 %v2631
        %3888 = vmatpush.bf16.msra.mxu0 %v2615
        %3889 = vmatmul.bf16.gmra.mxu0 %v393
        %v3890 = vpop.f32.mrf.mxu0
        %v3891 = vadd.f32 %v3878, %v3890
        %v3892 = vpop.f32.mrf.mxu0
        %3893 = vdwg.mxu0
        %3894 = vmatpush.bf16.msra.mxu0 %v2855
        %3895 = vmatpush.bf16.msra.mxu0 %v2839
        %3896 = vmatpush.bf16.msra.mxu0 %v2823
        %3897 = vmatpush.bf16.msra.mxu0 %v2807
        %3898 = vmatpush.bf16.msra.mxu0 %v2791
        %3899 = vmatpush.bf16.msra.mxu0 %v2775
        %3900 = vmatpush.bf16.msra.mxu0 %v2759
        %3901 = vmatpush.bf16.msra.mxu0 %v2743
        %3902 = vmatmul.bf16.gmra.mxu0 %v394
        %v3903 = vpop.f32.mrf.mxu0
        %v3904 = vadd.f32 %v3891, %v3903
        %v3905 = vpop.f32.mrf.mxu0
        %3906 = vdwg.mxu0
        %3907 = vmatpush.bf16.msra.mxu0 %v2983
        %3908 = vmatpush.bf16.msra.mxu0 %v2967
        %3909 = vmatpush.bf16.msra.mxu0 %v2951
        %3910 = vmatpush.bf16.msra.mxu0 %v2935
        %3911 = vmatpush.bf16.msra.mxu0 %v2919
        %3912 = vmatpush.bf16.msra.mxu0 %v2903
        %3913 = vmatpush.bf16.msra.mxu0 %v2887
        %3914 = vmatpush.bf16.msra.mxu0 %v2871
        %3915 = vmatmul.bf16.gmra.mxu0 %v395
        %v3916 = vpop.f32.mrf.mxu0
        %v3917 = vadd.f32 %v3904, %v3916
        %v3918 = vpop.f32.mrf.mxu0
        %3919 = vdwg.mxu0
        %3920 = vmatpush.bf16.msra.mxu0 %v2600
        %3921 = vmatpush.bf16.msra.mxu0 %v2584
        %3922 = vmatpush.bf16.msra.mxu0 %v2568
        %3923 = vmatpush.bf16.msra.mxu0 %v2552
        %3924 = vmatpush.bf16.msra.mxu0 %v2536
        %3925 = vmatpush.bf16.msra.mxu0 %v2520
        %3926 = vmatpush.bf16.msra.mxu0 %v2504
        %3927 = vmatpush.bf16.msra.mxu0 %v2488
        %3928 = vmatmul.bf16.gmra.mxu0 %v392
        %v3929 = vpop.f32.mrf.mxu0
        %v3930 = vadd.f32 %v920, %v3929
        %v3931 = vpop.f32.mrf.mxu0
        %3932 = vdwg.mxu0
        %3933 = vmatpush.bf16.msra.mxu0 %v2728
        %3934 = vmatpush.bf16.msra.mxu0 %v2712
        %3935 = vmatpush.bf16.msra.mxu0 %v2696
        %3936 = vmatpush.bf16.msra.mxu0 %v2680
        %3937 = vmatpush.bf16.msra.mxu0 %v2664
        %3938 = vmatpush.bf16.msra.mxu0 %v2648
        %3939 = vmatpush.bf16.msra.mxu0 %v2632
        %3940 = vmatpush.bf16.msra.mxu0 %v2616
        %3941 = vmatmul.bf16.gmra.mxu0 %v393
        %v3942 = vpop.f32.mrf.mxu0
        %v3943 = vadd.f32 %v3930, %v3942
        %v3944 = vpop.f32.mrf.mxu0
        %3945 = vdwg.mxu0
        %3946 = vmatpush.bf16.msra.mxu0 %v2856
        %3947 = vmatpush.bf16.msra.mxu0 %v2840
        %3948 = vmatpush.bf16.msra.mxu0 %v2824
        %3949 = vmatpush.bf16.msra.mxu0 %v2808
        %3950 = vmatpush.bf16.msra.mxu0 %v2792
        %3951 = vmatpush.bf16.msra.mxu0 %v2776
        %3952 = vmatpush.bf16.msra.mxu0 %v2760
        %3953 = vmatpush.bf16.msra.mxu0 %v2744
        %3954 = vmatmul.bf16.gmra.mxu0 %v394
        %v3955 = vpop.f32.mrf.mxu0
        %v3956 = vadd.f32 %v3943, %v3955
        %v3957 = vpop.f32.mrf.mxu0
        %3958 = vdwg.mxu0
        %3959 = vmatpush.bf16.msra.mxu0 %v2984
        %3960 = vmatpush.bf16.msra.mxu0 %v2968
        %3961 = vmatpush.bf16.msra.mxu0 %v2952
        %3962 = vmatpush.bf16.msra.mxu0 %v2936
        %3963 = vmatpush.bf16.msra.mxu0 %v2920
        %3964 = vmatpush.bf16.msra.mxu0 %v2904
        %3965 = vmatpush.bf16.msra.mxu0 %v2888
        %3966 = vmatpush.bf16.msra.mxu0 %v2872
        %3967 = vmatmul.bf16.gmra.mxu0 %v395
        %v3968 = vpop.f32.mrf.mxu0
        %v3969 = vadd.f32 %v3956, %v3968
        %v3970 = vpop.f32.mrf.mxu0
        %3971 = vdwg.mxu0
        %3972 = vmatpush.bf16.msra.mxu0 %v2601
        %3973 = vmatpush.bf16.msra.mxu0 %v2585
        %3974 = vmatpush.bf16.msra.mxu0 %v2569
        %3975 = vmatpush.bf16.msra.mxu0 %v2553
        %3976 = vmatpush.bf16.msra.mxu0 %v2537
        %3977 = vmatpush.bf16.msra.mxu0 %v2521
        %3978 = vmatpush.bf16.msra.mxu0 %v2505
        %3979 = vmatpush.bf16.msra.mxu0 %v2489
        %3980 = vmatmul.bf16.gmra.mxu0 %v392
        %v3981 = vpop.f32.mrf.mxu0
        %v3982 = vadd.f32 %v921, %v3981
        %v3983 = vpop.f32.mrf.mxu0
        %3984 = vdwg.mxu0
        %3985 = vmatpush.bf16.msra.mxu0 %v2729
        %3986 = vmatpush.bf16.msra.mxu0 %v2713
        %3987 = vmatpush.bf16.msra.mxu0 %v2697
        %3988 = vmatpush.bf16.msra.mxu0 %v2681
        %3989 = vmatpush.bf16.msra.mxu0 %v2665
        %3990 = vmatpush.bf16.msra.mxu0 %v2649
        %3991 = vmatpush.bf16.msra.mxu0 %v2633
        %3992 = vmatpush.bf16.msra.mxu0 %v2617
        %3993 = vmatmul.bf16.gmra.mxu0 %v393
        %v3994 = vpop.f32.mrf.mxu0
        %v3995 = vadd.f32 %v3982, %v3994
        %v3996 = vpop.f32.mrf.mxu0
        %3997 = vdwg.mxu0
        %3998 = vmatpush.bf16.msra.mxu0 %v2857
        %3999 = vmatpush.bf16.msra.mxu0 %v2841
        %4000 = vmatpush.bf16.msra.mxu0 %v2825
        %4001 = vmatpush.bf16.msra.mxu0 %v2809
        %4002 = vmatpush.bf16.msra.mxu0 %v2793
        %4003 = vmatpush.bf16.msra.mxu0 %v2777
        %4004 = vmatpush.bf16.msra.mxu0 %v2761
        %4005 = vmatpush.bf16.msra.mxu0 %v2745
        %4006 = vmatmul.bf16.gmra.mxu0 %v394
        %v4007 = vpop.f32.mrf.mxu0
        %v4008 = vadd.f32 %v3995, %v4007
        %v4009 = vpop.f32.mrf.mxu0
        %4010 = vdwg.mxu0
        %4011 = vmatpush.bf16.msra.mxu0 %v2985
        %4012 = vmatpush.bf16.msra.mxu0 %v2969
        %4013 = vmatpush.bf16.msra.mxu0 %v2953
        %4014 = vmatpush.bf16.msra.mxu0 %v2937
        %4015 = vmatpush.bf16.msra.mxu0 %v2921
        %4016 = vmatpush.bf16.msra.mxu0 %v2905
        %4017 = vmatpush.bf16.msra.mxu0 %v2889
        %4018 = vmatpush.bf16.msra.mxu0 %v2873
        %4019 = vmatmul.bf16.gmra.mxu0 %v395
        %v4020 = vpop.f32.mrf.mxu0
        %v4021 = vadd.f32 %v4008, %v4020
        %v4022 = vpop.f32.mrf.mxu0
        %4023 = vdwg.mxu0
        %4024 = vmatpush.bf16.msra.mxu0 %v2602
        %4025 = vmatpush.bf16.msra.mxu0 %v2586
        %4026 = vmatpush.bf16.msra.mxu0 %v2570
        %4027 = vmatpush.bf16.msra.mxu0 %v2554
        %4028 = vmatpush.bf16.msra.mxu0 %v2538
        %4029 = vmatpush.bf16.msra.mxu0 %v2522
        %4030 = vmatpush.bf16.msra.mxu0 %v2506
        %4031 = vmatpush.bf16.msra.mxu0 %v2490
        %4032 = vmatmul.bf16.gmra.mxu0 %v392
        %v4033 = vpop.f32.mrf.mxu0
        %v4034 = vadd.f32 %v922, %v4033
        %v4035 = vpop.f32.mrf.mxu0
        %4036 = vdwg.mxu0
        %4037 = vmatpush.bf16.msra.mxu0 %v2730
        %4038 = vmatpush.bf16.msra.mxu0 %v2714
        %4039 = vmatpush.bf16.msra.mxu0 %v2698
        %4040 = vmatpush.bf16.msra.mxu0 %v2682
        %4041 = vmatpush.bf16.msra.mxu0 %v2666
        %4042 = vmatpush.bf16.msra.mxu0 %v2650
        %4043 = vmatpush.bf16.msra.mxu0 %v2634
        %4044 = vmatpush.bf16.msra.mxu0 %v2618
        %4045 = vmatmul.bf16.gmra.mxu0 %v393
        %v4046 = vpop.f32.mrf.mxu0
        %v4047 = vadd.f32 %v4034, %v4046
        %v4048 = vpop.f32.mrf.mxu0
        %4049 = vdwg.mxu0
        %4050 = vmatpush.bf16.msra.mxu0 %v2858
        %4051 = vmatpush.bf16.msra.mxu0 %v2842
        %4052 = vmatpush.bf16.msra.mxu0 %v2826
        %4053 = vmatpush.bf16.msra.mxu0 %v2810
        %4054 = vmatpush.bf16.msra.mxu0 %v2794
        %4055 = vmatpush.bf16.msra.mxu0 %v2778
        %4056 = vmatpush.bf16.msra.mxu0 %v2762
        %4057 = vmatpush.bf16.msra.mxu0 %v2746
        %4058 = vmatmul.bf16.gmra.mxu0 %v394
        %v4059 = vpop.f32.mrf.mxu0
        %v4060 = vadd.f32 %v4047, %v4059
        %v4061 = vpop.f32.mrf.mxu0
        %4062 = vdwg.mxu0
        %4063 = vmatpush.bf16.msra.mxu0 %v2986
        %4064 = vmatpush.bf16.msra.mxu0 %v2970
        %4065 = vmatpush.bf16.msra.mxu0 %v2954
        %4066 = vmatpush.bf16.msra.mxu0 %v2938
        %4067 = vmatpush.bf16.msra.mxu0 %v2922
        %4068 = vmatpush.bf16.msra.mxu0 %v2906
        %4069 = vmatpush.bf16.msra.mxu0 %v2890
        %4070 = vmatpush.bf16.msra.mxu0 %v2874
        %4071 = vmatmul.bf16.gmra.mxu0 %v395
        %v4072 = vpop.f32.mrf.mxu0
        %v4073 = vadd.f32 %v4060, %v4072
        %v4074 = vpop.f32.mrf.mxu0
        %4075 = vdwg.mxu0
        %4076 = vmatpush.bf16.msra.mxu0 %v2603
        %4077 = vmatpush.bf16.msra.mxu0 %v2587
        %4078 = vmatpush.bf16.msra.mxu0 %v2571
        %4079 = vmatpush.bf16.msra.mxu0 %v2555
        %4080 = vmatpush.bf16.msra.mxu0 %v2539
        %4081 = vmatpush.bf16.msra.mxu0 %v2523
        %4082 = vmatpush.bf16.msra.mxu0 %v2507
        %4083 = vmatpush.bf16.msra.mxu0 %v2491
        %4084 = vmatmul.bf16.gmra.mxu0 %v392
        %v4085 = vpop.f32.mrf.mxu0
        %v4086 = vadd.f32 %v923, %v4085
        %v4087 = vpop.f32.mrf.mxu0
        %4088 = vdwg.mxu0
        %4089 = vmatpush.bf16.msra.mxu0 %v2731
        %4090 = vmatpush.bf16.msra.mxu0 %v2715
        %4091 = vmatpush.bf16.msra.mxu0 %v2699
        %4092 = vmatpush.bf16.msra.mxu0 %v2683
        %4093 = vmatpush.bf16.msra.mxu0 %v2667
        %4094 = vmatpush.bf16.msra.mxu0 %v2651
        %4095 = vmatpush.bf16.msra.mxu0 %v2635
        %4096 = vmatpush.bf16.msra.mxu0 %v2619
        %4097 = vmatmul.bf16.gmra.mxu0 %v393
        %v4098 = vpop.f32.mrf.mxu0
        %v4099 = vadd.f32 %v4086, %v4098
        %v4100 = vpop.f32.mrf.mxu0
        %4101 = vdwg.mxu0
        %4102 = vmatpush.bf16.msra.mxu0 %v2859
        %4103 = vmatpush.bf16.msra.mxu0 %v2843
        %4104 = vmatpush.bf16.msra.mxu0 %v2827
        %4105 = vmatpush.bf16.msra.mxu0 %v2811
        %4106 = vmatpush.bf16.msra.mxu0 %v2795
        %4107 = vmatpush.bf16.msra.mxu0 %v2779
        %4108 = vmatpush.bf16.msra.mxu0 %v2763
        %4109 = vmatpush.bf16.msra.mxu0 %v2747
        %4110 = vmatmul.bf16.gmra.mxu0 %v394
        %v4111 = vpop.f32.mrf.mxu0
        %v4112 = vadd.f32 %v4099, %v4111
        %v4113 = vpop.f32.mrf.mxu0
        %4114 = vdwg.mxu0
        %4115 = vmatpush.bf16.msra.mxu0 %v2987
        %4116 = vmatpush.bf16.msra.mxu0 %v2971
        %4117 = vmatpush.bf16.msra.mxu0 %v2955
        %4118 = vmatpush.bf16.msra.mxu0 %v2939
        %4119 = vmatpush.bf16.msra.mxu0 %v2923
        %4120 = vmatpush.bf16.msra.mxu0 %v2907
        %4121 = vmatpush.bf16.msra.mxu0 %v2891
        %4122 = vmatpush.bf16.msra.mxu0 %v2875
        %4123 = vmatmul.bf16.gmra.mxu0 %v395
        %v4124 = vpop.f32.mrf.mxu0
        %v4125 = vadd.f32 %v4112, %v4124
        %v4126 = vpop.f32.mrf.mxu0
        %4127 = vdwg.mxu0
        %4128 = vmatpush.bf16.msra.mxu0 %v2604
        %4129 = vmatpush.bf16.msra.mxu0 %v2588
        %4130 = vmatpush.bf16.msra.mxu0 %v2572
        %4131 = vmatpush.bf16.msra.mxu0 %v2556
        %4132 = vmatpush.bf16.msra.mxu0 %v2540
        %4133 = vmatpush.bf16.msra.mxu0 %v2524
        %4134 = vmatpush.bf16.msra.mxu0 %v2508
        %4135 = vmatpush.bf16.msra.mxu0 %v2492
        %4136 = vmatmul.bf16.gmra.mxu0 %v392
        %v4137 = vpop.f32.mrf.mxu0
        %v4138 = vadd.f32 %v924, %v4137
        %v4139 = vpop.f32.mrf.mxu0
        %4140 = vdwg.mxu0
        %4141 = vmatpush.bf16.msra.mxu0 %v2732
        %4142 = vmatpush.bf16.msra.mxu0 %v2716
        %4143 = vmatpush.bf16.msra.mxu0 %v2700
        %4144 = vmatpush.bf16.msra.mxu0 %v2684
        %4145 = vmatpush.bf16.msra.mxu0 %v2668
        %4146 = vmatpush.bf16.msra.mxu0 %v2652
        %4147 = vmatpush.bf16.msra.mxu0 %v2636
        %4148 = vmatpush.bf16.msra.mxu0 %v2620
        %4149 = vmatmul.bf16.gmra.mxu0 %v393
        %v4150 = vpop.f32.mrf.mxu0
        %v4151 = vadd.f32 %v4138, %v4150
        %v4152 = vpop.f32.mrf.mxu0
        %4153 = vdwg.mxu0
        %4154 = vmatpush.bf16.msra.mxu0 %v2860
        %4155 = vmatpush.bf16.msra.mxu0 %v2844
        %4156 = vmatpush.bf16.msra.mxu0 %v2828
        %4157 = vmatpush.bf16.msra.mxu0 %v2812
        %4158 = vmatpush.bf16.msra.mxu0 %v2796
        %4159 = vmatpush.bf16.msra.mxu0 %v2780
        %4160 = vmatpush.bf16.msra.mxu0 %v2764
        %4161 = vmatpush.bf16.msra.mxu0 %v2748
        %4162 = vmatmul.bf16.gmra.mxu0 %v394
        %v4163 = vpop.f32.mrf.mxu0
        %v4164 = vadd.f32 %v4151, %v4163
        %v4165 = vpop.f32.mrf.mxu0
        %4166 = vdwg.mxu0
        %4167 = vmatpush.bf16.msra.mxu0 %v2988
        %4168 = vmatpush.bf16.msra.mxu0 %v2972
        %4169 = vmatpush.bf16.msra.mxu0 %v2956
        %4170 = vmatpush.bf16.msra.mxu0 %v2940
        %4171 = vmatpush.bf16.msra.mxu0 %v2924
        %4172 = vmatpush.bf16.msra.mxu0 %v2908
        %4173 = vmatpush.bf16.msra.mxu0 %v2892
        %4174 = vmatpush.bf16.msra.mxu0 %v2876
        %4175 = vmatmul.bf16.gmra.mxu0 %v395
        %v4176 = vpop.f32.mrf.mxu0
        %v4177 = vadd.f32 %v4164, %v4176
        %v4178 = vpop.f32.mrf.mxu0
        %4179 = vdwg.mxu0
        %4180 = vmatpush.bf16.msra.mxu0 %v2605
        %4181 = vmatpush.bf16.msra.mxu0 %v2589
        %4182 = vmatpush.bf16.msra.mxu0 %v2573
        %4183 = vmatpush.bf16.msra.mxu0 %v2557
        %4184 = vmatpush.bf16.msra.mxu0 %v2541
        %4185 = vmatpush.bf16.msra.mxu0 %v2525
        %4186 = vmatpush.bf16.msra.mxu0 %v2509
        %4187 = vmatpush.bf16.msra.mxu0 %v2493
        %4188 = vmatmul.bf16.gmra.mxu0 %v392
        %v4189 = vpop.f32.mrf.mxu0
        %v4190 = vadd.f32 %v925, %v4189
        %v4191 = vpop.f32.mrf.mxu0
        %4192 = vdwg.mxu0
        %4193 = vmatpush.bf16.msra.mxu0 %v2733
        %4194 = vmatpush.bf16.msra.mxu0 %v2717
        %4195 = vmatpush.bf16.msra.mxu0 %v2701
        %4196 = vmatpush.bf16.msra.mxu0 %v2685
        %4197 = vmatpush.bf16.msra.mxu0 %v2669
        %4198 = vmatpush.bf16.msra.mxu0 %v2653
        %4199 = vmatpush.bf16.msra.mxu0 %v2637
        %4200 = vmatpush.bf16.msra.mxu0 %v2621
        %4201 = vmatmul.bf16.gmra.mxu0 %v393
        %v4202 = vpop.f32.mrf.mxu0
        %v4203 = vadd.f32 %v4190, %v4202
        %v4204 = vpop.f32.mrf.mxu0
        %4205 = vdwg.mxu0
        %4206 = vmatpush.bf16.msra.mxu0 %v2861
        %4207 = vmatpush.bf16.msra.mxu0 %v2845
        %4208 = vmatpush.bf16.msra.mxu0 %v2829
        %4209 = vmatpush.bf16.msra.mxu0 %v2813
        %4210 = vmatpush.bf16.msra.mxu0 %v2797
        %4211 = vmatpush.bf16.msra.mxu0 %v2781
        %4212 = vmatpush.bf16.msra.mxu0 %v2765
        %4213 = vmatpush.bf16.msra.mxu0 %v2749
        %4214 = vmatmul.bf16.gmra.mxu0 %v394
        %v4215 = vpop.f32.mrf.mxu0
        %v4216 = vadd.f32 %v4203, %v4215
        %v4217 = vpop.f32.mrf.mxu0
        %4218 = vdwg.mxu0
        %4219 = vmatpush.bf16.msra.mxu0 %v2989
        %4220 = vmatpush.bf16.msra.mxu0 %v2973
        %4221 = vmatpush.bf16.msra.mxu0 %v2957
        %4222 = vmatpush.bf16.msra.mxu0 %v2941
        %4223 = vmatpush.bf16.msra.mxu0 %v2925
        %4224 = vmatpush.bf16.msra.mxu0 %v2909
        %4225 = vmatpush.bf16.msra.mxu0 %v2893
        %4226 = vmatpush.bf16.msra.mxu0 %v2877
        %4227 = vmatmul.bf16.gmra.mxu0 %v395
        %v4228 = vpop.f32.mrf.mxu0
        %v4229 = vadd.f32 %v4216, %v4228
        %v4230 = vpop.f32.mrf.mxu0
        %4231 = vdwg.mxu0
        %4232 = vmatpush.bf16.msra.mxu0 %v2606
        %4233 = vmatpush.bf16.msra.mxu0 %v2590
        %4234 = vmatpush.bf16.msra.mxu0 %v2574
        %4235 = vmatpush.bf16.msra.mxu0 %v2558
        %4236 = vmatpush.bf16.msra.mxu0 %v2542
        %4237 = vmatpush.bf16.msra.mxu0 %v2526
        %4238 = vmatpush.bf16.msra.mxu0 %v2510
        %4239 = vmatpush.bf16.msra.mxu0 %v2494
        %4240 = vmatmul.bf16.gmra.mxu0 %v392
        %v4241 = vpop.f32.mrf.mxu0
        %v4242 = vadd.f32 %v926, %v4241
        %v4243 = vpop.f32.mrf.mxu0
        %4244 = vdwg.mxu0
        %4245 = vmatpush.bf16.msra.mxu0 %v2734
        %4246 = vmatpush.bf16.msra.mxu0 %v2718
        %4247 = vmatpush.bf16.msra.mxu0 %v2702
        %4248 = vmatpush.bf16.msra.mxu0 %v2686
        %4249 = vmatpush.bf16.msra.mxu0 %v2670
        %4250 = vmatpush.bf16.msra.mxu0 %v2654
        %4251 = vmatpush.bf16.msra.mxu0 %v2638
        %4252 = vmatpush.bf16.msra.mxu0 %v2622
        %4253 = vmatmul.bf16.gmra.mxu0 %v393
        %v4254 = vpop.f32.mrf.mxu0
        %v4255 = vadd.f32 %v4242, %v4254
        %v4256 = vpop.f32.mrf.mxu0
        %4257 = vdwg.mxu0
        %4258 = vmatpush.bf16.msra.mxu0 %v2862
        %4259 = vmatpush.bf16.msra.mxu0 %v2846
        %4260 = vmatpush.bf16.msra.mxu0 %v2830
        %4261 = vmatpush.bf16.msra.mxu0 %v2814
        %4262 = vmatpush.bf16.msra.mxu0 %v2798
        %4263 = vmatpush.bf16.msra.mxu0 %v2782
        %4264 = vmatpush.bf16.msra.mxu0 %v2766
        %4265 = vmatpush.bf16.msra.mxu0 %v2750
        %4266 = vmatmul.bf16.gmra.mxu0 %v394
        %v4267 = vpop.f32.mrf.mxu0
        %v4268 = vadd.f32 %v4255, %v4267
        %v4269 = vpop.f32.mrf.mxu0
        %4270 = vdwg.mxu0
        %4271 = vmatpush.bf16.msra.mxu0 %v2990
        %4272 = vmatpush.bf16.msra.mxu0 %v2974
        %4273 = vmatpush.bf16.msra.mxu0 %v2958
        %4274 = vmatpush.bf16.msra.mxu0 %v2942
        %4275 = vmatpush.bf16.msra.mxu0 %v2926
        %4276 = vmatpush.bf16.msra.mxu0 %v2910
        %4277 = vmatpush.bf16.msra.mxu0 %v2894
        %4278 = vmatpush.bf16.msra.mxu0 %v2878
        %4279 = vmatmul.bf16.gmra.mxu0 %v395
        %v4280 = vpop.f32.mrf.mxu0
        %v4281 = vadd.f32 %v4268, %v4280
        %v4282 = vpop.f32.mrf.mxu0
        %4283 = vdwg.mxu0
        %4284 = vmatpush.bf16.msra.mxu0 %v2607
        %4285 = vmatpush.bf16.msra.mxu0 %v2591
        %4286 = vmatpush.bf16.msra.mxu0 %v2575
        %4287 = vmatpush.bf16.msra.mxu0 %v2559
        %4288 = vmatpush.bf16.msra.mxu0 %v2543
        %4289 = vmatpush.bf16.msra.mxu0 %v2527
        %4290 = vmatpush.bf16.msra.mxu0 %v2511
        %4291 = vmatpush.bf16.msra.mxu0 %v2495
        %4292 = vmatmul.bf16.gmra.mxu0 %v392
        %v4293 = vpop.f32.mrf.mxu0
        %v4294 = vadd.f32 %v927, %v4293
        %v4295 = vpop.f32.mrf.mxu0
        %4296 = vdwg.mxu0
        %4297 = vmatpush.bf16.msra.mxu0 %v2735
        %4298 = vmatpush.bf16.msra.mxu0 %v2719
        %4299 = vmatpush.bf16.msra.mxu0 %v2703
        %4300 = vmatpush.bf16.msra.mxu0 %v2687
        %4301 = vmatpush.bf16.msra.mxu0 %v2671
        %4302 = vmatpush.bf16.msra.mxu0 %v2655
        %4303 = vmatpush.bf16.msra.mxu0 %v2639
        %4304 = vmatpush.bf16.msra.mxu0 %v2623
        %4305 = vmatmul.bf16.gmra.mxu0 %v393
        %v4306 = vpop.f32.mrf.mxu0
        %v4307 = vadd.f32 %v4294, %v4306
        %v4308 = vpop.f32.mrf.mxu0
        %4309 = vdwg.mxu0
        %4310 = vmatpush.bf16.msra.mxu0 %v2863
        %4311 = vmatpush.bf16.msra.mxu0 %v2847
        %4312 = vmatpush.bf16.msra.mxu0 %v2831
        %4313 = vmatpush.bf16.msra.mxu0 %v2815
        %4314 = vmatpush.bf16.msra.mxu0 %v2799
        %4315 = vmatpush.bf16.msra.mxu0 %v2783
        %4316 = vmatpush.bf16.msra.mxu0 %v2767
        %4317 = vmatpush.bf16.msra.mxu0 %v2751
        %4318 = vmatmul.bf16.gmra.mxu0 %v394
        %v4319 = vpop.f32.mrf.mxu0
        %v4320 = vadd.f32 %v4307, %v4319
        %v4321 = vpop.f32.mrf.mxu0
        %4322 = vdwg.mxu0
        %4323 = vmatpush.bf16.msra.mxu0 %v2991
        %4324 = vmatpush.bf16.msra.mxu0 %v2975
        %4325 = vmatpush.bf16.msra.mxu0 %v2959
        %4326 = vmatpush.bf16.msra.mxu0 %v2943
        %4327 = vmatpush.bf16.msra.mxu0 %v2927
        %4328 = vmatpush.bf16.msra.mxu0 %v2911
        %4329 = vmatpush.bf16.msra.mxu0 %v2895
        %4330 = vmatpush.bf16.msra.mxu0 %v2879
        %4331 = vmatmul.bf16.gmra.mxu0 %v395
        %v4332 = vpop.f32.mrf.mxu0
        %v4333 = vadd.f32 %v4320, %v4332
        %v4334 = vpop.f32.mrf.mxu0
        %4335 = vdwg.mxu0
        %v4336 = vmax.f32 %v3553, 0.0
        %v4337 = vmax.f32 %v3605, 0.0
        %v4338 = vmax.f32 %v3657, 0.0
        %v4339 = vmax.f32 %v3709, 0.0
        %v4340 = vmax.f32 %v3761, 0.0
        %v4341 = vmax.f32 %v3813, 0.0
        %v4342 = vmax.f32 %v3865, 0.0
        %v4343 = vmax.f32 %v3917, 0.0
        %v4344 = vmax.f32 %v3969, 0.0
        %v4345 = vmax.f32 %v4021, 0.0
        %v4346 = vmax.f32 %v4073, 0.0
        %v4347 = vmax.f32 %v4125, 0.0
        %v4348 = vmax.f32 %v4177, 0.0
        %v4349 = vmax.f32 %v4229, 0.0
        %v4350 = vmax.f32 %v4281, 0.0
        %v4351 = vmax.f32 %v4333, 0.0
        %v4352 = vpack.c.bf16 %v4336, %v4336
        %v4353 = vpack.c.bf16 %v4337, %v4337
        %v4354 = vpack.c.bf16 %v4338, %v4338
        %v4355 = vpack.c.bf16 %v4339, %v4339
        %v4356 = vpack.c.bf16 %v4340, %v4340
        %v4357 = vpack.c.bf16 %v4341, %v4341
        %v4358 = vpack.c.bf16 %v4342, %v4342
        %v4359 = vpack.c.bf16 %v4343, %v4343
        %v4360 = vpack.c.bf16 %v4344, %v4344
        %v4361 = vpack.c.bf16 %v4345, %v4345
        %v4362 = vpack.c.bf16 %v4346, %v4346
        %v4363 = vpack.c.bf16 %v4347, %v4347
        %v4364 = vpack.c.bf16 %v4348, %v4348
        %v4365 = vpack.c.bf16 %v4349, %v4349
        %v4366 = vpack.c.bf16 %v4350, %v4350
        %v4367 = vpack.c.bf16 %v4351, %v4351
        %v4368 = vld [vmem:[#allocation8] sm:$0xff]
        %v4369 = vld [vmem:[#allocation8 + $0x8] sm:$0xff]
        %v4370 = vld [vmem:[#allocation8 + $0x10] sm:$0xff]
        %v4371 = vld [vmem:[#allocation8 + $0x18] sm:$0xff]
        %v4372 = vld [vmem:[#allocation8 + $0x20] sm:$0xff]
        %v4373 = vld [vmem:[#allocation8 + $0x28] sm:$0xff]
        %v4374 = vld [vmem:[#allocation8 + $0x30] sm:$0xff]
        %v4375 = vld [vmem:[#allocation8 + $0x38] sm:$0xff]
        %v4376 = vld [vmem:[#allocation8 + $0x40] sm:$0xff]
        %v4377 = vld [vmem:[#allocation8 + $0x48] sm:$0xff]
        %v4378 = vld [vmem:[#allocation8 + $0x50] sm:$0xff]
        %v4379 = vld [vmem:[#allocation8 + $0x58] sm:$0xff]
        %v4380 = vld [vmem:[#allocation8 + $0x60] sm:$0xff]
        %v4381 = vld [vmem:[#allocation8 + $0x68] sm:$0xff]
        %v4382 = vld [vmem:[#allocation8 + $0x70] sm:$0xff]
        %v4383 = vld [vmem:[#allocation8 + $0x78] sm:$0xff]
        %v4384 = vld [vmem:[#allocation8 + $0x80] sm:$0xff]
        %v4385 = vld [vmem:[#allocation8 + $0x88] sm:$0xff]
        %v4386 = vld [vmem:[#allocation8 + $0x90] sm:$0xff]
        %v4387 = vld [vmem:[#allocation8 + $0x98] sm:$0xff]
        %v4388 = vld [vmem:[#allocation8 + $0xa0] sm:$0xff]
        %v4389 = vld [vmem:[#allocation8 + $0xa8] sm:$0xff]
        %v4390 = vld [vmem:[#allocation8 + $0xb0] sm:$0xff]
        %v4391 = vld [vmem:[#allocation8 + $0xb8] sm:$0xff]
        %v4392 = vld [vmem:[#allocation8 + $0xc0] sm:$0xff]
        %v4393 = vld [vmem:[#allocation8 + $0xc8] sm:$0xff]
        %v4394 = vld [vmem:[#allocation8 + $0xd0] sm:$0xff]
        %v4395 = vld [vmem:[#allocation8 + $0xd8] sm:$0xff]
        %v4396 = vld [vmem:[#allocation8 + $0xe0] sm:$0xff]
        %v4397 = vld [vmem:[#allocation8 + $0xe8] sm:$0xff]
        %v4398 = vld [vmem:[#allocation8 + $0xf0] sm:$0xff]
        %v4399 = vld [vmem:[#allocation8 + $0xf8] sm:$0xff]
        %v4400 = vld [vmem:[#allocation8 + $0x100] sm:$0xff]
        %v4401 = vld [vmem:[#allocation8 + $0x108] sm:$0xff]
        %v4402 = vld [vmem:[#allocation8 + $0x110] sm:$0xff]
        %v4403 = vld [vmem:[#allocation8 + $0x118] sm:$0xff]
        %v4404 = vld [vmem:[#allocation8 + $0x120] sm:$0xff]
        %v4405 = vld [vmem:[#allocation8 + $0x128] sm:$0xff]
        %v4406 = vld [vmem:[#allocation8 + $0x130] sm:$0xff]
        %v4407 = vld [vmem:[#allocation8 + $0x138] sm:$0xff]
        %v4408 = vld [vmem:[#allocation8 + $0x140] sm:$0xff]
        %v4409 = vld [vmem:[#allocation8 + $0x148] sm:$0xff]
        %v4410 = vld [vmem:[#allocation8 + $0x150] sm:$0xff]
        %v4411 = vld [vmem:[#allocation8 + $0x158] sm:$0xff]
        %v4412 = vld [vmem:[#allocation8 + $0x160] sm:$0xff]
        %v4413 = vld [vmem:[#allocation8 + $0x168] sm:$0xff]
        %v4414 = vld [vmem:[#allocation8 + $0x170] sm:$0xff]
        %v4415 = vld [vmem:[#allocation8 + $0x178] sm:$0xff]
        %v4416 = vld [vmem:[#allocation8 + $0x180] sm:$0xff]
        %v4417 = vld [vmem:[#allocation8 + $0x188] sm:$0xff]
        %v4418 = vld [vmem:[#allocation8 + $0x190] sm:$0xff]
        %v4419 = vld [vmem:[#allocation8 + $0x198] sm:$0xff]
        %v4420 = vld [vmem:[#allocation8 + $0x1a0] sm:$0xff]
        %v4421 = vld [vmem:[#allocation8 + $0x1a8] sm:$0xff]
        %v4422 = vld [vmem:[#allocation8 + $0x1b0] sm:$0xff]
        %v4423 = vld [vmem:[#allocation8 + $0x1b8] sm:$0xff]
        %v4424 = vld [vmem:[#allocation8 + $0x1c0] sm:$0xff]
        %v4425 = vld [vmem:[#allocation8 + $0x1c8] sm:$0xff]
        %v4426 = vld [vmem:[#allocation8 + $0x1d0] sm:$0xff]
        %v4427 = vld [vmem:[#allocation8 + $0x1d8] sm:$0xff]
        %v4428 = vld [vmem:[#allocation8 + $0x1e0] sm:$0xff]
        %v4429 = vld [vmem:[#allocation8 + $0x1e8] sm:$0xff]
        %v4430 = vld [vmem:[#allocation8 + $0x1f0] sm:$0xff]
        %v4431 = vld [vmem:[#allocation8 + $0x1f8] sm:$0xff]
        %v4432 = vld [vmem:[#allocation8 + $0x200] sm:$0xff]
        %v4433 = vld [vmem:[#allocation8 + $0x208] sm:$0xff]
        %v4434 = vld [vmem:[#allocation8 + $0x210] sm:$0xff]
        %v4435 = vld [vmem:[#allocation8 + $0x218] sm:$0xff]
        %v4436 = vld [vmem:[#allocation8 + $0x220] sm:$0xff]
        %v4437 = vld [vmem:[#allocation8 + $0x228] sm:$0xff]
        %v4438 = vld [vmem:[#allocation8 + $0x230] sm:$0xff]
        %v4439 = vld [vmem:[#allocation8 + $0x238] sm:$0xff]
        %v4440 = vld [vmem:[#allocation8 + $0x240] sm:$0xff]
        %v4441 = vld [vmem:[#allocation8 + $0x248] sm:$0xff]
        %v4442 = vld [vmem:[#allocation8 + $0x250] sm:$0xff]
        %v4443 = vld [vmem:[#allocation8 + $0x258] sm:$0xff]
        %v4444 = vld [vmem:[#allocation8 + $0x260] sm:$0xff]
        %v4445 = vld [vmem:[#allocation8 + $0x268] sm:$0xff]
        %v4446 = vld [vmem:[#allocation8 + $0x270] sm:$0xff]
        %v4447 = vld [vmem:[#allocation8 + $0x278] sm:$0xff]
        %v4448 = vld [vmem:[#allocation8 + $0x280] sm:$0xff]
        %v4449 = vld [vmem:[#allocation8 + $0x288] sm:$0xff]
        %v4450 = vld [vmem:[#allocation8 + $0x290] sm:$0xff]
        %v4451 = vld [vmem:[#allocation8 + $0x298] sm:$0xff]
        %v4452 = vld [vmem:[#allocation8 + $0x2a0] sm:$0xff]
        %v4453 = vld [vmem:[#allocation8 + $0x2a8] sm:$0xff]
        %v4454 = vld [vmem:[#allocation8 + $0x2b0] sm:$0xff]
        %v4455 = vld [vmem:[#allocation8 + $0x2b8] sm:$0xff]
        %v4456 = vld [vmem:[#allocation8 + $0x2c0] sm:$0xff]
        %v4457 = vld [vmem:[#allocation8 + $0x2c8] sm:$0xff]
        %v4458 = vld [vmem:[#allocation8 + $0x2d0] sm:$0xff]
        %v4459 = vld [vmem:[#allocation8 + $0x2d8] sm:$0xff]
        %v4460 = vld [vmem:[#allocation8 + $0x2e0] sm:$0xff]
        %v4461 = vld [vmem:[#allocation8 + $0x2e8] sm:$0xff]
        %v4462 = vld [vmem:[#allocation8 + $0x2f0] sm:$0xff]
        %v4463 = vld [vmem:[#allocation8 + $0x2f8] sm:$0xff]
        %v4464 = vld [vmem:[#allocation8 + $0x300] sm:$0xff]
        %v4465 = vld [vmem:[#allocation8 + $0x308] sm:$0xff]
        %v4466 = vld [vmem:[#allocation8 + $0x310] sm:$0xff]
        %v4467 = vld [vmem:[#allocation8 + $0x318] sm:$0xff]
        %v4468 = vld [vmem:[#allocation8 + $0x320] sm:$0xff]
        %v4469 = vld [vmem:[#allocation8 + $0x328] sm:$0xff]
        %v4470 = vld [vmem:[#allocation8 + $0x330] sm:$0xff]
        %v4471 = vld [vmem:[#allocation8 + $0x338] sm:$0xff]
        %v4472 = vld [vmem:[#allocation8 + $0x340] sm:$0xff]
        %v4473 = vld [vmem:[#allocation8 + $0x348] sm:$0xff]
        %v4474 = vld [vmem:[#allocation8 + $0x350] sm:$0xff]
        %v4475 = vld [vmem:[#allocation8 + $0x358] sm:$0xff]
        %v4476 = vld [vmem:[#allocation8 + $0x360] sm:$0xff]
        %v4477 = vld [vmem:[#allocation8 + $0x368] sm:$0xff]
        %v4478 = vld [vmem:[#allocation8 + $0x370] sm:$0xff]
        %v4479 = vld [vmem:[#allocation8 + $0x378] sm:$0xff]
        %v4480 = vld [vmem:[#allocation8 + $0x380] sm:$0xff]
        %v4481 = vld [vmem:[#allocation8 + $0x388] sm:$0xff]
        %v4482 = vld [vmem:[#allocation8 + $0x390] sm:$0xff]
        %v4483 = vld [vmem:[#allocation8 + $0x398] sm:$0xff]
        %v4484 = vld [vmem:[#allocation8 + $0x3a0] sm:$0xff]
        %v4485 = vld [vmem:[#allocation8 + $0x3a8] sm:$0xff]
        %v4486 = vld [vmem:[#allocation8 + $0x3b0] sm:$0xff]
        %v4487 = vld [vmem:[#allocation8 + $0x3b8] sm:$0xff]
        %v4488 = vld [vmem:[#allocation8 + $0x3c0] sm:$0xff]
        %v4489 = vld [vmem:[#allocation8 + $0x3c8] sm:$0xff]
        %v4490 = vld [vmem:[#allocation8 + $0x3d0] sm:$0xff]
        %v4491 = vld [vmem:[#allocation8 + $0x3d8] sm:$0xff]
        %v4492 = vld [vmem:[#allocation8 + $0x3e0] sm:$0xff]
        %v4493 = vld [vmem:[#allocation8 + $0x3e8] sm:$0xff]
        %v4494 = vld [vmem:[#allocation8 + $0x3f0] sm:$0xff]
        %v4495 = vld [vmem:[#allocation8 + $0x3f8] sm:$0xff]
        %v4496 = vld [vmem:[#allocation8 + $0x400] sm:$0xff]
        %v4497 = vld [vmem:[#allocation8 + $0x408] sm:$0xff]
        %v4498 = vld [vmem:[#allocation8 + $0x410] sm:$0xff]
        %v4499 = vld [vmem:[#allocation8 + $0x418] sm:$0xff]
        %v4500 = vld [vmem:[#allocation8 + $0x420] sm:$0xff]
        %v4501 = vld [vmem:[#allocation8 + $0x428] sm:$0xff]
        %v4502 = vld [vmem:[#allocation8 + $0x430] sm:$0xff]
        %v4503 = vld [vmem:[#allocation8 + $0x438] sm:$0xff]
        %v4504 = vld [vmem:[#allocation8 + $0x440] sm:$0xff]
        %v4505 = vld [vmem:[#allocation8 + $0x448] sm:$0xff]
        %v4506 = vld [vmem:[#allocation8 + $0x450] sm:$0xff]
        %v4507 = vld [vmem:[#allocation8 + $0x458] sm:$0xff]
        %v4508 = vld [vmem:[#allocation8 + $0x460] sm:$0xff]
        %v4509 = vld [vmem:[#allocation8 + $0x468] sm:$0xff]
        %v4510 = vld [vmem:[#allocation8 + $0x470] sm:$0xff]
        %v4511 = vld [vmem:[#allocation8 + $0x478] sm:$0xff]
        %v4512 = vld [vmem:[#allocation8 + $0x480] sm:$0xff]
        %v4513 = vld [vmem:[#allocation8 + $0x488] sm:$0xff]
        %v4514 = vld [vmem:[#allocation8 + $0x490] sm:$0xff]
        %v4515 = vld [vmem:[#allocation8 + $0x498] sm:$0xff]
        %v4516 = vld [vmem:[#allocation8 + $0x4a0] sm:$0xff]
        %v4517 = vld [vmem:[#allocation8 + $0x4a8] sm:$0xff]
        %v4518 = vld [vmem:[#allocation8 + $0x4b0] sm:$0xff]
        %v4519 = vld [vmem:[#allocation8 + $0x4b8] sm:$0xff]
        %v4520 = vld [vmem:[#allocation8 + $0x4c0] sm:$0xff]
        %v4521 = vld [vmem:[#allocation8 + $0x4c8] sm:$0xff]
        %v4522 = vld [vmem:[#allocation8 + $0x4d0] sm:$0xff]
        %v4523 = vld [vmem:[#allocation8 + $0x4d8] sm:$0xff]
        %v4524 = vld [vmem:[#allocation8 + $0x4e0] sm:$0xff]
        %v4525 = vld [vmem:[#allocation8 + $0x4e8] sm:$0xff]
        %v4526 = vld [vmem:[#allocation8 + $0x4f0] sm:$0xff]
        %v4527 = vld [vmem:[#allocation8 + $0x4f8] sm:$0xff]
        %v4528 = vld [vmem:[#allocation8 + $0x500] sm:$0xff]
        %v4529 = vld [vmem:[#allocation8 + $0x508] sm:$0xff]
        %v4530 = vld [vmem:[#allocation8 + $0x510] sm:$0xff]
        %v4531 = vld [vmem:[#allocation8 + $0x518] sm:$0xff]
        %v4532 = vld [vmem:[#allocation8 + $0x520] sm:$0xff]
        %v4533 = vld [vmem:[#allocation8 + $0x528] sm:$0xff]
        %v4534 = vld [vmem:[#allocation8 + $0x530] sm:$0xff]
        %v4535 = vld [vmem:[#allocation8 + $0x538] sm:$0xff]
        %v4536 = vld [vmem:[#allocation8 + $0x540] sm:$0xff]
        %v4537 = vld [vmem:[#allocation8 + $0x548] sm:$0xff]
        %v4538 = vld [vmem:[#allocation8 + $0x550] sm:$0xff]
        %v4539 = vld [vmem:[#allocation8 + $0x558] sm:$0xff]
        %v4540 = vld [vmem:[#allocation8 + $0x560] sm:$0xff]
        %v4541 = vld [vmem:[#allocation8 + $0x568] sm:$0xff]
        %v4542 = vld [vmem:[#allocation8 + $0x570] sm:$0xff]
        %v4543 = vld [vmem:[#allocation8 + $0x578] sm:$0xff]
        %v4544 = vld [vmem:[#allocation8 + $0x580] sm:$0xff]
        %v4545 = vld [vmem:[#allocation8 + $0x588] sm:$0xff]
        %v4546 = vld [vmem:[#allocation8 + $0x590] sm:$0xff]
        %v4547 = vld [vmem:[#allocation8 + $0x598] sm:$0xff]
        %v4548 = vld [vmem:[#allocation8 + $0x5a0] sm:$0xff]
        %v4549 = vld [vmem:[#allocation8 + $0x5a8] sm:$0xff]
        %v4550 = vld [vmem:[#allocation8 + $0x5b0] sm:$0xff]
        %v4551 = vld [vmem:[#allocation8 + $0x5b8] sm:$0xff]
        %v4552 = vld [vmem:[#allocation8 + $0x5c0] sm:$0xff]
        %v4553 = vld [vmem:[#allocation8 + $0x5c8] sm:$0xff]
        %v4554 = vld [vmem:[#allocation8 + $0x5d0] sm:$0xff]
        %v4555 = vld [vmem:[#allocation8 + $0x5d8] sm:$0xff]
        %v4556 = vld [vmem:[#allocation8 + $0x5e0] sm:$0xff]
        %v4557 = vld [vmem:[#allocation8 + $0x5e8] sm:$0xff]
        %v4558 = vld [vmem:[#allocation8 + $0x5f0] sm:$0xff]
        %v4559 = vld [vmem:[#allocation8 + $0x5f8] sm:$0xff]
        %v4560 = vld [vmem:[#allocation8 + $0x600] sm:$0xff]
        %v4561 = vld [vmem:[#allocation8 + $0x608] sm:$0xff]
        %v4562 = vld [vmem:[#allocation8 + $0x610] sm:$0xff]
        %v4563 = vld [vmem:[#allocation8 + $0x618] sm:$0xff]
        %v4564 = vld [vmem:[#allocation8 + $0x620] sm:$0xff]
        %v4565 = vld [vmem:[#allocation8 + $0x628] sm:$0xff]
        %v4566 = vld [vmem:[#allocation8 + $0x630] sm:$0xff]
        %v4567 = vld [vmem:[#allocation8 + $0x638] sm:$0xff]
        %v4568 = vld [vmem:[#allocation8 + $0x640] sm:$0xff]
        %v4569 = vld [vmem:[#allocation8 + $0x648] sm:$0xff]
        %v4570 = vld [vmem:[#allocation8 + $0x650] sm:$0xff]
        %v4571 = vld [vmem:[#allocation8 + $0x658] sm:$0xff]
        %v4572 = vld [vmem:[#allocation8 + $0x660] sm:$0xff]
        %v4573 = vld [vmem:[#allocation8 + $0x668] sm:$0xff]
        %v4574 = vld [vmem:[#allocation8 + $0x670] sm:$0xff]
        %v4575 = vld [vmem:[#allocation8 + $0x678] sm:$0xff]
        %v4576 = vld [vmem:[#allocation8 + $0x680] sm:$0xff]
        %v4577 = vld [vmem:[#allocation8 + $0x688] sm:$0xff]
        %v4578 = vld [vmem:[#allocation8 + $0x690] sm:$0xff]
        %v4579 = vld [vmem:[#allocation8 + $0x698] sm:$0xff]
        %v4580 = vld [vmem:[#allocation8 + $0x6a0] sm:$0xff]
        %v4581 = vld [vmem:[#allocation8 + $0x6a8] sm:$0xff]
        %v4582 = vld [vmem:[#allocation8 + $0x6b0] sm:$0xff]
        %v4583 = vld [vmem:[#allocation8 + $0x6b8] sm:$0xff]
        %v4584 = vld [vmem:[#allocation8 + $0x6c0] sm:$0xff]
        %v4585 = vld [vmem:[#allocation8 + $0x6c8] sm:$0xff]
        %v4586 = vld [vmem:[#allocation8 + $0x6d0] sm:$0xff]
        %v4587 = vld [vmem:[#allocation8 + $0x6d8] sm:$0xff]
        %v4588 = vld [vmem:[#allocation8 + $0x6e0] sm:$0xff]
        %v4589 = vld [vmem:[#allocation8 + $0x6e8] sm:$0xff]
        %v4590 = vld [vmem:[#allocation8 + $0x6f0] sm:$0xff]
        %v4591 = vld [vmem:[#allocation8 + $0x6f8] sm:$0xff]
        %v4592 = vld [vmem:[#allocation8 + $0x700] sm:$0xff]
        %v4593 = vld [vmem:[#allocation8 + $0x708] sm:$0xff]
        %v4594 = vld [vmem:[#allocation8 + $0x710] sm:$0xff]
        %v4595 = vld [vmem:[#allocation8 + $0x718] sm:$0xff]
        %v4596 = vld [vmem:[#allocation8 + $0x720] sm:$0xff]
        %v4597 = vld [vmem:[#allocation8 + $0x728] sm:$0xff]
        %v4598 = vld [vmem:[#allocation8 + $0x730] sm:$0xff]
        %v4599 = vld [vmem:[#allocation8 + $0x738] sm:$0xff]
        %v4600 = vld [vmem:[#allocation8 + $0x740] sm:$0xff]
        %v4601 = vld [vmem:[#allocation8 + $0x748] sm:$0xff]
        %v4602 = vld [vmem:[#allocation8 + $0x750] sm:$0xff]
        %v4603 = vld [vmem:[#allocation8 + $0x758] sm:$0xff]
        %v4604 = vld [vmem:[#allocation8 + $0x760] sm:$0xff]
        %v4605 = vld [vmem:[#allocation8 + $0x768] sm:$0xff]
        %v4606 = vld [vmem:[#allocation8 + $0x770] sm:$0xff]
        %v4607 = vld [vmem:[#allocation8 + $0x778] sm:$0xff]
        %v4608 = vld [vmem:[#allocation8 + $0x780] sm:$0xff]
        %v4609 = vld [vmem:[#allocation8 + $0x788] sm:$0xff]
        %v4610 = vld [vmem:[#allocation8 + $0x790] sm:$0xff]
        %v4611 = vld [vmem:[#allocation8 + $0x798] sm:$0xff]
        %v4612 = vld [vmem:[#allocation8 + $0x7a0] sm:$0xff]
        %v4613 = vld [vmem:[#allocation8 + $0x7a8] sm:$0xff]
        %v4614 = vld [vmem:[#allocation8 + $0x7b0] sm:$0xff]
        %v4615 = vld [vmem:[#allocation8 + $0x7b8] sm:$0xff]
        %v4616 = vld [vmem:[#allocation8 + $0x7c0] sm:$0xff]
        %v4617 = vld [vmem:[#allocation8 + $0x7c8] sm:$0xff]
        %v4618 = vld [vmem:[#allocation8 + $0x7d0] sm:$0xff]
        %v4619 = vld [vmem:[#allocation8 + $0x7d8] sm:$0xff]
        %v4620 = vld [vmem:[#allocation8 + $0x7e0] sm:$0xff]
        %v4621 = vld [vmem:[#allocation8 + $0x7e8] sm:$0xff]
        %v4622 = vld [vmem:[#allocation8 + $0x7f0] sm:$0xff]
        %v4623 = vld [vmem:[#allocation8 + $0x7f8] sm:$0xff]
        %v4624 = vld [vmem:[#allocation8 + $0x800] sm:$0xff]
        %v4625 = vld [vmem:[#allocation8 + $0x808] sm:$0xff]
        %v4626 = vld [vmem:[#allocation8 + $0x810] sm:$0xff]
        %v4627 = vld [vmem:[#allocation8 + $0x818] sm:$0xff]
        %v4628 = vld [vmem:[#allocation8 + $0x820] sm:$0xff]
        %v4629 = vld [vmem:[#allocation8 + $0x828] sm:$0xff]
        %v4630 = vld [vmem:[#allocation8 + $0x830] sm:$0xff]
        %v4631 = vld [vmem:[#allocation8 + $0x838] sm:$0xff]
        %v4632 = vld [vmem:[#allocation8 + $0x840] sm:$0xff]
        %v4633 = vld [vmem:[#allocation8 + $0x848] sm:$0xff]
        %v4634 = vld [vmem:[#allocation8 + $0x850] sm:$0xff]
        %v4635 = vld [vmem:[#allocation8 + $0x858] sm:$0xff]
        %v4636 = vld [vmem:[#allocation8 + $0x860] sm:$0xff]
        %v4637 = vld [vmem:[#allocation8 + $0x868] sm:$0xff]
        %v4638 = vld [vmem:[#allocation8 + $0x870] sm:$0xff]
        %v4639 = vld [vmem:[#allocation8 + $0x878] sm:$0xff]
        %v4640 = vld [vmem:[#allocation8 + $0x880] sm:$0xff]
        %v4641 = vld [vmem:[#allocation8 + $0x888] sm:$0xff]
        %v4642 = vld [vmem:[#allocation8 + $0x890] sm:$0xff]
        %v4643 = vld [vmem:[#allocation8 + $0x898] sm:$0xff]
        %v4644 = vld [vmem:[#allocation8 + $0x8a0] sm:$0xff]
        %v4645 = vld [vmem:[#allocation8 + $0x8a8] sm:$0xff]
        %v4646 = vld [vmem:[#allocation8 + $0x8b0] sm:$0xff]
        %v4647 = vld [vmem:[#allocation8 + $0x8b8] sm:$0xff]
        %v4648 = vld [vmem:[#allocation8 + $0x8c0] sm:$0xff]
        %v4649 = vld [vmem:[#allocation8 + $0x8c8] sm:$0xff]
        %v4650 = vld [vmem:[#allocation8 + $0x8d0] sm:$0xff]
        %v4651 = vld [vmem:[#allocation8 + $0x8d8] sm:$0xff]
        %v4652 = vld [vmem:[#allocation8 + $0x8e0] sm:$0xff]
        %v4653 = vld [vmem:[#allocation8 + $0x8e8] sm:$0xff]
        %v4654 = vld [vmem:[#allocation8 + $0x8f0] sm:$0xff]
        %v4655 = vld [vmem:[#allocation8 + $0x8f8] sm:$0xff]
        %v4656 = vld [vmem:[#allocation8 + $0x900] sm:$0xff]
        %v4657 = vld [vmem:[#allocation8 + $0x908] sm:$0xff]
        %v4658 = vld [vmem:[#allocation8 + $0x910] sm:$0xff]
        %v4659 = vld [vmem:[#allocation8 + $0x918] sm:$0xff]
        %v4660 = vld [vmem:[#allocation8 + $0x920] sm:$0xff]
        %v4661 = vld [vmem:[#allocation8 + $0x928] sm:$0xff]
        %v4662 = vld [vmem:[#allocation8 + $0x930] sm:$0xff]
        %v4663 = vld [vmem:[#allocation8 + $0x938] sm:$0xff]
        %v4664 = vld [vmem:[#allocation8 + $0x940] sm:$0xff]
        %v4665 = vld [vmem:[#allocation8 + $0x948] sm:$0xff]
        %v4666 = vld [vmem:[#allocation8 + $0x950] sm:$0xff]
        %v4667 = vld [vmem:[#allocation8 + $0x958] sm:$0xff]
        %v4668 = vld [vmem:[#allocation8 + $0x960] sm:$0xff]
        %v4669 = vld [vmem:[#allocation8 + $0x968] sm:$0xff]
        %v4670 = vld [vmem:[#allocation8 + $0x970] sm:$0xff]
        %v4671 = vld [vmem:[#allocation8 + $0x978] sm:$0xff]
        %v4672 = vld [vmem:[#allocation8 + $0x980] sm:$0xff]
        %v4673 = vld [vmem:[#allocation8 + $0x988] sm:$0xff]
        %v4674 = vld [vmem:[#allocation8 + $0x990] sm:$0xff]
        %v4675 = vld [vmem:[#allocation8 + $0x998] sm:$0xff]
        %v4676 = vld [vmem:[#allocation8 + $0x9a0] sm:$0xff]
        %v4677 = vld [vmem:[#allocation8 + $0x9a8] sm:$0xff]
        %v4678 = vld [vmem:[#allocation8 + $0x9b0] sm:$0xff]
        %v4679 = vld [vmem:[#allocation8 + $0x9b8] sm:$0xff]
        %v4680 = vld [vmem:[#allocation8 + $0x9c0] sm:$0xff]
        %v4681 = vld [vmem:[#allocation8 + $0x9c8] sm:$0xff]
        %v4682 = vld [vmem:[#allocation8 + $0x9d0] sm:$0xff]
        %v4683 = vld [vmem:[#allocation8 + $0x9d8] sm:$0xff]
        %v4684 = vld [vmem:[#allocation8 + $0x9e0] sm:$0xff]
        %v4685 = vld [vmem:[#allocation8 + $0x9e8] sm:$0xff]
        %v4686 = vld [vmem:[#allocation8 + $0x9f0] sm:$0xff]
        %v4687 = vld [vmem:[#allocation8 + $0x9f8] sm:$0xff]
        %v4688 = vld [vmem:[#allocation8 + $0xa00] sm:$0xff]
        %v4689 = vld [vmem:[#allocation8 + $0xa08] sm:$0xff]
        %v4690 = vld [vmem:[#allocation8 + $0xa10] sm:$0xff]
        %v4691 = vld [vmem:[#allocation8 + $0xa18] sm:$0xff]
        %v4692 = vld [vmem:[#allocation8 + $0xa20] sm:$0xff]
        %v4693 = vld [vmem:[#allocation8 + $0xa28] sm:$0xff]
        %v4694 = vld [vmem:[#allocation8 + $0xa30] sm:$0xff]
        %v4695 = vld [vmem:[#allocation8 + $0xa38] sm:$0xff]
        %v4696 = vld [vmem:[#allocation8 + $0xa40] sm:$0xff]
        %v4697 = vld [vmem:[#allocation8 + $0xa48] sm:$0xff]
        %v4698 = vld [vmem:[#allocation8 + $0xa50] sm:$0xff]
        %v4699 = vld [vmem:[#allocation8 + $0xa58] sm:$0xff]
        %v4700 = vld [vmem:[#allocation8 + $0xa60] sm:$0xff]
        %v4701 = vld [vmem:[#allocation8 + $0xa68] sm:$0xff]
        %v4702 = vld [vmem:[#allocation8 + $0xa70] sm:$0xff]
        %v4703 = vld [vmem:[#allocation8 + $0xa78] sm:$0xff]
        %v4704 = vld [vmem:[#allocation8 + $0xa80] sm:$0xff]
        %v4705 = vld [vmem:[#allocation8 + $0xa88] sm:$0xff]
        %v4706 = vld [vmem:[#allocation8 + $0xa90] sm:$0xff]
        %v4707 = vld [vmem:[#allocation8 + $0xa98] sm:$0xff]
        %v4708 = vld [vmem:[#allocation8 + $0xaa0] sm:$0xff]
        %v4709 = vld [vmem:[#allocation8 + $0xaa8] sm:$0xff]
        %v4710 = vld [vmem:[#allocation8 + $0xab0] sm:$0xff]
        %v4711 = vld [vmem:[#allocation8 + $0xab8] sm:$0xff]
        %v4712 = vld [vmem:[#allocation8 + $0xac0] sm:$0xff]
        %v4713 = vld [vmem:[#allocation8 + $0xac8] sm:$0xff]
        %v4714 = vld [vmem:[#allocation8 + $0xad0] sm:$0xff]
        %v4715 = vld [vmem:[#allocation8 + $0xad8] sm:$0xff]
        %v4716 = vld [vmem:[#allocation8 + $0xae0] sm:$0xff]
        %v4717 = vld [vmem:[#allocation8 + $0xae8] sm:$0xff]
        %v4718 = vld [vmem:[#allocation8 + $0xaf0] sm:$0xff]
        %v4719 = vld [vmem:[#allocation8 + $0xaf8] sm:$0xff]
        %v4720 = vld [vmem:[#allocation8 + $0xb00] sm:$0xff]
        %v4721 = vld [vmem:[#allocation8 + $0xb08] sm:$0xff]
        %v4722 = vld [vmem:[#allocation8 + $0xb10] sm:$0xff]
        %v4723 = vld [vmem:[#allocation8 + $0xb18] sm:$0xff]
        %v4724 = vld [vmem:[#allocation8 + $0xb20] sm:$0xff]
        %v4725 = vld [vmem:[#allocation8 + $0xb28] sm:$0xff]
        %v4726 = vld [vmem:[#allocation8 + $0xb30] sm:$0xff]
        %v4727 = vld [vmem:[#allocation8 + $0xb38] sm:$0xff]
        %v4728 = vld [vmem:[#allocation8 + $0xb40] sm:$0xff]
        %v4729 = vld [vmem:[#allocation8 + $0xb48] sm:$0xff]
        %v4730 = vld [vmem:[#allocation8 + $0xb50] sm:$0xff]
        %v4731 = vld [vmem:[#allocation8 + $0xb58] sm:$0xff]
        %v4732 = vld [vmem:[#allocation8 + $0xb60] sm:$0xff]
        %v4733 = vld [vmem:[#allocation8 + $0xb68] sm:$0xff]
        %v4734 = vld [vmem:[#allocation8 + $0xb70] sm:$0xff]
        %v4735 = vld [vmem:[#allocation8 + $0xb78] sm:$0xff]
        %v4736 = vld [vmem:[#allocation8 + $0xb80] sm:$0xff]
        %v4737 = vld [vmem:[#allocation8 + $0xb88] sm:$0xff]
        %v4738 = vld [vmem:[#allocation8 + $0xb90] sm:$0xff]
        %v4739 = vld [vmem:[#allocation8 + $0xb98] sm:$0xff]
        %v4740 = vld [vmem:[#allocation8 + $0xba0] sm:$0xff]
        %v4741 = vld [vmem:[#allocation8 + $0xba8] sm:$0xff]
        %v4742 = vld [vmem:[#allocation8 + $0xbb0] sm:$0xff]
        %v4743 = vld [vmem:[#allocation8 + $0xbb8] sm:$0xff]
        %v4744 = vld [vmem:[#allocation8 + $0xbc0] sm:$0xff]
        %v4745 = vld [vmem:[#allocation8 + $0xbc8] sm:$0xff]
        %v4746 = vld [vmem:[#allocation8 + $0xbd0] sm:$0xff]
        %v4747 = vld [vmem:[#allocation8 + $0xbd8] sm:$0xff]
        %v4748 = vld [vmem:[#allocation8 + $0xbe0] sm:$0xff]
        %v4749 = vld [vmem:[#allocation8 + $0xbe8] sm:$0xff]
        %v4750 = vld [vmem:[#allocation8 + $0xbf0] sm:$0xff]
        %v4751 = vld [vmem:[#allocation8 + $0xbf8] sm:$0xff]
        %v4752 = vld [vmem:[#allocation8 + $0xc00] sm:$0xff]
        %v4753 = vld [vmem:[#allocation8 + $0xc08] sm:$0xff]
        %v4754 = vld [vmem:[#allocation8 + $0xc10] sm:$0xff]
        %v4755 = vld [vmem:[#allocation8 + $0xc18] sm:$0xff]
        %v4756 = vld [vmem:[#allocation8 + $0xc20] sm:$0xff]
        %v4757 = vld [vmem:[#allocation8 + $0xc28] sm:$0xff]
        %v4758 = vld [vmem:[#allocation8 + $0xc30] sm:$0xff]
        %v4759 = vld [vmem:[#allocation8 + $0xc38] sm:$0xff]
        %v4760 = vld [vmem:[#allocation8 + $0xc40] sm:$0xff]
        %v4761 = vld [vmem:[#allocation8 + $0xc48] sm:$0xff]
        %v4762 = vld [vmem:[#allocation8 + $0xc50] sm:$0xff]
        %v4763 = vld [vmem:[#allocation8 + $0xc58] sm:$0xff]
        %v4764 = vld [vmem:[#allocation8 + $0xc60] sm:$0xff]
        %v4765 = vld [vmem:[#allocation8 + $0xc68] sm:$0xff]
        %v4766 = vld [vmem:[#allocation8 + $0xc70] sm:$0xff]
        %v4767 = vld [vmem:[#allocation8 + $0xc78] sm:$0xff]
        %v4768 = vld [vmem:[#allocation8 + $0xc80] sm:$0xff]
        %v4769 = vld [vmem:[#allocation8 + $0xc88] sm:$0xff]
        %v4770 = vld [vmem:[#allocation8 + $0xc90] sm:$0xff]
        %v4771 = vld [vmem:[#allocation8 + $0xc98] sm:$0xff]
        %v4772 = vld [vmem:[#allocation8 + $0xca0] sm:$0xff]
        %v4773 = vld [vmem:[#allocation8 + $0xca8] sm:$0xff]
        %v4774 = vld [vmem:[#allocation8 + $0xcb0] sm:$0xff]
        %v4775 = vld [vmem:[#allocation8 + $0xcb8] sm:$0xff]
        %v4776 = vld [vmem:[#allocation8 + $0xcc0] sm:$0xff]
        %v4777 = vld [vmem:[#allocation8 + $0xcc8] sm:$0xff]
        %v4778 = vld [vmem:[#allocation8 + $0xcd0] sm:$0xff]
        %v4779 = vld [vmem:[#allocation8 + $0xcd8] sm:$0xff]
        %v4780 = vld [vmem:[#allocation8 + $0xce0] sm:$0xff]
        %v4781 = vld [vmem:[#allocation8 + $0xce8] sm:$0xff]
        %v4782 = vld [vmem:[#allocation8 + $0xcf0] sm:$0xff]
        %v4783 = vld [vmem:[#allocation8 + $0xcf8] sm:$0xff]
        %v4784 = vld [vmem:[#allocation8 + $0xd00] sm:$0xff]
        %v4785 = vld [vmem:[#allocation8 + $0xd08] sm:$0xff]
        %v4786 = vld [vmem:[#allocation8 + $0xd10] sm:$0xff]
        %v4787 = vld [vmem:[#allocation8 + $0xd18] sm:$0xff]
        %v4788 = vld [vmem:[#allocation8 + $0xd20] sm:$0xff]
        %v4789 = vld [vmem:[#allocation8 + $0xd28] sm:$0xff]
        %v4790 = vld [vmem:[#allocation8 + $0xd30] sm:$0xff]
        %v4791 = vld [vmem:[#allocation8 + $0xd38] sm:$0xff]
        %v4792 = vld [vmem:[#allocation8 + $0xd40] sm:$0xff]
        %v4793 = vld [vmem:[#allocation8 + $0xd48] sm:$0xff]
        %v4794 = vld [vmem:[#allocation8 + $0xd50] sm:$0xff]
        %v4795 = vld [vmem:[#allocation8 + $0xd58] sm:$0xff]
        %v4796 = vld [vmem:[#allocation8 + $0xd60] sm:$0xff]
        %v4797 = vld [vmem:[#allocation8 + $0xd68] sm:$0xff]
        %v4798 = vld [vmem:[#allocation8 + $0xd70] sm:$0xff]
        %v4799 = vld [vmem:[#allocation8 + $0xd78] sm:$0xff]
        %v4800 = vld [vmem:[#allocation8 + $0xd80] sm:$0xff]
        %v4801 = vld [vmem:[#allocation8 + $0xd88] sm:$0xff]
        %v4802 = vld [vmem:[#allocation8 + $0xd90] sm:$0xff]
        %v4803 = vld [vmem:[#allocation8 + $0xd98] sm:$0xff]
        %v4804 = vld [vmem:[#allocation8 + $0xda0] sm:$0xff]
        %v4805 = vld [vmem:[#allocation8 + $0xda8] sm:$0xff]
        %v4806 = vld [vmem:[#allocation8 + $0xdb0] sm:$0xff]
        %v4807 = vld [vmem:[#allocation8 + $0xdb8] sm:$0xff]
        %v4808 = vld [vmem:[#allocation8 + $0xdc0] sm:$0xff]
        %v4809 = vld [vmem:[#allocation8 + $0xdc8] sm:$0xff]
        %v4810 = vld [vmem:[#allocation8 + $0xdd0] sm:$0xff]
        %v4811 = vld [vmem:[#allocation8 + $0xdd8] sm:$0xff]
        %v4812 = vld [vmem:[#allocation8 + $0xde0] sm:$0xff]
        %v4813 = vld [vmem:[#allocation8 + $0xde8] sm:$0xff]
        %v4814 = vld [vmem:[#allocation8 + $0xdf0] sm:$0xff]
        %v4815 = vld [vmem:[#allocation8 + $0xdf8] sm:$0xff]
        %v4816 = vld [vmem:[#allocation8 + $0xe00] sm:$0xff]
        %v4817 = vld [vmem:[#allocation8 + $0xe08] sm:$0xff]
        %v4818 = vld [vmem:[#allocation8 + $0xe10] sm:$0xff]
        %v4819 = vld [vmem:[#allocation8 + $0xe18] sm:$0xff]
        %v4820 = vld [vmem:[#allocation8 + $0xe20] sm:$0xff]
        %v4821 = vld [vmem:[#allocation8 + $0xe28] sm:$0xff]
        %v4822 = vld [vmem:[#allocation8 + $0xe30] sm:$0xff]
        %v4823 = vld [vmem:[#allocation8 + $0xe38] sm:$0xff]
        %v4824 = vld [vmem:[#allocation8 + $0xe40] sm:$0xff]
        %v4825 = vld [vmem:[#allocation8 + $0xe48] sm:$0xff]
        %v4826 = vld [vmem:[#allocation8 + $0xe50] sm:$0xff]
        %v4827 = vld [vmem:[#allocation8 + $0xe58] sm:$0xff]
        %v4828 = vld [vmem:[#allocation8 + $0xe60] sm:$0xff]
        %v4829 = vld [vmem:[#allocation8 + $0xe68] sm:$0xff]
        %v4830 = vld [vmem:[#allocation8 + $0xe70] sm:$0xff]
        %v4831 = vld [vmem:[#allocation8 + $0xe78] sm:$0xff]
        %v4832 = vld [vmem:[#allocation8 + $0xe80] sm:$0xff]
        %v4833 = vld [vmem:[#allocation8 + $0xe88] sm:$0xff]
        %v4834 = vld [vmem:[#allocation8 + $0xe90] sm:$0xff]
        %v4835 = vld [vmem:[#allocation8 + $0xe98] sm:$0xff]
        %v4836 = vld [vmem:[#allocation8 + $0xea0] sm:$0xff]
        %v4837 = vld [vmem:[#allocation8 + $0xea8] sm:$0xff]
        %v4838 = vld [vmem:[#allocation8 + $0xeb0] sm:$0xff]
        %v4839 = vld [vmem:[#allocation8 + $0xeb8] sm:$0xff]
        %v4840 = vld [vmem:[#allocation8 + $0xec0] sm:$0xff]
        %v4841 = vld [vmem:[#allocation8 + $0xec8] sm:$0xff]
        %v4842 = vld [vmem:[#allocation8 + $0xed0] sm:$0xff]
        %v4843 = vld [vmem:[#allocation8 + $0xed8] sm:$0xff]
        %v4844 = vld [vmem:[#allocation8 + $0xee0] sm:$0xff]
        %v4845 = vld [vmem:[#allocation8 + $0xee8] sm:$0xff]
        %v4846 = vld [vmem:[#allocation8 + $0xef0] sm:$0xff]
        %v4847 = vld [vmem:[#allocation8 + $0xef8] sm:$0xff]
        %v4848 = vld [vmem:[#allocation8 + $0xf00] sm:$0xff]
        %v4849 = vld [vmem:[#allocation8 + $0xf08] sm:$0xff]
        %v4850 = vld [vmem:[#allocation8 + $0xf10] sm:$0xff]
        %v4851 = vld [vmem:[#allocation8 + $0xf18] sm:$0xff]
        %v4852 = vld [vmem:[#allocation8 + $0xf20] sm:$0xff]
        %v4853 = vld [vmem:[#allocation8 + $0xf28] sm:$0xff]
        %v4854 = vld [vmem:[#allocation8 + $0xf30] sm:$0xff]
        %v4855 = vld [vmem:[#allocation8 + $0xf38] sm:$0xff]
        %v4856 = vld [vmem:[#allocation8 + $0xf40] sm:$0xff]
        %v4857 = vld [vmem:[#allocation8 + $0xf48] sm:$0xff]
        %v4858 = vld [vmem:[#allocation8 + $0xf50] sm:$0xff]
        %v4859 = vld [vmem:[#allocation8 + $0xf58] sm:$0xff]
        %v4860 = vld [vmem:[#allocation8 + $0xf60] sm:$0xff]
        %v4861 = vld [vmem:[#allocation8 + $0xf68] sm:$0xff]
        %v4862 = vld [vmem:[#allocation8 + $0xf70] sm:$0xff]
        %v4863 = vld [vmem:[#allocation8 + $0xf78] sm:$0xff]
        %v4864 = vld [vmem:[#allocation8 + $0xf80] sm:$0xff]
        %v4865 = vld [vmem:[#allocation8 + $0xf88] sm:$0xff]
        %v4866 = vld [vmem:[#allocation8 + $0xf90] sm:$0xff]
        %v4867 = vld [vmem:[#allocation8 + $0xf98] sm:$0xff]
        %v4868 = vld [vmem:[#allocation8 + $0xfa0] sm:$0xff]
        %v4869 = vld [vmem:[#allocation8 + $0xfa8] sm:$0xff]
        %v4870 = vld [vmem:[#allocation8 + $0xfb0] sm:$0xff]
        %v4871 = vld [vmem:[#allocation8 + $0xfb8] sm:$0xff]
        %v4872 = vld [vmem:[#allocation8 + $0xfc0] sm:$0xff]
        %v4873 = vld [vmem:[#allocation8 + $0xfc8] sm:$0xff]
        %v4874 = vld [vmem:[#allocation8 + $0xfd0] sm:$0xff]
        %v4875 = vld [vmem:[#allocation8 + $0xfd8] sm:$0xff]
        %v4876 = vld [vmem:[#allocation8 + $0xfe0] sm:$0xff]
        %v4877 = vld [vmem:[#allocation8 + $0xfe8] sm:$0xff]
        %v4878 = vld [vmem:[#allocation8 + $0xff0] sm:$0xff]
        %v4879 = vld [vmem:[#allocation8 + $0xff8] sm:$0xff]
        %v4880 = vld [vmem:[#allocation10] sm:$0xf]
        %v4882 = vperm.slane %v4880, 0
        %v4883 = vperm.slane %v4880, 1
        %v4884 = vperm.slane %v4880, 2
        %v4885 = vperm.slane %v4880, 3
        %v5402 = vunpack.c.l.b16 %v4368
        %v5403 = vunpack.c.h.b16 %v4368
        %v5404 = vunpack.c.l.b16 %v4369
        %v5405 = vunpack.c.h.b16 %v4369
        %v5406 = vunpack.c.l.b16 %v4370
        %v5407 = vunpack.c.h.b16 %v4370
        %v5408 = vunpack.c.l.b16 %v4371
        %v5409 = vunpack.c.h.b16 %v4371
        %v5410 = vunpack.c.l.b16 %v4372
        %v5411 = vunpack.c.h.b16 %v4372
        %v5412 = vunpack.c.l.b16 %v4373
        %v5413 = vunpack.c.h.b16 %v4373
        %v5414 = vunpack.c.l.b16 %v4374
        %v5415 = vunpack.c.h.b16 %v4374
        %v5416 = vunpack.c.l.b16 %v4375
        %v5417 = vunpack.c.h.b16 %v4375
        %v5418 = vunpack.c.l.b16 %v4376
        %v5419 = vunpack.c.h.b16 %v4376
        %v5420 = vunpack.c.l.b16 %v4377
        %v5421 = vunpack.c.h.b16 %v4377
        %v5422 = vunpack.c.l.b16 %v4378
        %v5423 = vunpack.c.h.b16 %v4378
        %v5424 = vunpack.c.l.b16 %v4379
        %v5425 = vunpack.c.h.b16 %v4379
        %v5426 = vunpack.c.l.b16 %v4380
        %v5427 = vunpack.c.h.b16 %v4380
        %v5428 = vunpack.c.l.b16 %v4381
        %v5429 = vunpack.c.h.b16 %v4381
        %v5430 = vunpack.c.l.b16 %v4382
        %v5431 = vunpack.c.h.b16 %v4382
        %v5432 = vunpack.c.l.b16 %v4383
        %v5433 = vunpack.c.h.b16 %v4383
        %v5434 = vunpack.c.l.b16 %v4384
        %v5435 = vunpack.c.h.b16 %v4384
        %v5436 = vunpack.c.l.b16 %v4385
        %v5437 = vunpack.c.h.b16 %v4385
        %v5438 = vunpack.c.l.b16 %v4386
        %v5439 = vunpack.c.h.b16 %v4386
        %v5440 = vunpack.c.l.b16 %v4387
        %v5441 = vunpack.c.h.b16 %v4387
        %v5442 = vunpack.c.l.b16 %v4388
        %v5443 = vunpack.c.h.b16 %v4388
        %v5444 = vunpack.c.l.b16 %v4389
        %v5445 = vunpack.c.h.b16 %v4389
        %v5446 = vunpack.c.l.b16 %v4390
        %v5447 = vunpack.c.h.b16 %v4390
        %v5448 = vunpack.c.l.b16 %v4391
        %v5449 = vunpack.c.h.b16 %v4391
        %v5450 = vunpack.c.l.b16 %v4392
        %v5451 = vunpack.c.h.b16 %v4392
        %v5452 = vunpack.c.l.b16 %v4393
        %v5453 = vunpack.c.h.b16 %v4393
        %v5454 = vunpack.c.l.b16 %v4394
        %v5455 = vunpack.c.h.b16 %v4394
        %v5456 = vunpack.c.l.b16 %v4395
        %v5457 = vunpack.c.h.b16 %v4395
        %v5458 = vunpack.c.l.b16 %v4396
        %v5459 = vunpack.c.h.b16 %v4396
        %v5460 = vunpack.c.l.b16 %v4397
        %v5461 = vunpack.c.h.b16 %v4397
        %v5462 = vunpack.c.l.b16 %v4398
        %v5463 = vunpack.c.h.b16 %v4398
        %v5464 = vunpack.c.l.b16 %v4399
        %v5465 = vunpack.c.h.b16 %v4399
        %v5466 = vunpack.c.l.b16 %v4400
        %v5467 = vunpack.c.h.b16 %v4400
        %v5468 = vunpack.c.l.b16 %v4401
        %v5469 = vunpack.c.h.b16 %v4401
        %v5470 = vunpack.c.l.b16 %v4402
        %v5471 = vunpack.c.h.b16 %v4402
        %v5472 = vunpack.c.l.b16 %v4403
        %v5473 = vunpack.c.h.b16 %v4403
        %v5474 = vunpack.c.l.b16 %v4404
        %v5475 = vunpack.c.h.b16 %v4404
        %v5476 = vunpack.c.l.b16 %v4405
        %v5477 = vunpack.c.h.b16 %v4405
        %v5478 = vunpack.c.l.b16 %v4406
        %v5479 = vunpack.c.h.b16 %v4406
        %v5480 = vunpack.c.l.b16 %v4407
        %v5481 = vunpack.c.h.b16 %v4407
        %v5482 = vunpack.c.l.b16 %v4408
        %v5483 = vunpack.c.h.b16 %v4408
        %v5484 = vunpack.c.l.b16 %v4409
        %v5485 = vunpack.c.h.b16 %v4409
        %v5486 = vunpack.c.l.b16 %v4410
        %v5487 = vunpack.c.h.b16 %v4410
        %v5488 = vunpack.c.l.b16 %v4411
        %v5489 = vunpack.c.h.b16 %v4411
        %v5490 = vunpack.c.l.b16 %v4412
        %v5491 = vunpack.c.h.b16 %v4412
        %v5492 = vunpack.c.l.b16 %v4413
        %v5493 = vunpack.c.h.b16 %v4413
        %v5494 = vunpack.c.l.b16 %v4414
        %v5495 = vunpack.c.h.b16 %v4414
        %v5496 = vunpack.c.l.b16 %v4415
        %v5497 = vunpack.c.h.b16 %v4415
        %v5498 = vunpack.c.l.b16 %v4416
        %v5499 = vunpack.c.h.b16 %v4416
        %v5500 = vunpack.c.l.b16 %v4417
        %v5501 = vunpack.c.h.b16 %v4417
        %v5502 = vunpack.c.l.b16 %v4418
        %v5503 = vunpack.c.h.b16 %v4418
        %v5504 = vunpack.c.l.b16 %v4419
        %v5505 = vunpack.c.h.b16 %v4419
        %v5506 = vunpack.c.l.b16 %v4420
        %v5507 = vunpack.c.h.b16 %v4420
        %v5508 = vunpack.c.l.b16 %v4421
        %v5509 = vunpack.c.h.b16 %v4421
        %v5510 = vunpack.c.l.b16 %v4422
        %v5511 = vunpack.c.h.b16 %v4422
        %v5512 = vunpack.c.l.b16 %v4423
        %v5513 = vunpack.c.h.b16 %v4423
        %v5514 = vunpack.c.l.b16 %v4424
        %v5515 = vunpack.c.h.b16 %v4424
        %v5516 = vunpack.c.l.b16 %v4425
        %v5517 = vunpack.c.h.b16 %v4425
        %v5518 = vunpack.c.l.b16 %v4426
        %v5519 = vunpack.c.h.b16 %v4426
        %v5520 = vunpack.c.l.b16 %v4427
        %v5521 = vunpack.c.h.b16 %v4427
        %v5522 = vunpack.c.l.b16 %v4428
        %v5523 = vunpack.c.h.b16 %v4428
        %v5524 = vunpack.c.l.b16 %v4429
        %v5525 = vunpack.c.h.b16 %v4429
        %v5526 = vunpack.c.l.b16 %v4430
        %v5527 = vunpack.c.h.b16 %v4430
        %v5528 = vunpack.c.l.b16 %v4431
        %v5529 = vunpack.c.h.b16 %v4431
        %v5530 = vunpack.c.l.b16 %v4432
        %v5531 = vunpack.c.h.b16 %v4432
        %v5532 = vunpack.c.l.b16 %v4433
        %v5533 = vunpack.c.h.b16 %v4433
        %v5534 = vunpack.c.l.b16 %v4434
        %v5535 = vunpack.c.h.b16 %v4434
        %v5536 = vunpack.c.l.b16 %v4435
        %v5537 = vunpack.c.h.b16 %v4435
        %v5538 = vunpack.c.l.b16 %v4436
        %v5539 = vunpack.c.h.b16 %v4436
        %v5540 = vunpack.c.l.b16 %v4437
        %v5541 = vunpack.c.h.b16 %v4437
        %v5542 = vunpack.c.l.b16 %v4438
        %v5543 = vunpack.c.h.b16 %v4438
        %v5544 = vunpack.c.l.b16 %v4439
        %v5545 = vunpack.c.h.b16 %v4439
        %v5546 = vunpack.c.l.b16 %v4440
        %v5547 = vunpack.c.h.b16 %v4440
        %v5548 = vunpack.c.l.b16 %v4441
        %v5549 = vunpack.c.h.b16 %v4441
        %v5550 = vunpack.c.l.b16 %v4442
        %v5551 = vunpack.c.h.b16 %v4442
        %v5552 = vunpack.c.l.b16 %v4443
        %v5553 = vunpack.c.h.b16 %v4443
        %v5554 = vunpack.c.l.b16 %v4444
        %v5555 = vunpack.c.h.b16 %v4444
        %v5556 = vunpack.c.l.b16 %v4445
        %v5557 = vunpack.c.h.b16 %v4445
        %v5558 = vunpack.c.l.b16 %v4446
        %v5559 = vunpack.c.h.b16 %v4446
        %v5560 = vunpack.c.l.b16 %v4447
        %v5561 = vunpack.c.h.b16 %v4447
        %v5562 = vunpack.c.l.b16 %v4448
        %v5563 = vunpack.c.h.b16 %v4448
        %v5564 = vunpack.c.l.b16 %v4449
        %v5565 = vunpack.c.h.b16 %v4449
        %v5566 = vunpack.c.l.b16 %v4450
        %v5567 = vunpack.c.h.b16 %v4450
        %v5568 = vunpack.c.l.b16 %v4451
        %v5569 = vunpack.c.h.b16 %v4451
        %v5570 = vunpack.c.l.b16 %v4452
        %v5571 = vunpack.c.h.b16 %v4452
        %v5572 = vunpack.c.l.b16 %v4453
        %v5573 = vunpack.c.h.b16 %v4453
        %v5574 = vunpack.c.l.b16 %v4454
        %v5575 = vunpack.c.h.b16 %v4454
        %v5576 = vunpack.c.l.b16 %v4455
        %v5577 = vunpack.c.h.b16 %v4455
        %v5578 = vunpack.c.l.b16 %v4456
        %v5579 = vunpack.c.h.b16 %v4456
        %v5580 = vunpack.c.l.b16 %v4457
        %v5581 = vunpack.c.h.b16 %v4457
        %v5582 = vunpack.c.l.b16 %v4458
        %v5583 = vunpack.c.h.b16 %v4458
        %v5584 = vunpack.c.l.b16 %v4459
        %v5585 = vunpack.c.h.b16 %v4459
        %v5586 = vunpack.c.l.b16 %v4460
        %v5587 = vunpack.c.h.b16 %v4460
        %v5588 = vunpack.c.l.b16 %v4461
        %v5589 = vunpack.c.h.b16 %v4461
        %v5590 = vunpack.c.l.b16 %v4462
        %v5591 = vunpack.c.h.b16 %v4462
        %v5592 = vunpack.c.l.b16 %v4463
        %v5593 = vunpack.c.h.b16 %v4463
        %v5594 = vunpack.c.l.b16 %v4464
        %v5595 = vunpack.c.h.b16 %v4464
        %v5596 = vunpack.c.l.b16 %v4465
        %v5597 = vunpack.c.h.b16 %v4465
        %v5598 = vunpack.c.l.b16 %v4466
        %v5599 = vunpack.c.h.b16 %v4466
        %v5600 = vunpack.c.l.b16 %v4467
        %v5601 = vunpack.c.h.b16 %v4467
        %v5602 = vunpack.c.l.b16 %v4468
        %v5603 = vunpack.c.h.b16 %v4468
        %v5604 = vunpack.c.l.b16 %v4469
        %v5605 = vunpack.c.h.b16 %v4469
        %v5606 = vunpack.c.l.b16 %v4470
        %v5607 = vunpack.c.h.b16 %v4470
        %v5608 = vunpack.c.l.b16 %v4471
        %v5609 = vunpack.c.h.b16 %v4471
        %v5610 = vunpack.c.l.b16 %v4472
        %v5611 = vunpack.c.h.b16 %v4472
        %v5612 = vunpack.c.l.b16 %v4473
        %v5613 = vunpack.c.h.b16 %v4473
        %v5614 = vunpack.c.l.b16 %v4474
        %v5615 = vunpack.c.h.b16 %v4474
        %v5616 = vunpack.c.l.b16 %v4475
        %v5617 = vunpack.c.h.b16 %v4475
        %v5618 = vunpack.c.l.b16 %v4476
        %v5619 = vunpack.c.h.b16 %v4476
        %v5620 = vunpack.c.l.b16 %v4477
        %v5621 = vunpack.c.h.b16 %v4477
        %v5622 = vunpack.c.l.b16 %v4478
        %v5623 = vunpack.c.h.b16 %v4478
        %v5624 = vunpack.c.l.b16 %v4479
        %v5625 = vunpack.c.h.b16 %v4479
        %v5626 = vunpack.c.l.b16 %v4480
        %v5627 = vunpack.c.h.b16 %v4480
        %v5628 = vunpack.c.l.b16 %v4481
        %v5629 = vunpack.c.h.b16 %v4481
        %v5630 = vunpack.c.l.b16 %v4482
        %v5631 = vunpack.c.h.b16 %v4482
        %v5632 = vunpack.c.l.b16 %v4483
        %v5633 = vunpack.c.h.b16 %v4483
        %v5634 = vunpack.c.l.b16 %v4484
        %v5635 = vunpack.c.h.b16 %v4484
        %v5636 = vunpack.c.l.b16 %v4485
        %v5637 = vunpack.c.h.b16 %v4485
        %v5638 = vunpack.c.l.b16 %v4486
        %v5639 = vunpack.c.h.b16 %v4486
        %v5640 = vunpack.c.l.b16 %v4487
        %v5641 = vunpack.c.h.b16 %v4487
        %v5642 = vunpack.c.l.b16 %v4488
        %v5643 = vunpack.c.h.b16 %v4488
        %v5644 = vunpack.c.l.b16 %v4489
        %v5645 = vunpack.c.h.b16 %v4489
        %v5646 = vunpack.c.l.b16 %v4490
        %v5647 = vunpack.c.h.b16 %v4490
        %v5648 = vunpack.c.l.b16 %v4491
        %v5649 = vunpack.c.h.b16 %v4491
        %v5650 = vunpack.c.l.b16 %v4492
        %v5651 = vunpack.c.h.b16 %v4492
        %v5652 = vunpack.c.l.b16 %v4493
        %v5653 = vunpack.c.h.b16 %v4493
        %v5654 = vunpack.c.l.b16 %v4494
        %v5655 = vunpack.c.h.b16 %v4494
        %v5656 = vunpack.c.l.b16 %v4495
        %v5657 = vunpack.c.h.b16 %v4495
        %v5658 = vunpack.c.l.b16 %v4496
        %v5659 = vunpack.c.h.b16 %v4496
        %v5660 = vunpack.c.l.b16 %v4497
        %v5661 = vunpack.c.h.b16 %v4497
        %v5662 = vunpack.c.l.b16 %v4498
        %v5663 = vunpack.c.h.b16 %v4498
        %v5664 = vunpack.c.l.b16 %v4499
        %v5665 = vunpack.c.h.b16 %v4499
        %v5666 = vunpack.c.l.b16 %v4500
        %v5667 = vunpack.c.h.b16 %v4500
        %v5668 = vunpack.c.l.b16 %v4501
        %v5669 = vunpack.c.h.b16 %v4501
        %v5670 = vunpack.c.l.b16 %v4502
        %v5671 = vunpack.c.h.b16 %v4502
        %v5672 = vunpack.c.l.b16 %v4503
        %v5673 = vunpack.c.h.b16 %v4503
        %v5674 = vunpack.c.l.b16 %v4504
        %v5675 = vunpack.c.h.b16 %v4504
        %v5676 = vunpack.c.l.b16 %v4505
        %v5677 = vunpack.c.h.b16 %v4505
        %v5678 = vunpack.c.l.b16 %v4506
        %v5679 = vunpack.c.h.b16 %v4506
        %v5680 = vunpack.c.l.b16 %v4507
        %v5681 = vunpack.c.h.b16 %v4507
        %v5682 = vunpack.c.l.b16 %v4508
        %v5683 = vunpack.c.h.b16 %v4508
        %v5684 = vunpack.c.l.b16 %v4509
        %v5685 = vunpack.c.h.b16 %v4509
        %v5686 = vunpack.c.l.b16 %v4510
        %v5687 = vunpack.c.h.b16 %v4510
        %v5688 = vunpack.c.l.b16 %v4511
        %v5689 = vunpack.c.h.b16 %v4511
        %v5690 = vunpack.c.l.b16 %v4512
        %v5691 = vunpack.c.h.b16 %v4512
        %v5692 = vunpack.c.l.b16 %v4513
        %v5693 = vunpack.c.h.b16 %v4513
        %v5694 = vunpack.c.l.b16 %v4514
        %v5695 = vunpack.c.h.b16 %v4514
        %v5696 = vunpack.c.l.b16 %v4515
        %v5697 = vunpack.c.h.b16 %v4515
        %v5698 = vunpack.c.l.b16 %v4516
        %v5699 = vunpack.c.h.b16 %v4516
        %v5700 = vunpack.c.l.b16 %v4517
        %v5701 = vunpack.c.h.b16 %v4517
        %v5702 = vunpack.c.l.b16 %v4518
        %v5703 = vunpack.c.h.b16 %v4518
        %v5704 = vunpack.c.l.b16 %v4519
        %v5705 = vunpack.c.h.b16 %v4519
        %v5706 = vunpack.c.l.b16 %v4520
        %v5707 = vunpack.c.h.b16 %v4520
        %v5708 = vunpack.c.l.b16 %v4521
        %v5709 = vunpack.c.h.b16 %v4521
        %v5710 = vunpack.c.l.b16 %v4522
        %v5711 = vunpack.c.h.b16 %v4522
        %v5712 = vunpack.c.l.b16 %v4523
        %v5713 = vunpack.c.h.b16 %v4523
        %v5714 = vunpack.c.l.b16 %v4524
        %v5715 = vunpack.c.h.b16 %v4524
        %v5716 = vunpack.c.l.b16 %v4525
        %v5717 = vunpack.c.h.b16 %v4525
        %v5718 = vunpack.c.l.b16 %v4526
        %v5719 = vunpack.c.h.b16 %v4526
        %v5720 = vunpack.c.l.b16 %v4527
        %v5721 = vunpack.c.h.b16 %v4527
        %v5722 = vunpack.c.l.b16 %v4528
        %v5723 = vunpack.c.h.b16 %v4528
        %v5724 = vunpack.c.l.b16 %v4529
        %v5725 = vunpack.c.h.b16 %v4529
        %v5726 = vunpack.c.l.b16 %v4530
        %v5727 = vunpack.c.h.b16 %v4530
        %v5728 = vunpack.c.l.b16 %v4531
        %v5729 = vunpack.c.h.b16 %v4531
        %v5730 = vunpack.c.l.b16 %v4532
        %v5731 = vunpack.c.h.b16 %v4532
        %v5732 = vunpack.c.l.b16 %v4533
        %v5733 = vunpack.c.h.b16 %v4533
        %v5734 = vunpack.c.l.b16 %v4534
        %v5735 = vunpack.c.h.b16 %v4534
        %v5736 = vunpack.c.l.b16 %v4535
        %v5737 = vunpack.c.h.b16 %v4535
        %v5738 = vunpack.c.l.b16 %v4536
        %v5739 = vunpack.c.h.b16 %v4536
        %v5740 = vunpack.c.l.b16 %v4537
        %v5741 = vunpack.c.h.b16 %v4537
        %v5742 = vunpack.c.l.b16 %v4538
        %v5743 = vunpack.c.h.b16 %v4538
        %v5744 = vunpack.c.l.b16 %v4539
        %v5745 = vunpack.c.h.b16 %v4539
        %v5746 = vunpack.c.l.b16 %v4540
        %v5747 = vunpack.c.h.b16 %v4540
        %v5748 = vunpack.c.l.b16 %v4541
        %v5749 = vunpack.c.h.b16 %v4541
        %v5750 = vunpack.c.l.b16 %v4542
        %v5751 = vunpack.c.h.b16 %v4542
        %v5752 = vunpack.c.l.b16 %v4543
        %v5753 = vunpack.c.h.b16 %v4543
        %v5754 = vunpack.c.l.b16 %v4544
        %v5755 = vunpack.c.h.b16 %v4544
        %v5756 = vunpack.c.l.b16 %v4545
        %v5757 = vunpack.c.h.b16 %v4545
        %v5758 = vunpack.c.l.b16 %v4546
        %v5759 = vunpack.c.h.b16 %v4546
        %v5760 = vunpack.c.l.b16 %v4547
        %v5761 = vunpack.c.h.b16 %v4547
        %v5762 = vunpack.c.l.b16 %v4548
        %v5763 = vunpack.c.h.b16 %v4548
        %v5764 = vunpack.c.l.b16 %v4549
        %v5765 = vunpack.c.h.b16 %v4549
        %v5766 = vunpack.c.l.b16 %v4550
        %v5767 = vunpack.c.h.b16 %v4550
        %v5768 = vunpack.c.l.b16 %v4551
        %v5769 = vunpack.c.h.b16 %v4551
        %v5770 = vunpack.c.l.b16 %v4552
        %v5771 = vunpack.c.h.b16 %v4552
        %v5772 = vunpack.c.l.b16 %v4553
        %v5773 = vunpack.c.h.b16 %v4553
        %v5774 = vunpack.c.l.b16 %v4554
        %v5775 = vunpack.c.h.b16 %v4554
        %v5776 = vunpack.c.l.b16 %v4555
        %v5777 = vunpack.c.h.b16 %v4555
        %v5778 = vunpack.c.l.b16 %v4556
        %v5779 = vunpack.c.h.b16 %v4556
        %v5780 = vunpack.c.l.b16 %v4557
        %v5781 = vunpack.c.h.b16 %v4557
        %v5782 = vunpack.c.l.b16 %v4558
        %v5783 = vunpack.c.h.b16 %v4558
        %v5784 = vunpack.c.l.b16 %v4559
        %v5785 = vunpack.c.h.b16 %v4559
        %v5786 = vunpack.c.l.b16 %v4560
        %v5787 = vunpack.c.h.b16 %v4560
        %v5788 = vunpack.c.l.b16 %v4561
        %v5789 = vunpack.c.h.b16 %v4561
        %v5790 = vunpack.c.l.b16 %v4562
        %v5791 = vunpack.c.h.b16 %v4562
        %v5792 = vunpack.c.l.b16 %v4563
        %v5793 = vunpack.c.h.b16 %v4563
        %v5794 = vunpack.c.l.b16 %v4564
        %v5795 = vunpack.c.h.b16 %v4564
        %v5796 = vunpack.c.l.b16 %v4565
        %v5797 = vunpack.c.h.b16 %v4565
        %v5798 = vunpack.c.l.b16 %v4566
        %v5799 = vunpack.c.h.b16 %v4566
        %v5800 = vunpack.c.l.b16 %v4567
        %v5801 = vunpack.c.h.b16 %v4567
        %v5802 = vunpack.c.l.b16 %v4568
        %v5803 = vunpack.c.h.b16 %v4568
        %v5804 = vunpack.c.l.b16 %v4569
        %v5805 = vunpack.c.h.b16 %v4569
        %v5806 = vunpack.c.l.b16 %v4570
        %v5807 = vunpack.c.h.b16 %v4570
        %v5808 = vunpack.c.l.b16 %v4571
        %v5809 = vunpack.c.h.b16 %v4571
        %v5810 = vunpack.c.l.b16 %v4572
        %v5811 = vunpack.c.h.b16 %v4572
        %v5812 = vunpack.c.l.b16 %v4573
        %v5813 = vunpack.c.h.b16 %v4573
        %v5814 = vunpack.c.l.b16 %v4574
        %v5815 = vunpack.c.h.b16 %v4574
        %v5816 = vunpack.c.l.b16 %v4575
        %v5817 = vunpack.c.h.b16 %v4575
        %v5818 = vunpack.c.l.b16 %v4576
        %v5819 = vunpack.c.h.b16 %v4576
        %v5820 = vunpack.c.l.b16 %v4577
        %v5821 = vunpack.c.h.b16 %v4577
        %v5822 = vunpack.c.l.b16 %v4578
        %v5823 = vunpack.c.h.b16 %v4578
        %v5824 = vunpack.c.l.b16 %v4579
        %v5825 = vunpack.c.h.b16 %v4579
        %v5826 = vunpack.c.l.b16 %v4580
        %v5827 = vunpack.c.h.b16 %v4580
        %v5828 = vunpack.c.l.b16 %v4581
        %v5829 = vunpack.c.h.b16 %v4581
        %v5830 = vunpack.c.l.b16 %v4582
        %v5831 = vunpack.c.h.b16 %v4582
        %v5832 = vunpack.c.l.b16 %v4583
        %v5833 = vunpack.c.h.b16 %v4583
        %v5834 = vunpack.c.l.b16 %v4584
        %v5835 = vunpack.c.h.b16 %v4584
        %v5836 = vunpack.c.l.b16 %v4585
        %v5837 = vunpack.c.h.b16 %v4585
        %v5838 = vunpack.c.l.b16 %v4586
        %v5839 = vunpack.c.h.b16 %v4586
        %v5840 = vunpack.c.l.b16 %v4587
        %v5841 = vunpack.c.h.b16 %v4587
        %v5842 = vunpack.c.l.b16 %v4588
        %v5843 = vunpack.c.h.b16 %v4588
        %v5844 = vunpack.c.l.b16 %v4589
        %v5845 = vunpack.c.h.b16 %v4589
        %v5846 = vunpack.c.l.b16 %v4590
        %v5847 = vunpack.c.h.b16 %v4590
        %v5848 = vunpack.c.l.b16 %v4591
        %v5849 = vunpack.c.h.b16 %v4591
        %v5850 = vunpack.c.l.b16 %v4592
        %v5851 = vunpack.c.h.b16 %v4592
        %v5852 = vunpack.c.l.b16 %v4593
        %v5853 = vunpack.c.h.b16 %v4593
        %v5854 = vunpack.c.l.b16 %v4594
        %v5855 = vunpack.c.h.b16 %v4594
        %v5856 = vunpack.c.l.b16 %v4595
        %v5857 = vunpack.c.h.b16 %v4595
        %v5858 = vunpack.c.l.b16 %v4596
        %v5859 = vunpack.c.h.b16 %v4596
        %v5860 = vunpack.c.l.b16 %v4597
        %v5861 = vunpack.c.h.b16 %v4597
        %v5862 = vunpack.c.l.b16 %v4598
        %v5863 = vunpack.c.h.b16 %v4598
        %v5864 = vunpack.c.l.b16 %v4599
        %v5865 = vunpack.c.h.b16 %v4599
        %v5866 = vunpack.c.l.b16 %v4600
        %v5867 = vunpack.c.h.b16 %v4600
        %v5868 = vunpack.c.l.b16 %v4601
        %v5869 = vunpack.c.h.b16 %v4601
        %v5870 = vunpack.c.l.b16 %v4602
        %v5871 = vunpack.c.h.b16 %v4602
        %v5872 = vunpack.c.l.b16 %v4603
        %v5873 = vunpack.c.h.b16 %v4603
        %v5874 = vunpack.c.l.b16 %v4604
        %v5875 = vunpack.c.h.b16 %v4604
        %v5876 = vunpack.c.l.b16 %v4605
        %v5877 = vunpack.c.h.b16 %v4605
        %v5878 = vunpack.c.l.b16 %v4606
        %v5879 = vunpack.c.h.b16 %v4606
        %v5880 = vunpack.c.l.b16 %v4607
        %v5881 = vunpack.c.h.b16 %v4607
        %v5882 = vunpack.c.l.b16 %v4608
        %v5883 = vunpack.c.h.b16 %v4608
        %v5884 = vunpack.c.l.b16 %v4609
        %v5885 = vunpack.c.h.b16 %v4609
        %v5886 = vunpack.c.l.b16 %v4610
        %v5887 = vunpack.c.h.b16 %v4610
        %v5888 = vunpack.c.l.b16 %v4611
        %v5889 = vunpack.c.h.b16 %v4611
        %v5890 = vunpack.c.l.b16 %v4612
        %v5891 = vunpack.c.h.b16 %v4612
        %v5892 = vunpack.c.l.b16 %v4613
        %v5893 = vunpack.c.h.b16 %v4613
        %v5894 = vunpack.c.l.b16 %v4614
        %v5895 = vunpack.c.h.b16 %v4614
        %v5896 = vunpack.c.l.b16 %v4615
        %v5897 = vunpack.c.h.b16 %v4615
        %v5898 = vunpack.c.l.b16 %v4616
        %v5899 = vunpack.c.h.b16 %v4616
        %v5900 = vunpack.c.l.b16 %v4617
        %v5901 = vunpack.c.h.b16 %v4617
        %v5902 = vunpack.c.l.b16 %v4618
        %v5903 = vunpack.c.h.b16 %v4618
        %v5904 = vunpack.c.l.b16 %v4619
        %v5905 = vunpack.c.h.b16 %v4619
        %v5906 = vunpack.c.l.b16 %v4620
        %v5907 = vunpack.c.h.b16 %v4620
        %v5908 = vunpack.c.l.b16 %v4621
        %v5909 = vunpack.c.h.b16 %v4621
        %v5910 = vunpack.c.l.b16 %v4622
        %v5911 = vunpack.c.h.b16 %v4622
        %v5912 = vunpack.c.l.b16 %v4623
        %v5913 = vunpack.c.h.b16 %v4623
        %v5914 = vunpack.c.l.b16 %v4624
        %v5915 = vunpack.c.h.b16 %v4624
        %v5916 = vunpack.c.l.b16 %v4625
        %v5917 = vunpack.c.h.b16 %v4625
        %v5918 = vunpack.c.l.b16 %v4626
        %v5919 = vunpack.c.h.b16 %v4626
        %v5920 = vunpack.c.l.b16 %v4627
        %v5921 = vunpack.c.h.b16 %v4627
        %v5922 = vunpack.c.l.b16 %v4628
        %v5923 = vunpack.c.h.b16 %v4628
        %v5924 = vunpack.c.l.b16 %v4629
        %v5925 = vunpack.c.h.b16 %v4629
        %v5926 = vunpack.c.l.b16 %v4630
        %v5927 = vunpack.c.h.b16 %v4630
        %v5928 = vunpack.c.l.b16 %v4631
        %v5929 = vunpack.c.h.b16 %v4631
        %v5930 = vunpack.c.l.b16 %v4632
        %v5931 = vunpack.c.h.b16 %v4632
        %v5932 = vunpack.c.l.b16 %v4633
        %v5933 = vunpack.c.h.b16 %v4633
        %v5934 = vunpack.c.l.b16 %v4634
        %v5935 = vunpack.c.h.b16 %v4634
        %v5936 = vunpack.c.l.b16 %v4635
        %v5937 = vunpack.c.h.b16 %v4635
        %v5938 = vunpack.c.l.b16 %v4636
        %v5939 = vunpack.c.h.b16 %v4636
        %v5940 = vunpack.c.l.b16 %v4637
        %v5941 = vunpack.c.h.b16 %v4637
        %v5942 = vunpack.c.l.b16 %v4638
        %v5943 = vunpack.c.h.b16 %v4638
        %v5944 = vunpack.c.l.b16 %v4639
        %v5945 = vunpack.c.h.b16 %v4639
        %v5946 = vunpack.c.l.b16 %v4640
        %v5947 = vunpack.c.h.b16 %v4640
        %v5948 = vunpack.c.l.b16 %v4641
        %v5949 = vunpack.c.h.b16 %v4641
        %v5950 = vunpack.c.l.b16 %v4642
        %v5951 = vunpack.c.h.b16 %v4642
        %v5952 = vunpack.c.l.b16 %v4643
        %v5953 = vunpack.c.h.b16 %v4643
        %v5954 = vunpack.c.l.b16 %v4644
        %v5955 = vunpack.c.h.b16 %v4644
        %v5956 = vunpack.c.l.b16 %v4645
        %v5957 = vunpack.c.h.b16 %v4645
        %v5958 = vunpack.c.l.b16 %v4646
        %v5959 = vunpack.c.h.b16 %v4646
        %v5960 = vunpack.c.l.b16 %v4647
        %v5961 = vunpack.c.h.b16 %v4647
        %v5962 = vunpack.c.l.b16 %v4648
        %v5963 = vunpack.c.h.b16 %v4648
        %v5964 = vunpack.c.l.b16 %v4649
        %v5965 = vunpack.c.h.b16 %v4649
        %v5966 = vunpack.c.l.b16 %v4650
        %v5967 = vunpack.c.h.b16 %v4650
        %v5968 = vunpack.c.l.b16 %v4651
        %v5969 = vunpack.c.h.b16 %v4651
        %v5970 = vunpack.c.l.b16 %v4652
        %v5971 = vunpack.c.h.b16 %v4652
        %v5972 = vunpack.c.l.b16 %v4653
        %v5973 = vunpack.c.h.b16 %v4653
        %v5974 = vunpack.c.l.b16 %v4654
        %v5975 = vunpack.c.h.b16 %v4654
        %v5976 = vunpack.c.l.b16 %v4655
        %v5977 = vunpack.c.h.b16 %v4655
        %v5978 = vunpack.c.l.b16 %v4656
        %v5979 = vunpack.c.h.b16 %v4656
        %v5980 = vunpack.c.l.b16 %v4657
        %v5981 = vunpack.c.h.b16 %v4657
        %v5982 = vunpack.c.l.b16 %v4658
        %v5983 = vunpack.c.h.b16 %v4658
        %v5984 = vunpack.c.l.b16 %v4659
        %v5985 = vunpack.c.h.b16 %v4659
        %v5986 = vunpack.c.l.b16 %v4660
        %v5987 = vunpack.c.h.b16 %v4660
        %v5988 = vunpack.c.l.b16 %v4661
        %v5989 = vunpack.c.h.b16 %v4661
        %v5990 = vunpack.c.l.b16 %v4662
        %v5991 = vunpack.c.h.b16 %v4662
        %v5992 = vunpack.c.l.b16 %v4663
        %v5993 = vunpack.c.h.b16 %v4663
        %v5994 = vunpack.c.l.b16 %v4664
        %v5995 = vunpack.c.h.b16 %v4664
        %v5996 = vunpack.c.l.b16 %v4665
        %v5997 = vunpack.c.h.b16 %v4665
        %v5998 = vunpack.c.l.b16 %v4666
        %v5999 = vunpack.c.h.b16 %v4666
        %v6000 = vunpack.c.l.b16 %v4667
        %v6001 = vunpack.c.h.b16 %v4667
        %v6002 = vunpack.c.l.b16 %v4668
        %v6003 = vunpack.c.h.b16 %v4668
        %v6004 = vunpack.c.l.b16 %v4669
        %v6005 = vunpack.c.h.b16 %v4669
        %v6006 = vunpack.c.l.b16 %v4670
        %v6007 = vunpack.c.h.b16 %v4670
        %v6008 = vunpack.c.l.b16 %v4671
        %v6009 = vunpack.c.h.b16 %v4671
        %v6010 = vunpack.c.l.b16 %v4672
        %v6011 = vunpack.c.h.b16 %v4672
        %v6012 = vunpack.c.l.b16 %v4673
        %v6013 = vunpack.c.h.b16 %v4673
        %v6014 = vunpack.c.l.b16 %v4674
        %v6015 = vunpack.c.h.b16 %v4674
        %v6016 = vunpack.c.l.b16 %v4675
        %v6017 = vunpack.c.h.b16 %v4675
        %v6018 = vunpack.c.l.b16 %v4676
        %v6019 = vunpack.c.h.b16 %v4676
        %v6020 = vunpack.c.l.b16 %v4677
        %v6021 = vunpack.c.h.b16 %v4677
        %v6022 = vunpack.c.l.b16 %v4678
        %v6023 = vunpack.c.h.b16 %v4678
        %v6024 = vunpack.c.l.b16 %v4679
        %v6025 = vunpack.c.h.b16 %v4679
        %v6026 = vunpack.c.l.b16 %v4680
        %v6027 = vunpack.c.h.b16 %v4680
        %v6028 = vunpack.c.l.b16 %v4681
        %v6029 = vunpack.c.h.b16 %v4681
        %v6030 = vunpack.c.l.b16 %v4682
        %v6031 = vunpack.c.h.b16 %v4682
        %v6032 = vunpack.c.l.b16 %v4683
        %v6033 = vunpack.c.h.b16 %v4683
        %v6034 = vunpack.c.l.b16 %v4684
        %v6035 = vunpack.c.h.b16 %v4684
        %v6036 = vunpack.c.l.b16 %v4685
        %v6037 = vunpack.c.h.b16 %v4685
        %v6038 = vunpack.c.l.b16 %v4686
        %v6039 = vunpack.c.h.b16 %v4686
        %v6040 = vunpack.c.l.b16 %v4687
        %v6041 = vunpack.c.h.b16 %v4687
        %v6042 = vunpack.c.l.b16 %v4688
        %v6043 = vunpack.c.h.b16 %v4688
        %v6044 = vunpack.c.l.b16 %v4689
        %v6045 = vunpack.c.h.b16 %v4689
        %v6046 = vunpack.c.l.b16 %v4690
        %v6047 = vunpack.c.h.b16 %v4690
        %v6048 = vunpack.c.l.b16 %v4691
        %v6049 = vunpack.c.h.b16 %v4691
        %v6050 = vunpack.c.l.b16 %v4692
        %v6051 = vunpack.c.h.b16 %v4692
        %v6052 = vunpack.c.l.b16 %v4693
        %v6053 = vunpack.c.h.b16 %v4693
        %v6054 = vunpack.c.l.b16 %v4694
        %v6055 = vunpack.c.h.b16 %v4694
        %v6056 = vunpack.c.l.b16 %v4695
        %v6057 = vunpack.c.h.b16 %v4695
        %v6058 = vunpack.c.l.b16 %v4696
        %v6059 = vunpack.c.h.b16 %v4696
        %v6060 = vunpack.c.l.b16 %v4697
        %v6061 = vunpack.c.h.b16 %v4697
        %v6062 = vunpack.c.l.b16 %v4698
        %v6063 = vunpack.c.h.b16 %v4698
        %v6064 = vunpack.c.l.b16 %v4699
        %v6065 = vunpack.c.h.b16 %v4699
        %v6066 = vunpack.c.l.b16 %v4700
        %v6067 = vunpack.c.h.b16 %v4700
        %v6068 = vunpack.c.l.b16 %v4701
        %v6069 = vunpack.c.h.b16 %v4701
        %v6070 = vunpack.c.l.b16 %v4702
        %v6071 = vunpack.c.h.b16 %v4702
        %v6072 = vunpack.c.l.b16 %v4703
        %v6073 = vunpack.c.h.b16 %v4703
        %v6074 = vunpack.c.l.b16 %v4704
        %v6075 = vunpack.c.h.b16 %v4704
        %v6076 = vunpack.c.l.b16 %v4705
        %v6077 = vunpack.c.h.b16 %v4705
        %v6078 = vunpack.c.l.b16 %v4706
        %v6079 = vunpack.c.h.b16 %v4706
        %v6080 = vunpack.c.l.b16 %v4707
        %v6081 = vunpack.c.h.b16 %v4707
        %v6082 = vunpack.c.l.b16 %v4708
        %v6083 = vunpack.c.h.b16 %v4708
        %v6084 = vunpack.c.l.b16 %v4709
        %v6085 = vunpack.c.h.b16 %v4709
        %v6086 = vunpack.c.l.b16 %v4710
        %v6087 = vunpack.c.h.b16 %v4710
        %v6088 = vunpack.c.l.b16 %v4711
        %v6089 = vunpack.c.h.b16 %v4711
        %v6090 = vunpack.c.l.b16 %v4712
        %v6091 = vunpack.c.h.b16 %v4712
        %v6092 = vunpack.c.l.b16 %v4713
        %v6093 = vunpack.c.h.b16 %v4713
        %v6094 = vunpack.c.l.b16 %v4714
        %v6095 = vunpack.c.h.b16 %v4714
        %v6096 = vunpack.c.l.b16 %v4715
        %v6097 = vunpack.c.h.b16 %v4715
        %v6098 = vunpack.c.l.b16 %v4716
        %v6099 = vunpack.c.h.b16 %v4716
        %v6100 = vunpack.c.l.b16 %v4717
        %v6101 = vunpack.c.h.b16 %v4717
        %v6102 = vunpack.c.l.b16 %v4718
        %v6103 = vunpack.c.h.b16 %v4718
        %v6104 = vunpack.c.l.b16 %v4719
        %v6105 = vunpack.c.h.b16 %v4719
        %v6106 = vunpack.c.l.b16 %v4720
        %v6107 = vunpack.c.h.b16 %v4720
        %v6108 = vunpack.c.l.b16 %v4721
        %v6109 = vunpack.c.h.b16 %v4721
        %v6110 = vunpack.c.l.b16 %v4722
        %v6111 = vunpack.c.h.b16 %v4722
        %v6112 = vunpack.c.l.b16 %v4723
        %v6113 = vunpack.c.h.b16 %v4723
        %v6114 = vunpack.c.l.b16 %v4724
        %v6115 = vunpack.c.h.b16 %v4724
        %v6116 = vunpack.c.l.b16 %v4725
        %v6117 = vunpack.c.h.b16 %v4725
        %v6118 = vunpack.c.l.b16 %v4726
        %v6119 = vunpack.c.h.b16 %v4726
        %v6120 = vunpack.c.l.b16 %v4727
        %v6121 = vunpack.c.h.b16 %v4727
        %v6122 = vunpack.c.l.b16 %v4728
        %v6123 = vunpack.c.h.b16 %v4728
        %v6124 = vunpack.c.l.b16 %v4729
        %v6125 = vunpack.c.h.b16 %v4729
        %v6126 = vunpack.c.l.b16 %v4730
        %v6127 = vunpack.c.h.b16 %v4730
        %v6128 = vunpack.c.l.b16 %v4731
        %v6129 = vunpack.c.h.b16 %v4731
        %v6130 = vunpack.c.l.b16 %v4732
        %v6131 = vunpack.c.h.b16 %v4732
        %v6132 = vunpack.c.l.b16 %v4733
        %v6133 = vunpack.c.h.b16 %v4733
        %v6134 = vunpack.c.l.b16 %v4734
        %v6135 = vunpack.c.h.b16 %v4734
        %v6136 = vunpack.c.l.b16 %v4735
        %v6137 = vunpack.c.h.b16 %v4735
        %v6138 = vunpack.c.l.b16 %v4736
        %v6139 = vunpack.c.h.b16 %v4736
        %v6140 = vunpack.c.l.b16 %v4737
        %v6141 = vunpack.c.h.b16 %v4737
        %v6142 = vunpack.c.l.b16 %v4738
        %v6143 = vunpack.c.h.b16 %v4738
        %v6144 = vunpack.c.l.b16 %v4739
        %v6145 = vunpack.c.h.b16 %v4739
        %v6146 = vunpack.c.l.b16 %v4740
        %v6147 = vunpack.c.h.b16 %v4740
        %v6148 = vunpack.c.l.b16 %v4741
        %v6149 = vunpack.c.h.b16 %v4741
        %v6150 = vunpack.c.l.b16 %v4742
        %v6151 = vunpack.c.h.b16 %v4742
        %v6152 = vunpack.c.l.b16 %v4743
        %v6153 = vunpack.c.h.b16 %v4743
        %v6154 = vunpack.c.l.b16 %v4744
        %v6155 = vunpack.c.h.b16 %v4744
        %v6156 = vunpack.c.l.b16 %v4745
        %v6157 = vunpack.c.h.b16 %v4745
        %v6158 = vunpack.c.l.b16 %v4746
        %v6159 = vunpack.c.h.b16 %v4746
        %v6160 = vunpack.c.l.b16 %v4747
        %v6161 = vunpack.c.h.b16 %v4747
        %v6162 = vunpack.c.l.b16 %v4748
        %v6163 = vunpack.c.h.b16 %v4748
        %v6164 = vunpack.c.l.b16 %v4749
        %v6165 = vunpack.c.h.b16 %v4749
        %v6166 = vunpack.c.l.b16 %v4750
        %v6167 = vunpack.c.h.b16 %v4750
        %v6168 = vunpack.c.l.b16 %v4751
        %v6169 = vunpack.c.h.b16 %v4751
        %v6170 = vunpack.c.l.b16 %v4752
        %v6171 = vunpack.c.h.b16 %v4752
        %v6172 = vunpack.c.l.b16 %v4753
        %v6173 = vunpack.c.h.b16 %v4753
        %v6174 = vunpack.c.l.b16 %v4754
        %v6175 = vunpack.c.h.b16 %v4754
        %v6176 = vunpack.c.l.b16 %v4755
        %v6177 = vunpack.c.h.b16 %v4755
        %v6178 = vunpack.c.l.b16 %v4756
        %v6179 = vunpack.c.h.b16 %v4756
        %v6180 = vunpack.c.l.b16 %v4757
        %v6181 = vunpack.c.h.b16 %v4757
        %v6182 = vunpack.c.l.b16 %v4758
        %v6183 = vunpack.c.h.b16 %v4758
        %v6184 = vunpack.c.l.b16 %v4759
        %v6185 = vunpack.c.h.b16 %v4759
        %v6186 = vunpack.c.l.b16 %v4760
        %v6187 = vunpack.c.h.b16 %v4760
        %v6188 = vunpack.c.l.b16 %v4761
        %v6189 = vunpack.c.h.b16 %v4761
        %v6190 = vunpack.c.l.b16 %v4762
        %v6191 = vunpack.c.h.b16 %v4762
        %v6192 = vunpack.c.l.b16 %v4763
        %v6193 = vunpack.c.h.b16 %v4763
        %v6194 = vunpack.c.l.b16 %v4764
        %v6195 = vunpack.c.h.b16 %v4764
        %v6196 = vunpack.c.l.b16 %v4765
        %v6197 = vunpack.c.h.b16 %v4765
        %v6198 = vunpack.c.l.b16 %v4766
        %v6199 = vunpack.c.h.b16 %v4766
        %v6200 = vunpack.c.l.b16 %v4767
        %v6201 = vunpack.c.h.b16 %v4767
        %v6202 = vunpack.c.l.b16 %v4768
        %v6203 = vunpack.c.h.b16 %v4768
        %v6204 = vunpack.c.l.b16 %v4769
        %v6205 = vunpack.c.h.b16 %v4769
        %v6206 = vunpack.c.l.b16 %v4770
        %v6207 = vunpack.c.h.b16 %v4770
        %v6208 = vunpack.c.l.b16 %v4771
        %v6209 = vunpack.c.h.b16 %v4771
        %v6210 = vunpack.c.l.b16 %v4772
        %v6211 = vunpack.c.h.b16 %v4772
        %v6212 = vunpack.c.l.b16 %v4773
        %v6213 = vunpack.c.h.b16 %v4773
        %v6214 = vunpack.c.l.b16 %v4774
        %v6215 = vunpack.c.h.b16 %v4774
        %v6216 = vunpack.c.l.b16 %v4775
        %v6217 = vunpack.c.h.b16 %v4775
        %v6218 = vunpack.c.l.b16 %v4776
        %v6219 = vunpack.c.h.b16 %v4776
        %v6220 = vunpack.c.l.b16 %v4777
        %v6221 = vunpack.c.h.b16 %v4777
        %v6222 = vunpack.c.l.b16 %v4778
        %v6223 = vunpack.c.h.b16 %v4778
        %v6224 = vunpack.c.l.b16 %v4779
        %v6225 = vunpack.c.h.b16 %v4779
        %v6226 = vunpack.c.l.b16 %v4780
        %v6227 = vunpack.c.h.b16 %v4780
        %v6228 = vunpack.c.l.b16 %v4781
        %v6229 = vunpack.c.h.b16 %v4781
        %v6230 = vunpack.c.l.b16 %v4782
        %v6231 = vunpack.c.h.b16 %v4782
        %v6232 = vunpack.c.l.b16 %v4783
        %v6233 = vunpack.c.h.b16 %v4783
        %v6234 = vunpack.c.l.b16 %v4784
        %v6235 = vunpack.c.h.b16 %v4784
        %v6236 = vunpack.c.l.b16 %v4785
        %v6237 = vunpack.c.h.b16 %v4785
        %v6238 = vunpack.c.l.b16 %v4786
        %v6239 = vunpack.c.h.b16 %v4786
        %v6240 = vunpack.c.l.b16 %v4787
        %v6241 = vunpack.c.h.b16 %v4787
        %v6242 = vunpack.c.l.b16 %v4788
        %v6243 = vunpack.c.h.b16 %v4788
        %v6244 = vunpack.c.l.b16 %v4789
        %v6245 = vunpack.c.h.b16 %v4789
        %v6246 = vunpack.c.l.b16 %v4790
        %v6247 = vunpack.c.h.b16 %v4790
        %v6248 = vunpack.c.l.b16 %v4791
        %v6249 = vunpack.c.h.b16 %v4791
        %v6250 = vunpack.c.l.b16 %v4792
        %v6251 = vunpack.c.h.b16 %v4792
        %v6252 = vunpack.c.l.b16 %v4793
        %v6253 = vunpack.c.h.b16 %v4793
        %v6254 = vunpack.c.l.b16 %v4794
        %v6255 = vunpack.c.h.b16 %v4794
        %v6256 = vunpack.c.l.b16 %v4795
        %v6257 = vunpack.c.h.b16 %v4795
        %v6258 = vunpack.c.l.b16 %v4796
        %v6259 = vunpack.c.h.b16 %v4796
        %v6260 = vunpack.c.l.b16 %v4797
        %v6261 = vunpack.c.h.b16 %v4797
        %v6262 = vunpack.c.l.b16 %v4798
        %v6263 = vunpack.c.h.b16 %v4798
        %v6264 = vunpack.c.l.b16 %v4799
        %v6265 = vunpack.c.h.b16 %v4799
        %v6266 = vunpack.c.l.b16 %v4800
        %v6267 = vunpack.c.h.b16 %v4800
        %v6268 = vunpack.c.l.b16 %v4801
        %v6269 = vunpack.c.h.b16 %v4801
        %v6270 = vunpack.c.l.b16 %v4802
        %v6271 = vunpack.c.h.b16 %v4802
        %v6272 = vunpack.c.l.b16 %v4803
        %v6273 = vunpack.c.h.b16 %v4803
        %v6274 = vunpack.c.l.b16 %v4804
        %v6275 = vunpack.c.h.b16 %v4804
        %v6276 = vunpack.c.l.b16 %v4805
        %v6277 = vunpack.c.h.b16 %v4805
        %v6278 = vunpack.c.l.b16 %v4806
        %v6279 = vunpack.c.h.b16 %v4806
        %v6280 = vunpack.c.l.b16 %v4807
        %v6281 = vunpack.c.h.b16 %v4807
        %v6282 = vunpack.c.l.b16 %v4808
        %v6283 = vunpack.c.h.b16 %v4808
        %v6284 = vunpack.c.l.b16 %v4809
        %v6285 = vunpack.c.h.b16 %v4809
        %v6286 = vunpack.c.l.b16 %v4810
        %v6287 = vunpack.c.h.b16 %v4810
        %v6288 = vunpack.c.l.b16 %v4811
        %v6289 = vunpack.c.h.b16 %v4811
        %v6290 = vunpack.c.l.b16 %v4812
        %v6291 = vunpack.c.h.b16 %v4812
        %v6292 = vunpack.c.l.b16 %v4813
        %v6293 = vunpack.c.h.b16 %v4813
        %v6294 = vunpack.c.l.b16 %v4814
        %v6295 = vunpack.c.h.b16 %v4814
        %v6296 = vunpack.c.l.b16 %v4815
        %v6297 = vunpack.c.h.b16 %v4815
        %v6298 = vunpack.c.l.b16 %v4816
        %v6299 = vunpack.c.h.b16 %v4816
        %v6300 = vunpack.c.l.b16 %v4817
        %v6301 = vunpack.c.h.b16 %v4817
        %v6302 = vunpack.c.l.b16 %v4818
        %v6303 = vunpack.c.h.b16 %v4818
        %v6304 = vunpack.c.l.b16 %v4819
        %v6305 = vunpack.c.h.b16 %v4819
        %v6306 = vunpack.c.l.b16 %v4820
        %v6307 = vunpack.c.h.b16 %v4820
        %v6308 = vunpack.c.l.b16 %v4821
        %v6309 = vunpack.c.h.b16 %v4821
        %v6310 = vunpack.c.l.b16 %v4822
        %v6311 = vunpack.c.h.b16 %v4822
        %v6312 = vunpack.c.l.b16 %v4823
        %v6313 = vunpack.c.h.b16 %v4823
        %v6314 = vunpack.c.l.b16 %v4824
        %v6315 = vunpack.c.h.b16 %v4824
        %v6316 = vunpack.c.l.b16 %v4825
        %v6317 = vunpack.c.h.b16 %v4825
        %v6318 = vunpack.c.l.b16 %v4826
        %v6319 = vunpack.c.h.b16 %v4826
        %v6320 = vunpack.c.l.b16 %v4827
        %v6321 = vunpack.c.h.b16 %v4827
        %v6322 = vunpack.c.l.b16 %v4828
        %v6323 = vunpack.c.h.b16 %v4828
        %v6324 = vunpack.c.l.b16 %v4829
        %v6325 = vunpack.c.h.b16 %v4829
        %v6326 = vunpack.c.l.b16 %v4830
        %v6327 = vunpack.c.h.b16 %v4830
        %v6328 = vunpack.c.l.b16 %v4831
        %v6329 = vunpack.c.h.b16 %v4831
        %v6330 = vunpack.c.l.b16 %v4832
        %v6331 = vunpack.c.h.b16 %v4832
        %v6332 = vunpack.c.l.b16 %v4833
        %v6333 = vunpack.c.h.b16 %v4833
        %v6334 = vunpack.c.l.b16 %v4834
        %v6335 = vunpack.c.h.b16 %v4834
        %v6336 = vunpack.c.l.b16 %v4835
        %v6337 = vunpack.c.h.b16 %v4835
        %v6338 = vunpack.c.l.b16 %v4836
        %v6339 = vunpack.c.h.b16 %v4836
        %v6340 = vunpack.c.l.b16 %v4837
        %v6341 = vunpack.c.h.b16 %v4837
        %v6342 = vunpack.c.l.b16 %v4838
        %v6343 = vunpack.c.h.b16 %v4838
        %v6344 = vunpack.c.l.b16 %v4839
        %v6345 = vunpack.c.h.b16 %v4839
        %v6346 = vunpack.c.l.b16 %v4840
        %v6347 = vunpack.c.h.b16 %v4840
        %v6348 = vunpack.c.l.b16 %v4841
        %v6349 = vunpack.c.h.b16 %v4841
        %v6350 = vunpack.c.l.b16 %v4842
        %v6351 = vunpack.c.h.b16 %v4842
        %v6352 = vunpack.c.l.b16 %v4843
        %v6353 = vunpack.c.h.b16 %v4843
        %v6354 = vunpack.c.l.b16 %v4844
        %v6355 = vunpack.c.h.b16 %v4844
        %v6356 = vunpack.c.l.b16 %v4845
        %v6357 = vunpack.c.h.b16 %v4845
        %v6358 = vunpack.c.l.b16 %v4846
        %v6359 = vunpack.c.h.b16 %v4846
        %v6360 = vunpack.c.l.b16 %v4847
        %v6361 = vunpack.c.h.b16 %v4847
        %v6362 = vunpack.c.l.b16 %v4848
        %v6363 = vunpack.c.h.b16 %v4848
        %v6364 = vunpack.c.l.b16 %v4849
        %v6365 = vunpack.c.h.b16 %v4849
        %v6366 = vunpack.c.l.b16 %v4850
        %v6367 = vunpack.c.h.b16 %v4850
        %v6368 = vunpack.c.l.b16 %v4851
        %v6369 = vunpack.c.h.b16 %v4851
        %v6370 = vunpack.c.l.b16 %v4852
        %v6371 = vunpack.c.h.b16 %v4852
        %v6372 = vunpack.c.l.b16 %v4853
        %v6373 = vunpack.c.h.b16 %v4853
        %v6374 = vunpack.c.l.b16 %v4854
        %v6375 = vunpack.c.h.b16 %v4854
        %v6376 = vunpack.c.l.b16 %v4855
        %v6377 = vunpack.c.h.b16 %v4855
        %v6378 = vunpack.c.l.b16 %v4856
        %v6379 = vunpack.c.h.b16 %v4856
        %v6380 = vunpack.c.l.b16 %v4857
        %v6381 = vunpack.c.h.b16 %v4857
        %v6382 = vunpack.c.l.b16 %v4858
        %v6383 = vunpack.c.h.b16 %v4858
        %v6384 = vunpack.c.l.b16 %v4859
        %v6385 = vunpack.c.h.b16 %v4859
        %v6386 = vunpack.c.l.b16 %v4860
        %v6387 = vunpack.c.h.b16 %v4860
        %v6388 = vunpack.c.l.b16 %v4861
        %v6389 = vunpack.c.h.b16 %v4861
        %v6390 = vunpack.c.l.b16 %v4862
        %v6391 = vunpack.c.h.b16 %v4862
        %v6392 = vunpack.c.l.b16 %v4863
        %v6393 = vunpack.c.h.b16 %v4863
        %v6394 = vunpack.c.l.b16 %v4864
        %v6395 = vunpack.c.h.b16 %v4864
        %v6396 = vunpack.c.l.b16 %v4865
        %v6397 = vunpack.c.h.b16 %v4865
        %v6398 = vunpack.c.l.b16 %v4866
        %v6399 = vunpack.c.h.b16 %v4866
        %v6400 = vunpack.c.l.b16 %v4867
        %v6401 = vunpack.c.h.b16 %v4867
        %v6402 = vunpack.c.l.b16 %v4868
        %v6403 = vunpack.c.h.b16 %v4868
        %v6404 = vunpack.c.l.b16 %v4869
        %v6405 = vunpack.c.h.b16 %v4869
        %v6406 = vunpack.c.l.b16 %v4870
        %v6407 = vunpack.c.h.b16 %v4870
        %v6408 = vunpack.c.l.b16 %v4871
        %v6409 = vunpack.c.h.b16 %v4871
        %v6410 = vunpack.c.l.b16 %v4872
        %v6411 = vunpack.c.h.b16 %v4872
        %v6412 = vunpack.c.l.b16 %v4873
        %v6413 = vunpack.c.h.b16 %v4873
        %v6414 = vunpack.c.l.b16 %v4874
        %v6415 = vunpack.c.h.b16 %v4874
        %v6416 = vunpack.c.l.b16 %v4875
        %v6417 = vunpack.c.h.b16 %v4875
        %v6418 = vunpack.c.l.b16 %v4876
        %v6419 = vunpack.c.h.b16 %v4876
        %v6420 = vunpack.c.l.b16 %v4877
        %v6421 = vunpack.c.h.b16 %v4877
        %v6422 = vunpack.c.l.b16 %v4878
        %v6423 = vunpack.c.h.b16 %v4878
        %v6424 = vunpack.c.l.b16 %v4879
        %v6425 = vunpack.c.h.b16 %v4879
        %v6426 = vpack.c.b16 %v5406, %v5402
        %v6427 = vpack.c.b16 %v5407, %v5403
        %v6428 = vpack.c.b16 %v5408, %v5404
        %v6429 = vpack.c.b16 %v5409, %v5405
        %v6430 = vpack.c.b16 %v5414, %v5410
        %v6431 = vpack.c.b16 %v5415, %v5411
        %v6432 = vpack.c.b16 %v5416, %v5412
        %v6433 = vpack.c.b16 %v5417, %v5413
        %v6434 = vpack.c.b16 %v5422, %v5418
        %v6435 = vpack.c.b16 %v5423, %v5419
        %v6436 = vpack.c.b16 %v5424, %v5420
        %v6437 = vpack.c.b16 %v5425, %v5421
        %v6438 = vpack.c.b16 %v5430, %v5426
        %v6439 = vpack.c.b16 %v5431, %v5427
        %v6440 = vpack.c.b16 %v5432, %v5428
        %v6441 = vpack.c.b16 %v5433, %v5429
        %v6442 = vpack.c.b16 %v5438, %v5434
        %v6443 = vpack.c.b16 %v5439, %v5435
        %v6444 = vpack.c.b16 %v5440, %v5436
        %v6445 = vpack.c.b16 %v5441, %v5437
        %v6446 = vpack.c.b16 %v5446, %v5442
        %v6447 = vpack.c.b16 %v5447, %v5443
        %v6448 = vpack.c.b16 %v5448, %v5444
        %v6449 = vpack.c.b16 %v5449, %v5445
        %v6450 = vpack.c.b16 %v5454, %v5450
        %v6451 = vpack.c.b16 %v5455, %v5451
        %v6452 = vpack.c.b16 %v5456, %v5452
        %v6453 = vpack.c.b16 %v5457, %v5453
        %v6454 = vpack.c.b16 %v5462, %v5458
        %v6455 = vpack.c.b16 %v5463, %v5459
        %v6456 = vpack.c.b16 %v5464, %v5460
        %v6457 = vpack.c.b16 %v5465, %v5461
        %v6458 = vpack.c.b16 %v5470, %v5466
        %v6459 = vpack.c.b16 %v5471, %v5467
        %v6460 = vpack.c.b16 %v5472, %v5468
        %v6461 = vpack.c.b16 %v5473, %v5469
        %v6462 = vpack.c.b16 %v5478, %v5474
        %v6463 = vpack.c.b16 %v5479, %v5475
        %v6464 = vpack.c.b16 %v5480, %v5476
        %v6465 = vpack.c.b16 %v5481, %v5477
        %v6466 = vpack.c.b16 %v5486, %v5482
        %v6467 = vpack.c.b16 %v5487, %v5483
        %v6468 = vpack.c.b16 %v5488, %v5484
        %v6469 = vpack.c.b16 %v5489, %v5485
        %v6470 = vpack.c.b16 %v5494, %v5490
        %v6471 = vpack.c.b16 %v5495, %v5491
        %v6472 = vpack.c.b16 %v5496, %v5492
        %v6473 = vpack.c.b16 %v5497, %v5493
        %v6474 = vpack.c.b16 %v5502, %v5498
        %v6475 = vpack.c.b16 %v5503, %v5499
        %v6476 = vpack.c.b16 %v5504, %v5500
        %v6477 = vpack.c.b16 %v5505, %v5501
        %v6478 = vpack.c.b16 %v5510, %v5506
        %v6479 = vpack.c.b16 %v5511, %v5507
        %v6480 = vpack.c.b16 %v5512, %v5508
        %v6481 = vpack.c.b16 %v5513, %v5509
        %v6482 = vpack.c.b16 %v5518, %v5514
        %v6483 = vpack.c.b16 %v5519, %v5515
        %v6484 = vpack.c.b16 %v5520, %v5516
        %v6485 = vpack.c.b16 %v5521, %v5517
        %v6486 = vpack.c.b16 %v5526, %v5522
        %v6487 = vpack.c.b16 %v5527, %v5523
        %v6488 = vpack.c.b16 %v5528, %v5524
        %v6489 = vpack.c.b16 %v5529, %v5525
        %v6490 = vpack.c.b16 %v5534, %v5530
        %v6491 = vpack.c.b16 %v5535, %v5531
        %v6492 = vpack.c.b16 %v5536, %v5532
        %v6493 = vpack.c.b16 %v5537, %v5533
        %v6494 = vpack.c.b16 %v5542, %v5538
        %v6495 = vpack.c.b16 %v5543, %v5539
        %v6496 = vpack.c.b16 %v5544, %v5540
        %v6497 = vpack.c.b16 %v5545, %v5541
        %v6498 = vpack.c.b16 %v5550, %v5546
        %v6499 = vpack.c.b16 %v5551, %v5547
        %v6500 = vpack.c.b16 %v5552, %v5548
        %v6501 = vpack.c.b16 %v5553, %v5549
        %v6502 = vpack.c.b16 %v5558, %v5554
        %v6503 = vpack.c.b16 %v5559, %v5555
        %v6504 = vpack.c.b16 %v5560, %v5556
        %v6505 = vpack.c.b16 %v5561, %v5557
        %v6506 = vpack.c.b16 %v5566, %v5562
        %v6507 = vpack.c.b16 %v5567, %v5563
        %v6508 = vpack.c.b16 %v5568, %v5564
        %v6509 = vpack.c.b16 %v5569, %v5565
        %v6510 = vpack.c.b16 %v5574, %v5570
        %v6511 = vpack.c.b16 %v5575, %v5571
        %v6512 = vpack.c.b16 %v5576, %v5572
        %v6513 = vpack.c.b16 %v5577, %v5573
        %v6514 = vpack.c.b16 %v5582, %v5578
        %v6515 = vpack.c.b16 %v5583, %v5579
        %v6516 = vpack.c.b16 %v5584, %v5580
        %v6517 = vpack.c.b16 %v5585, %v5581
        %v6518 = vpack.c.b16 %v5590, %v5586
        %v6519 = vpack.c.b16 %v5591, %v5587
        %v6520 = vpack.c.b16 %v5592, %v5588
        %v6521 = vpack.c.b16 %v5593, %v5589
        %v6522 = vpack.c.b16 %v5598, %v5594
        %v6523 = vpack.c.b16 %v5599, %v5595
        %v6524 = vpack.c.b16 %v5600, %v5596
        %v6525 = vpack.c.b16 %v5601, %v5597
        %v6526 = vpack.c.b16 %v5606, %v5602
        %v6527 = vpack.c.b16 %v5607, %v5603
        %v6528 = vpack.c.b16 %v5608, %v5604
        %v6529 = vpack.c.b16 %v5609, %v5605
        %v6530 = vpack.c.b16 %v5614, %v5610
        %v6531 = vpack.c.b16 %v5615, %v5611
        %v6532 = vpack.c.b16 %v5616, %v5612
        %v6533 = vpack.c.b16 %v5617, %v5613
        %v6534 = vpack.c.b16 %v5622, %v5618
        %v6535 = vpack.c.b16 %v5623, %v5619
        %v6536 = vpack.c.b16 %v5624, %v5620
        %v6537 = vpack.c.b16 %v5625, %v5621
        %v6538 = vpack.c.b16 %v5630, %v5626
        %v6539 = vpack.c.b16 %v5631, %v5627
        %v6540 = vpack.c.b16 %v5632, %v5628
        %v6541 = vpack.c.b16 %v5633, %v5629
        %v6542 = vpack.c.b16 %v5638, %v5634
        %v6543 = vpack.c.b16 %v5639, %v5635
        %v6544 = vpack.c.b16 %v5640, %v5636
        %v6545 = vpack.c.b16 %v5641, %v5637
        %v6546 = vpack.c.b16 %v5646, %v5642
        %v6547 = vpack.c.b16 %v5647, %v5643
        %v6548 = vpack.c.b16 %v5648, %v5644
        %v6549 = vpack.c.b16 %v5649, %v5645
        %v6550 = vpack.c.b16 %v5654, %v5650
        %v6551 = vpack.c.b16 %v5655, %v5651
        %v6552 = vpack.c.b16 %v5656, %v5652
        %v6553 = vpack.c.b16 %v5657, %v5653
        %v6554 = vpack.c.b16 %v5662, %v5658
        %v6555 = vpack.c.b16 %v5663, %v5659
        %v6556 = vpack.c.b16 %v5664, %v5660
        %v6557 = vpack.c.b16 %v5665, %v5661
        %v6558 = vpack.c.b16 %v5670, %v5666
        %v6559 = vpack.c.b16 %v5671, %v5667
        %v6560 = vpack.c.b16 %v5672, %v5668
        %v6561 = vpack.c.b16 %v5673, %v5669
        %v6562 = vpack.c.b16 %v5678, %v5674
        %v6563 = vpack.c.b16 %v5679, %v5675
        %v6564 = vpack.c.b16 %v5680, %v5676
        %v6565 = vpack.c.b16 %v5681, %v5677
        %v6566 = vpack.c.b16 %v5686, %v5682
        %v6567 = vpack.c.b16 %v5687, %v5683
        %v6568 = vpack.c.b16 %v5688, %v5684
        %v6569 = vpack.c.b16 %v5689, %v5685
        %v6570 = vpack.c.b16 %v5694, %v5690
        %v6571 = vpack.c.b16 %v5695, %v5691
        %v6572 = vpack.c.b16 %v5696, %v5692
        %v6573 = vpack.c.b16 %v5697, %v5693
        %v6574 = vpack.c.b16 %v5702, %v5698
        %v6575 = vpack.c.b16 %v5703, %v5699
        %v6576 = vpack.c.b16 %v5704, %v5700
        %v6577 = vpack.c.b16 %v5705, %v5701
        %v6578 = vpack.c.b16 %v5710, %v5706
        %v6579 = vpack.c.b16 %v5711, %v5707
        %v6580 = vpack.c.b16 %v5712, %v5708
        %v6581 = vpack.c.b16 %v5713, %v5709
        %v6582 = vpack.c.b16 %v5718, %v5714
        %v6583 = vpack.c.b16 %v5719, %v5715
        %v6584 = vpack.c.b16 %v5720, %v5716
        %v6585 = vpack.c.b16 %v5721, %v5717
        %v6586 = vpack.c.b16 %v5726, %v5722
        %v6587 = vpack.c.b16 %v5727, %v5723
        %v6588 = vpack.c.b16 %v5728, %v5724
        %v6589 = vpack.c.b16 %v5729, %v5725
        %v6590 = vpack.c.b16 %v5734, %v5730
        %v6591 = vpack.c.b16 %v5735, %v5731
        %v6592 = vpack.c.b16 %v5736, %v5732
        %v6593 = vpack.c.b16 %v5737, %v5733
        %v6594 = vpack.c.b16 %v5742, %v5738
        %v6595 = vpack.c.b16 %v5743, %v5739
        %v6596 = vpack.c.b16 %v5744, %v5740
        %v6597 = vpack.c.b16 %v5745, %v5741
        %v6598 = vpack.c.b16 %v5750, %v5746
        %v6599 = vpack.c.b16 %v5751, %v5747
        %v6600 = vpack.c.b16 %v5752, %v5748
        %v6601 = vpack.c.b16 %v5753, %v5749
        %v6602 = vpack.c.b16 %v5758, %v5754
        %v6603 = vpack.c.b16 %v5759, %v5755
        %v6604 = vpack.c.b16 %v5760, %v5756
        %v6605 = vpack.c.b16 %v5761, %v5757
        %v6606 = vpack.c.b16 %v5766, %v5762
        %v6607 = vpack.c.b16 %v5767, %v5763
        %v6608 = vpack.c.b16 %v5768, %v5764
        %v6609 = vpack.c.b16 %v5769, %v5765
        %v6610 = vpack.c.b16 %v5774, %v5770
        %v6611 = vpack.c.b16 %v5775, %v5771
        %v6612 = vpack.c.b16 %v5776, %v5772
        %v6613 = vpack.c.b16 %v5777, %v5773
        %v6614 = vpack.c.b16 %v5782, %v5778
        %v6615 = vpack.c.b16 %v5783, %v5779
        %v6616 = vpack.c.b16 %v5784, %v5780
        %v6617 = vpack.c.b16 %v5785, %v5781
        %v6618 = vpack.c.b16 %v5790, %v5786
        %v6619 = vpack.c.b16 %v5791, %v5787
        %v6620 = vpack.c.b16 %v5792, %v5788
        %v6621 = vpack.c.b16 %v5793, %v5789
        %v6622 = vpack.c.b16 %v5798, %v5794
        %v6623 = vpack.c.b16 %v5799, %v5795
        %v6624 = vpack.c.b16 %v5800, %v5796
        %v6625 = vpack.c.b16 %v5801, %v5797
        %v6626 = vpack.c.b16 %v5806, %v5802
        %v6627 = vpack.c.b16 %v5807, %v5803
        %v6628 = vpack.c.b16 %v5808, %v5804
        %v6629 = vpack.c.b16 %v5809, %v5805
        %v6630 = vpack.c.b16 %v5814, %v5810
        %v6631 = vpack.c.b16 %v5815, %v5811
        %v6632 = vpack.c.b16 %v5816, %v5812
        %v6633 = vpack.c.b16 %v5817, %v5813
        %v6634 = vpack.c.b16 %v5822, %v5818
        %v6635 = vpack.c.b16 %v5823, %v5819
        %v6636 = vpack.c.b16 %v5824, %v5820
        %v6637 = vpack.c.b16 %v5825, %v5821
        %v6638 = vpack.c.b16 %v5830, %v5826
        %v6639 = vpack.c.b16 %v5831, %v5827
        %v6640 = vpack.c.b16 %v5832, %v5828
        %v6641 = vpack.c.b16 %v5833, %v5829
        %v6642 = vpack.c.b16 %v5838, %v5834
        %v6643 = vpack.c.b16 %v5839, %v5835
        %v6644 = vpack.c.b16 %v5840, %v5836
        %v6645 = vpack.c.b16 %v5841, %v5837
        %v6646 = vpack.c.b16 %v5846, %v5842
        %v6647 = vpack.c.b16 %v5847, %v5843
        %v6648 = vpack.c.b16 %v5848, %v5844
        %v6649 = vpack.c.b16 %v5849, %v5845
        %v6650 = vpack.c.b16 %v5854, %v5850
        %v6651 = vpack.c.b16 %v5855, %v5851
        %v6652 = vpack.c.b16 %v5856, %v5852
        %v6653 = vpack.c.b16 %v5857, %v5853
        %v6654 = vpack.c.b16 %v5862, %v5858
        %v6655 = vpack.c.b16 %v5863, %v5859
        %v6656 = vpack.c.b16 %v5864, %v5860
        %v6657 = vpack.c.b16 %v5865, %v5861
        %v6658 = vpack.c.b16 %v5870, %v5866
        %v6659 = vpack.c.b16 %v5871, %v5867
        %v6660 = vpack.c.b16 %v5872, %v5868
        %v6661 = vpack.c.b16 %v5873, %v5869
        %v6662 = vpack.c.b16 %v5878, %v5874
        %v6663 = vpack.c.b16 %v5879, %v5875
        %v6664 = vpack.c.b16 %v5880, %v5876
        %v6665 = vpack.c.b16 %v5881, %v5877
        %v6666 = vpack.c.b16 %v5886, %v5882
        %v6667 = vpack.c.b16 %v5887, %v5883
        %v6668 = vpack.c.b16 %v5888, %v5884
        %v6669 = vpack.c.b16 %v5889, %v5885
        %v6670 = vpack.c.b16 %v5894, %v5890
        %v6671 = vpack.c.b16 %v5895, %v5891
        %v6672 = vpack.c.b16 %v5896, %v5892
        %v6673 = vpack.c.b16 %v5897, %v5893
        %v6674 = vpack.c.b16 %v5902, %v5898
        %v6675 = vpack.c.b16 %v5903, %v5899
        %v6676 = vpack.c.b16 %v5904, %v5900
        %v6677 = vpack.c.b16 %v5905, %v5901
        %v6678 = vpack.c.b16 %v5910, %v5906
        %v6679 = vpack.c.b16 %v5911, %v5907
        %v6680 = vpack.c.b16 %v5912, %v5908
        %v6681 = vpack.c.b16 %v5913, %v5909
        %v6682 = vpack.c.b16 %v5918, %v5914
        %v6683 = vpack.c.b16 %v5919, %v5915
        %v6684 = vpack.c.b16 %v5920, %v5916
        %v6685 = vpack.c.b16 %v5921, %v5917
        %v6686 = vpack.c.b16 %v5926, %v5922
        %v6687 = vpack.c.b16 %v5927, %v5923
        %v6688 = vpack.c.b16 %v5928, %v5924
        %v6689 = vpack.c.b16 %v5929, %v5925
        %v6690 = vpack.c.b16 %v5934, %v5930
        %v6691 = vpack.c.b16 %v5935, %v5931
        %v6692 = vpack.c.b16 %v5936, %v5932
        %v6693 = vpack.c.b16 %v5937, %v5933
        %v6694 = vpack.c.b16 %v5942, %v5938
        %v6695 = vpack.c.b16 %v5943, %v5939
        %v6696 = vpack.c.b16 %v5944, %v5940
        %v6697 = vpack.c.b16 %v5945, %v5941
        %v6698 = vpack.c.b16 %v5950, %v5946
        %v6699 = vpack.c.b16 %v5951, %v5947
        %v6700 = vpack.c.b16 %v5952, %v5948
        %v6701 = vpack.c.b16 %v5953, %v5949
        %v6702 = vpack.c.b16 %v5958, %v5954
        %v6703 = vpack.c.b16 %v5959, %v5955
        %v6704 = vpack.c.b16 %v5960, %v5956
        %v6705 = vpack.c.b16 %v5961, %v5957
        %v6706 = vpack.c.b16 %v5966, %v5962
        %v6707 = vpack.c.b16 %v5967, %v5963
        %v6708 = vpack.c.b16 %v5968, %v5964
        %v6709 = vpack.c.b16 %v5969, %v5965
        %v6710 = vpack.c.b16 %v5974, %v5970
        %v6711 = vpack.c.b16 %v5975, %v5971
        %v6712 = vpack.c.b16 %v5976, %v5972
        %v6713 = vpack.c.b16 %v5977, %v5973
        %v6714 = vpack.c.b16 %v5982, %v5978
        %v6715 = vpack.c.b16 %v5983, %v5979
        %v6716 = vpack.c.b16 %v5984, %v5980
        %v6717 = vpack.c.b16 %v5985, %v5981
        %v6718 = vpack.c.b16 %v5990, %v5986
        %v6719 = vpack.c.b16 %v5991, %v5987
        %v6720 = vpack.c.b16 %v5992, %v5988
        %v6721 = vpack.c.b16 %v5993, %v5989
        %v6722 = vpack.c.b16 %v5998, %v5994
        %v6723 = vpack.c.b16 %v5999, %v5995
        %v6724 = vpack.c.b16 %v6000, %v5996
        %v6725 = vpack.c.b16 %v6001, %v5997
        %v6726 = vpack.c.b16 %v6006, %v6002
        %v6727 = vpack.c.b16 %v6007, %v6003
        %v6728 = vpack.c.b16 %v6008, %v6004
        %v6729 = vpack.c.b16 %v6009, %v6005
        %v6730 = vpack.c.b16 %v6014, %v6010
        %v6731 = vpack.c.b16 %v6015, %v6011
        %v6732 = vpack.c.b16 %v6016, %v6012
        %v6733 = vpack.c.b16 %v6017, %v6013
        %v6734 = vpack.c.b16 %v6022, %v6018
        %v6735 = vpack.c.b16 %v6023, %v6019
        %v6736 = vpack.c.b16 %v6024, %v6020
        %v6737 = vpack.c.b16 %v6025, %v6021
        %v6738 = vpack.c.b16 %v6030, %v6026
        %v6739 = vpack.c.b16 %v6031, %v6027
        %v6740 = vpack.c.b16 %v6032, %v6028
        %v6741 = vpack.c.b16 %v6033, %v6029
        %v6742 = vpack.c.b16 %v6038, %v6034
        %v6743 = vpack.c.b16 %v6039, %v6035
        %v6744 = vpack.c.b16 %v6040, %v6036
        %v6745 = vpack.c.b16 %v6041, %v6037
        %v6746 = vpack.c.b16 %v6046, %v6042
        %v6747 = vpack.c.b16 %v6047, %v6043
        %v6748 = vpack.c.b16 %v6048, %v6044
        %v6749 = vpack.c.b16 %v6049, %v6045
        %v6750 = vpack.c.b16 %v6054, %v6050
        %v6751 = vpack.c.b16 %v6055, %v6051
        %v6752 = vpack.c.b16 %v6056, %v6052
        %v6753 = vpack.c.b16 %v6057, %v6053
        %v6754 = vpack.c.b16 %v6062, %v6058
        %v6755 = vpack.c.b16 %v6063, %v6059
        %v6756 = vpack.c.b16 %v6064, %v6060
        %v6757 = vpack.c.b16 %v6065, %v6061
        %v6758 = vpack.c.b16 %v6070, %v6066
        %v6759 = vpack.c.b16 %v6071, %v6067
        %v6760 = vpack.c.b16 %v6072, %v6068
        %v6761 = vpack.c.b16 %v6073, %v6069
        %v6762 = vpack.c.b16 %v6078, %v6074
        %v6763 = vpack.c.b16 %v6079, %v6075
        %v6764 = vpack.c.b16 %v6080, %v6076
        %v6765 = vpack.c.b16 %v6081, %v6077
        %v6766 = vpack.c.b16 %v6086, %v6082
        %v6767 = vpack.c.b16 %v6087, %v6083
        %v6768 = vpack.c.b16 %v6088, %v6084
        %v6769 = vpack.c.b16 %v6089, %v6085
        %v6770 = vpack.c.b16 %v6094, %v6090
        %v6771 = vpack.c.b16 %v6095, %v6091
        %v6772 = vpack.c.b16 %v6096, %v6092
        %v6773 = vpack.c.b16 %v6097, %v6093
        %v6774 = vpack.c.b16 %v6102, %v6098
        %v6775 = vpack.c.b16 %v6103, %v6099
        %v6776 = vpack.c.b16 %v6104, %v6100
        %v6777 = vpack.c.b16 %v6105, %v6101
        %v6778 = vpack.c.b16 %v6110, %v6106
        %v6779 = vpack.c.b16 %v6111, %v6107
        %v6780 = vpack.c.b16 %v6112, %v6108
        %v6781 = vpack.c.b16 %v6113, %v6109
        %v6782 = vpack.c.b16 %v6118, %v6114
        %v6783 = vpack.c.b16 %v6119, %v6115
        %v6784 = vpack.c.b16 %v6120, %v6116
        %v6785 = vpack.c.b16 %v6121, %v6117
        %v6786 = vpack.c.b16 %v6126, %v6122
        %v6787 = vpack.c.b16 %v6127, %v6123
        %v6788 = vpack.c.b16 %v6128, %v6124
        %v6789 = vpack.c.b16 %v6129, %v6125
        %v6790 = vpack.c.b16 %v6134, %v6130
        %v6791 = vpack.c.b16 %v6135, %v6131
        %v6792 = vpack.c.b16 %v6136, %v6132
        %v6793 = vpack.c.b16 %v6137, %v6133
        %v6794 = vpack.c.b16 %v6142, %v6138
        %v6795 = vpack.c.b16 %v6143, %v6139
        %v6796 = vpack.c.b16 %v6144, %v6140
        %v6797 = vpack.c.b16 %v6145, %v6141
        %v6798 = vpack.c.b16 %v6150, %v6146
        %v6799 = vpack.c.b16 %v6151, %v6147
        %v6800 = vpack.c.b16 %v6152, %v6148
        %v6801 = vpack.c.b16 %v6153, %v6149
        %v6802 = vpack.c.b16 %v6158, %v6154
        %v6803 = vpack.c.b16 %v6159, %v6155
        %v6804 = vpack.c.b16 %v6160, %v6156
        %v6805 = vpack.c.b16 %v6161, %v6157
        %v6806 = vpack.c.b16 %v6166, %v6162
        %v6807 = vpack.c.b16 %v6167, %v6163
        %v6808 = vpack.c.b16 %v6168, %v6164
        %v6809 = vpack.c.b16 %v6169, %v6165
        %v6810 = vpack.c.b16 %v6174, %v6170
        %v6811 = vpack.c.b16 %v6175, %v6171
        %v6812 = vpack.c.b16 %v6176, %v6172
        %v6813 = vpack.c.b16 %v6177, %v6173
        %v6814 = vpack.c.b16 %v6182, %v6178
        %v6815 = vpack.c.b16 %v6183, %v6179
        %v6816 = vpack.c.b16 %v6184, %v6180
        %v6817 = vpack.c.b16 %v6185, %v6181
        %v6818 = vpack.c.b16 %v6190, %v6186
        %v6819 = vpack.c.b16 %v6191, %v6187
        %v6820 = vpack.c.b16 %v6192, %v6188
        %v6821 = vpack.c.b16 %v6193, %v6189
        %v6822 = vpack.c.b16 %v6198, %v6194
        %v6823 = vpack.c.b16 %v6199, %v6195
        %v6824 = vpack.c.b16 %v6200, %v6196
        %v6825 = vpack.c.b16 %v6201, %v6197
        %v6826 = vpack.c.b16 %v6206, %v6202
        %v6827 = vpack.c.b16 %v6207, %v6203
        %v6828 = vpack.c.b16 %v6208, %v6204
        %v6829 = vpack.c.b16 %v6209, %v6205
        %v6830 = vpack.c.b16 %v6214, %v6210
        %v6831 = vpack.c.b16 %v6215, %v6211
        %v6832 = vpack.c.b16 %v6216, %v6212
        %v6833 = vpack.c.b16 %v6217, %v6213
        %v6834 = vpack.c.b16 %v6222, %v6218
        %v6835 = vpack.c.b16 %v6223, %v6219
        %v6836 = vpack.c.b16 %v6224, %v6220
        %v6837 = vpack.c.b16 %v6225, %v6221
        %v6838 = vpack.c.b16 %v6230, %v6226
        %v6839 = vpack.c.b16 %v6231, %v6227
        %v6840 = vpack.c.b16 %v6232, %v6228
        %v6841 = vpack.c.b16 %v6233, %v6229
        %v6842 = vpack.c.b16 %v6238, %v6234
        %v6843 = vpack.c.b16 %v6239, %v6235
        %v6844 = vpack.c.b16 %v6240, %v6236
        %v6845 = vpack.c.b16 %v6241, %v6237
        %v6846 = vpack.c.b16 %v6246, %v6242
        %v6847 = vpack.c.b16 %v6247, %v6243
        %v6848 = vpack.c.b16 %v6248, %v6244
        %v6849 = vpack.c.b16 %v6249, %v6245
        %v6850 = vpack.c.b16 %v6254, %v6250
        %v6851 = vpack.c.b16 %v6255, %v6251
        %v6852 = vpack.c.b16 %v6256, %v6252
        %v6853 = vpack.c.b16 %v6257, %v6253
        %v6854 = vpack.c.b16 %v6262, %v6258
        %v6855 = vpack.c.b16 %v6263, %v6259
        %v6856 = vpack.c.b16 %v6264, %v6260
        %v6857 = vpack.c.b16 %v6265, %v6261
        %v6858 = vpack.c.b16 %v6270, %v6266
        %v6859 = vpack.c.b16 %v6271, %v6267
        %v6860 = vpack.c.b16 %v6272, %v6268
        %v6861 = vpack.c.b16 %v6273, %v6269
        %v6862 = vpack.c.b16 %v6278, %v6274
        %v6863 = vpack.c.b16 %v6279, %v6275
        %v6864 = vpack.c.b16 %v6280, %v6276
        %v6865 = vpack.c.b16 %v6281, %v6277
        %v6866 = vpack.c.b16 %v6286, %v6282
        %v6867 = vpack.c.b16 %v6287, %v6283
        %v6868 = vpack.c.b16 %v6288, %v6284
        %v6869 = vpack.c.b16 %v6289, %v6285
        %v6870 = vpack.c.b16 %v6294, %v6290
        %v6871 = vpack.c.b16 %v6295, %v6291
        %v6872 = vpack.c.b16 %v6296, %v6292
        %v6873 = vpack.c.b16 %v6297, %v6293
        %v6874 = vpack.c.b16 %v6302, %v6298
        %v6875 = vpack.c.b16 %v6303, %v6299
        %v6876 = vpack.c.b16 %v6304, %v6300
        %v6877 = vpack.c.b16 %v6305, %v6301
        %v6878 = vpack.c.b16 %v6310, %v6306
        %v6879 = vpack.c.b16 %v6311, %v6307
        %v6880 = vpack.c.b16 %v6312, %v6308
        %v6881 = vpack.c.b16 %v6313, %v6309
        %v6882 = vpack.c.b16 %v6318, %v6314
        %v6883 = vpack.c.b16 %v6319, %v6315
        %v6884 = vpack.c.b16 %v6320, %v6316
        %v6885 = vpack.c.b16 %v6321, %v6317
        %v6886 = vpack.c.b16 %v6326, %v6322
        %v6887 = vpack.c.b16 %v6327, %v6323
        %v6888 = vpack.c.b16 %v6328, %v6324
        %v6889 = vpack.c.b16 %v6329, %v6325
        %v6890 = vpack.c.b16 %v6334, %v6330
        %v6891 = vpack.c.b16 %v6335, %v6331
        %v6892 = vpack.c.b16 %v6336, %v6332
        %v6893 = vpack.c.b16 %v6337, %v6333
        %v6894 = vpack.c.b16 %v6342, %v6338
        %v6895 = vpack.c.b16 %v6343, %v6339
        %v6896 = vpack.c.b16 %v6344, %v6340
        %v6897 = vpack.c.b16 %v6345, %v6341
        %v6898 = vpack.c.b16 %v6350, %v6346
        %v6899 = vpack.c.b16 %v6351, %v6347
        %v6900 = vpack.c.b16 %v6352, %v6348
        %v6901 = vpack.c.b16 %v6353, %v6349
        %v6902 = vpack.c.b16 %v6358, %v6354
        %v6903 = vpack.c.b16 %v6359, %v6355
        %v6904 = vpack.c.b16 %v6360, %v6356
        %v6905 = vpack.c.b16 %v6361, %v6357
        %v6906 = vpack.c.b16 %v6366, %v6362
        %v6907 = vpack.c.b16 %v6367, %v6363
        %v6908 = vpack.c.b16 %v6368, %v6364
        %v6909 = vpack.c.b16 %v6369, %v6365
        %v6910 = vpack.c.b16 %v6374, %v6370
        %v6911 = vpack.c.b16 %v6375, %v6371
        %v6912 = vpack.c.b16 %v6376, %v6372
        %v6913 = vpack.c.b16 %v6377, %v6373
        %v6914 = vpack.c.b16 %v6382, %v6378
        %v6915 = vpack.c.b16 %v6383, %v6379
        %v6916 = vpack.c.b16 %v6384, %v6380
        %v6917 = vpack.c.b16 %v6385, %v6381
        %v6918 = vpack.c.b16 %v6390, %v6386
        %v6919 = vpack.c.b16 %v6391, %v6387
        %v6920 = vpack.c.b16 %v6392, %v6388
        %v6921 = vpack.c.b16 %v6393, %v6389
        %v6922 = vpack.c.b16 %v6398, %v6394
        %v6923 = vpack.c.b16 %v6399, %v6395
        %v6924 = vpack.c.b16 %v6400, %v6396
        %v6925 = vpack.c.b16 %v6401, %v6397
        %v6926 = vpack.c.b16 %v6406, %v6402
        %v6927 = vpack.c.b16 %v6407, %v6403
        %v6928 = vpack.c.b16 %v6408, %v6404
        %v6929 = vpack.c.b16 %v6409, %v6405
        %v6930 = vpack.c.b16 %v6414, %v6410
        %v6931 = vpack.c.b16 %v6415, %v6411
        %v6932 = vpack.c.b16 %v6416, %v6412
        %v6933 = vpack.c.b16 %v6417, %v6413
        %v6934 = vpack.c.b16 %v6422, %v6418
        %v6935 = vpack.c.b16 %v6423, %v6419
        %v6936 = vpack.c.b16 %v6424, %v6420
        %v6937 = vpack.c.b16 %v6425, %v6421
        %7450 = vmatpush.bf16.msra.mxu0 %v6454
        %7451 = vmatpush.bf16.msra.mxu0 %v6450
        %7452 = vmatpush.bf16.msra.mxu0 %v6446
        %7453 = vmatpush.bf16.msra.mxu0 %v6442
        %7454 = vmatpush.bf16.msra.mxu0 %v6438
        %7455 = vmatpush.bf16.msra.mxu0 %v6434
        %7456 = vmatpush.bf16.msra.mxu0 %v6430
        %7457 = vmatpush.bf16.msra.mxu0 %v6426
        %7458 = vmatmul.bf16.gmra.mxu0 %v4352
        %v7459 = vpop.f32.mrf.mxu0
        %v7460 = vadd.f32 %v4882, %v7459
        %v7461 = vpop.f32.mrf.mxu0
        %7462 = vdwg.mxu0
        %7463 = vmatpush.bf16.msra.mxu0 %v6486
        %7464 = vmatpush.bf16.msra.mxu0 %v6482
        %7465 = vmatpush.bf16.msra.mxu0 %v6478
        %7466 = vmatpush.bf16.msra.mxu0 %v6474
        %7467 = vmatpush.bf16.msra.mxu0 %v6470
        %7468 = vmatpush.bf16.msra.mxu0 %v6466
        %7469 = vmatpush.bf16.msra.mxu0 %v6462
        %7470 = vmatpush.bf16.msra.mxu0 %v6458
        %7471 = vmatmul.bf16.gmra.mxu0 %v4353
        %v7472 = vpop.f32.mrf.mxu0
        %v7473 = vadd.f32 %v7460, %v7472
        %v7474 = vpop.f32.mrf.mxu0
        %7475 = vdwg.mxu0
        %7476 = vmatpush.bf16.msra.mxu0 %v6518
        %7477 = vmatpush.bf16.msra.mxu0 %v6514
        %7478 = vmatpush.bf16.msra.mxu0 %v6510
        %7479 = vmatpush.bf16.msra.mxu0 %v6506
        %7480 = vmatpush.bf16.msra.mxu0 %v6502
        %7481 = vmatpush.bf16.msra.mxu0 %v6498
        %7482 = vmatpush.bf16.msra.mxu0 %v6494
        %7483 = vmatpush.bf16.msra.mxu0 %v6490
        %7484 = vmatmul.bf16.gmra.mxu0 %v4354
        %v7485 = vpop.f32.mrf.mxu0
        %v7486 = vadd.f32 %v7473, %v7485
        %v7487 = vpop.f32.mrf.mxu0
        %7488 = vdwg.mxu0
        %7489 = vmatpush.bf16.msra.mxu0 %v6550
        %7490 = vmatpush.bf16.msra.mxu0 %v6546
        %7491 = vmatpush.bf16.msra.mxu0 %v6542
        %7492 = vmatpush.bf16.msra.mxu0 %v6538
        %7493 = vmatpush.bf16.msra.mxu0 %v6534
        %7494 = vmatpush.bf16.msra.mxu0 %v6530
        %7495 = vmatpush.bf16.msra.mxu0 %v6526
        %7496 = vmatpush.bf16.msra.mxu0 %v6522
        %7497 = vmatmul.bf16.gmra.mxu0 %v4355
        %v7498 = vpop.f32.mrf.mxu0
        %v7499 = vadd.f32 %v7486, %v7498
        %v7500 = vpop.f32.mrf.mxu0
        %7501 = vdwg.mxu0
        %7502 = vmatpush.bf16.msra.mxu0 %v6582
        %7503 = vmatpush.bf16.msra.mxu0 %v6578
        %7504 = vmatpush.bf16.msra.mxu0 %v6574
        %7505 = vmatpush.bf16.msra.mxu0 %v6570
        %7506 = vmatpush.bf16.msra.mxu0 %v6566
        %7507 = vmatpush.bf16.msra.mxu0 %v6562
        %7508 = vmatpush.bf16.msra.mxu0 %v6558
        %7509 = vmatpush.bf16.msra.mxu0 %v6554
        %7510 = vmatmul.bf16.gmra.mxu0 %v4356
        %v7511 = vpop.f32.mrf.mxu0
        %v7512 = vadd.f32 %v7499, %v7511
        %v7513 = vpop.f32.mrf.mxu0
        %7514 = vdwg.mxu0
        %7515 = vmatpush.bf16.msra.mxu0 %v6614
        %7516 = vmatpush.bf16.msra.mxu0 %v6610
        %7517 = vmatpush.bf16.msra.mxu0 %v6606
        %7518 = vmatpush.bf16.msra.mxu0 %v6602
        %7519 = vmatpush.bf16.msra.mxu0 %v6598
        %7520 = vmatpush.bf16.msra.mxu0 %v6594
        %7521 = vmatpush.bf16.msra.mxu0 %v6590
        %7522 = vmatpush.bf16.msra.mxu0 %v6586
        %7523 = vmatmul.bf16.gmra.mxu0 %v4357
        %v7524 = vpop.f32.mrf.mxu0
        %v7525 = vadd.f32 %v7512, %v7524
        %v7526 = vpop.f32.mrf.mxu0
        %7527 = vdwg.mxu0
        %7528 = vmatpush.bf16.msra.mxu0 %v6646
        %7529 = vmatpush.bf16.msra.mxu0 %v6642
        %7530 = vmatpush.bf16.msra.mxu0 %v6638
        %7531 = vmatpush.bf16.msra.mxu0 %v6634
        %7532 = vmatpush.bf16.msra.mxu0 %v6630
        %7533 = vmatpush.bf16.msra.mxu0 %v6626
        %7534 = vmatpush.bf16.msra.mxu0 %v6622
        %7535 = vmatpush.bf16.msra.mxu0 %v6618
        %7536 = vmatmul.bf16.gmra.mxu0 %v4358
        %v7537 = vpop.f32.mrf.mxu0
        %v7538 = vadd.f32 %v7525, %v7537
        %v7539 = vpop.f32.mrf.mxu0
        %7540 = vdwg.mxu0
        %7541 = vmatpush.bf16.msra.mxu0 %v6678
        %7542 = vmatpush.bf16.msra.mxu0 %v6674
        %7543 = vmatpush.bf16.msra.mxu0 %v6670
        %7544 = vmatpush.bf16.msra.mxu0 %v6666
        %7545 = vmatpush.bf16.msra.mxu0 %v6662
        %7546 = vmatpush.bf16.msra.mxu0 %v6658
        %7547 = vmatpush.bf16.msra.mxu0 %v6654
        %7548 = vmatpush.bf16.msra.mxu0 %v6650
        %7549 = vmatmul.bf16.gmra.mxu0 %v4359
        %v7550 = vpop.f32.mrf.mxu0
        %v7551 = vadd.f32 %v7538, %v7550
        %v7552 = vpop.f32.mrf.mxu0
        %7553 = vdwg.mxu0
        %7554 = vmatpush.bf16.msra.mxu0 %v6710
        %7555 = vmatpush.bf16.msra.mxu0 %v6706
        %7556 = vmatpush.bf16.msra.mxu0 %v6702
        %7557 = vmatpush.bf16.msra.mxu0 %v6698
        %7558 = vmatpush.bf16.msra.mxu0 %v6694
        %7559 = vmatpush.bf16.msra.mxu0 %v6690
        %7560 = vmatpush.bf16.msra.mxu0 %v6686
        %7561 = vmatpush.bf16.msra.mxu0 %v6682
        %7562 = vmatmul.bf16.gmra.mxu0 %v4360
        %v7563 = vpop.f32.mrf.mxu0
        %v7564 = vadd.f32 %v7551, %v7563
        %v7565 = vpop.f32.mrf.mxu0
        %7566 = vdwg.mxu0
        %7567 = vmatpush.bf16.msra.mxu0 %v6742
        %7568 = vmatpush.bf16.msra.mxu0 %v6738
        %7569 = vmatpush.bf16.msra.mxu0 %v6734
        %7570 = vmatpush.bf16.msra.mxu0 %v6730
        %7571 = vmatpush.bf16.msra.mxu0 %v6726
        %7572 = vmatpush.bf16.msra.mxu0 %v6722
        %7573 = vmatpush.bf16.msra.mxu0 %v6718
        %7574 = vmatpush.bf16.msra.mxu0 %v6714
        %7575 = vmatmul.bf16.gmra.mxu0 %v4361
        %v7576 = vpop.f32.mrf.mxu0
        %v7577 = vadd.f32 %v7564, %v7576
        %v7578 = vpop.f32.mrf.mxu0
        %7579 = vdwg.mxu0
        %7580 = vmatpush.bf16.msra.mxu0 %v6774
        %7581 = vmatpush.bf16.msra.mxu0 %v6770
        %7582 = vmatpush.bf16.msra.mxu0 %v6766
        %7583 = vmatpush.bf16.msra.mxu0 %v6762
        %7584 = vmatpush.bf16.msra.mxu0 %v6758
        %7585 = vmatpush.bf16.msra.mxu0 %v6754
        %7586 = vmatpush.bf16.msra.mxu0 %v6750
        %7587 = vmatpush.bf16.msra.mxu0 %v6746
        %7588 = vmatmul.bf16.gmra.mxu0 %v4362
        %v7589 = vpop.f32.mrf.mxu0
        %v7590 = vadd.f32 %v7577, %v7589
        %v7591 = vpop.f32.mrf.mxu0
        %7592 = vdwg.mxu0
        %7593 = vmatpush.bf16.msra.mxu0 %v6806
        %7594 = vmatpush.bf16.msra.mxu0 %v6802
        %7595 = vmatpush.bf16.msra.mxu0 %v6798
        %7596 = vmatpush.bf16.msra.mxu0 %v6794
        %7597 = vmatpush.bf16.msra.mxu0 %v6790
        %7598 = vmatpush.bf16.msra.mxu0 %v6786
        %7599 = vmatpush.bf16.msra.mxu0 %v6782
        %7600 = vmatpush.bf16.msra.mxu0 %v6778
        %7601 = vmatmul.bf16.gmra.mxu0 %v4363
        %v7602 = vpop.f32.mrf.mxu0
        %v7603 = vadd.f32 %v7590, %v7602
        %v7604 = vpop.f32.mrf.mxu0
        %7605 = vdwg.mxu0
        %7606 = vmatpush.bf16.msra.mxu0 %v6838
        %7607 = vmatpush.bf16.msra.mxu0 %v6834
        %7608 = vmatpush.bf16.msra.mxu0 %v6830
        %7609 = vmatpush.bf16.msra.mxu0 %v6826
        %7610 = vmatpush.bf16.msra.mxu0 %v6822
        %7611 = vmatpush.bf16.msra.mxu0 %v6818
        %7612 = vmatpush.bf16.msra.mxu0 %v6814
        %7613 = vmatpush.bf16.msra.mxu0 %v6810
        %7614 = vmatmul.bf16.gmra.mxu0 %v4364
        %v7615 = vpop.f32.mrf.mxu0
        %v7616 = vadd.f32 %v7603, %v7615
        %v7617 = vpop.f32.mrf.mxu0
        %7618 = vdwg.mxu0
        %7619 = vmatpush.bf16.msra.mxu0 %v6870
        %7620 = vmatpush.bf16.msra.mxu0 %v6866
        %7621 = vmatpush.bf16.msra.mxu0 %v6862
        %7622 = vmatpush.bf16.msra.mxu0 %v6858
        %7623 = vmatpush.bf16.msra.mxu0 %v6854
        %7624 = vmatpush.bf16.msra.mxu0 %v6850
        %7625 = vmatpush.bf16.msra.mxu0 %v6846
        %7626 = vmatpush.bf16.msra.mxu0 %v6842
        %7627 = vmatmul.bf16.gmra.mxu0 %v4365
        %v7628 = vpop.f32.mrf.mxu0
        %v7629 = vadd.f32 %v7616, %v7628
        %v7630 = vpop.f32.mrf.mxu0
        %7631 = vdwg.mxu0
        %7632 = vmatpush.bf16.msra.mxu0 %v6902
        %7633 = vmatpush.bf16.msra.mxu0 %v6898
        %7634 = vmatpush.bf16.msra.mxu0 %v6894
        %7635 = vmatpush.bf16.msra.mxu0 %v6890
        %7636 = vmatpush.bf16.msra.mxu0 %v6886
        %7637 = vmatpush.bf16.msra.mxu0 %v6882
        %7638 = vmatpush.bf16.msra.mxu0 %v6878
        %7639 = vmatpush.bf16.msra.mxu0 %v6874
        %7640 = vmatmul.bf16.gmra.mxu0 %v4366
        %v7641 = vpop.f32.mrf.mxu0
        %v7642 = vadd.f32 %v7629, %v7641
        %v7643 = vpop.f32.mrf.mxu0
        %7644 = vdwg.mxu0
        %7645 = vmatpush.bf16.msra.mxu0 %v6934
        %7646 = vmatpush.bf16.msra.mxu0 %v6930
        %7647 = vmatpush.bf16.msra.mxu0 %v6926
        %7648 = vmatpush.bf16.msra.mxu0 %v6922
        %7649 = vmatpush.bf16.msra.mxu0 %v6918
        %7650 = vmatpush.bf16.msra.mxu0 %v6914
        %7651 = vmatpush.bf16.msra.mxu0 %v6910
        %7652 = vmatpush.bf16.msra.mxu0 %v6906
        %7653 = vmatmul.bf16.gmra.mxu0 %v4367
        %v7654 = vpop.f32.mrf.mxu0
        %v7655 = vadd.f32 %v7642, %v7654
        %v7656 = vpop.f32.mrf.mxu0
        %7657 = vdwg.mxu0
        %7658 = vmatpush.bf16.msra.mxu0 %v6455
        %7659 = vmatpush.bf16.msra.mxu0 %v6451
        %7660 = vmatpush.bf16.msra.mxu0 %v6447
        %7661 = vmatpush.bf16.msra.mxu0 %v6443
        %7662 = vmatpush.bf16.msra.mxu0 %v6439
        %7663 = vmatpush.bf16.msra.mxu0 %v6435
        %7664 = vmatpush.bf16.msra.mxu0 %v6431
        %7665 = vmatpush.bf16.msra.mxu0 %v6427
        %7666 = vmatmul.bf16.gmra.mxu0 %v4352
        %v7667 = vpop.f32.mrf.mxu0
        %v7668 = vadd.f32 %v4883, %v7667
        %v7669 = vpop.f32.mrf.mxu0
        %7670 = vdwg.mxu0
        %7671 = vmatpush.bf16.msra.mxu0 %v6487
        %7672 = vmatpush.bf16.msra.mxu0 %v6483
        %7673 = vmatpush.bf16.msra.mxu0 %v6479
        %7674 = vmatpush.bf16.msra.mxu0 %v6475
        %7675 = vmatpush.bf16.msra.mxu0 %v6471
        %7676 = vmatpush.bf16.msra.mxu0 %v6467
        %7677 = vmatpush.bf16.msra.mxu0 %v6463
        %7678 = vmatpush.bf16.msra.mxu0 %v6459
        %7679 = vmatmul.bf16.gmra.mxu0 %v4353
        %v7680 = vpop.f32.mrf.mxu0
        %v7681 = vadd.f32 %v7668, %v7680
        %v7682 = vpop.f32.mrf.mxu0
        %7683 = vdwg.mxu0
        %7684 = vmatpush.bf16.msra.mxu0 %v6519
        %7685 = vmatpush.bf16.msra.mxu0 %v6515
        %7686 = vmatpush.bf16.msra.mxu0 %v6511
        %7687 = vmatpush.bf16.msra.mxu0 %v6507
        %7688 = vmatpush.bf16.msra.mxu0 %v6503
        %7689 = vmatpush.bf16.msra.mxu0 %v6499
        %7690 = vmatpush.bf16.msra.mxu0 %v6495
        %7691 = vmatpush.bf16.msra.mxu0 %v6491
        %7692 = vmatmul.bf16.gmra.mxu0 %v4354
        %v7693 = vpop.f32.mrf.mxu0
        %v7694 = vadd.f32 %v7681, %v7693
        %v7695 = vpop.f32.mrf.mxu0
        %7696 = vdwg.mxu0
        %7697 = vmatpush.bf16.msra.mxu0 %v6551
        %7698 = vmatpush.bf16.msra.mxu0 %v6547
        %7699 = vmatpush.bf16.msra.mxu0 %v6543
        %7700 = vmatpush.bf16.msra.mxu0 %v6539
        %7701 = vmatpush.bf16.msra.mxu0 %v6535
        %7702 = vmatpush.bf16.msra.mxu0 %v6531
        %7703 = vmatpush.bf16.msra.mxu0 %v6527
        %7704 = vmatpush.bf16.msra.mxu0 %v6523
        %7705 = vmatmul.bf16.gmra.mxu0 %v4355
        %v7706 = vpop.f32.mrf.mxu0
        %v7707 = vadd.f32 %v7694, %v7706
        %v7708 = vpop.f32.mrf.mxu0
        %7709 = vdwg.mxu0
        %7710 = vmatpush.bf16.msra.mxu0 %v6583
        %7711 = vmatpush.bf16.msra.mxu0 %v6579
        %7712 = vmatpush.bf16.msra.mxu0 %v6575
        %7713 = vmatpush.bf16.msra.mxu0 %v6571
        %7714 = vmatpush.bf16.msra.mxu0 %v6567
        %7715 = vmatpush.bf16.msra.mxu0 %v6563
        %7716 = vmatpush.bf16.msra.mxu0 %v6559
        %7717 = vmatpush.bf16.msra.mxu0 %v6555
        %7718 = vmatmul.bf16.gmra.mxu0 %v4356
        %v7719 = vpop.f32.mrf.mxu0
        %v7720 = vadd.f32 %v7707, %v7719
        %v7721 = vpop.f32.mrf.mxu0
        %7722 = vdwg.mxu0
        %7723 = vmatpush.bf16.msra.mxu0 %v6615
        %7724 = vmatpush.bf16.msra.mxu0 %v6611
        %7725 = vmatpush.bf16.msra.mxu0 %v6607
        %7726 = vmatpush.bf16.msra.mxu0 %v6603
        %7727 = vmatpush.bf16.msra.mxu0 %v6599
        %7728 = vmatpush.bf16.msra.mxu0 %v6595
        %7729 = vmatpush.bf16.msra.mxu0 %v6591
        %7730 = vmatpush.bf16.msra.mxu0 %v6587
        %7731 = vmatmul.bf16.gmra.mxu0 %v4357
        %v7732 = vpop.f32.mrf.mxu0
        %v7733 = vadd.f32 %v7720, %v7732
        %v7734 = vpop.f32.mrf.mxu0
        %7735 = vdwg.mxu0
        %7736 = vmatpush.bf16.msra.mxu0 %v6647
        %7737 = vmatpush.bf16.msra.mxu0 %v6643
        %7738 = vmatpush.bf16.msra.mxu0 %v6639
        %7739 = vmatpush.bf16.msra.mxu0 %v6635
        %7740 = vmatpush.bf16.msra.mxu0 %v6631
        %7741 = vmatpush.bf16.msra.mxu0 %v6627
        %7742 = vmatpush.bf16.msra.mxu0 %v6623
        %7743 = vmatpush.bf16.msra.mxu0 %v6619
        %7744 = vmatmul.bf16.gmra.mxu0 %v4358
        %v7745 = vpop.f32.mrf.mxu0
        %v7746 = vadd.f32 %v7733, %v7745
        %v7747 = vpop.f32.mrf.mxu0
        %7748 = vdwg.mxu0
        %7749 = vmatpush.bf16.msra.mxu0 %v6679
        %7750 = vmatpush.bf16.msra.mxu0 %v6675
        %7751 = vmatpush.bf16.msra.mxu0 %v6671
        %7752 = vmatpush.bf16.msra.mxu0 %v6667
        %7753 = vmatpush.bf16.msra.mxu0 %v6663
        %7754 = vmatpush.bf16.msra.mxu0 %v6659
        %7755 = vmatpush.bf16.msra.mxu0 %v6655
        %7756 = vmatpush.bf16.msra.mxu0 %v6651
        %7757 = vmatmul.bf16.gmra.mxu0 %v4359
        %v7758 = vpop.f32.mrf.mxu0
        %v7759 = vadd.f32 %v7746, %v7758
        %v7760 = vpop.f32.mrf.mxu0
        %7761 = vdwg.mxu0
        %7762 = vmatpush.bf16.msra.mxu0 %v6711
        %7763 = vmatpush.bf16.msra.mxu0 %v6707
        %7764 = vmatpush.bf16.msra.mxu0 %v6703
        %7765 = vmatpush.bf16.msra.mxu0 %v6699
        %7766 = vmatpush.bf16.msra.mxu0 %v6695
        %7767 = vmatpush.bf16.msra.mxu0 %v6691
        %7768 = vmatpush.bf16.msra.mxu0 %v6687
        %7769 = vmatpush.bf16.msra.mxu0 %v6683
        %7770 = vmatmul.bf16.gmra.mxu0 %v4360
        %v7771 = vpop.f32.mrf.mxu0
        %v7772 = vadd.f32 %v7759, %v7771
        %v7773 = vpop.f32.mrf.mxu0
        %7774 = vdwg.mxu0
        %7775 = vmatpush.bf16.msra.mxu0 %v6743
        %7776 = vmatpush.bf16.msra.mxu0 %v6739
        %7777 = vmatpush.bf16.msra.mxu0 %v6735
        %7778 = vmatpush.bf16.msra.mxu0 %v6731
        %7779 = vmatpush.bf16.msra.mxu0 %v6727
        %7780 = vmatpush.bf16.msra.mxu0 %v6723
        %7781 = vmatpush.bf16.msra.mxu0 %v6719
        %7782 = vmatpush.bf16.msra.mxu0 %v6715
        %7783 = vmatmul.bf16.gmra.mxu0 %v4361
        %v7784 = vpop.f32.mrf.mxu0
        %v7785 = vadd.f32 %v7772, %v7784
        %v7786 = vpop.f32.mrf.mxu0
        %7787 = vdwg.mxu0
        %7788 = vmatpush.bf16.msra.mxu0 %v6775
        %7789 = vmatpush.bf16.msra.mxu0 %v6771
        %7790 = vmatpush.bf16.msra.mxu0 %v6767
        %7791 = vmatpush.bf16.msra.mxu0 %v6763
        %7792 = vmatpush.bf16.msra.mxu0 %v6759
        %7793 = vmatpush.bf16.msra.mxu0 %v6755
        %7794 = vmatpush.bf16.msra.mxu0 %v6751
        %7795 = vmatpush.bf16.msra.mxu0 %v6747
        %7796 = vmatmul.bf16.gmra.mxu0 %v4362
        %v7797 = vpop.f32.mrf.mxu0
        %v7798 = vadd.f32 %v7785, %v7797
        %v7799 = vpop.f32.mrf.mxu0
        %7800 = vdwg.mxu0
        %7801 = vmatpush.bf16.msra.mxu0 %v6807
        %7802 = vmatpush.bf16.msra.mxu0 %v6803
        %7803 = vmatpush.bf16.msra.mxu0 %v6799
        %7804 = vmatpush.bf16.msra.mxu0 %v6795
        %7805 = vmatpush.bf16.msra.mxu0 %v6791
        %7806 = vmatpush.bf16.msra.mxu0 %v6787
        %7807 = vmatpush.bf16.msra.mxu0 %v6783
        %7808 = vmatpush.bf16.msra.mxu0 %v6779
        %7809 = vmatmul.bf16.gmra.mxu0 %v4363
        %v7810 = vpop.f32.mrf.mxu0
        %v7811 = vadd.f32 %v7798, %v7810
        %v7812 = vpop.f32.mrf.mxu0
        %7813 = vdwg.mxu0
        %7814 = vmatpush.bf16.msra.mxu0 %v6839
        %7815 = vmatpush.bf16.msra.mxu0 %v6835
        %7816 = vmatpush.bf16.msra.mxu0 %v6831
        %7817 = vmatpush.bf16.msra.mxu0 %v6827
        %7818 = vmatpush.bf16.msra.mxu0 %v6823
        %7819 = vmatpush.bf16.msra.mxu0 %v6819
        %7820 = vmatpush.bf16.msra.mxu0 %v6815
        %7821 = vmatpush.bf16.msra.mxu0 %v6811
        %7822 = vmatmul.bf16.gmra.mxu0 %v4364
        %v7823 = vpop.f32.mrf.mxu0
        %v7824 = vadd.f32 %v7811, %v7823
        %v7825 = vpop.f32.mrf.mxu0
        %7826 = vdwg.mxu0
        %7827 = vmatpush.bf16.msra.mxu0 %v6871
        %7828 = vmatpush.bf16.msra.mxu0 %v6867
        %7829 = vmatpush.bf16.msra.mxu0 %v6863
        %7830 = vmatpush.bf16.msra.mxu0 %v6859
        %7831 = vmatpush.bf16.msra.mxu0 %v6855
        %7832 = vmatpush.bf16.msra.mxu0 %v6851
        %7833 = vmatpush.bf16.msra.mxu0 %v6847
        %7834 = vmatpush.bf16.msra.mxu0 %v6843
        %7835 = vmatmul.bf16.gmra.mxu0 %v4365
        %v7836 = vpop.f32.mrf.mxu0
        %v7837 = vadd.f32 %v7824, %v7836
        %v7838 = vpop.f32.mrf.mxu0
        %7839 = vdwg.mxu0
        %7840 = vmatpush.bf16.msra.mxu0 %v6903
        %7841 = vmatpush.bf16.msra.mxu0 %v6899
        %7842 = vmatpush.bf16.msra.mxu0 %v6895
        %7843 = vmatpush.bf16.msra.mxu0 %v6891
        %7844 = vmatpush.bf16.msra.mxu0 %v6887
        %7845 = vmatpush.bf16.msra.mxu0 %v6883
        %7846 = vmatpush.bf16.msra.mxu0 %v6879
        %7847 = vmatpush.bf16.msra.mxu0 %v6875
        %7848 = vmatmul.bf16.gmra.mxu0 %v4366
        %v7849 = vpop.f32.mrf.mxu0
        %v7850 = vadd.f32 %v7837, %v7849
        %v7851 = vpop.f32.mrf.mxu0
        %7852 = vdwg.mxu0
        %7853 = vmatpush.bf16.msra.mxu0 %v6935
        %7854 = vmatpush.bf16.msra.mxu0 %v6931
        %7855 = vmatpush.bf16.msra.mxu0 %v6927
        %7856 = vmatpush.bf16.msra.mxu0 %v6923
        %7857 = vmatpush.bf16.msra.mxu0 %v6919
        %7858 = vmatpush.bf16.msra.mxu0 %v6915
        %7859 = vmatpush.bf16.msra.mxu0 %v6911
        %7860 = vmatpush.bf16.msra.mxu0 %v6907
        %7861 = vmatmul.bf16.gmra.mxu0 %v4367
        %v7862 = vpop.f32.mrf.mxu0
        %v7863 = vadd.f32 %v7850, %v7862
        %v7864 = vpop.f32.mrf.mxu0
        %7865 = vdwg.mxu0
        %7866 = vmatpush.bf16.msra.mxu0 %v6456
        %7867 = vmatpush.bf16.msra.mxu0 %v6452
        %7868 = vmatpush.bf16.msra.mxu0 %v6448
        %7869 = vmatpush.bf16.msra.mxu0 %v6444
        %7870 = vmatpush.bf16.msra.mxu0 %v6440
        %7871 = vmatpush.bf16.msra.mxu0 %v6436
        %7872 = vmatpush.bf16.msra.mxu0 %v6432
        %7873 = vmatpush.bf16.msra.mxu0 %v6428
        %7874 = vmatmul.bf16.gmra.mxu0 %v4352
        %v7875 = vpop.f32.mrf.mxu0
        %v7876 = vadd.f32 %v4884, %v7875
        %v7877 = vpop.f32.mrf.mxu0
        %7878 = vdwg.mxu0
        %7879 = vmatpush.bf16.msra.mxu0 %v6488
        %7880 = vmatpush.bf16.msra.mxu0 %v6484
        %7881 = vmatpush.bf16.msra.mxu0 %v6480
        %7882 = vmatpush.bf16.msra.mxu0 %v6476
        %7883 = vmatpush.bf16.msra.mxu0 %v6472
        %7884 = vmatpush.bf16.msra.mxu0 %v6468
        %7885 = vmatpush.bf16.msra.mxu0 %v6464
        %7886 = vmatpush.bf16.msra.mxu0 %v6460
        %7887 = vmatmul.bf16.gmra.mxu0 %v4353
        %v7888 = vpop.f32.mrf.mxu0
        %v7889 = vadd.f32 %v7876, %v7888
        %v7890 = vpop.f32.mrf.mxu0
        %7891 = vdwg.mxu0
        %7892 = vmatpush.bf16.msra.mxu0 %v6520
        %7893 = vmatpush.bf16.msra.mxu0 %v6516
        %7894 = vmatpush.bf16.msra.mxu0 %v6512
        %7895 = vmatpush.bf16.msra.mxu0 %v6508
        %7896 = vmatpush.bf16.msra.mxu0 %v6504
        %7897 = vmatpush.bf16.msra.mxu0 %v6500
        %7898 = vmatpush.bf16.msra.mxu0 %v6496
        %7899 = vmatpush.bf16.msra.mxu0 %v6492
        %7900 = vmatmul.bf16.gmra.mxu0 %v4354
        %v7901 = vpop.f32.mrf.mxu0
        %v7902 = vadd.f32 %v7889, %v7901
        %v7903 = vpop.f32.mrf.mxu0
        %7904 = vdwg.mxu0
        %7905 = vmatpush.bf16.msra.mxu0 %v6552
        %7906 = vmatpush.bf16.msra.mxu0 %v6548
        %7907 = vmatpush.bf16.msra.mxu0 %v6544
        %7908 = vmatpush.bf16.msra.mxu0 %v6540
        %7909 = vmatpush.bf16.msra.mxu0 %v6536
        %7910 = vmatpush.bf16.msra.mxu0 %v6532
        %7911 = vmatpush.bf16.msra.mxu0 %v6528
        %7912 = vmatpush.bf16.msra.mxu0 %v6524
        %7913 = vmatmul.bf16.gmra.mxu0 %v4355
        %v7914 = vpop.f32.mrf.mxu0
        %v7915 = vadd.f32 %v7902, %v7914
        %v7916 = vpop.f32.mrf.mxu0
        %7917 = vdwg.mxu0
        %7918 = vmatpush.bf16.msra.mxu0 %v6584
        %7919 = vmatpush.bf16.msra.mxu0 %v6580
        %7920 = vmatpush.bf16.msra.mxu0 %v6576
        %7921 = vmatpush.bf16.msra.mxu0 %v6572
        %7922 = vmatpush.bf16.msra.mxu0 %v6568
        %7923 = vmatpush.bf16.msra.mxu0 %v6564
        %7924 = vmatpush.bf16.msra.mxu0 %v6560
        %7925 = vmatpush.bf16.msra.mxu0 %v6556
        %7926 = vmatmul.bf16.gmra.mxu0 %v4356
        %v7927 = vpop.f32.mrf.mxu0
        %v7928 = vadd.f32 %v7915, %v7927
        %v7929 = vpop.f32.mrf.mxu0
        %7930 = vdwg.mxu0
        %7931 = vmatpush.bf16.msra.mxu0 %v6616
        %7932 = vmatpush.bf16.msra.mxu0 %v6612
        %7933 = vmatpush.bf16.msra.mxu0 %v6608
        %7934 = vmatpush.bf16.msra.mxu0 %v6604
        %7935 = vmatpush.bf16.msra.mxu0 %v6600
        %7936 = vmatpush.bf16.msra.mxu0 %v6596
        %7937 = vmatpush.bf16.msra.mxu0 %v6592
        %7938 = vmatpush.bf16.msra.mxu0 %v6588
        %7939 = vmatmul.bf16.gmra.mxu0 %v4357
        %v7940 = vpop.f32.mrf.mxu0
        %v7941 = vadd.f32 %v7928, %v7940
        %v7942 = vpop.f32.mrf.mxu0
        %7943 = vdwg.mxu0
        %7944 = vmatpush.bf16.msra.mxu0 %v6648
        %7945 = vmatpush.bf16.msra.mxu0 %v6644
        %7946 = vmatpush.bf16.msra.mxu0 %v6640
        %7947 = vmatpush.bf16.msra.mxu0 %v6636
        %7948 = vmatpush.bf16.msra.mxu0 %v6632
        %7949 = vmatpush.bf16.msra.mxu0 %v6628
        %7950 = vmatpush.bf16.msra.mxu0 %v6624
        %7951 = vmatpush.bf16.msra.mxu0 %v6620
        %7952 = vmatmul.bf16.gmra.mxu0 %v4358
        %v7953 = vpop.f32.mrf.mxu0
        %v7954 = vadd.f32 %v7941, %v7953
        %v7955 = vpop.f32.mrf.mxu0
        %7956 = vdwg.mxu0
        %7957 = vmatpush.bf16.msra.mxu0 %v6680
        %7958 = vmatpush.bf16.msra.mxu0 %v6676
        %7959 = vmatpush.bf16.msra.mxu0 %v6672
        %7960 = vmatpush.bf16.msra.mxu0 %v6668
        %7961 = vmatpush.bf16.msra.mxu0 %v6664
        %7962 = vmatpush.bf16.msra.mxu0 %v6660
        %7963 = vmatpush.bf16.msra.mxu0 %v6656
        %7964 = vmatpush.bf16.msra.mxu0 %v6652
        %7965 = vmatmul.bf16.gmra.mxu0 %v4359
        %v7966 = vpop.f32.mrf.mxu0
        %v7967 = vadd.f32 %v7954, %v7966
        %v7968 = vpop.f32.mrf.mxu0
        %7969 = vdwg.mxu0
        %7970 = vmatpush.bf16.msra.mxu0 %v6712
        %7971 = vmatpush.bf16.msra.mxu0 %v6708
        %7972 = vmatpush.bf16.msra.mxu0 %v6704
        %7973 = vmatpush.bf16.msra.mxu0 %v6700
        %7974 = vmatpush.bf16.msra.mxu0 %v6696
        %7975 = vmatpush.bf16.msra.mxu0 %v6692
        %7976 = vmatpush.bf16.msra.mxu0 %v6688
        %7977 = vmatpush.bf16.msra.mxu0 %v6684
        %7978 = vmatmul.bf16.gmra.mxu0 %v4360
        %v7979 = vpop.f32.mrf.mxu0
        %v7980 = vadd.f32 %v7967, %v7979
        %v7981 = vpop.f32.mrf.mxu0
        %7982 = vdwg.mxu0
        %7983 = vmatpush.bf16.msra.mxu0 %v6744
        %7984 = vmatpush.bf16.msra.mxu0 %v6740
        %7985 = vmatpush.bf16.msra.mxu0 %v6736
        %7986 = vmatpush.bf16.msra.mxu0 %v6732
        %7987 = vmatpush.bf16.msra.mxu0 %v6728
        %7988 = vmatpush.bf16.msra.mxu0 %v6724
        %7989 = vmatpush.bf16.msra.mxu0 %v6720
        %7990 = vmatpush.bf16.msra.mxu0 %v6716
        %7991 = vmatmul.bf16.gmra.mxu0 %v4361
        %v7992 = vpop.f32.mrf.mxu0
        %v7993 = vadd.f32 %v7980, %v7992
        %v7994 = vpop.f32.mrf.mxu0
        %7995 = vdwg.mxu0
        %7996 = vmatpush.bf16.msra.mxu0 %v6776
        %7997 = vmatpush.bf16.msra.mxu0 %v6772
        %7998 = vmatpush.bf16.msra.mxu0 %v6768
        %7999 = vmatpush.bf16.msra.mxu0 %v6764
        %8000 = vmatpush.bf16.msra.mxu0 %v6760
        %8001 = vmatpush.bf16.msra.mxu0 %v6756
        %8002 = vmatpush.bf16.msra.mxu0 %v6752
        %8003 = vmatpush.bf16.msra.mxu0 %v6748
        %8004 = vmatmul.bf16.gmra.mxu0 %v4362
        %v8005 = vpop.f32.mrf.mxu0
        %v8006 = vadd.f32 %v7993, %v8005
        %v8007 = vpop.f32.mrf.mxu0
        %8008 = vdwg.mxu0
        %8009 = vmatpush.bf16.msra.mxu0 %v6808
        %8010 = vmatpush.bf16.msra.mxu0 %v6804
        %8011 = vmatpush.bf16.msra.mxu0 %v6800
        %8012 = vmatpush.bf16.msra.mxu0 %v6796
        %8013 = vmatpush.bf16.msra.mxu0 %v6792
        %8014 = vmatpush.bf16.msra.mxu0 %v6788
        %8015 = vmatpush.bf16.msra.mxu0 %v6784
        %8016 = vmatpush.bf16.msra.mxu0 %v6780
        %8017 = vmatmul.bf16.gmra.mxu0 %v4363
        %v8018 = vpop.f32.mrf.mxu0
        %v8019 = vadd.f32 %v8006, %v8018
        %v8020 = vpop.f32.mrf.mxu0
        %8021 = vdwg.mxu0
        %8022 = vmatpush.bf16.msra.mxu0 %v6840
        %8023 = vmatpush.bf16.msra.mxu0 %v6836
        %8024 = vmatpush.bf16.msra.mxu0 %v6832
        %8025 = vmatpush.bf16.msra.mxu0 %v6828
        %8026 = vmatpush.bf16.msra.mxu0 %v6824
        %8027 = vmatpush.bf16.msra.mxu0 %v6820
        %8028 = vmatpush.bf16.msra.mxu0 %v6816
        %8029 = vmatpush.bf16.msra.mxu0 %v6812
        %8030 = vmatmul.bf16.gmra.mxu0 %v4364
        %v8031 = vpop.f32.mrf.mxu0
        %v8032 = vadd.f32 %v8019, %v8031
        %v8033 = vpop.f32.mrf.mxu0
        %8034 = vdwg.mxu0
        %8035 = vmatpush.bf16.msra.mxu0 %v6872
        %8036 = vmatpush.bf16.msra.mxu0 %v6868
        %8037 = vmatpush.bf16.msra.mxu0 %v6864
        %8038 = vmatpush.bf16.msra.mxu0 %v6860
        %8039 = vmatpush.bf16.msra.mxu0 %v6856
        %8040 = vmatpush.bf16.msra.mxu0 %v6852
        %8041 = vmatpush.bf16.msra.mxu0 %v6848
        %8042 = vmatpush.bf16.msra.mxu0 %v6844
        %8043 = vmatmul.bf16.gmra.mxu0 %v4365
        %v8044 = vpop.f32.mrf.mxu0
        %v8045 = vadd.f32 %v8032, %v8044
        %v8046 = vpop.f32.mrf.mxu0
        %8047 = vdwg.mxu0
        %8048 = vmatpush.bf16.msra.mxu0 %v6904
        %8049 = vmatpush.bf16.msra.mxu0 %v6900
        %8050 = vmatpush.bf16.msra.mxu0 %v6896
        %8051 = vmatpush.bf16.msra.mxu0 %v6892
        %8052 = vmatpush.bf16.msra.mxu0 %v6888
        %8053 = vmatpush.bf16.msra.mxu0 %v6884
        %8054 = vmatpush.bf16.msra.mxu0 %v6880
        %8055 = vmatpush.bf16.msra.mxu0 %v6876
        %8056 = vmatmul.bf16.gmra.mxu0 %v4366
        %v8057 = vpop.f32.mrf.mxu0
        %v8058 = vadd.f32 %v8045, %v8057
        %v8059 = vpop.f32.mrf.mxu0
        %8060 = vdwg.mxu0
        %8061 = vmatpush.bf16.msra.mxu0 %v6936
        %8062 = vmatpush.bf16.msra.mxu0 %v6932
        %8063 = vmatpush.bf16.msra.mxu0 %v6928
        %8064 = vmatpush.bf16.msra.mxu0 %v6924
        %8065 = vmatpush.bf16.msra.mxu0 %v6920
        %8066 = vmatpush.bf16.msra.mxu0 %v6916
        %8067 = vmatpush.bf16.msra.mxu0 %v6912
        %8068 = vmatpush.bf16.msra.mxu0 %v6908
        %8069 = vmatmul.bf16.gmra.mxu0 %v4367
        %v8070 = vpop.f32.mrf.mxu0
        %v8071 = vadd.f32 %v8058, %v8070
        %v8072 = vpop.f32.mrf.mxu0
        %8073 = vdwg.mxu0
        %8074 = vmatpush.bf16.msra.mxu0 %v6457
        %8075 = vmatpush.bf16.msra.mxu0 %v6453
        %8076 = vmatpush.bf16.msra.mxu0 %v6449
        %8077 = vmatpush.bf16.msra.mxu0 %v6445
        %8078 = vmatpush.bf16.msra.mxu0 %v6441
        %8079 = vmatpush.bf16.msra.mxu0 %v6437
        %8080 = vmatpush.bf16.msra.mxu0 %v6433
        %8081 = vmatpush.bf16.msra.mxu0 %v6429
        %8082 = vmatmul.bf16.gmra.mxu0 %v4352
        %v8083 = vpop.f32.mrf.mxu0
        %v8084 = vadd.f32 %v4885, %v8083
        %v8085 = vpop.f32.mrf.mxu0
        %8086 = vdwg.mxu0
        %8087 = vmatpush.bf16.msra.mxu0 %v6489
        %8088 = vmatpush.bf16.msra.mxu0 %v6485
        %8089 = vmatpush.bf16.msra.mxu0 %v6481
        %8090 = vmatpush.bf16.msra.mxu0 %v6477
        %8091 = vmatpush.bf16.msra.mxu0 %v6473
        %8092 = vmatpush.bf16.msra.mxu0 %v6469
        %8093 = vmatpush.bf16.msra.mxu0 %v6465
        %8094 = vmatpush.bf16.msra.mxu0 %v6461
        %8095 = vmatmul.bf16.gmra.mxu0 %v4353
        %v8096 = vpop.f32.mrf.mxu0
        %v8097 = vadd.f32 %v8084, %v8096
        %v8098 = vpop.f32.mrf.mxu0
        %8099 = vdwg.mxu0
        %8100 = vmatpush.bf16.msra.mxu0 %v6521
        %8101 = vmatpush.bf16.msra.mxu0 %v6517
        %8102 = vmatpush.bf16.msra.mxu0 %v6513
        %8103 = vmatpush.bf16.msra.mxu0 %v6509
        %8104 = vmatpush.bf16.msra.mxu0 %v6505
        %8105 = vmatpush.bf16.msra.mxu0 %v6501
        %8106 = vmatpush.bf16.msra.mxu0 %v6497
        %8107 = vmatpush.bf16.msra.mxu0 %v6493
        %8108 = vmatmul.bf16.gmra.mxu0 %v4354
        %v8109 = vpop.f32.mrf.mxu0
        %v8110 = vadd.f32 %v8097, %v8109
        %v8111 = vpop.f32.mrf.mxu0
        %8112 = vdwg.mxu0
        %8113 = vmatpush.bf16.msra.mxu0 %v6553
        %8114 = vmatpush.bf16.msra.mxu0 %v6549
        %8115 = vmatpush.bf16.msra.mxu0 %v6545
        %8116 = vmatpush.bf16.msra.mxu0 %v6541
        %8117 = vmatpush.bf16.msra.mxu0 %v6537
        %8118 = vmatpush.bf16.msra.mxu0 %v6533
        %8119 = vmatpush.bf16.msra.mxu0 %v6529
        %8120 = vmatpush.bf16.msra.mxu0 %v6525
        %8121 = vmatmul.bf16.gmra.mxu0 %v4355
        %v8122 = vpop.f32.mrf.mxu0
        %v8123 = vadd.f32 %v8110, %v8122
        %v8124 = vpop.f32.mrf.mxu0
        %8125 = vdwg.mxu0
        %8126 = vmatpush.bf16.msra.mxu0 %v6585
        %8127 = vmatpush.bf16.msra.mxu0 %v6581
        %8128 = vmatpush.bf16.msra.mxu0 %v6577
        %8129 = vmatpush.bf16.msra.mxu0 %v6573
        %8130 = vmatpush.bf16.msra.mxu0 %v6569
        %8131 = vmatpush.bf16.msra.mxu0 %v6565
        %8132 = vmatpush.bf16.msra.mxu0 %v6561
        %8133 = vmatpush.bf16.msra.mxu0 %v6557
        %8134 = vmatmul.bf16.gmra.mxu0 %v4356
        %v8135 = vpop.f32.mrf.mxu0
        %v8136 = vadd.f32 %v8123, %v8135
        %v8137 = vpop.f32.mrf.mxu0
        %8138 = vdwg.mxu0
        %8139 = vmatpush.bf16.msra.mxu0 %v6617
        %8140 = vmatpush.bf16.msra.mxu0 %v6613
        %8141 = vmatpush.bf16.msra.mxu0 %v6609
        %8142 = vmatpush.bf16.msra.mxu0 %v6605
        %8143 = vmatpush.bf16.msra.mxu0 %v6601
        %8144 = vmatpush.bf16.msra.mxu0 %v6597
        %8145 = vmatpush.bf16.msra.mxu0 %v6593
        %8146 = vmatpush.bf16.msra.mxu0 %v6589
        %8147 = vmatmul.bf16.gmra.mxu0 %v4357
        %v8148 = vpop.f32.mrf.mxu0
        %v8149 = vadd.f32 %v8136, %v8148
        %v8150 = vpop.f32.mrf.mxu0
        %8151 = vdwg.mxu0
        %8152 = vmatpush.bf16.msra.mxu0 %v6649
        %8153 = vmatpush.bf16.msra.mxu0 %v6645
        %8154 = vmatpush.bf16.msra.mxu0 %v6641
        %8155 = vmatpush.bf16.msra.mxu0 %v6637
        %8156 = vmatpush.bf16.msra.mxu0 %v6633
        %8157 = vmatpush.bf16.msra.mxu0 %v6629
        %8158 = vmatpush.bf16.msra.mxu0 %v6625
        %8159 = vmatpush.bf16.msra.mxu0 %v6621
        %8160 = vmatmul.bf16.gmra.mxu0 %v4358
        %v8161 = vpop.f32.mrf.mxu0
        %v8162 = vadd.f32 %v8149, %v8161
        %v8163 = vpop.f32.mrf.mxu0
        %8164 = vdwg.mxu0
        %8165 = vmatpush.bf16.msra.mxu0 %v6681
        %8166 = vmatpush.bf16.msra.mxu0 %v6677
        %8167 = vmatpush.bf16.msra.mxu0 %v6673
        %8168 = vmatpush.bf16.msra.mxu0 %v6669
        %8169 = vmatpush.bf16.msra.mxu0 %v6665
        %8170 = vmatpush.bf16.msra.mxu0 %v6661
        %8171 = vmatpush.bf16.msra.mxu0 %v6657
        %8172 = vmatpush.bf16.msra.mxu0 %v6653
        %8173 = vmatmul.bf16.gmra.mxu0 %v4359
        %v8174 = vpop.f32.mrf.mxu0
        %v8175 = vadd.f32 %v8162, %v8174
        %v8176 = vpop.f32.mrf.mxu0
        %8177 = vdwg.mxu0
        %8178 = vmatpush.bf16.msra.mxu0 %v6713
        %8179 = vmatpush.bf16.msra.mxu0 %v6709
        %8180 = vmatpush.bf16.msra.mxu0 %v6705
        %8181 = vmatpush.bf16.msra.mxu0 %v6701
        %8182 = vmatpush.bf16.msra.mxu0 %v6697
        %8183 = vmatpush.bf16.msra.mxu0 %v6693
        %8184 = vmatpush.bf16.msra.mxu0 %v6689
        %8185 = vmatpush.bf16.msra.mxu0 %v6685
        %8186 = vmatmul.bf16.gmra.mxu0 %v4360
        %v8187 = vpop.f32.mrf.mxu0
        %v8188 = vadd.f32 %v8175, %v8187
        %v8189 = vpop.f32.mrf.mxu0
        %8190 = vdwg.mxu0
        %8191 = vmatpush.bf16.msra.mxu0 %v6745
        %8192 = vmatpush.bf16.msra.mxu0 %v6741
        %8193 = vmatpush.bf16.msra.mxu0 %v6737
        %8194 = vmatpush.bf16.msra.mxu0 %v6733
        %8195 = vmatpush.bf16.msra.mxu0 %v6729
        %8196 = vmatpush.bf16.msra.mxu0 %v6725
        %8197 = vmatpush.bf16.msra.mxu0 %v6721
        %8198 = vmatpush.bf16.msra.mxu0 %v6717
        %8199 = vmatmul.bf16.gmra.mxu0 %v4361
        %v8200 = vpop.f32.mrf.mxu0
        %v8201 = vadd.f32 %v8188, %v8200
        %v8202 = vpop.f32.mrf.mxu0
        %8203 = vdwg.mxu0
        %8204 = vmatpush.bf16.msra.mxu0 %v6777
        %8205 = vmatpush.bf16.msra.mxu0 %v6773
        %8206 = vmatpush.bf16.msra.mxu0 %v6769
        %8207 = vmatpush.bf16.msra.mxu0 %v6765
        %8208 = vmatpush.bf16.msra.mxu0 %v6761
        %8209 = vmatpush.bf16.msra.mxu0 %v6757
        %8210 = vmatpush.bf16.msra.mxu0 %v6753
        %8211 = vmatpush.bf16.msra.mxu0 %v6749
        %8212 = vmatmul.bf16.gmra.mxu0 %v4362
        %v8213 = vpop.f32.mrf.mxu0
        %v8214 = vadd.f32 %v8201, %v8213
        %v8215 = vpop.f32.mrf.mxu0
        %8216 = vdwg.mxu0
        %8217 = vmatpush.bf16.msra.mxu0 %v6809
        %8218 = vmatpush.bf16.msra.mxu0 %v6805
        %8219 = vmatpush.bf16.msra.mxu0 %v6801
        %8220 = vmatpush.bf16.msra.mxu0 %v6797
        %8221 = vmatpush.bf16.msra.mxu0 %v6793
        %8222 = vmatpush.bf16.msra.mxu0 %v6789
        %8223 = vmatpush.bf16.msra.mxu0 %v6785
        %8224 = vmatpush.bf16.msra.mxu0 %v6781
        %8225 = vmatmul.bf16.gmra.mxu0 %v4363
        %v8226 = vpop.f32.mrf.mxu0
        %v8227 = vadd.f32 %v8214, %v8226
        %v8228 = vpop.f32.mrf.mxu0
        %8229 = vdwg.mxu0
        %8230 = vmatpush.bf16.msra.mxu0 %v6841
        %8231 = vmatpush.bf16.msra.mxu0 %v6837
        %8232 = vmatpush.bf16.msra.mxu0 %v6833
        %8233 = vmatpush.bf16.msra.mxu0 %v6829
        %8234 = vmatpush.bf16.msra.mxu0 %v6825
        %8235 = vmatpush.bf16.msra.mxu0 %v6821
        %8236 = vmatpush.bf16.msra.mxu0 %v6817
        %8237 = vmatpush.bf16.msra.mxu0 %v6813
        %8238 = vmatmul.bf16.gmra.mxu0 %v4364
        %v8239 = vpop.f32.mrf.mxu0
        %v8240 = vadd.f32 %v8227, %v8239
        %v8241 = vpop.f32.mrf.mxu0
        %8242 = vdwg.mxu0
        %8243 = vmatpush.bf16.msra.mxu0 %v6873
        %8244 = vmatpush.bf16.msra.mxu0 %v6869
        %8245 = vmatpush.bf16.msra.mxu0 %v6865
        %8246 = vmatpush.bf16.msra.mxu0 %v6861
        %8247 = vmatpush.bf16.msra.mxu0 %v6857
        %8248 = vmatpush.bf16.msra.mxu0 %v6853
        %8249 = vmatpush.bf16.msra.mxu0 %v6849
        %8250 = vmatpush.bf16.msra.mxu0 %v6845
        %8251 = vmatmul.bf16.gmra.mxu0 %v4365
        %v8252 = vpop.f32.mrf.mxu0
        %v8253 = vadd.f32 %v8240, %v8252
        %v8254 = vpop.f32.mrf.mxu0
        %8255 = vdwg.mxu0
        %8256 = vmatpush.bf16.msra.mxu0 %v6905
        %8257 = vmatpush.bf16.msra.mxu0 %v6901
        %8258 = vmatpush.bf16.msra.mxu0 %v6897
        %8259 = vmatpush.bf16.msra.mxu0 %v6893
        %8260 = vmatpush.bf16.msra.mxu0 %v6889
        %8261 = vmatpush.bf16.msra.mxu0 %v6885
        %8262 = vmatpush.bf16.msra.mxu0 %v6881
        %8263 = vmatpush.bf16.msra.mxu0 %v6877
        %8264 = vmatmul.bf16.gmra.mxu0 %v4366
        %v8265 = vpop.f32.mrf.mxu0
        %v8266 = vadd.f32 %v8253, %v8265
        %v8267 = vpop.f32.mrf.mxu0
        %8268 = vdwg.mxu0
        %8269 = vmatpush.bf16.msra.mxu0 %v6937
        %8270 = vmatpush.bf16.msra.mxu0 %v6933
        %8271 = vmatpush.bf16.msra.mxu0 %v6929
        %8272 = vmatpush.bf16.msra.mxu0 %v6925
        %8273 = vmatpush.bf16.msra.mxu0 %v6921
        %8274 = vmatpush.bf16.msra.mxu0 %v6917
        %8275 = vmatpush.bf16.msra.mxu0 %v6913
        %8276 = vmatpush.bf16.msra.mxu0 %v6909
        %8277 = vmatmul.bf16.gmra.mxu0 %v4367
        %v8278 = vpop.f32.mrf.mxu0
        %v8279 = vadd.f32 %v8266, %v8278
        %v8280 = vpop.f32.mrf.mxu0
        %8281 = vdwg.mxu0
        %v8282 = vadd.f32 %v7655, %v388
        %v8283 = vadd.f32 %v7863, %v389
        %v8284 = vadd.f32 %v8071, %v390
        %v8285 = vadd.f32 %v8279, %v391
        %v8286 = vadd.f32 %v8282, %v8283
        %v8287 = vadd.f32 %v8286, %v8284
        %v8288 = vadd.f32 %v8287, %v8285
        %8289 = vadd.xlane.f32.xlu0 %v8288
        %v8290 = vpop.xlane.xlu0 %8289
        %v8291 = vrcp.pop 512.0
        %v8292 = vmul.f32 512.0, %v8291
        %v8293 = vsub.f32 1.0, %v8292
        %v8294 = vmul.f32 %v8291, %v8293
        %v8295 = vadd.f32 %v8291, %v8294
        %vm8296 = vweird.f32 %v8291
        %v8297 = vsel %vm8296, %v8291, %v8295
        %v8298 = vmul.f32 %v8290, %v8297
        %v8299 = vsub.f32 %v8282, %v8298
        %v8300 = vsub.f32 %v8283, %v8298
        %v8301 = vsub.f32 %v8284, %v8298
        %v8302 = vsub.f32 %v8285, %v8298
        %v8303 = vmul.f32 %v8299, %v8299
        %v8304 = vmul.f32 %v8300, %v8300
        %v8305 = vmul.f32 %v8301, %v8301
        %v8306 = vmul.f32 %v8302, %v8302
        %v8307 = vadd.f32 %v8303, %v8304
        %v8308 = vadd.f32 %v8307, %v8305
        %v8309 = vadd.f32 %v8308, %v8306
        %8310 = vadd.xlane.f32.xlu0 %v8309
        %v8311 = vpop.xlane.xlu0 %8310
        %v8312 = vmul.f32 %v8311, %v8297
        %v8313 = vadd.f32 %v8312, 1e-05
        %v8314 = vrsqrt.pop %v8313
        %v8315 = vmul.f32 %v8314, %v8313
        %v8316 = vmul.f32 %v8315, %v8314
        %v8317 = vmul.f32 0.5, %v8316
        %v8318 = vsub.f32 1.5, %v8317
        %v8319 = vmul.f32 %v8314, %v8318
        %vm8320 = vweird.f32 %v8313
        %vm8321 = vweird.f32 %v8314
        %vm8322 = vmor %vm8320, %vm8321
        %v8323 = vsel %vm8322, %v8314, %v8319
        %v8324 = vmul.f32 %v8299, %v8323
        %v8325 = vmul.f32 %v8300, %v8323
        %v8326 = vmul.f32 %v8301, %v8323
        %v8327 = vmul.f32 %v8302, %v8323
        %v8328 = vld [vmem:[#allocation11] sm:$0xf]
        %v8330 = vperm.slane %v8328, 0
        %v8331 = vperm.slane %v8328, 1
        %v8332 = vperm.slane %v8328, 2
        %v8333 = vperm.slane %v8328, 3
        %v8338 = vmul.f32 %v8324, %v8330
        %v8339 = vmul.f32 %v8325, %v8331
        %v8340 = vmul.f32 %v8326, %v8332
        %v8341 = vmul.f32 %v8327, %v8333
        %v8342 = vld [vmem:[#allocation13] sm:$0xf]
        %v8344 = vperm.slane %v8342, 0
        %v8345 = vperm.slane %v8342, 1
        %v8346 = vperm.slane %v8342, 2
        %v8347 = vperm.slane %v8342, 3
        %v8352 = vadd.f32 %v8338, %v8344
        %v8353 = vadd.f32 %v8339, %v8345
        %v8354 = vadd.f32 %v8340, %v8346
        %v8355 = vadd.f32 %v8341, %v8347
        %8356 = vst [vmem:[%s387] sm:$0xff] %v8352
        %8357 = vst [vmem:[%s387 + $0x8] sm:$0xff] %v8353
        %8358 = vst [vmem:[%s387 + $0x10] sm:$0xff] %v8354
        %8359 = vst [vmem:[%s387 + $0x18] sm:$0xff] %v8355
        %s8360 = sand.u32 %s187, 1
        %s8361 = scalar_lea.sflag [#allocation4], %s8360
        %s8362 = sand.u32 %s187, 1
        %s8363 = smul.addr %s8362, 32
        %s8364 = scalar_lea.vmem [#allocation14], %s8363
        // Predicated region
        $region77: #{tpu_custom_call.1} parent=47 // pred_check
          %p8365 = pneg %p197
        $region78: #{tpu_custom_call.1} parent=47 // pred_check_branch
          %8367 = sbr.rel (%p8365) target = $region80
        $region79: #{tpu_custom_call.1} parent=47 // pred_region
          %8369 = vsyncadd %s8361, 0
          %s8370 = smul.addr %s27, 4
          %s8371 = smul.addr %s8370, 8
          %s8372 = scalar_lea.hbm %s7, %s8371
          %s8374 = sshll.u32 %s8364, 4
          %s8375 = int_to_ptr.vmem [resolvable:$true] %s8374
          %s8376 = sshll.u32 %s8372, 4
          %s8377 = int_to_ptr.hbm [resolvable:$true] %s8376
          %8379 = dma.vmem_to_hbm [thread:$0]  %s8375, 512, %s8377, %s8361
        $region80: #{tpu_custom_call.1} parent=47 // pred_fallthru
          _
      $region48: #{tpu_custom_call.1} parent=5 // pred_fallthru
        _
      %p8380 = scmp.le.s32.totalorder 2, %s22
      // Predicated region
      $region81: #{tpu_custom_call.1} parent=5 // pred_check
        %p8381 = pneg %p8380
      $region82: #{tpu_custom_call.1} parent=5 // pred_check_branch
        %8383 = sbr.rel (%p8381) target = $region84
      $region83: #{tpu_custom_call.1} parent=5 // pred_region
        %s8384 = ssub.s32 %s22, 2
        // Predicated region
        $region85: #{tpu_custom_call.1} parent=83 // pred_check
          %p8385 = pneg %p203
        $region86: #{tpu_custom_call.1} parent=83 // pred_check_branch
          %8387 = sbr.rel (%p8385) target = $region88
        $region87: #{tpu_custom_call.1} parent=83 // pred_region
          %s8388 = sand.u32 %s188, 1
          %s8389 = scalar_lea.sflag [#allocation4], %s8388
          %s8390 = sand.u32 %s188, 1
          %s8391 = smul.addr %s8390, 32
          %s8392 = scalar_lea.vmem [#allocation14], %s8391
          %8394 = dma.done %s8389, 512
        $region88: #{tpu_custom_call.1} parent=83 // pred_fallthru
          _
      $region84: #{tpu_custom_call.1} parent=5 // pred_fallthru
        _
    $region6: #{tpu_custom_call.1} parent=1 // loop_footer
      %s26 = sadd.s32 1, %s22
    $region7: #{tpu_custom_call.1} parent=1 // loop_footer_branch
      %21 = sbr.rel target = $region3
    $region8: #{tpu_custom_call.1} parent=1 // loop_exit
      _
    %8395 = vsyncpa [#allocation3], 1
    %s8396 = scalar_lea.sflag [#allocation3], 1
    %8397 = vsyncpa %s8396, 1
    %8398 = vsyncpa [#allocation6], 1
    %8399 = vsyncpa [#allocation9], 1
    %8400 = vsyncpa [#allocation12], 1
    %8401 = vsyncpa [#allocation4], 1
    %s8402 = scalar_lea.sflag [#allocation4], 1
    %8403 = vsyncpa %s8402, 1

</llo_original>
